<compile_context>
chip_gen: v6e
topology: v6e:2x2x1
jax: 0.10.0
libtpu: 0.0.40
codegen_flags: <defaults>
</compile_context>

<pallas_src>
import jax
import jax.numpy as jnp
import numpy as np
from jax.experimental import pallas as pl
from jax.experimental.pallas import tpu as pltpu


# ---------------------------------------------------------------------------
# Row-tiling helper (batch-blocked conv grids)
# ---------------------------------------------------------------------------
def _round_up(x, m):
    return ((x + m - 1) // m) * m


def _row_blocks(rows, max_rows, align=16):
    """Split `rows` into n grid steps of rt rows, rt % align == 0, rt <= max_rows."""
    n = pl.cdiv(rows, max_rows)
    rt = _round_up(pl.cdiv(rows, n), align)
    return n, rt, n * rt


# ---------------------------------------------------------------------------
# Kernels
# ---------------------------------------------------------------------------
def _conv1_kernel(x_ref, w_ref, b_ref, o_ref):
    # x: (rt, 9) f32   w: (9, 32) f32   b: (1, 32) f32   o: (rt, 32) bf16
    r = jnp.dot(x_ref[...], w_ref[...], preferred_element_type=jnp.float32)
    o_ref[...] = jnp.maximum(r + b_ref[...], 0.0).astype(o_ref.dtype)


def conv1_relu(cols, w, b, *, max_rows=2048):
    # cols: (N*900, 9) f32 -> (N*900, 32) bf16; rows tiled, "parallel" for megacore.
    rows, K = cols.shape
    C = w.shape[1]
    n, rt, rows_pad = _row_blocks(rows, max_rows)
    if rows_pad != rows:
        cols = jnp.pad(cols, ((0, rows_pad - rows), (0, 0)))
    out = pl.pallas_call(
        _conv1_kernel,
        out_shape=jax.ShapeDtypeStruct((rows_pad, C), jnp.bfloat16),
        grid_spec=pltpu.PrefetchScalarGridSpec(
            num_scalar_prefetch=0,
            grid=(n,),
            in_specs=[
                pl.BlockSpec((rt, K), lambda i: (i, 0)),
                pl.BlockSpec((K, C), lambda i: (0, 0)),
                pl.BlockSpec((1, C), lambda i: (0, 0)),
            ],
            out_specs=pl.BlockSpec((rt, C), lambda i: (i, 0)),
        ),
        compiler_params=pltpu.CompilerParams(
            dimension_semantics=("parallel",)),
    )(cols, w, b)
    return out[:rows]


def _conv2_pool_kernel(x_ref, w_ref, b_ref, o_ref):
    # x: (4, rt, 288) bf16 (pool-tap-major im2col)   w: (288, 64) bf16
    # b: (1, 64) f32   o: (rt, 64) bf16
    t, rt, k = x_ref.shape
    # Single big MXU push instead of 4 short per-tap matmuls; rt % 16 == 0 so the
    # merge/split reshapes below are layout-preserving in VMEM.
    x = x_ref[...].reshape(t * rt, k)
    m4 = jnp.dot(x, w_ref[...], preferred_element_type=jnp.float32)
    m = jnp.max(m4.reshape(t, rt, -1), axis=0)   # 2x2 maxpool = max over 4 taps
    # max / (+bias) / relu commute (monotone), so pooling before bias+relu is exact.
    o_ref[...] = jnp.maximum(m + b_ref[...], 0.0).astype(o_ref.dtype)


def conv2_relu_pool(cols, w, b, *, max_rows=1568):
    # cols: (4, N*196, 288) bf16 -> pooled (N*196, 64) bf16; rows tiled, "parallel".
    T, rows, K = cols.shape
    C = w.shape[1]
    n, rt, rows_pad = _row_blocks(rows, max_rows)
    if rows_pad != rows:
        cols = jnp.pad(cols, ((0, 0), (0, rows_pad - rows), (0, 0)))
    out = pl.pallas_call(
        _conv2_pool_kernel,
        out_shape=jax.ShapeDtypeStruct((rows_pad, C), jnp.bfloat16),
        grid_spec=pltpu.PrefetchScalarGridSpec(
            num_scalar_prefetch=0,
            grid=(n,),
            in_specs=[
                pl.BlockSpec((T, rt, K), lambda i: (0, i, 0)),
                pl.BlockSpec((K, C), lambda i: (0, 0)),
                pl.BlockSpec((1, C), lambda i: (0, 0)),
            ],
            out_specs=pl.BlockSpec((rt, C), lambda i: (i, 0)),
        ),
        compiler_params=pltpu.CompilerParams(
            dimension_semantics=("parallel",)),
    )(cols, w, b)
    return out[:rows]


def _fc_head_kernel(x_ref, w1_ref, b1_ref, w2_ref, b2_ref, o_ref, acc_ref):
    # K-tiled bf16 fc1 with f32 accumulator; fc2 + log_softmax fused in last step.
    @pl.when(pl.program_id(0) == 0)
    def _():
        acc_ref[...] = jnp.zeros_like(acc_ref)

    acc_ref[...] += jnp.dot(x_ref[...], w1_ref[...],
                            preferred_element_type=jnp.float32)

    @pl.when(pl.program_id(0) == pl.num_programs(0) - 1)
    def _():
        h = jnp.maximum(acc_ref[...] + b1_ref[...], 0.0)
        logits = jnp.dot(h, w2_ref[...],
                         preferred_element_type=jnp.float32) + b2_ref[...]
        m = jnp.max(logits, axis=-1, keepdims=True)
        s = logits - m
        lse = jnp.log(jnp.sum(jnp.exp(s), axis=-1, keepdims=True))
        o_ref[...] = (s - lse).astype(o_ref.dtype)


def fc_head(flat, w1, b1, w2, b2, *, k_tile=1792):
    # flat: (N, 12544) bf16, w1: (12544, 128) bf16, w2: (128, 2) f32 -> (N, 2) f32.
    M, K = flat.shape
    _, H = w1.shape
    _, O = w2.shape
    assert K % k_tile == 0 and k_tile % 128 == 0
    return pl.pallas_call(
        _fc_head_kernel,
        out_shape=jax.ShapeDtypeStruct((M, O), jnp.float32),
        grid_spec=pltpu.PrefetchScalarGridSpec(
            num_scalar_prefetch=0,
            grid=(K // k_tile,),
            in_specs=[
                pl.BlockSpec((M, k_tile), lambda k: (0, k)),
                pl.BlockSpec((k_tile, H), lambda k: (k, 0)),
                pl.BlockSpec((1, H), lambda k: (0, 0)),
                pl.BlockSpec((H, O), lambda k: (0, 0)),
                pl.BlockSpec((1, O), lambda k: (0, 0)),
            ],
            out_specs=pl.BlockSpec((M, O), lambda k: (0, 0)),
            scratch_shapes=[pltpu.VMEM((M, H), jnp.float32)],
        ),
        compiler_params=pltpu.CompilerParams(
            dimension_semantics=("arbitrary",)),
    )(flat, w1, b1, w2, b2)


# ---------------------------------------------------------------------------
# Glue (plain JAX): im2col on tiny data, one-time parameter prep
# ---------------------------------------------------------------------------
def conv1_cols(x_nhwc):
    # x: (N, 32, 32, 1) f32 -> (N*900, 9); rows ordered (n, y, x), cols (dy, dx, cin).
    N, Hh, Ww, _ = x_nhwc.shape
    Ho, Wo = Hh - 2, Ww - 2
    taps = [x_nhwc[:, dy:dy + Ho, dx:dx + Wo, :]
            for dy in range(3) for dx in range(3)]
    return jnp.stack(taps, axis=3).reshape(N * Ho * Wo, 9)


def conv2_pool_cols(y1):
    # y1: (N, 30, 30, 32) bf16 -> (4, N*196, 288) bf16.
    # Leading axis = 2x2 pool tap (py, px); rows ordered (n, y, x) over the pooled
    # 14x14 grid; columns ordered (dy, dx, cin) to match the conv2 weight reshape.
    N = y1.shape[0]
    slabs = []
    for py in range(2):
        for px in range(2):
            taps = [y1[:, py + dy:py + dy + 28:2, px + dx:px + dx + 28:2, :]
                    for dy in range(3) for dx in range(3)]
            slabs.append(jnp.stack(taps, axis=3).reshape(N * 196, 288))
    return jnp.stack(slabs, axis=0)


def prepare_params(params):
    """One-time conversion of PyTorch-layout params into kernel-ready arrays."""
    w1 = jnp.transpose(params["conv1_w"], (2, 3, 1, 0)).reshape(9, 32)
    w2 = jnp.transpose(params["conv2_w"], (2, 3, 1, 0)).reshape(288, 64)
    # Fold the NCHW-flatten permutation into fc1's weights (free at prep time),
    # so the NHWC pooled output feeds fc1 with a plain reshape.
    fc1w = params["fc1_w"].reshape(128, 64, 14, 14)
    fc1w = jnp.transpose(fc1w, (0, 2, 3, 1)).reshape(128, 12544).T  # (12544, 128)
    return {
        "w1": w1, "b1": params["conv1_b"].reshape(1, 32),
        "w2": w2.astype(jnp.bfloat16), "b2": params["conv2_b"].reshape(1, 64),
        "fc1_w": fc1w.astype(jnp.bfloat16),          # halves the largest HBM read
        "fc1_b": params["fc1_b"].reshape(1, 128),
        "fc2_w": params["fc2_w"].T, "fc2_b": params["fc2_b"].reshape(1, 2),
    }


@jax.jit
def net_forward(prepped, x_nchw):
    N, _, H, W = x_nchw.shape
    assert (H, W) == (32, 32), "fc1 in_features=12544 implies 32x32x1 input"
    x = jnp.transpose(x_nchw, (0, 2, 3, 1)).astype(jnp.float32)      # NHWC

    # conv1 (1->32, 3x3, valid) + relu; batch-blocked rows, bf16 activations out.
    c1 = conv1_cols(x)                                               # (N*900, 9)
    y1 = conv1_relu(c1, prepped["w1"], prepped["b1"])                # (N*900, 32) bf16
    y1 = y1.reshape(N, 30, 30, 32)

    # conv2 (32->64, 3x3, valid) + relu + 2x2 maxpool (fused in-kernel); bf16 cols.
    c2 = conv2_pool_cols(y1)                                         # (4, N*196, 288) bf16
    pooled = conv2_relu_pool(c2, prepped["w2"], prepped["b2"])       # (N*196, 64) bf16

    # dropout1/dropout2: identity in eval mode.
    flat = pooled.reshape(N, 14 * 14 * 64)                           # NHWC order (folded into fc1_w)

    # fc1 + relu + fc2 + log_softmax, fused, K-tiled.
    return fc_head(flat, prepped["fc1_w"], prepped["fc1_b"],
                   prepped["fc2_w"], prepped["fc2_b"], k_tile=1792)


# ---------------------------------------------------------------------------
# Params + pure-JAX f32 reference (matches the PyTorch forward in eval mode)
# ---------------------------------------------------------------------------
def init_params():
    key = jax.random.PRNGKey(0)
    ks = jax.random.split(key, 8)
    return {
        "conv1_w": 0.20 * jax.random.normal(ks[0], (32, 1, 3, 3), jnp.float32),
        "conv1_b": 0.10 * jax.random.normal(ks[1], (32,), jnp.float32),
        "conv2_w": 0.05 * jax.random.normal(ks[2], (64, 32, 3, 3), jnp.float32),
        "conv2_b": 0.10 * jax.random.normal(ks[3], (64,), jnp.float32),
        "fc1_w": 0.01 * jax.random.normal(ks[4], (128, 12544), jnp.float32),
        "fc1_b": 0.10 * jax.random.normal(ks[5], (128,), jnp.float32),
        "fc2_w": 0.05 * jax.random.normal(ks[6], (2, 128), jnp.float32),
        "fc2_b": 0.10 * jax.random.normal(ks[7], (2,), jnp.float32),
    }


def reference_forward(params, x_nchw):
    x = x_nchw.astype(jnp.float32)
    y = jax.lax.conv_general_dilated(
        x, params["conv1_w"], (1, 1), "VALID",
        dimension_numbers=("NCHW", "OIHW", "NCHW"))
    y = jax.nn.relu(y + params["conv1_b"][None, :, None, None])
    y = jax.lax.conv_general_dilated(
        y, params["conv2_w"], (1, 1), "VALID",
        dimension_numbers=("NCHW", "OIHW", "NCHW"))
    y = jax.nn.relu(y + params["conv2_b"][None, :, None, None])
    y = jax.lax.reduce_window(y, -jnp.inf, jax.lax.max,
                              (1, 1, 2, 2), (1, 1, 2, 2), "VALID")
    f = y.reshape(y.shape[0], -1)
    h = jax.nn.relu(f @ params["fc1_w"].T + params["fc1_b"])
    logits = h @ params["fc2_w"].T + params["fc2_b"]
    return jax.nn.log_softmax(logits, axis=1)


if __name__ == "__main__":
    params = init_params()
    prepped = prepare_params(params)
    # Input shape implied by fc1 in_features = 12544 = 64*14*14  =>  32x32x1 input.
    x = jax.random.normal(jax.random.PRNGKey(0), (2, 1, 32, 32), jnp.float32)

    out = jax.block_until_ready(net_forward(prepped, x))
    ref = jax.block_until_ready(reference_forward(params, x))

    assert out.shape == (2, 2), out.shape
    # bf16 activation/weight streams (f32 accumulation) sit ~1e-3 from the f32
    # reference; 1e-2 keeps the check meaningful while tolerating that rounding.
    np.testing.assert_allclose(np.asarray(out), np.asarray(ref),
                               rtol=1e-2, atol=1e-2)
    print("KERNEL_OK")
</pallas_src>

<mosaic_0001>
module attributes {stable_mosaic.version = 11 : i64} {
  func.func @_conv1_kernel(%arg0: i32, %arg1: memref<1808x9xf32, #tpu.memory_space<vmem>>, %arg2: memref<9x32xf32, #tpu.memory_space<vmem>>, %arg3: memref<1x32xf32, #tpu.memory_space<vmem>>, %arg4: memref<1808x32xbf16, #tpu.memory_space<vmem>>) attributes {dimension_semantics = [#tpu.dimension_semantics<parallel>], iteration_bounds = array<i64: 1>, scalar_prefetch = 0 : i64, scratch_operands = 0 : i64, tpu.core_type = #tpu.core_type<tc>, window_params = [{transform_indices = @transform_0, window_bounds = array<i64: 1808, 9>}, {pipeline_mode = #tpu.pipeline_mode<synchronous>, transform_indices = @transform_1, window_bounds = array<i64: 9, 32>}, {pipeline_mode = #tpu.pipeline_mode<synchronous>, transform_indices = @transform_2, window_bounds = array<i64: 1, 32>}, {transform_indices = @transform_3, window_bounds = array<i64: 1808, 32>}]} {
    %c0 = arith.constant 0 : index
    %c0_0 = arith.constant 0 : index
    %0 = vector.load %arg1[%c0, %c0_0] : memref<1808x9xf32, #tpu.memory_space<vmem>>, vector<1808x9xf32>
    %c0_1 = arith.constant 0 : index
    %c0_2 = arith.constant 0 : index
    %1 = vector.load %arg2[%c0_1, %c0_2] : memref<9x32xf32, #tpu.memory_space<vmem>>, vector<9x32xf32>
    %cst = arith.constant dense<0.000000e+00> : vector<1808x32xf32>
    %2 = tpu.matmul %0, %1, %cst {dimension_numbers = #tpu.dot_dimension_numbers<[1], [0], [0], [1], [0, 0, 1, 1], [], []>} : vector<1808x9xf32>, vector<9x32xf32>, vector<1808x32xf32> -> vector<1808x32xf32>
    %c0_3 = arith.constant 0 : index
    %c0_4 = arith.constant 0 : index
    %3 = vector.load %arg3[%c0_3, %c0_4] : memref<1x32xf32, #tpu.memory_space<vmem>>, vector<1x32xf32>
    %4 = vector.broadcast %3 : vector<1x32xf32> to vector<1808x32xf32>
    %5 = arith.addf %2, %4 : vector<1808x32xf32>
    %cst_5 = arith.constant 0.000000e+00 : f32
    %6 = vector.broadcast %cst_5 : f32 to vector<1808x32xf32>
    %7 = arith.maximumf %5, %6 : vector<1808x32xf32>
    %8 = arith.truncf %7 : vector<1808x32xf32> to vector<1808x32xbf16>
    %c0_6 = arith.constant 0 : index
    %c0_7 = arith.constant 0 : index
    %9 = vector.load %arg4[%c0_6, %c0_7] : memref<1808x32xbf16, #tpu.memory_space<vmem>>, vector<1808x32xbf16>
    tpu.vector_store %arg4[%c0_6, %c0_7], %8 {strides = array<i32>} : memref<1808x32xbf16, #tpu.memory_space<vmem>>, vector<1808x32xbf16>,
    return
  }
  func.func @transform_0(%arg0: i32) -> (i32, i32) {
    %c0_i32 = arith.constant 0 : i32
    %c0_i32_0 = arith.constant 0 : i32
    return %arg0, %c0_i32 : i32, i32
  }
  func.func @transform_1(%arg0: i32) -> (i32, i32) {
    %c0_i32 = arith.constant 0 : i32
    %c0_i32_0 = arith.constant 0 : i32
    %c0_i32_1 = arith.constant 0 : i32
    return %c0_i32, %c0_i32_0 : i32, i32
  }
  func.func @transform_2(%arg0: i32) -> (i32, i32) {
    %c0_i32 = arith.constant 0 : i32
    %c0_i32_0 = arith.constant 0 : i32
    %c0_i32_1 = arith.constant 0 : i32
    return %c0_i32, %c0_i32_0 : i32, i32
  }
  func.func @transform_3(%arg0: i32) -> (i32, i32) {
    %c0_i32 = arith.constant 0 : i32
    %c0_i32_0 = arith.constant 0 : i32
    return %arg0, %c0_i32 : i32, i32
  }
}

module attributes {stable_mosaic.version = 11 : i64} {
  func.func @_conv2_pool_kernel(%arg0: i32, %arg1: memref<4x400x288xbf16, #tpu.memory_space<vmem>>, %arg2: memref<288x64xbf16, #tpu.memory_space<vmem>>, %arg3: memref<1x64xf32, #tpu.memory_space<vmem>>, %arg4: memref<400x64xbf16, #tpu.memory_space<vmem>>) attributes {dimension_semantics = [#tpu.dimension_semantics<parallel>], iteration_bounds = array<i64: 1>, scalar_prefetch = 0 : i64, scratch_operands = 0 : i64, tpu.core_type = #tpu.core_type<tc>, window_params = [{transform_indices = @transform_0, window_bounds = array<i64: 4, 400, 288>}, {pipeline_mode = #tpu.pipeline_mode<synchronous>, transform_indices = @transform_1, window_bounds = array<i64: 288, 64>}, {pipeline_mode = #tpu.pipeline_mode<synchronous>, transform_indices = @transform_2, window_bounds = array<i64: 1, 64>}, {transform_indices = @transform_3, window_bounds = array<i64: 400, 64>}]} {
    %c0 = arith.constant 0 : index
    %c0_0 = arith.constant 0 : index
    %c0_1 = arith.constant 0 : index
    %0 = vector.load %arg1[%c0, %c0_0, %c0_1] : memref<4x400x288xbf16, #tpu.memory_space<vmem>>, vector<4x400x288xbf16>
    %1 = vector.shape_cast %0 : vector<4x400x288xbf16> to vector<1600x288xbf16>
    %c0_2 = arith.constant 0 : index
    %c0_3 = arith.constant 0 : index
    %2 = vector.load %arg2[%c0_2, %c0_3] : memref<288x64xbf16, #tpu.memory_space<vmem>>, vector<288x64xbf16>
    %cst = arith.constant dense<0.000000e+00> : vector<1600x64xf32>
    %3 = tpu.matmul %1, %2, %cst {dimension_numbers = #tpu.dot_dimension_numbers<[1], [0], [0], [1], [0, 0, 1, 1], [], []>} : vector<1600x288xbf16>, vector<288x64xbf16>, vector<1600x64xf32> -> vector<1600x64xf32>
    %4 = vector.shape_cast %3 : vector<1600x64xf32> to vector<4x400x64xf32>
    %cst_4 = arith.constant dense<0xFF800000> : vector<400x64xf32>
    %5 = vector.multi_reduction <maximumf>, %4, %cst_4 [0] : vector<4x400x64xf32> to vector<400x64xf32>
    %c0_5 = arith.constant 0 : index
    %c0_6 = arith.constant 0 : index
    %6 = vector.load %arg3[%c0_5, %c0_6] : memref<1x64xf32, #tpu.memory_space<vmem>>, vector<1x64xf32>
    %7 = vector.broadcast %6 : vector<1x64xf32> to vector<400x64xf32>
    %8 = arith.addf %5, %7 : vector<400x64xf32>
    %cst_7 = arith.constant 0.000000e+00 : f32
    %9 = vector.broadcast %cst_7 : f32 to vector<400x64xf32>
    %10 = arith.maximumf %8, %9 : vector<400x64xf32>
    %11 = arith.truncf %10 : vector<400x64xf32> to vector<400x64xbf16>
    %c0_8 = arith.constant 0 : index
    %c0_9 = arith.constant 0 : index
    %12 = vector.load %arg4[%c0_8, %c0_9] : memref<400x64xbf16, #tpu.memory_space<vmem>>, vector<400x64xbf16>
    tpu.vector_store %arg4[%c0_8, %c0_9], %11 {strides = array<i32>} : memref<400x64xbf16, #tpu.memory_space<vmem>>, vector<400x64xbf16>,
    return
  }
  func.func @transform_0(%arg0: i32) -> (i32, i32, i32) {
    %c0_i32 = arith.constant 0 : i32
    %c0_i32_0 = arith.constant 0 : i32
    %c0_i32_1 = arith.constant 0 : i32
    return %c0_i32, %arg0, %c0_i32_0 : i32, i32, i32
  }
  func.func @transform_1(%arg0: i32) -> (i32, i32) {
    %c0_i32 = arith.constant 0 : i32
    %c0_i32_0 = arith.constant 0 : i32
    %c0_i32_1 = arith.constant 0 : i32
    return %c0_i32, %c0_i32_0 : i32, i32
  }
  func.func @transform_2(%arg0: i32) -> (i32, i32) {
    %c0_i32 = arith.constant 0 : i32
    %c0_i32_0 = arith.constant 0 : i32
    %c0_i32_1 = arith.constant 0 : i32
    return %c0_i32, %c0_i32_0 : i32, i32
  }
  func.func @transform_3(%arg0: i32) -> (i32, i32) {
    %c0_i32 = arith.constant 0 : i32
    %c0_i32_0 = arith.constant 0 : i32
    return %arg0, %c0_i32 : i32, i32
  }
}

module attributes {stable_mosaic.version = 11 : i64} {
  func.func @_fc_head_kernel(%arg0: i32, %arg1: memref<2x1792xbf16, #tpu.memory_space<vmem>>, %arg2: memref<1792x128xbf16, #tpu.memory_space<vmem>>, %arg3: memref<1x128xf32, #tpu.memory_space<vmem>>, %arg4: memref<128x2xf32, #tpu.memory_space<vmem>>, %arg5: memref<1x2xf32, #tpu.memory_space<vmem>>, %arg6: memref<2x2xf32, #tpu.memory_space<vmem>>, %arg7: memref<2x128xf32, #tpu.memory_space<vmem>>) attributes {dimension_semantics = [#tpu.dimension_semantics<arbitrary>], iteration_bounds = array<i64: 7>, scalar_prefetch = 0 : i64, scratch_operands = 1 : i64, tpu.core_type = #tpu.core_type<tc>, window_params = [{transform_indices = @transform_0, window_bounds = array<i64: 2, 1792>}, {transform_indices = @transform_1, window_bounds = array<i64: 1792, 128>}, {pipeline_mode = #tpu.pipeline_mode<synchronous>, transform_indices = @transform_2, window_bounds = array<i64: 1, 128>}, {pipeline_mode = #tpu.pipeline_mode<synchronous>, transform_indices = @transform_3, window_bounds = array<i64: 128, 2>}, {pipeline_mode = #tpu.pipeline_mode<synchronous>, transform_indices = @transform_4, window_bounds = array<i64: 1, 2>}, {pipeline_mode = #tpu.pipeline_mode<synchronous>, transform_indices = @transform_5, window_bounds = array<i64: 2, 2>}]} {
    %c0_i32 = arith.constant 0 : i32
    %0 = arith.cmpi eq, %arg0, %c0_i32 : i32
    %1 = arith.extui %0 : i1 to i32
    %c0_i32_0 = arith.constant 0 : i32
    %2 = arith.cmpi ne, %1, %c0_i32_0 : i32
    scf.if %2 {
      %cst_9 = arith.constant 0.000000e+00 : f32
      %12 = vector.broadcast %cst_9 : f32 to vector<2x128xf32>
      %c0_10 = arith.constant 0 : index
      %c0_11 = arith.constant 0 : index
      %13 = vector.load %arg7[%c0_10, %c0_11] : memref<2x128xf32, #tpu.memory_space<vmem>>, vector<2x128xf32>
      tpu.vector_store %arg7[%c0_10, %c0_11], %12 {strides = array<i32>} : memref<2x128xf32, #tpu.memory_space<vmem>>, vector<2x128xf32>,
    } else {
    }
    %c0 = arith.constant 0 : index
    %c0_1 = arith.constant 0 : index
    %3 = vector.load %arg7[%c0, %c0_1] : memref<2x128xf32, #tpu.memory_space<vmem>>, vector<2x128xf32>
    %c0_2 = arith.constant 0 : index
    %c0_3 = arith.constant 0 : index
    %4 = vector.load %arg1[%c0_2, %c0_3] : memref<2x1792xbf16, #tpu.memory_space<vmem>>, vector<2x1792xbf16>
    %c0_4 = arith.constant 0 : index
    %c0_5 = arith.constant 0 : index
    %5 = vector.load %arg2[%c0_4, %c0_5] : memref<1792x128xbf16, #tpu.memory_space<vmem>>, vector<1792x128xbf16>
    %cst = arith.constant dense<0.000000e+00> : vector<2x128xf32>
    %6 = tpu.matmul %4, %5, %cst {dimension_numbers = #tpu.dot_dimension_numbers<[1], [0], [0], [1], [0, 0, 1, 1], [], []>} : vector<2x1792xbf16>, vector<1792x128xbf16>, vector<2x128xf32> -> vector<2x128xf32>
    %7 = arith.addf %3, %6 : vector<2x128xf32>
    %c0_6 = arith.constant 0 : index
    %c0_7 = arith.constant 0 : index
    %8 = vector.load %arg7[%c0_6, %c0_7] : memref<2x128xf32, #tpu.memory_space<vmem>>, vector<2x128xf32>
    tpu.vector_store %arg7[%c0_6, %c0_7], %7 {strides = array<i32>} : memref<2x128xf32, #tpu.memory_space<vmem>>, vector<2x128xf32>,
    %c6_i32 = arith.constant 6 : i32
    %9 = arith.cmpi eq, %arg0, %c6_i32 : i32
    %10 = arith.extui %9 : i1 to i32
    %c0_i32_8 = arith.constant 0 : i32
    %11 = arith.cmpi ne, %10, %c0_i32_8 : i32
    scf.if %11 {
      %c0_9 = arith.constant 0 : index
      %c0_10 = arith.constant 0 : index
      %12 = vector.load %arg7[%c0_9, %c0_10] : memref<2x128xf32, #tpu.memory_space<vmem>>, vector<2x128xf32>
      %c0_11 = arith.constant 0 : index
      %c0_12 = arith.constant 0 : index
      %13 = vector.load %arg3[%c0_11, %c0_12] : memref<1x128xf32, #tpu.memory_space<vmem>>, vector<1x128xf32>
      %14 = vector.broadcast %13 : vector<1x128xf32> to vector<2x128xf32>
      %15 = arith.addf %12, %14 : vector<2x128xf32>
      %cst_13 = arith.constant 0.000000e+00 : f32
      %16 = vector.broadcast %cst_13 : f32 to vector<2x128xf32>
      %17 = arith.maximumf %15, %16 : vector<2x128xf32>
      %c0_14 = arith.constant 0 : index
      %c0_15 = arith.constant 0 : index
      %18 = vector.load %arg4[%c0_14, %c0_15] : memref<128x2xf32, #tpu.memory_space<vmem>>, vector<128x2xf32>
      %cst_16 = arith.constant dense<0.000000e+00> : vector<2x2xf32>
      %19 = tpu.matmul %17, %18, %cst_16 {dimension_numbers = #tpu.dot_dimension_numbers<[1], [0], [0], [1], [0, 0, 1, 1], [], []>} : vector<2x128xf32>, vector<128x2xf32>, vector<2x2xf32> -> vector<2x2xf32>
      %c0_17 = arith.constant 0 : index
      %c0_18 = arith.constant 0 : index
      %20 = vector.load %arg5[%c0_17, %c0_18] : memref<1x2xf32, #tpu.memory_space<vmem>>, vector<1x2xf32>
      %21 = vector.broadcast %20 : vector<1x2xf32> to vector<2x2xf32>
      %22 = arith.addf %19, %21 : vector<2x2xf32>
      %cst_19 = arith.constant dense<0xFF800000> : vector<2xf32>
      %23 = vector.multi_reduction <maximumf>, %22, %cst_19 [1] : vector<2x2xf32> to vector<2xf32>
      %24 = vector.shape_cast %23 : vector<2xf32> to vector<2x1xf32>
      %25 = vector.broadcast %24 : vector<2x1xf32> to vector<2x2xf32>
      %26 = arith.subf %22, %25 : vector<2x2xf32>
      %27 = math.exp %26 : vector<2x2xf32>
      %cst_20 = arith.constant dense<0.000000e+00> : vector<2xf32>
      %28 = vector.multi_reduction <add>, %27, %cst_20 [1] : vector<2x2xf32> to vector<2xf32>
      %29 = vector.shape_cast %28 : vector<2xf32> to vector<2x1xf32>
      %30 = math.log %29 : vector<2x1xf32>
      %31 = vector.broadcast %30 : vector<2x1xf32> to vector<2x2xf32>
      %32 = arith.subf %26, %31 : vector<2x2xf32>
      %c0_21 = arith.constant 0 : index
      %c0_22 = arith.constant 0 : index
      %33 = vector.load %arg6[%c0_21, %c0_22] : memref<2x2xf32, #tpu.memory_space<vmem>>, vector<2x2xf32>
      tpu.vector_store %arg6[%c0_21, %c0_22], %32 {strides = array<i32>} : memref<2x2xf32, #tpu.memory_space<vmem>>, vector<2x2xf32>,
    } else {
    }
    return
  }
  func.func @transform_0(%arg0: i32) -> (i32, i32) {
    %c0_i32 = arith.constant 0 : i32
    %c0_i32_0 = arith.constant 0 : i32
    return %c0_i32, %arg0 : i32, i32
  }
  func.func @transform_1(%arg0: i32) -> (i32, i32) {
    %c0_i32 = arith.constant 0 : i32
    %c0_i32_0 = arith.constant 0 : i32
    return %arg0, %c0_i32 : i32, i32
  }
  func.func @transform_2(%arg0: i32) -> (i32, i32) {
    %c0_i32 = arith.constant 0 : i32
    %c0_i32_0 = arith.constant 0 : i32
    %c0_i32_1 = arith.constant 0 : i32
    return %c0_i32, %c0_i32_0 : i32, i32
  }
  func.func @transform_3(%arg0: i32) -> (i32, i32) {
    %c0_i32 = arith.constant 0 : i32
    %c0_i32_0 = arith.constant 0 : i32
    %c0_i32_1 = arith.constant 0 : i32
    return %c0_i32, %c0_i32_0 : i32, i32
  }
  func.func @transform_4(%arg0: i32) -> (i32, i32) {
    %c0_i32 = arith.constant 0 : i32
    %c0_i32_0 = arith.constant 0 : i32
    %c0_i32_1 = arith.constant 0 : i32
    return %c0_i32, %c0_i32_0 : i32, i32
  }
  func.func @transform_5(%arg0: i32) -> (i32, i32) {
    %c0_i32 = arith.constant 0 : i32
    %c0_i32_0 = arith.constant 0 : i32
    %c0_i32_1 = arith.constant 0 : i32
    return %c0_i32, %c0_i32_0 : i32, i32
  }
}

</mosaic_0001>

<llo_original>
// kernel: net_forward.3
$region0: #{net_forward.3}
  #allocation0 [shape = 'u32[]', space=smem, size = 0x4, offset = 0x4, fixed_abs, tag = 'smem constant byte address 0x4 - core index']
  #allocation1 [shape = 'u32[144,128]{1,0:T(1,128)}', space=vmem, size = 0x12000, scoped, tag = 'internal scratch']
  %s0 = inlined_call_operand.vmem [shape: f32[1808,9], index: 0, kind: input, shape index: {}]
  %s1 = inlined_call_operand.vmem [shape: f32[9,32], index: 1, kind: input, shape index: {}]
  %s2 = inlined_call_operand.vmem [shape: f32[1,32], index: 2, kind: input, shape index: {}]
  %s3 = inlined_call_operand.vmem [shape: bf16[1808,32], index: 3, kind: output, shape index: {}]
  %s4 = sld [smem:[#allocation0]]
  $region22: #{net_forward.3} parent=0
    _
  %s6 = ssub.s32 1, %s4
  %s7 = scalar_select 0, %s6, %s4
  // Predicated region
  $region2: #{net_forward.3} parent=0 // pred_check
    _
  $region3: #{net_forward.3} parent=0 // pred_check_branch
    %9 = sbr.rel (0) target = $region5
  $region4: #{net_forward.3} parent=0 // pred_region
    _
  $region5: #{net_forward.3} parent=0 // pred_fallthru
    _
  // Predicated region
  $region6: #{net_forward.3} parent=0 // pred_check
    _
  $region7: #{net_forward.3} parent=0 // pred_check_branch
    %11 = sbr.rel (0) target = $region9
  $region8: #{net_forward.3} parent=0 // pred_region
    _
  $region9: #{net_forward.3} parent=0 // pred_fallthru
    _
  // Predicated region
  $region10: #{net_forward.3} parent=0 // pred_check
    _
  $region11: #{net_forward.3} parent=0 // pred_check_branch
    %13 = sbr.rel (0) target = $region13
  $region12: #{net_forward.3} parent=0 // pred_region
    _
  $region13: #{net_forward.3} parent=0 // pred_fallthru
    _
  %v14 = vld [vmem:[%s0] sm:$0xff]
  %v15 = vld [vmem:[%s0 + $0x8] sm:$0xff]
  %v16 = vld [vmem:[%s0 + $0x10] sm:$0xff]
  %v17 = vld [vmem:[%s0 + $0x18] sm:$0xff]
  %v18 = vld [vmem:[%s0 + $0x20] sm:$0xff]
  %v19 = vld [vmem:[%s0 + $0x28] sm:$0xff]
  %v20 = vld [vmem:[%s0 + $0x30] sm:$0xff]
  %v21 = vld [vmem:[%s0 + $0x38] sm:$0xff]
  %v22 = vld [vmem:[%s0 + $0x40] sm:$0xff]
  %v23 = vld [vmem:[%s0 + $0x48] sm:$0xff]
  %v24 = vld [vmem:[%s0 + $0x50] sm:$0xff]
  %v25 = vld [vmem:[%s0 + $0x58] sm:$0xff]
  %v26 = vld [vmem:[%s0 + $0x60] sm:$0xff]
  %v27 = vld [vmem:[%s0 + $0x68] sm:$0xff]
  %v28 = vld [vmem:[%s0 + $0x70] sm:$0xff]
  %v29 = vld [vmem:[%s0 + $0x78] sm:$0xff]
  %v30 = vld [vmem:[%s0 + $0x80] sm:$0xff]
  %v31 = vld [vmem:[%s0 + $0x88] sm:$0xff]
  %v32 = vld [vmem:[%s0 + $0x90] sm:$0xff]
  %v33 = vld [vmem:[%s0 + $0x98] sm:$0xff]
  %v34 = vld [vmem:[%s0 + $0xa0] sm:$0xff]
  %v35 = vld [vmem:[%s0 + $0xa8] sm:$0xff]
  %v36 = vld [vmem:[%s0 + $0xb0] sm:$0xff]
  %v37 = vld [vmem:[%s0 + $0xb8] sm:$0xff]
  %v38 = vld [vmem:[%s0 + $0xc0] sm:$0xff]
  %v39 = vld [vmem:[%s0 + $0xc8] sm:$0xff]
  %v40 = vld [vmem:[%s0 + $0xd0] sm:$0xff]
  %v41 = vld [vmem:[%s0 + $0xd8] sm:$0xff]
  %v42 = vld [vmem:[%s0 + $0xe0] sm:$0xff]
  %v43 = vld [vmem:[%s0 + $0xe8] sm:$0xff]
  %v44 = vld [vmem:[%s0 + $0xf0] sm:$0xff]
  %v45 = vld [vmem:[%s0 + $0xf8] sm:$0xff]
  %v46 = vld [vmem:[%s0 + $0x100] sm:$0xff]
  %v47 = vld [vmem:[%s0 + $0x108] sm:$0xff]
  %v48 = vld [vmem:[%s0 + $0x110] sm:$0xff]
  %v49 = vld [vmem:[%s0 + $0x118] sm:$0xff]
  %v50 = vld [vmem:[%s0 + $0x120] sm:$0xff]
  %v51 = vld [vmem:[%s0 + $0x128] sm:$0xff]
  %v52 = vld [vmem:[%s0 + $0x130] sm:$0xff]
  %v53 = vld [vmem:[%s0 + $0x138] sm:$0xff]
  %v54 = vld [vmem:[%s0 + $0x140] sm:$0xff]
  %v55 = vld [vmem:[%s0 + $0x148] sm:$0xff]
  %v56 = vld [vmem:[%s0 + $0x150] sm:$0xff]
  %v57 = vld [vmem:[%s0 + $0x158] sm:$0xff]
  %v58 = vld [vmem:[%s0 + $0x160] sm:$0xff]
  %v59 = vld [vmem:[%s0 + $0x168] sm:$0xff]
  %v60 = vld [vmem:[%s0 + $0x170] sm:$0xff]
  %v61 = vld [vmem:[%s0 + $0x178] sm:$0xff]
  %v62 = vld [vmem:[%s0 + $0x180] sm:$0xff]
  %v63 = vld [vmem:[%s0 + $0x188] sm:$0xff]
  %v64 = vld [vmem:[%s0 + $0x190] sm:$0xff]
  %v65 = vld [vmem:[%s0 + $0x198] sm:$0xff]
  %v66 = vld [vmem:[%s0 + $0x1a0] sm:$0xff]
  %v67 = vld [vmem:[%s0 + $0x1a8] sm:$0xff]
  %v68 = vld [vmem:[%s0 + $0x1b0] sm:$0xff]
  %v69 = vld [vmem:[%s0 + $0x1b8] sm:$0xff]
  %v70 = vld [vmem:[%s0 + $0x1c0] sm:$0xff]
  %v71 = vld [vmem:[%s0 + $0x1c8] sm:$0xff]
  %v72 = vld [vmem:[%s0 + $0x1d0] sm:$0xff]
  %v73 = vld [vmem:[%s0 + $0x1d8] sm:$0xff]
  %v74 = vld [vmem:[%s0 + $0x1e0] sm:$0xff]
  %v75 = vld [vmem:[%s0 + $0x1e8] sm:$0xff]
  %v76 = vld [vmem:[%s0 + $0x1f0] sm:$0xff]
  %v77 = vld [vmem:[%s0 + $0x1f8] sm:$0xff]
  %v78 = vld [vmem:[%s0 + $0x200] sm:$0xff]
  %v79 = vld [vmem:[%s0 + $0x208] sm:$0xff]
  %v80 = vld [vmem:[%s0 + $0x210] sm:$0xff]
  %v81 = vld [vmem:[%s0 + $0x218] sm:$0xff]
  %v82 = vld [vmem:[%s0 + $0x220] sm:$0xff]
  %v83 = vld [vmem:[%s0 + $0x228] sm:$0xff]
  %v84 = vld [vmem:[%s0 + $0x230] sm:$0xff]
  %v85 = vld [vmem:[%s0 + $0x238] sm:$0xff]
  %v86 = vld [vmem:[%s0 + $0x240] sm:$0xff]
  %v87 = vld [vmem:[%s0 + $0x248] sm:$0xff]
  %v88 = vld [vmem:[%s0 + $0x250] sm:$0xff]
  %v89 = vld [vmem:[%s0 + $0x258] sm:$0xff]
  %v90 = vld [vmem:[%s0 + $0x260] sm:$0xff]
  %v91 = vld [vmem:[%s0 + $0x268] sm:$0xff]
  %v92 = vld [vmem:[%s0 + $0x270] sm:$0xff]
  %v93 = vld [vmem:[%s0 + $0x278] sm:$0xff]
  %v94 = vld [vmem:[%s0 + $0x280] sm:$0xff]
  %v95 = vld [vmem:[%s0 + $0x288] sm:$0xff]
  %v96 = vld [vmem:[%s0 + $0x290] sm:$0xff]
  %v97 = vld [vmem:[%s0 + $0x298] sm:$0xff]
  %v98 = vld [vmem:[%s0 + $0x2a0] sm:$0xff]
  %v99 = vld [vmem:[%s0 + $0x2a8] sm:$0xff]
  %v100 = vld [vmem:[%s0 + $0x2b0] sm:$0xff]
  %v101 = vld [vmem:[%s0 + $0x2b8] sm:$0xff]
  %v102 = vld [vmem:[%s0 + $0x2c0] sm:$0xff]
  %v103 = vld [vmem:[%s0 + $0x2c8] sm:$0xff]
  %v104 = vld [vmem:[%s0 + $0x2d0] sm:$0xff]
  %v105 = vld [vmem:[%s0 + $0x2d8] sm:$0xff]
  %v106 = vld [vmem:[%s0 + $0x2e0] sm:$0xff]
  %v107 = vld [vmem:[%s0 + $0x2e8] sm:$0xff]
  %v108 = vld [vmem:[%s0 + $0x2f0] sm:$0xff]
  %v109 = vld [vmem:[%s0 + $0x2f8] sm:$0xff]
  %v110 = vld [vmem:[%s0 + $0x300] sm:$0xff]
  %v111 = vld [vmem:[%s0 + $0x308] sm:$0xff]
  %v112 = vld [vmem:[%s0 + $0x310] sm:$0xff]
  %v113 = vld [vmem:[%s0 + $0x318] sm:$0xff]
  %v114 = vld [vmem:[%s0 + $0x320] sm:$0xff]
  %v115 = vld [vmem:[%s0 + $0x328] sm:$0xff]
  %v116 = vld [vmem:[%s0 + $0x330] sm:$0xff]
  %v117 = vld [vmem:[%s0 + $0x338] sm:$0xff]
  %v118 = vld [vmem:[%s0 + $0x340] sm:$0xff]
  %v119 = vld [vmem:[%s0 + $0x348] sm:$0xff]
  %v120 = vld [vmem:[%s0 + $0x350] sm:$0xff]
  %v121 = vld [vmem:[%s0 + $0x358] sm:$0xff]
  %v122 = vld [vmem:[%s0 + $0x360] sm:$0xff]
  %v123 = vld [vmem:[%s0 + $0x368] sm:$0xff]
  %v124 = vld [vmem:[%s0 + $0x370] sm:$0xff]
  %v125 = vld [vmem:[%s0 + $0x378] sm:$0xff]
  %v126 = vld [vmem:[%s0 + $0x380] sm:$0xff]
  %v127 = vld [vmem:[%s0 + $0x388] sm:$0xff]
  %v128 = vld [vmem:[%s0 + $0x390] sm:$0xff]
  %v129 = vld [vmem:[%s0 + $0x398] sm:$0xff]
  %v130 = vld [vmem:[%s0 + $0x3a0] sm:$0xff]
  %v131 = vld [vmem:[%s0 + $0x3a8] sm:$0xff]
  %v132 = vld [vmem:[%s0 + $0x3b0] sm:$0xff]
  %v133 = vld [vmem:[%s0 + $0x3b8] sm:$0xff]
  %v134 = vld [vmem:[%s0 + $0x3c0] sm:$0xff]
  %v135 = vld [vmem:[%s0 + $0x3c8] sm:$0xff]
  %v136 = vld [vmem:[%s0 + $0x3d0] sm:$0xff]
  %v137 = vld [vmem:[%s0 + $0x3d8] sm:$0xff]
  %v138 = vld [vmem:[%s0 + $0x3e0] sm:$0xff]
  %v139 = vld [vmem:[%s0 + $0x3e8] sm:$0xff]
  %v140 = vld [vmem:[%s0 + $0x3f0] sm:$0xff]
  %v141 = vld [vmem:[%s0 + $0x3f8] sm:$0xff]
  %v142 = vld [vmem:[%s0 + $0x400] sm:$0xff]
  %v143 = vld [vmem:[%s0 + $0x408] sm:$0xff]
  %v144 = vld [vmem:[%s0 + $0x410] sm:$0xff]
  %v145 = vld [vmem:[%s0 + $0x418] sm:$0xff]
  %v146 = vld [vmem:[%s0 + $0x420] sm:$0xff]
  %v147 = vld [vmem:[%s0 + $0x428] sm:$0xff]
  %v148 = vld [vmem:[%s0 + $0x430] sm:$0xff]
  %v149 = vld [vmem:[%s0 + $0x438] sm:$0xff]
  %v150 = vld [vmem:[%s0 + $0x440] sm:$0xff]
  %v151 = vld [vmem:[%s0 + $0x448] sm:$0xff]
  %v152 = vld [vmem:[%s0 + $0x450] sm:$0xff]
  %v153 = vld [vmem:[%s0 + $0x458] sm:$0xff]
  %v154 = vld [vmem:[%s0 + $0x460] sm:$0xff]
  %v155 = vld [vmem:[%s0 + $0x468] sm:$0xff]
  %v156 = vld [vmem:[%s0 + $0x470] sm:$0xff]
  %v157 = vld [vmem:[%s0 + $0x478] sm:$0xff]
  %v158 = vld [vmem:[%s0 + $0x480] sm:$0xff]
  %v159 = vld [vmem:[%s0 + $0x488] sm:$0xff]
  %v160 = vld [vmem:[%s0 + $0x490] sm:$0xff]
  %v161 = vld [vmem:[%s0 + $0x498] sm:$0xff]
  %v162 = vld [vmem:[%s0 + $0x4a0] sm:$0xff]
  %v163 = vld [vmem:[%s0 + $0x4a8] sm:$0xff]
  %v164 = vld [vmem:[%s0 + $0x4b0] sm:$0xff]
  %v165 = vld [vmem:[%s0 + $0x4b8] sm:$0xff]
  %v166 = vld [vmem:[%s0 + $0x4c0] sm:$0xff]
  %v167 = vld [vmem:[%s0 + $0x4c8] sm:$0xff]
  %v168 = vld [vmem:[%s0 + $0x4d0] sm:$0xff]
  %v169 = vld [vmem:[%s0 + $0x4d8] sm:$0xff]
  %v170 = vld [vmem:[%s0 + $0x4e0] sm:$0xff]
  %v171 = vld [vmem:[%s0 + $0x4e8] sm:$0xff]
  %v172 = vld [vmem:[%s0 + $0x4f0] sm:$0xff]
  %v173 = vld [vmem:[%s0 + $0x4f8] sm:$0xff]
  %v174 = vld [vmem:[%s0 + $0x500] sm:$0xff]
  %v175 = vld [vmem:[%s0 + $0x508] sm:$0xff]
  %v176 = vld [vmem:[%s0 + $0x510] sm:$0xff]
  %v177 = vld [vmem:[%s0 + $0x518] sm:$0xff]
  %v178 = vld [vmem:[%s0 + $0x520] sm:$0xff]
  %v179 = vld [vmem:[%s0 + $0x528] sm:$0xff]
  %v180 = vld [vmem:[%s0 + $0x530] sm:$0xff]
  %v181 = vld [vmem:[%s0 + $0x538] sm:$0xff]
  %v182 = vld [vmem:[%s0 + $0x540] sm:$0xff]
  %v183 = vld [vmem:[%s0 + $0x548] sm:$0xff]
  %v184 = vld [vmem:[%s0 + $0x550] sm:$0xff]
  %v185 = vld [vmem:[%s0 + $0x558] sm:$0xff]
  %v186 = vld [vmem:[%s0 + $0x560] sm:$0xff]
  %v187 = vld [vmem:[%s0 + $0x568] sm:$0xff]
  %v188 = vld [vmem:[%s0 + $0x570] sm:$0xff]
  %v189 = vld [vmem:[%s0 + $0x578] sm:$0xff]
  %v190 = vld [vmem:[%s0 + $0x580] sm:$0xff]
  %v191 = vld [vmem:[%s0 + $0x588] sm:$0xff]
  %v192 = vld [vmem:[%s0 + $0x590] sm:$0xff]
  %v193 = vld [vmem:[%s0 + $0x598] sm:$0xff]
  %v194 = vld [vmem:[%s0 + $0x5a0] sm:$0xff]
  %v195 = vld [vmem:[%s0 + $0x5a8] sm:$0xff]
  %v196 = vld [vmem:[%s0 + $0x5b0] sm:$0xff]
  %v197 = vld [vmem:[%s0 + $0x5b8] sm:$0xff]
  %v198 = vld [vmem:[%s0 + $0x5c0] sm:$0xff]
  %v199 = vld [vmem:[%s0 + $0x5c8] sm:$0xff]
  %v200 = vld [vmem:[%s0 + $0x5d0] sm:$0xff]
  %v201 = vld [vmem:[%s0 + $0x5d8] sm:$0xff]
  %v202 = vld [vmem:[%s0 + $0x5e0] sm:$0xff]
  %v203 = vld [vmem:[%s0 + $0x5e8] sm:$0xff]
  %v204 = vld [vmem:[%s0 + $0x5f0] sm:$0xff]
  %v205 = vld [vmem:[%s0 + $0x5f8] sm:$0xff]
  %v206 = vld [vmem:[%s0 + $0x600] sm:$0xff]
  %v207 = vld [vmem:[%s0 + $0x608] sm:$0xff]
  %v208 = vld [vmem:[%s0 + $0x610] sm:$0xff]
  %v209 = vld [vmem:[%s0 + $0x618] sm:$0xff]
  %v210 = vld [vmem:[%s0 + $0x620] sm:$0xff]
  %v211 = vld [vmem:[%s0 + $0x628] sm:$0xff]
  %v212 = vld [vmem:[%s0 + $0x630] sm:$0xff]
  %v213 = vld [vmem:[%s0 + $0x638] sm:$0xff]
  %v214 = vld [vmem:[%s0 + $0x640] sm:$0xff]
  %v215 = vld [vmem:[%s0 + $0x648] sm:$0xff]
  %v216 = vld [vmem:[%s0 + $0x650] sm:$0xff]
  %v217 = vld [vmem:[%s0 + $0x658] sm:$0xff]
  %v218 = vld [vmem:[%s0 + $0x660] sm:$0xff]
  %v219 = vld [vmem:[%s0 + $0x668] sm:$0xff]
  %v220 = vld [vmem:[%s0 + $0x670] sm:$0xff]
  %v221 = vld [vmem:[%s0 + $0x678] sm:$0xff]
  %v222 = vld [vmem:[%s0 + $0x680] sm:$0xff]
  %v223 = vld [vmem:[%s0 + $0x688] sm:$0xff]
  %v224 = vld [vmem:[%s0 + $0x690] sm:$0xff]
  %v225 = vld [vmem:[%s0 + $0x698] sm:$0xff]
  %v226 = vld [vmem:[%s0 + $0x6a0] sm:$0xff]
  %v227 = vld [vmem:[%s0 + $0x6a8] sm:$0xff]
  %v228 = vld [vmem:[%s0 + $0x6b0] sm:$0xff]
  %v229 = vld [vmem:[%s0 + $0x6b8] sm:$0xff]
  %v230 = vld [vmem:[%s0 + $0x6c0] sm:$0xff]
  %v231 = vld [vmem:[%s0 + $0x6c8] sm:$0xff]
  %v232 = vld [vmem:[%s0 + $0x6d0] sm:$0xff]
  %v233 = vld [vmem:[%s0 + $0x6d8] sm:$0xff]
  %v234 = vld [vmem:[%s0 + $0x6e0] sm:$0xff]
  %v235 = vld [vmem:[%s0 + $0x6e8] sm:$0xff]
  %v236 = vld [vmem:[%s0 + $0x6f0] sm:$0xff]
  %v237 = vld [vmem:[%s0 + $0x6f8] sm:$0xff]
  %v238 = vld [vmem:[%s0 + $0x700] sm:$0xff]
  %v239 = vld [vmem:[%s0 + $0x708] sm:$0xff]
  %v240 = vld [vmem:[%s1] sm:$0xff]
  %v241 = vld [vmem:[%s1 + $0x8] sm:$0x1]
  %v242 = vld [vmem:[%s2] sm:$0x1]
  %v244 = vlaneseq
  %v245 = vshrl.u32 %v244, 7
  %v246 = vsub.s32 0, %v245
  %v247 = vrot.slane %v242, %v246
  %vm249 = vcmask 72704
  %v251 = vsel %vm249, %v14, 0
  %v254 = vsel %vm249, %v15, 0
  %v257 = vsel %vm249, %v16, 0
  %v260 = vsel %vm249, %v17, 0
  %v263 = vsel %vm249, %v18, 0
  %v266 = vsel %vm249, %v19, 0
  %v269 = vsel %vm249, %v20, 0
  %v272 = vsel %vm249, %v21, 0
  %v275 = vsel %vm249, %v22, 0
  %v278 = vsel %vm249, %v23, 0
  %v281 = vsel %vm249, %v24, 0
  %v284 = vsel %vm249, %v25, 0
  %v287 = vsel %vm249, %v26, 0
  %v290 = vsel %vm249, %v27, 0
  %v293 = vsel %vm249, %v28, 0
  %v296 = vsel %vm249, %v29, 0
  %v299 = vsel %vm249, %v30, 0
  %v302 = vsel %vm249, %v31, 0
  %v305 = vsel %vm249, %v32, 0
  %v308 = vsel %vm249, %v33, 0
  %v311 = vsel %vm249, %v34, 0
  %v314 = vsel %vm249, %v35, 0
  %v317 = vsel %vm249, %v36, 0
  %v320 = vsel %vm249, %v37, 0
  %v323 = vsel %vm249, %v38, 0
  %v326 = vsel %vm249, %v39, 0
  %v329 = vsel %vm249, %v40, 0
  %v332 = vsel %vm249, %v41, 0
  %v335 = vsel %vm249, %v42, 0
  %v338 = vsel %vm249, %v43, 0
  %v341 = vsel %vm249, %v44, 0
  %v344 = vsel %vm249, %v45, 0
  %v347 = vsel %vm249, %v46, 0
  %v350 = vsel %vm249, %v47, 0
  %v353 = vsel %vm249, %v48, 0
  %v356 = vsel %vm249, %v49, 0
  %v359 = vsel %vm249, %v50, 0
  %v362 = vsel %vm249, %v51, 0
  %v365 = vsel %vm249, %v52, 0
  %v368 = vsel %vm249, %v53, 0
  %v371 = vsel %vm249, %v54, 0
  %v374 = vsel %vm249, %v55, 0
  %v377 = vsel %vm249, %v56, 0
  %v380 = vsel %vm249, %v57, 0
  %v383 = vsel %vm249, %v58, 0
  %v386 = vsel %vm249, %v59, 0
  %v389 = vsel %vm249, %v60, 0
  %v392 = vsel %vm249, %v61, 0
  %v395 = vsel %vm249, %v62, 0
  %v398 = vsel %vm249, %v63, 0
  %v401 = vsel %vm249, %v64, 0
  %v404 = vsel %vm249, %v65, 0
  %v407 = vsel %vm249, %v66, 0
  %v410 = vsel %vm249, %v67, 0
  %v413 = vsel %vm249, %v68, 0
  %v416 = vsel %vm249, %v69, 0
  %v419 = vsel %vm249, %v70, 0
  %v422 = vsel %vm249, %v71, 0
  %v425 = vsel %vm249, %v72, 0
  %v428 = vsel %vm249, %v73, 0
  %v431 = vsel %vm249, %v74, 0
  %v434 = vsel %vm249, %v75, 0
  %v437 = vsel %vm249, %v76, 0
  %v440 = vsel %vm249, %v77, 0
  %v443 = vsel %vm249, %v78, 0
  %v446 = vsel %vm249, %v79, 0
  %v449 = vsel %vm249, %v80, 0
  %v452 = vsel %vm249, %v81, 0
  %v455 = vsel %vm249, %v82, 0
  %v458 = vsel %vm249, %v83, 0
  %v461 = vsel %vm249, %v84, 0
  %v464 = vsel %vm249, %v85, 0
  %v467 = vsel %vm249, %v86, 0
  %v470 = vsel %vm249, %v87, 0
  %v473 = vsel %vm249, %v88, 0
  %v476 = vsel %vm249, %v89, 0
  %v479 = vsel %vm249, %v90, 0
  %v482 = vsel %vm249, %v91, 0
  %v485 = vsel %vm249, %v92, 0
  %v488 = vsel %vm249, %v93, 0
  %v491 = vsel %vm249, %v94, 0
  %v494 = vsel %vm249, %v95, 0
  %v497 = vsel %vm249, %v96, 0
  %v500 = vsel %vm249, %v97, 0
  %v503 = vsel %vm249, %v98, 0
  %v506 = vsel %vm249, %v99, 0
  %v509 = vsel %vm249, %v100, 0
  %v512 = vsel %vm249, %v101, 0
  %v515 = vsel %vm249, %v102, 0
  %v518 = vsel %vm249, %v103, 0
  %v521 = vsel %vm249, %v104, 0
  %v524 = vsel %vm249, %v105, 0
  %v527 = vsel %vm249, %v106, 0
  %v530 = vsel %vm249, %v107, 0
  %v533 = vsel %vm249, %v108, 0
  %v536 = vsel %vm249, %v109, 0
  %v539 = vsel %vm249, %v110, 0
  %v542 = vsel %vm249, %v111, 0
  %v545 = vsel %vm249, %v112, 0
  %v548 = vsel %vm249, %v113, 0
  %v551 = vsel %vm249, %v114, 0
  %v554 = vsel %vm249, %v115, 0
  %v557 = vsel %vm249, %v116, 0
  %v560 = vsel %vm249, %v117, 0
  %v563 = vsel %vm249, %v118, 0
  %v566 = vsel %vm249, %v119, 0
  %v569 = vsel %vm249, %v120, 0
  %v572 = vsel %vm249, %v121, 0
  %v575 = vsel %vm249, %v122, 0
  %v578 = vsel %vm249, %v123, 0
  %v581 = vsel %vm249, %v124, 0
  %v584 = vsel %vm249, %v125, 0
  %v587 = vsel %vm249, %v126, 0
  %v590 = vsel %vm249, %v127, 0
  %v593 = vsel %vm249, %v128, 0
  %v596 = vsel %vm249, %v129, 0
  %v599 = vsel %vm249, %v130, 0
  %v602 = vsel %vm249, %v131, 0
  %v605 = vsel %vm249, %v132, 0
  %v608 = vsel %vm249, %v133, 0
  %v611 = vsel %vm249, %v134, 0
  %v614 = vsel %vm249, %v135, 0
  %v617 = vsel %vm249, %v136, 0
  %v620 = vsel %vm249, %v137, 0
  %v623 = vsel %vm249, %v138, 0
  %v626 = vsel %vm249, %v139, 0
  %v629 = vsel %vm249, %v140, 0
  %v632 = vsel %vm249, %v141, 0
  %v635 = vsel %vm249, %v142, 0
  %v638 = vsel %vm249, %v143, 0
  %v641 = vsel %vm249, %v144, 0
  %v644 = vsel %vm249, %v145, 0
  %v647 = vsel %vm249, %v146, 0
  %v650 = vsel %vm249, %v147, 0
  %v653 = vsel %vm249, %v148, 0
  %v656 = vsel %vm249, %v149, 0
  %v659 = vsel %vm249, %v150, 0
  %v662 = vsel %vm249, %v151, 0
  %v665 = vsel %vm249, %v152, 0
  %v668 = vsel %vm249, %v153, 0
  %v671 = vsel %vm249, %v154, 0
  %v674 = vsel %vm249, %v155, 0
  %v677 = vsel %vm249, %v156, 0
  %v680 = vsel %vm249, %v157, 0
  %v683 = vsel %vm249, %v158, 0
  %v686 = vsel %vm249, %v159, 0
  %v689 = vsel %vm249, %v160, 0
  %v692 = vsel %vm249, %v161, 0
  %v695 = vsel %vm249, %v162, 0
  %v698 = vsel %vm249, %v163, 0
  %v701 = vsel %vm249, %v164, 0
  %v704 = vsel %vm249, %v165, 0
  %v707 = vsel %vm249, %v166, 0
  %v710 = vsel %vm249, %v167, 0
  %v713 = vsel %vm249, %v168, 0
  %v716 = vsel %vm249, %v169, 0
  %v719 = vsel %vm249, %v170, 0
  %v722 = vsel %vm249, %v171, 0
  %v725 = vsel %vm249, %v172, 0
  %v728 = vsel %vm249, %v173, 0
  %v731 = vsel %vm249, %v174, 0
  %v734 = vsel %vm249, %v175, 0
  %v737 = vsel %vm249, %v176, 0
  %v740 = vsel %vm249, %v177, 0
  %v743 = vsel %vm249, %v178, 0
  %v746 = vsel %vm249, %v179, 0
  %v749 = vsel %vm249, %v180, 0
  %v752 = vsel %vm249, %v181, 0
  %v755 = vsel %vm249, %v182, 0
  %v758 = vsel %vm249, %v183, 0
  %v761 = vsel %vm249, %v184, 0
  %v764 = vsel %vm249, %v185, 0
  %v767 = vsel %vm249, %v186, 0
  %v770 = vsel %vm249, %v187, 0
  %v773 = vsel %vm249, %v188, 0
  %v776 = vsel %vm249, %v189, 0
  %v779 = vsel %vm249, %v190, 0
  %v782 = vsel %vm249, %v191, 0
  %v785 = vsel %vm249, %v192, 0
  %v788 = vsel %vm249, %v193, 0
  %v791 = vsel %vm249, %v194, 0
  %v794 = vsel %vm249, %v195, 0
  %v797 = vsel %vm249, %v196, 0
  %v800 = vsel %vm249, %v197, 0
  %v803 = vsel %vm249, %v198, 0
  %v806 = vsel %vm249, %v199, 0
  %v809 = vsel %vm249, %v200, 0
  %v812 = vsel %vm249, %v201, 0
  %v815 = vsel %vm249, %v202, 0
  %v818 = vsel %vm249, %v203, 0
  %v821 = vsel %vm249, %v204, 0
  %v824 = vsel %vm249, %v205, 0
  %v827 = vsel %vm249, %v206, 0
  %v830 = vsel %vm249, %v207, 0
  %v833 = vsel %vm249, %v208, 0
  %v836 = vsel %vm249, %v209, 0
  %v839 = vsel %vm249, %v210, 0
  %v842 = vsel %vm249, %v211, 0
  %v845 = vsel %vm249, %v212, 0
  %v848 = vsel %vm249, %v213, 0
  %v851 = vsel %vm249, %v214, 0
  %v854 = vsel %vm249, %v215, 0
  %v857 = vsel %vm249, %v216, 0
  %v860 = vsel %vm249, %v217, 0
  %v863 = vsel %vm249, %v218, 0
  %v866 = vsel %vm249, %v219, 0
  %v869 = vsel %vm249, %v220, 0
  %v872 = vsel %vm249, %v221, 0
  %v875 = vsel %vm249, %v222, 0
  %v878 = vsel %vm249, %v223, 0
  %v881 = vsel %vm249, %v224, 0
  %v884 = vsel %vm249, %v225, 0
  %v887 = vsel %vm249, %v226, 0
  %v890 = vsel %vm249, %v227, 0
  %v893 = vsel %vm249, %v228, 0
  %v896 = vsel %vm249, %v229, 0
  %v899 = vsel %vm249, %v230, 0
  %v902 = vsel %vm249, %v231, 0
  %v905 = vsel %vm249, %v232, 0
  %v908 = vsel %vm249, %v233, 0
  %v911 = vsel %vm249, %v234, 0
  %v914 = vsel %vm249, %v235, 0
  %v917 = vsel %vm249, %v236, 0
  %v920 = vsel %vm249, %v237, 0
  %v923 = vsel %vm249, %v238, 0
  %v926 = vsel %vm249, %v239, 0
  %vm928 = vcmask 1040384
  %v930 = vsel %vm928, %v241, 0
  %932 = vmatprep.subr.mxu0 0.0
  %933 = vmatpush1.msra.mxu0 0.0
  %934 = vmatprep.subr.mxu0 0.0
  %935 = vmatpush1.msra.mxu0 0.0
  %936 = vmatprep.subr.mxu0 0.0
  %937 = vmatpush1.msra.mxu0 0.0
  %938 = vmatprep.subr.mxu0 0.0
  %939 = vmatpush1.msra.mxu0 0.0
  %940 = vmatprep.subr.mxu0 0.0
  %941 = vmatpush1.msra.mxu0 0.0
  %942 = vmatprep.subr.mxu0 0.0
  %943 = vmatpush1.msra.mxu0 0.0
  %944 = vmatprep.subr.mxu0 0.0
  %945 = vmatpush1.msra.mxu0 0.0
  %946 = vmatprep.subr.mxu0 0.0
  %947 = vmatpush1.msra.mxu0 0.0
  %948 = vmatprep.subr.mxu0 0.0
  %949 = vmatpush1.msra.mxu0 0.0
  %950 = vmatprep.subr.mxu0 0.0
  %951 = vmatpush1.msra.mxu0 0.0
  %952 = vmatprep.subr.mxu0 0.0
  %953 = vmatpush1.msra.mxu0 0.0
  %954 = vmatprep.subr.mxu0 0.0
  %955 = vmatpush1.msra.mxu0 0.0
  %956 = vmatprep.subr.mxu0 0.0
  %957 = vmatpush1.msra.mxu0 0.0
  %958 = vmatprep.subr.mxu0 0.0
  %959 = vmatpush1.msra.mxu0 0.0
  %960 = vmatprep.subr.mxu0 0.0
  %961 = vmatpush1.msra.mxu0 %v930
  %962 = vmatprep.subr.mxu0 0.0
  %963 = vmatpush1.msra.mxu0 %v240
  %964 = vmatprep.subr.mxu0 0.0
  %965 = vmatpush2.msra.mxu0 0.0
  %966 = vmatprep.subr.mxu0 0.0
  %967 = vmatpush2.msra.mxu0 0.0
  %968 = vmatprep.subr.mxu0 0.0
  %969 = vmatpush2.msra.mxu0 0.0
  %970 = vmatprep.subr.mxu0 0.0
  %971 = vmatpush2.msra.mxu0 0.0
  %972 = vmatprep.subr.mxu0 0.0
  %973 = vmatpush2.msra.mxu0 0.0
  %974 = vmatprep.subr.mxu0 0.0
  %975 = vmatpush2.msra.mxu0 0.0
  %976 = vmatprep.subr.mxu0 0.0
  %977 = vmatpush2.msra.mxu0 0.0
  %978 = vmatprep.subr.mxu0 0.0
  %979 = vmatpush2.msra.mxu0 0.0
  %980 = vmatprep.subr.mxu0 0.0
  %981 = vmatpush2.msra.mxu0 0.0
  %982 = vmatprep.subr.mxu0 0.0
  %983 = vmatpush2.msra.mxu0 0.0
  %984 = vmatprep.subr.mxu0 0.0
  %985 = vmatpush2.msra.mxu0 0.0
  %986 = vmatprep.subr.mxu0 0.0
  %987 = vmatpush2.msra.mxu0 0.0
  %988 = vmatprep.subr.mxu0 0.0
  %989 = vmatpush2.msra.mxu0 0.0
  %990 = vmatprep.subr.mxu0 0.0
  %991 = vmatpush2.msra.mxu0 0.0
  %992 = vmatprep.subr.mxu0 0.0
  %993 = vmatpush2.msra.mxu0 0.0
  %994 = vmatprep.subr.mxu0 0.0
  %995 = vmatpush2.msra.mxu0 0.0
  %996 = vmatprep.mubr.f32.mxu0 0.0
  %997 = vmatmul.mubr.f32.gmra.mxu0 %v251
  %v998 = vpop.f32.mrf.mxu0
  %v999 = vadd.f32 %v247, %v998
  %v1000 = vpop.f32.mrf.mxu0
  %1001 = vmatprep.mubr.f32.mxu0 0.0
  %1002 = vmatmul.mubr.f32.gmra.mxu0 %v254
  %v1003 = vpop.f32.mrf.mxu0
  %v1004 = vadd.f32 %v247, %v1003
  %v1005 = vpop.f32.mrf.mxu0
  %1006 = vmatprep.mubr.f32.mxu0 0.0
  %1007 = vmatmul.mubr.f32.gmra.mxu0 %v257
  %v1008 = vpop.f32.mrf.mxu0
  %v1009 = vadd.f32 %v247, %v1008
  %v1010 = vpop.f32.mrf.mxu0
  %1011 = vmatprep.mubr.f32.mxu0 0.0
  %1012 = vmatmul.mubr.f32.gmra.mxu0 %v260
  %v1013 = vpop.f32.mrf.mxu0
  %v1014 = vadd.f32 %v247, %v1013
  %v1015 = vpop.f32.mrf.mxu0
  %1016 = vmatprep.mubr.f32.mxu0 0.0
  %1017 = vmatmul.mubr.f32.gmra.mxu0 %v263
  %v1018 = vpop.f32.mrf.mxu0
  %v1019 = vadd.f32 %v247, %v1018
  %v1020 = vpop.f32.mrf.mxu0
  %1021 = vmatprep.mubr.f32.mxu0 0.0
  %1022 = vmatmul.mubr.f32.gmra.mxu0 %v266
  %v1023 = vpop.f32.mrf.mxu0
  %v1024 = vadd.f32 %v247, %v1023
  %v1025 = vpop.f32.mrf.mxu0
  %1026 = vmatprep.mubr.f32.mxu0 0.0
  %1027 = vmatmul.mubr.f32.gmra.mxu0 %v269
  %v1028 = vpop.f32.mrf.mxu0
  %v1029 = vadd.f32 %v247, %v1028
  %v1030 = vpop.f32.mrf.mxu0
  %1031 = vmatprep.mubr.f32.mxu0 0.0
  %1032 = vmatmul.mubr.f32.gmra.mxu0 %v272
  %v1033 = vpop.f32.mrf.mxu0
  %v1034 = vadd.f32 %v247, %v1033
  %v1035 = vpop.f32.mrf.mxu0
  %1036 = vmatprep.mubr.f32.mxu0 0.0
  %1037 = vmatmul.mubr.f32.gmra.mxu0 %v275
  %v1038 = vpop.f32.mrf.mxu0
  %v1039 = vadd.f32 %v247, %v1038
  %v1040 = vpop.f32.mrf.mxu0
  %1041 = vmatprep.mubr.f32.mxu0 0.0
  %1042 = vmatmul.mubr.f32.gmra.mxu0 %v278
  %v1043 = vpop.f32.mrf.mxu0
  %v1044 = vadd.f32 %v247, %v1043
  %v1045 = vpop.f32.mrf.mxu0
  %1046 = vmatprep.mubr.f32.mxu0 0.0
  %1047 = vmatmul.mubr.f32.gmra.mxu0 %v281
  %v1048 = vpop.f32.mrf.mxu0
  %v1049 = vadd.f32 %v247, %v1048
  %v1050 = vpop.f32.mrf.mxu0
  %1051 = vmatprep.mubr.f32.mxu0 0.0
  %1052 = vmatmul.mubr.f32.gmra.mxu0 %v284
  %v1053 = vpop.f32.mrf.mxu0
  %v1054 = vadd.f32 %v247, %v1053
  %v1055 = vpop.f32.mrf.mxu0
  %1056 = vmatprep.mubr.f32.mxu0 0.0
  %1057 = vmatmul.mubr.f32.gmra.mxu0 %v287
  %v1058 = vpop.f32.mrf.mxu0
  %v1059 = vadd.f32 %v247, %v1058
  %v1060 = vpop.f32.mrf.mxu0
  %1061 = vmatprep.mubr.f32.mxu0 0.0
  %1062 = vmatmul.mubr.f32.gmra.mxu0 %v290
  %v1063 = vpop.f32.mrf.mxu0
  %v1064 = vadd.f32 %v247, %v1063
  %v1065 = vpop.f32.mrf.mxu0
  %1066 = vmatprep.mubr.f32.mxu0 0.0
  %1067 = vmatmul.mubr.f32.gmra.mxu0 %v293
  %v1068 = vpop.f32.mrf.mxu0
  %v1069 = vadd.f32 %v247, %v1068
  %v1070 = vpop.f32.mrf.mxu0
  %1071 = vmatprep.mubr.f32.mxu0 0.0
  %1072 = vmatmul.mubr.f32.gmra.mxu0 %v296
  %v1073 = vpop.f32.mrf.mxu0
  %v1074 = vadd.f32 %v247, %v1073
  %v1075 = vpop.f32.mrf.mxu0
  %1076 = vmatprep.mubr.f32.mxu0 0.0
  %1077 = vmatmul.mubr.f32.gmra.mxu0 %v299
  %v1078 = vpop.f32.mrf.mxu0
  %v1079 = vadd.f32 %v247, %v1078
  %v1080 = vpop.f32.mrf.mxu0
  %1081 = vmatprep.mubr.f32.mxu0 0.0
  %1082 = vmatmul.mubr.f32.gmra.mxu0 %v302
  %v1083 = vpop.f32.mrf.mxu0
  %v1084 = vadd.f32 %v247, %v1083
  %v1085 = vpop.f32.mrf.mxu0
  %1086 = vmatprep.mubr.f32.mxu0 0.0
  %1087 = vmatmul.mubr.f32.gmra.mxu0 %v305
  %v1088 = vpop.f32.mrf.mxu0
  %v1089 = vadd.f32 %v247, %v1088
  %v1090 = vpop.f32.mrf.mxu0
  %1091 = vmatprep.mubr.f32.mxu0 0.0
  %1092 = vmatmul.mubr.f32.gmra.mxu0 %v308
  %v1093 = vpop.f32.mrf.mxu0
  %v1094 = vadd.f32 %v247, %v1093
  %v1095 = vpop.f32.mrf.mxu0
  %1096 = vmatprep.mubr.f32.mxu0 0.0
  %1097 = vmatmul.mubr.f32.gmra.mxu0 %v311
  %v1098 = vpop.f32.mrf.mxu0
  %v1099 = vadd.f32 %v247, %v1098
  %v1100 = vpop.f32.mrf.mxu0
  %1101 = vmatprep.mubr.f32.mxu0 0.0
  %1102 = vmatmul.mubr.f32.gmra.mxu0 %v314
  %v1103 = vpop.f32.mrf.mxu0
  %v1104 = vadd.f32 %v247, %v1103
  %v1105 = vpop.f32.mrf.mxu0
  %1106 = vmatprep.mubr.f32.mxu0 0.0
  %1107 = vmatmul.mubr.f32.gmra.mxu0 %v317
  %v1108 = vpop.f32.mrf.mxu0
  %v1109 = vadd.f32 %v247, %v1108
  %v1110 = vpop.f32.mrf.mxu0
  %1111 = vmatprep.mubr.f32.mxu0 0.0
  %1112 = vmatmul.mubr.f32.gmra.mxu0 %v320
  %v1113 = vpop.f32.mrf.mxu0
  %v1114 = vadd.f32 %v247, %v1113
  %v1115 = vpop.f32.mrf.mxu0
  %1116 = vmatprep.mubr.f32.mxu0 0.0
  %1117 = vmatmul.mubr.f32.gmra.mxu0 %v323
  %v1118 = vpop.f32.mrf.mxu0
  %v1119 = vadd.f32 %v247, %v1118
  %v1120 = vpop.f32.mrf.mxu0
  %1121 = vmatprep.mubr.f32.mxu0 0.0
  %1122 = vmatmul.mubr.f32.gmra.mxu0 %v326
  %v1123 = vpop.f32.mrf.mxu0
  %v1124 = vadd.f32 %v247, %v1123
  %v1125 = vpop.f32.mrf.mxu0
  %1126 = vmatprep.mubr.f32.mxu0 0.0
  %1127 = vmatmul.mubr.f32.gmra.mxu0 %v329
  %v1128 = vpop.f32.mrf.mxu0
  %v1129 = vadd.f32 %v247, %v1128
  %v1130 = vpop.f32.mrf.mxu0
  %1131 = vmatprep.mubr.f32.mxu0 0.0
  %1132 = vmatmul.mubr.f32.gmra.mxu0 %v332
  %v1133 = vpop.f32.mrf.mxu0
  %v1134 = vadd.f32 %v247, %v1133
  %v1135 = vpop.f32.mrf.mxu0
  %1136 = vmatprep.mubr.f32.mxu0 0.0
  %1137 = vmatmul.mubr.f32.gmra.mxu0 %v335
  %v1138 = vpop.f32.mrf.mxu0
  %v1139 = vadd.f32 %v247, %v1138
  %v1140 = vpop.f32.mrf.mxu0
  %1141 = vmatprep.mubr.f32.mxu0 0.0
  %1142 = vmatmul.mubr.f32.gmra.mxu0 %v338
  %v1143 = vpop.f32.mrf.mxu0
  %v1144 = vadd.f32 %v247, %v1143
  %v1145 = vpop.f32.mrf.mxu0
  %1146 = vmatprep.mubr.f32.mxu0 0.0
  %1147 = vmatmul.mubr.f32.gmra.mxu0 %v341
  %v1148 = vpop.f32.mrf.mxu0
  %v1149 = vadd.f32 %v247, %v1148
  %v1150 = vpop.f32.mrf.mxu0
  %1151 = vmatprep.mubr.f32.mxu0 0.0
  %1152 = vmatmul.mubr.f32.gmra.mxu0 %v344
  %v1153 = vpop.f32.mrf.mxu0
  %v1154 = vadd.f32 %v247, %v1153
  %v1155 = vpop.f32.mrf.mxu0
  %1156 = vmatprep.mubr.f32.mxu0 0.0
  %1157 = vmatmul.mubr.f32.gmra.mxu0 %v347
  %v1158 = vpop.f32.mrf.mxu0
  %v1159 = vadd.f32 %v247, %v1158
  %v1160 = vpop.f32.mrf.mxu0
  %1161 = vmatprep.mubr.f32.mxu0 0.0
  %1162 = vmatmul.mubr.f32.gmra.mxu0 %v350
  %v1163 = vpop.f32.mrf.mxu0
  %v1164 = vadd.f32 %v247, %v1163
  %v1165 = vpop.f32.mrf.mxu0
  %1166 = vmatprep.mubr.f32.mxu0 0.0
  %1167 = vmatmul.mubr.f32.gmra.mxu0 %v353
  %v1168 = vpop.f32.mrf.mxu0
  %v1169 = vadd.f32 %v247, %v1168
  %v1170 = vpop.f32.mrf.mxu0
  %1171 = vmatprep.mubr.f32.mxu0 0.0
  %1172 = vmatmul.mubr.f32.gmra.mxu0 %v356
  %v1173 = vpop.f32.mrf.mxu0
  %v1174 = vadd.f32 %v247, %v1173
  %v1175 = vpop.f32.mrf.mxu0
  %1176 = vmatprep.mubr.f32.mxu0 0.0
  %1177 = vmatmul.mubr.f32.gmra.mxu0 %v359
  %v1178 = vpop.f32.mrf.mxu0
  %v1179 = vadd.f32 %v247, %v1178
  %v1180 = vpop.f32.mrf.mxu0
  %1181 = vmatprep.mubr.f32.mxu0 0.0
  %1182 = vmatmul.mubr.f32.gmra.mxu0 %v362
  %v1183 = vpop.f32.mrf.mxu0
  %v1184 = vadd.f32 %v247, %v1183
  %v1185 = vpop.f32.mrf.mxu0
  %1186 = vmatprep.mubr.f32.mxu0 0.0
  %1187 = vmatmul.mubr.f32.gmra.mxu0 %v365
  %v1188 = vpop.f32.mrf.mxu0
  %v1189 = vadd.f32 %v247, %v1188
  %v1190 = vpop.f32.mrf.mxu0
  %1191 = vmatprep.mubr.f32.mxu0 0.0
  %1192 = vmatmul.mubr.f32.gmra.mxu0 %v368
  %v1193 = vpop.f32.mrf.mxu0
  %v1194 = vadd.f32 %v247, %v1193
  %v1195 = vpop.f32.mrf.mxu0
  %1196 = vmatprep.mubr.f32.mxu0 0.0
  %1197 = vmatmul.mubr.f32.gmra.mxu0 %v371
  %v1198 = vpop.f32.mrf.mxu0
  %v1199 = vadd.f32 %v247, %v1198
  %v1200 = vpop.f32.mrf.mxu0
  %1201 = vmatprep.mubr.f32.mxu0 0.0
  %1202 = vmatmul.mubr.f32.gmra.mxu0 %v374
  %v1203 = vpop.f32.mrf.mxu0
  %v1204 = vadd.f32 %v247, %v1203
  %v1205 = vpop.f32.mrf.mxu0
  %1206 = vmatprep.mubr.f32.mxu0 0.0
  %1207 = vmatmul.mubr.f32.gmra.mxu0 %v377
  %v1208 = vpop.f32.mrf.mxu0
  %v1209 = vadd.f32 %v247, %v1208
  %v1210 = vpop.f32.mrf.mxu0
  %1211 = vmatprep.mubr.f32.mxu0 0.0
  %1212 = vmatmul.mubr.f32.gmra.mxu0 %v380
  %v1213 = vpop.f32.mrf.mxu0
  %v1214 = vadd.f32 %v247, %v1213
  %v1215 = vpop.f32.mrf.mxu0
  %1216 = vmatprep.mubr.f32.mxu0 0.0
  %1217 = vmatmul.mubr.f32.gmra.mxu0 %v383
  %v1218 = vpop.f32.mrf.mxu0
  %v1219 = vadd.f32 %v247, %v1218
  %v1220 = vpop.f32.mrf.mxu0
  %1221 = vmatprep.mubr.f32.mxu0 0.0
  %1222 = vmatmul.mubr.f32.gmra.mxu0 %v386
  %v1223 = vpop.f32.mrf.mxu0
  %v1224 = vadd.f32 %v247, %v1223
  %v1225 = vpop.f32.mrf.mxu0
  %1226 = vmatprep.mubr.f32.mxu0 0.0
  %1227 = vmatmul.mubr.f32.gmra.mxu0 %v389
  %v1228 = vpop.f32.mrf.mxu0
  %v1229 = vadd.f32 %v247, %v1228
  %v1230 = vpop.f32.mrf.mxu0
  %1231 = vmatprep.mubr.f32.mxu0 0.0
  %1232 = vmatmul.mubr.f32.gmra.mxu0 %v392
  %v1233 = vpop.f32.mrf.mxu0
  %v1234 = vadd.f32 %v247, %v1233
  %v1235 = vpop.f32.mrf.mxu0
  %1236 = vmatprep.mubr.f32.mxu0 0.0
  %1237 = vmatmul.mubr.f32.gmra.mxu0 %v395
  %v1238 = vpop.f32.mrf.mxu0
  %v1239 = vadd.f32 %v247, %v1238
  %v1240 = vpop.f32.mrf.mxu0
  %1241 = vmatprep.mubr.f32.mxu0 0.0
  %1242 = vmatmul.mubr.f32.gmra.mxu0 %v398
  %v1243 = vpop.f32.mrf.mxu0
  %v1244 = vadd.f32 %v247, %v1243
  %v1245 = vpop.f32.mrf.mxu0
  %1246 = vmatprep.mubr.f32.mxu0 0.0
  %1247 = vmatmul.mubr.f32.gmra.mxu0 %v401
  %v1248 = vpop.f32.mrf.mxu0
  %v1249 = vadd.f32 %v247, %v1248
  %v1250 = vpop.f32.mrf.mxu0
  %1251 = vmatprep.mubr.f32.mxu0 0.0
  %1252 = vmatmul.mubr.f32.gmra.mxu0 %v404
  %v1253 = vpop.f32.mrf.mxu0
  %v1254 = vadd.f32 %v247, %v1253
  %v1255 = vpop.f32.mrf.mxu0
  %1256 = vmatprep.mubr.f32.mxu0 0.0
  %1257 = vmatmul.mubr.f32.gmra.mxu0 %v407
  %v1258 = vpop.f32.mrf.mxu0
  %v1259 = vadd.f32 %v247, %v1258
  %v1260 = vpop.f32.mrf.mxu0
  %1261 = vmatprep.mubr.f32.mxu0 0.0
  %1262 = vmatmul.mubr.f32.gmra.mxu0 %v410
  %v1263 = vpop.f32.mrf.mxu0
  %v1264 = vadd.f32 %v247, %v1263
  %v1265 = vpop.f32.mrf.mxu0
  %1266 = vmatprep.mubr.f32.mxu0 0.0
  %1267 = vmatmul.mubr.f32.gmra.mxu0 %v413
  %v1268 = vpop.f32.mrf.mxu0
  %v1269 = vadd.f32 %v247, %v1268
  %v1270 = vpop.f32.mrf.mxu0
  %1271 = vmatprep.mubr.f32.mxu0 0.0
  %1272 = vmatmul.mubr.f32.gmra.mxu0 %v416
  %v1273 = vpop.f32.mrf.mxu0
  %v1274 = vadd.f32 %v247, %v1273
  %v1275 = vpop.f32.mrf.mxu0
  %1276 = vmatprep.mubr.f32.mxu0 0.0
  %1277 = vmatmul.mubr.f32.gmra.mxu0 %v419
  %v1278 = vpop.f32.mrf.mxu0
  %v1279 = vadd.f32 %v247, %v1278
  %v1280 = vpop.f32.mrf.mxu0
  %1281 = vmatprep.mubr.f32.mxu0 0.0
  %1282 = vmatmul.mubr.f32.gmra.mxu0 %v422
  %v1283 = vpop.f32.mrf.mxu0
  %v1284 = vadd.f32 %v247, %v1283
  %v1285 = vpop.f32.mrf.mxu0
  %1286 = vmatprep.mubr.f32.mxu0 0.0
  %1287 = vmatmul.mubr.f32.gmra.mxu0 %v425
  %v1288 = vpop.f32.mrf.mxu0
  %v1289 = vadd.f32 %v247, %v1288
  %v1290 = vpop.f32.mrf.mxu0
  %1291 = vmatprep.mubr.f32.mxu0 0.0
  %1292 = vmatmul.mubr.f32.gmra.mxu0 %v428
  %v1293 = vpop.f32.mrf.mxu0
  %v1294 = vadd.f32 %v247, %v1293
  %v1295 = vpop.f32.mrf.mxu0
  %1296 = vmatprep.mubr.f32.mxu0 0.0
  %1297 = vmatmul.mubr.f32.gmra.mxu0 %v431
  %v1298 = vpop.f32.mrf.mxu0
  %v1299 = vadd.f32 %v247, %v1298
  %v1300 = vpop.f32.mrf.mxu0
  %1301 = vmatprep.mubr.f32.mxu0 0.0
  %1302 = vmatmul.mubr.f32.gmra.mxu0 %v434
  %v1303 = vpop.f32.mrf.mxu0
  %v1304 = vadd.f32 %v247, %v1303
  %v1305 = vpop.f32.mrf.mxu0
  %1306 = vmatprep.mubr.f32.mxu0 0.0
  %1307 = vmatmul.mubr.f32.gmra.mxu0 %v437
  %v1308 = vpop.f32.mrf.mxu0
  %v1309 = vadd.f32 %v247, %v1308
  %v1310 = vpop.f32.mrf.mxu0
  %1311 = vmatprep.mubr.f32.mxu0 0.0
  %1312 = vmatmul.mubr.f32.gmra.mxu0 %v440
  %v1313 = vpop.f32.mrf.mxu0
  %v1314 = vadd.f32 %v247, %v1313
  %v1315 = vpop.f32.mrf.mxu0
  %1316 = vmatprep.mubr.f32.mxu0 0.0
  %1317 = vmatmul.mubr.f32.gmra.mxu0 %v443
  %v1318 = vpop.f32.mrf.mxu0
  %v1319 = vadd.f32 %v247, %v1318
  %v1320 = vpop.f32.mrf.mxu0
  %1321 = vmatprep.mubr.f32.mxu0 0.0
  %1322 = vmatmul.mubr.f32.gmra.mxu0 %v446
  %v1323 = vpop.f32.mrf.mxu0
  %v1324 = vadd.f32 %v247, %v1323
  %v1325 = vpop.f32.mrf.mxu0
  %1326 = vmatprep.mubr.f32.mxu0 0.0
  %1327 = vmatmul.mubr.f32.gmra.mxu0 %v449
  %v1328 = vpop.f32.mrf.mxu0
  %v1329 = vadd.f32 %v247, %v1328
  %v1330 = vpop.f32.mrf.mxu0
  %1331 = vmatprep.mubr.f32.mxu0 0.0
  %1332 = vmatmul.mubr.f32.gmra.mxu0 %v452
  %v1333 = vpop.f32.mrf.mxu0
  %v1334 = vadd.f32 %v247, %v1333
  %v1335 = vpop.f32.mrf.mxu0
  %1336 = vmatprep.mubr.f32.mxu0 0.0
  %1337 = vmatmul.mubr.f32.gmra.mxu0 %v455
  %v1338 = vpop.f32.mrf.mxu0
  %v1339 = vadd.f32 %v247, %v1338
  %v1340 = vpop.f32.mrf.mxu0
  %1341 = vmatprep.mubr.f32.mxu0 0.0
  %1342 = vmatmul.mubr.f32.gmra.mxu0 %v458
  %v1343 = vpop.f32.mrf.mxu0
  %v1344 = vadd.f32 %v247, %v1343
  %v1345 = vpop.f32.mrf.mxu0
  %1346 = vmatprep.mubr.f32.mxu0 0.0
  %1347 = vmatmul.mubr.f32.gmra.mxu0 %v461
  %v1348 = vpop.f32.mrf.mxu0
  %v1349 = vadd.f32 %v247, %v1348
  %v1350 = vpop.f32.mrf.mxu0
  %1351 = vmatprep.mubr.f32.mxu0 0.0
  %1352 = vmatmul.mubr.f32.gmra.mxu0 %v464
  %v1353 = vpop.f32.mrf.mxu0
  %v1354 = vadd.f32 %v247, %v1353
  %v1355 = vpop.f32.mrf.mxu0
  %1356 = vmatprep.mubr.f32.mxu0 0.0
  %1357 = vmatmul.mubr.f32.gmra.mxu0 %v467
  %v1358 = vpop.f32.mrf.mxu0
  %v1359 = vadd.f32 %v247, %v1358
  %v1360 = vpop.f32.mrf.mxu0
  %1361 = vmatprep.mubr.f32.mxu0 0.0
  %1362 = vmatmul.mubr.f32.gmra.mxu0 %v470
  %v1363 = vpop.f32.mrf.mxu0
  %v1364 = vadd.f32 %v247, %v1363
  %v1365 = vpop.f32.mrf.mxu0
  %1366 = vmatprep.mubr.f32.mxu0 0.0
  %1367 = vmatmul.mubr.f32.gmra.mxu0 %v473
  %v1368 = vpop.f32.mrf.mxu0
  %v1369 = vadd.f32 %v247, %v1368
  %v1370 = vpop.f32.mrf.mxu0
  %1371 = vmatprep.mubr.f32.mxu0 0.0
  %1372 = vmatmul.mubr.f32.gmra.mxu0 %v476
  %v1373 = vpop.f32.mrf.mxu0
  %v1374 = vadd.f32 %v247, %v1373
  %v1375 = vpop.f32.mrf.mxu0
  %1376 = vmatprep.mubr.f32.mxu0 0.0
  %1377 = vmatmul.mubr.f32.gmra.mxu0 %v479
  %v1378 = vpop.f32.mrf.mxu0
  %v1379 = vadd.f32 %v247, %v1378
  %v1380 = vpop.f32.mrf.mxu0
  %1381 = vmatprep.mubr.f32.mxu0 0.0
  %1382 = vmatmul.mubr.f32.gmra.mxu0 %v482
  %v1383 = vpop.f32.mrf.mxu0
  %v1384 = vadd.f32 %v247, %v1383
  %v1385 = vpop.f32.mrf.mxu0
  %1386 = vmatprep.mubr.f32.mxu0 0.0
  %1387 = vmatmul.mubr.f32.gmra.mxu0 %v485
  %v1388 = vpop.f32.mrf.mxu0
  %v1389 = vadd.f32 %v247, %v1388
  %v1390 = vpop.f32.mrf.mxu0
  %1391 = vmatprep.mubr.f32.mxu0 0.0
  %1392 = vmatmul.mubr.f32.gmra.mxu0 %v488
  %v1393 = vpop.f32.mrf.mxu0
  %v1394 = vadd.f32 %v247, %v1393
  %v1395 = vpop.f32.mrf.mxu0
  %1396 = vmatprep.mubr.f32.mxu0 0.0
  %1397 = vmatmul.mubr.f32.gmra.mxu0 %v491
  %v1398 = vpop.f32.mrf.mxu0
  %v1399 = vadd.f32 %v247, %v1398
  %v1400 = vpop.f32.mrf.mxu0
  %1401 = vmatprep.mubr.f32.mxu0 0.0
  %1402 = vmatmul.mubr.f32.gmra.mxu0 %v494
  %v1403 = vpop.f32.mrf.mxu0
  %v1404 = vadd.f32 %v247, %v1403
  %v1405 = vpop.f32.mrf.mxu0
  %1406 = vmatprep.mubr.f32.mxu0 0.0
  %1407 = vmatmul.mubr.f32.gmra.mxu0 %v497
  %v1408 = vpop.f32.mrf.mxu0
  %v1409 = vadd.f32 %v247, %v1408
  %v1410 = vpop.f32.mrf.mxu0
  %1411 = vmatprep.mubr.f32.mxu0 0.0
  %1412 = vmatmul.mubr.f32.gmra.mxu0 %v500
  %v1413 = vpop.f32.mrf.mxu0
  %v1414 = vadd.f32 %v247, %v1413
  %v1415 = vpop.f32.mrf.mxu0
  %1416 = vmatprep.mubr.f32.mxu0 0.0
  %1417 = vmatmul.mubr.f32.gmra.mxu0 %v503
  %v1418 = vpop.f32.mrf.mxu0
  %v1419 = vadd.f32 %v247, %v1418
  %v1420 = vpop.f32.mrf.mxu0
  %1421 = vmatprep.mubr.f32.mxu0 0.0
  %1422 = vmatmul.mubr.f32.gmra.mxu0 %v506
  %v1423 = vpop.f32.mrf.mxu0
  %v1424 = vadd.f32 %v247, %v1423
  %v1425 = vpop.f32.mrf.mxu0
  %1426 = vmatprep.mubr.f32.mxu0 0.0
  %1427 = vmatmul.mubr.f32.gmra.mxu0 %v509
  %v1428 = vpop.f32.mrf.mxu0
  %v1429 = vadd.f32 %v247, %v1428
  %v1430 = vpop.f32.mrf.mxu0
  %1431 = vmatprep.mubr.f32.mxu0 0.0
  %1432 = vmatmul.mubr.f32.gmra.mxu0 %v512
  %v1433 = vpop.f32.mrf.mxu0
  %v1434 = vadd.f32 %v247, %v1433
  %v1435 = vpop.f32.mrf.mxu0
  %1436 = vmatprep.mubr.f32.mxu0 0.0
  %1437 = vmatmul.mubr.f32.gmra.mxu0 %v515
  %v1438 = vpop.f32.mrf.mxu0
  %v1439 = vadd.f32 %v247, %v1438
  %v1440 = vpop.f32.mrf.mxu0
  %1441 = vmatprep.mubr.f32.mxu0 0.0
  %1442 = vmatmul.mubr.f32.gmra.mxu0 %v518
  %v1443 = vpop.f32.mrf.mxu0
  %v1444 = vadd.f32 %v247, %v1443
  %v1445 = vpop.f32.mrf.mxu0
  %1446 = vmatprep.mubr.f32.mxu0 0.0
  %1447 = vmatmul.mubr.f32.gmra.mxu0 %v521
  %v1448 = vpop.f32.mrf.mxu0
  %v1449 = vadd.f32 %v247, %v1448
  %v1450 = vpop.f32.mrf.mxu0
  %1451 = vmatprep.mubr.f32.mxu0 0.0
  %1452 = vmatmul.mubr.f32.gmra.mxu0 %v524
  %v1453 = vpop.f32.mrf.mxu0
  %v1454 = vadd.f32 %v247, %v1453
  %v1455 = vpop.f32.mrf.mxu0
  %1456 = vmatprep.mubr.f32.mxu0 0.0
  %1457 = vmatmul.mubr.f32.gmra.mxu0 %v527
  %v1458 = vpop.f32.mrf.mxu0
  %v1459 = vadd.f32 %v247, %v1458
  %v1460 = vpop.f32.mrf.mxu0
  %1461 = vmatprep.mubr.f32.mxu0 0.0
  %1462 = vmatmul.mubr.f32.gmra.mxu0 %v530
  %v1463 = vpop.f32.mrf.mxu0
  %v1464 = vadd.f32 %v247, %v1463
  %v1465 = vpop.f32.mrf.mxu0
  %1466 = vmatprep.mubr.f32.mxu0 0.0
  %1467 = vmatmul.mubr.f32.gmra.mxu0 %v533
  %v1468 = vpop.f32.mrf.mxu0
  %v1469 = vadd.f32 %v247, %v1468
  %v1470 = vpop.f32.mrf.mxu0
  %1471 = vmatprep.mubr.f32.mxu0 0.0
  %1472 = vmatmul.mubr.f32.gmra.mxu0 %v536
  %v1473 = vpop.f32.mrf.mxu0
  %v1474 = vadd.f32 %v247, %v1473
  %v1475 = vpop.f32.mrf.mxu0
  %1476 = vmatprep.mubr.f32.mxu0 0.0
  %1477 = vmatmul.mubr.f32.gmra.mxu0 %v539
  %v1478 = vpop.f32.mrf.mxu0
  %v1479 = vadd.f32 %v247, %v1478
  %v1480 = vpop.f32.mrf.mxu0
  %1481 = vmatprep.mubr.f32.mxu0 0.0
  %1482 = vmatmul.mubr.f32.gmra.mxu0 %v542
  %v1483 = vpop.f32.mrf.mxu0
  %v1484 = vadd.f32 %v247, %v1483
  %v1485 = vpop.f32.mrf.mxu0
  %1486 = vmatprep.mubr.f32.mxu0 0.0
  %1487 = vmatmul.mubr.f32.gmra.mxu0 %v545
  %v1488 = vpop.f32.mrf.mxu0
  %v1489 = vadd.f32 %v247, %v1488
  %v1490 = vpop.f32.mrf.mxu0
  %1491 = vmatprep.mubr.f32.mxu0 0.0
  %1492 = vmatmul.mubr.f32.gmra.mxu0 %v548
  %v1493 = vpop.f32.mrf.mxu0
  %v1494 = vadd.f32 %v247, %v1493
  %v1495 = vpop.f32.mrf.mxu0
  %1496 = vmatprep.mubr.f32.mxu0 0.0
  %1497 = vmatmul.mubr.f32.gmra.mxu0 %v551
  %v1498 = vpop.f32.mrf.mxu0
  %v1499 = vadd.f32 %v247, %v1498
  %v1500 = vpop.f32.mrf.mxu0
  %1501 = vmatprep.mubr.f32.mxu0 0.0
  %1502 = vmatmul.mubr.f32.gmra.mxu0 %v554
  %v1503 = vpop.f32.mrf.mxu0
  %v1504 = vadd.f32 %v247, %v1503
  %v1505 = vpop.f32.mrf.mxu0
  %1506 = vmatprep.mubr.f32.mxu0 0.0
  %1507 = vmatmul.mubr.f32.gmra.mxu0 %v557
  %v1508 = vpop.f32.mrf.mxu0
  %v1509 = vadd.f32 %v247, %v1508
  %v1510 = vpop.f32.mrf.mxu0
  %1511 = vmatprep.mubr.f32.mxu0 0.0
  %1512 = vmatmul.mubr.f32.gmra.mxu0 %v560
  %v1513 = vpop.f32.mrf.mxu0
  %v1514 = vadd.f32 %v247, %v1513
  %v1515 = vpop.f32.mrf.mxu0
  %1516 = vmatprep.mubr.f32.mxu0 0.0
  %1517 = vmatmul.mubr.f32.gmra.mxu0 %v563
  %v1518 = vpop.f32.mrf.mxu0
  %v1519 = vadd.f32 %v247, %v1518
  %v1520 = vpop.f32.mrf.mxu0
  %1521 = vmatprep.mubr.f32.mxu0 0.0
  %1522 = vmatmul.mubr.f32.gmra.mxu0 %v566
  %v1523 = vpop.f32.mrf.mxu0
  %v1524 = vadd.f32 %v247, %v1523
  %v1525 = vpop.f32.mrf.mxu0
  %1526 = vmatprep.mubr.f32.mxu0 0.0
  %1527 = vmatmul.mubr.f32.gmra.mxu0 %v569
  %v1528 = vpop.f32.mrf.mxu0
  %v1529 = vadd.f32 %v247, %v1528
  %v1530 = vpop.f32.mrf.mxu0
  %1531 = vmatprep.mubr.f32.mxu0 0.0
  %1532 = vmatmul.mubr.f32.gmra.mxu0 %v572
  %v1533 = vpop.f32.mrf.mxu0
  %v1534 = vadd.f32 %v247, %v1533
  %v1535 = vpop.f32.mrf.mxu0
  %1536 = vmatprep.mubr.f32.mxu0 0.0
  %1537 = vmatmul.mubr.f32.gmra.mxu0 %v575
  %v1538 = vpop.f32.mrf.mxu0
  %v1539 = vadd.f32 %v247, %v1538
  %v1540 = vpop.f32.mrf.mxu0
  %1541 = vmatprep.mubr.f32.mxu0 0.0
  %1542 = vmatmul.mubr.f32.gmra.mxu0 %v578
  %v1543 = vpop.f32.mrf.mxu0
  %v1544 = vadd.f32 %v247, %v1543
  %v1545 = vpop.f32.mrf.mxu0
  %1546 = vmatprep.mubr.f32.mxu0 0.0
  %1547 = vmatmul.mubr.f32.gmra.mxu0 %v581
  %v1548 = vpop.f32.mrf.mxu0
  %v1549 = vadd.f32 %v247, %v1548
  %v1550 = vpop.f32.mrf.mxu0
  %1551 = vmatprep.mubr.f32.mxu0 0.0
  %1552 = vmatmul.mubr.f32.gmra.mxu0 %v584
  %v1553 = vpop.f32.mrf.mxu0
  %v1554 = vadd.f32 %v247, %v1553
  %v1555 = vpop.f32.mrf.mxu0
  %1556 = vmatprep.mubr.f32.mxu0 0.0
  %1557 = vmatmul.mubr.f32.gmra.mxu0 %v587
  %v1558 = vpop.f32.mrf.mxu0
  %v1559 = vadd.f32 %v247, %v1558
  %v1560 = vpop.f32.mrf.mxu0
  %1561 = vmatprep.mubr.f32.mxu0 0.0
  %1562 = vmatmul.mubr.f32.gmra.mxu0 %v590
  %v1563 = vpop.f32.mrf.mxu0
  %v1564 = vadd.f32 %v247, %v1563
  %v1565 = vpop.f32.mrf.mxu0
  %1566 = vmatprep.mubr.f32.mxu0 0.0
  %1567 = vmatmul.mubr.f32.gmra.mxu0 %v593
  %v1568 = vpop.f32.mrf.mxu0
  %v1569 = vadd.f32 %v247, %v1568
  %v1570 = vpop.f32.mrf.mxu0
  %1571 = vmatprep.mubr.f32.mxu0 0.0
  %1572 = vmatmul.mubr.f32.gmra.mxu0 %v596
  %v1573 = vpop.f32.mrf.mxu0
  %v1574 = vadd.f32 %v247, %v1573
  %v1575 = vpop.f32.mrf.mxu0
  %1576 = vmatprep.mubr.f32.mxu0 0.0
  %1577 = vmatmul.mubr.f32.gmra.mxu0 %v599
  %v1578 = vpop.f32.mrf.mxu0
  %v1579 = vadd.f32 %v247, %v1578
  %v1580 = vpop.f32.mrf.mxu0
  %1581 = vmatprep.mubr.f32.mxu0 0.0
  %1582 = vmatmul.mubr.f32.gmra.mxu0 %v602
  %v1583 = vpop.f32.mrf.mxu0
  %v1584 = vadd.f32 %v247, %v1583
  %v1585 = vpop.f32.mrf.mxu0
  %1586 = vmatprep.mubr.f32.mxu0 0.0
  %1587 = vmatmul.mubr.f32.gmra.mxu0 %v605
  %v1588 = vpop.f32.mrf.mxu0
  %v1589 = vadd.f32 %v247, %v1588
  %v1590 = vpop.f32.mrf.mxu0
  %1591 = vmatprep.mubr.f32.mxu0 0.0
  %1592 = vmatmul.mubr.f32.gmra.mxu0 %v608
  %v1593 = vpop.f32.mrf.mxu0
  %v1594 = vadd.f32 %v247, %v1593
  %v1595 = vpop.f32.mrf.mxu0
  %1596 = vmatprep.mubr.f32.mxu0 0.0
  %1597 = vmatmul.mubr.f32.gmra.mxu0 %v611
  %v1598 = vpop.f32.mrf.mxu0
  %v1599 = vadd.f32 %v247, %v1598
  %v1600 = vpop.f32.mrf.mxu0
  %1601 = vmatprep.mubr.f32.mxu0 0.0
  %1602 = vmatmul.mubr.f32.gmra.mxu0 %v614
  %v1603 = vpop.f32.mrf.mxu0
  %v1604 = vadd.f32 %v247, %v1603
  %v1605 = vpop.f32.mrf.mxu0
  %1606 = vmatprep.mubr.f32.mxu0 0.0
  %1607 = vmatmul.mubr.f32.gmra.mxu0 %v617
  %v1608 = vpop.f32.mrf.mxu0
  %v1609 = vadd.f32 %v247, %v1608
  %v1610 = vpop.f32.mrf.mxu0
  %1611 = vmatprep.mubr.f32.mxu0 0.0
  %1612 = vmatmul.mubr.f32.gmra.mxu0 %v620
  %v1613 = vpop.f32.mrf.mxu0
  %v1614 = vadd.f32 %v247, %v1613
  %v1615 = vpop.f32.mrf.mxu0
  %1616 = vmatprep.mubr.f32.mxu0 0.0
  %1617 = vmatmul.mubr.f32.gmra.mxu0 %v623
  %v1618 = vpop.f32.mrf.mxu0
  %v1619 = vadd.f32 %v247, %v1618
  %v1620 = vpop.f32.mrf.mxu0
  %1621 = vmatprep.mubr.f32.mxu0 0.0
  %1622 = vmatmul.mubr.f32.gmra.mxu0 %v626
  %v1623 = vpop.f32.mrf.mxu0
  %v1624 = vadd.f32 %v247, %v1623
  %v1625 = vpop.f32.mrf.mxu0
  %1626 = vmatprep.mubr.f32.mxu0 0.0
  %1627 = vmatmul.mubr.f32.gmra.mxu0 %v629
  %v1628 = vpop.f32.mrf.mxu0
  %v1629 = vadd.f32 %v247, %v1628
  %v1630 = vpop.f32.mrf.mxu0
  %1631 = vmatprep.mubr.f32.mxu0 0.0
  %1632 = vmatmul.mubr.f32.gmra.mxu0 %v632
  %v1633 = vpop.f32.mrf.mxu0
  %v1634 = vadd.f32 %v247, %v1633
  %v1635 = vpop.f32.mrf.mxu0
  %1636 = vmatprep.mubr.f32.mxu0 0.0
  %1637 = vmatmul.mubr.f32.gmra.mxu0 %v635
  %v1638 = vpop.f32.mrf.mxu0
  %v1639 = vadd.f32 %v247, %v1638
  %v1640 = vpop.f32.mrf.mxu0
  %1641 = vmatprep.mubr.f32.mxu0 0.0
  %1642 = vmatmul.mubr.f32.gmra.mxu0 %v638
  %v1643 = vpop.f32.mrf.mxu0
  %v1644 = vadd.f32 %v247, %v1643
  %v1645 = vpop.f32.mrf.mxu0
  %1646 = vmatprep.mubr.f32.mxu0 0.0
  %1647 = vmatmul.mubr.f32.gmra.mxu0 %v641
  %v1648 = vpop.f32.mrf.mxu0
  %v1649 = vadd.f32 %v247, %v1648
  %v1650 = vpop.f32.mrf.mxu0
  %1651 = vmatprep.mubr.f32.mxu0 0.0
  %1652 = vmatmul.mubr.f32.gmra.mxu0 %v644
  %v1653 = vpop.f32.mrf.mxu0
  %v1654 = vadd.f32 %v247, %v1653
  %v1655 = vpop.f32.mrf.mxu0
  %1656 = vmatprep.mubr.f32.mxu0 0.0
  %1657 = vmatmul.mubr.f32.gmra.mxu0 %v647
  %v1658 = vpop.f32.mrf.mxu0
  %v1659 = vadd.f32 %v247, %v1658
  %v1660 = vpop.f32.mrf.mxu0
  %1661 = vmatprep.mubr.f32.mxu0 0.0
  %1662 = vmatmul.mubr.f32.gmra.mxu0 %v650
  %v1663 = vpop.f32.mrf.mxu0
  %v1664 = vadd.f32 %v247, %v1663
  %v1665 = vpop.f32.mrf.mxu0
  %1666 = vmatprep.mubr.f32.mxu0 0.0
  %1667 = vmatmul.mubr.f32.gmra.mxu0 %v653
  %v1668 = vpop.f32.mrf.mxu0
  %v1669 = vadd.f32 %v247, %v1668
  %v1670 = vpop.f32.mrf.mxu0
  %1671 = vmatprep.mubr.f32.mxu0 0.0
  %1672 = vmatmul.mubr.f32.gmra.mxu0 %v656
  %v1673 = vpop.f32.mrf.mxu0
  %v1674 = vadd.f32 %v247, %v1673
  %v1675 = vpop.f32.mrf.mxu0
  %1676 = vmatprep.mubr.f32.mxu0 0.0
  %1677 = vmatmul.mubr.f32.gmra.mxu0 %v659
  %v1678 = vpop.f32.mrf.mxu0
  %v1679 = vadd.f32 %v247, %v1678
  %v1680 = vpop.f32.mrf.mxu0
  %1681 = vmatprep.mubr.f32.mxu0 0.0
  %1682 = vmatmul.mubr.f32.gmra.mxu0 %v662
  %v1683 = vpop.f32.mrf.mxu0
  %v1684 = vadd.f32 %v247, %v1683
  %v1685 = vpop.f32.mrf.mxu0
  %1686 = vmatprep.mubr.f32.mxu0 0.0
  %1687 = vmatmul.mubr.f32.gmra.mxu0 %v665
  %v1688 = vpop.f32.mrf.mxu0
  %v1689 = vadd.f32 %v247, %v1688
  %v1690 = vpop.f32.mrf.mxu0
  %1691 = vmatprep.mubr.f32.mxu0 0.0
  %1692 = vmatmul.mubr.f32.gmra.mxu0 %v668
  %v1693 = vpop.f32.mrf.mxu0
  %v1694 = vadd.f32 %v247, %v1693
  %v1695 = vpop.f32.mrf.mxu0
  %1696 = vmatprep.mubr.f32.mxu0 0.0
  %1697 = vmatmul.mubr.f32.gmra.mxu0 %v671
  %v1698 = vpop.f32.mrf.mxu0
  %v1699 = vadd.f32 %v247, %v1698
  %v1700 = vpop.f32.mrf.mxu0
  %1701 = vmatprep.mubr.f32.mxu0 0.0
  %1702 = vmatmul.mubr.f32.gmra.mxu0 %v674
  %v1703 = vpop.f32.mrf.mxu0
  %v1704 = vadd.f32 %v247, %v1703
  %v1705 = vpop.f32.mrf.mxu0
  %1706 = vmatprep.mubr.f32.mxu0 0.0
  %1707 = vmatmul.mubr.f32.gmra.mxu0 %v677
  %v1708 = vpop.f32.mrf.mxu0
  %v1709 = vadd.f32 %v247, %v1708
  %v1710 = vpop.f32.mrf.mxu0
  %1711 = vmatprep.mubr.f32.mxu0 0.0
  %1712 = vmatmul.mubr.f32.gmra.mxu0 %v680
  %v1713 = vpop.f32.mrf.mxu0
  %v1714 = vadd.f32 %v247, %v1713
  %v1715 = vpop.f32.mrf.mxu0
  %1716 = vmatprep.mubr.f32.mxu0 0.0
  %1717 = vmatmul.mubr.f32.gmra.mxu0 %v683
  %v1718 = vpop.f32.mrf.mxu0
  %v1719 = vadd.f32 %v247, %v1718
  %v1720 = vpop.f32.mrf.mxu0
  %1721 = vmatprep.mubr.f32.mxu0 0.0
  %1722 = vmatmul.mubr.f32.gmra.mxu0 %v686
  %v1723 = vpop.f32.mrf.mxu0
  %v1724 = vadd.f32 %v247, %v1723
  %v1725 = vpop.f32.mrf.mxu0
  %1726 = vmatprep.mubr.f32.mxu0 0.0
  %1727 = vmatmul.mubr.f32.gmra.mxu0 %v689
  %v1728 = vpop.f32.mrf.mxu0
  %v1729 = vadd.f32 %v247, %v1728
  %v1730 = vpop.f32.mrf.mxu0
  %1731 = vmatprep.mubr.f32.mxu0 0.0
  %1732 = vmatmul.mubr.f32.gmra.mxu0 %v692
  %v1733 = vpop.f32.mrf.mxu0
  %v1734 = vadd.f32 %v247, %v1733
  %v1735 = vpop.f32.mrf.mxu0
  %1736 = vmatprep.mubr.f32.mxu0 0.0
  %1737 = vmatmul.mubr.f32.gmra.mxu0 %v695
  %v1738 = vpop.f32.mrf.mxu0
  %v1739 = vadd.f32 %v247, %v1738
  %v1740 = vpop.f32.mrf.mxu0
  %1741 = vmatprep.mubr.f32.mxu0 0.0
  %1742 = vmatmul.mubr.f32.gmra.mxu0 %v698
  %v1743 = vpop.f32.mrf.mxu0
  %v1744 = vadd.f32 %v247, %v1743
  %v1745 = vpop.f32.mrf.mxu0
  %1746 = vmatprep.mubr.f32.mxu0 0.0
  %1747 = vmatmul.mubr.f32.gmra.mxu0 %v701
  %v1748 = vpop.f32.mrf.mxu0
  %v1749 = vadd.f32 %v247, %v1748
  %v1750 = vpop.f32.mrf.mxu0
  %1751 = vmatprep.mubr.f32.mxu0 0.0
  %1752 = vmatmul.mubr.f32.gmra.mxu0 %v704
  %v1753 = vpop.f32.mrf.mxu0
  %v1754 = vadd.f32 %v247, %v1753
  %v1755 = vpop.f32.mrf.mxu0
  %1756 = vmatprep.mubr.f32.mxu0 0.0
  %1757 = vmatmul.mubr.f32.gmra.mxu0 %v707
  %v1758 = vpop.f32.mrf.mxu0
  %v1759 = vadd.f32 %v247, %v1758
  %v1760 = vpop.f32.mrf.mxu0
  %1761 = vmatprep.mubr.f32.mxu0 0.0
  %1762 = vmatmul.mubr.f32.gmra.mxu0 %v710
  %v1763 = vpop.f32.mrf.mxu0
  %v1764 = vadd.f32 %v247, %v1763
  %v1765 = vpop.f32.mrf.mxu0
  %1766 = vmatprep.mubr.f32.mxu0 0.0
  %1767 = vmatmul.mubr.f32.gmra.mxu0 %v713
  %v1768 = vpop.f32.mrf.mxu0
  %v1769 = vadd.f32 %v247, %v1768
  %v1770 = vpop.f32.mrf.mxu0
  %1771 = vmatprep.mubr.f32.mxu0 0.0
  %1772 = vmatmul.mubr.f32.gmra.mxu0 %v716
  %v1773 = vpop.f32.mrf.mxu0
  %v1774 = vadd.f32 %v247, %v1773
  %v1775 = vpop.f32.mrf.mxu0
  %1776 = vmatprep.mubr.f32.mxu0 0.0
  %1777 = vmatmul.mubr.f32.gmra.mxu0 %v719
  %v1778 = vpop.f32.mrf.mxu0
  %v1779 = vadd.f32 %v247, %v1778
  %v1780 = vpop.f32.mrf.mxu0
  %1781 = vmatprep.mubr.f32.mxu0 0.0
  %1782 = vmatmul.mubr.f32.gmra.mxu0 %v722
  %v1783 = vpop.f32.mrf.mxu0
  %v1784 = vadd.f32 %v247, %v1783
  %v1785 = vpop.f32.mrf.mxu0
  %1786 = vmatprep.mubr.f32.mxu0 0.0
  %1787 = vmatmul.mubr.f32.gmra.mxu0 %v725
  %v1788 = vpop.f32.mrf.mxu0
  %v1789 = vadd.f32 %v247, %v1788
  %v1790 = vpop.f32.mrf.mxu0
  %1791 = vmatprep.mubr.f32.mxu0 0.0
  %1792 = vmatmul.mubr.f32.gmra.mxu0 %v728
  %v1793 = vpop.f32.mrf.mxu0
  %v1794 = vadd.f32 %v247, %v1793
  %v1795 = vpop.f32.mrf.mxu0
  %1796 = vmatprep.mubr.f32.mxu0 0.0
  %1797 = vmatmul.mubr.f32.gmra.mxu0 %v731
  %v1798 = vpop.f32.mrf.mxu0
  %v1799 = vadd.f32 %v247, %v1798
  %v1800 = vpop.f32.mrf.mxu0
  %1801 = vmatprep.mubr.f32.mxu0 0.0
  %1802 = vmatmul.mubr.f32.gmra.mxu0 %v734
  %v1803 = vpop.f32.mrf.mxu0
  %v1804 = vadd.f32 %v247, %v1803
  %v1805 = vpop.f32.mrf.mxu0
  %1806 = vmatprep.mubr.f32.mxu0 0.0
  %1807 = vmatmul.mubr.f32.gmra.mxu0 %v737
  %v1808 = vpop.f32.mrf.mxu0
  %v1809 = vadd.f32 %v247, %v1808
  %v1810 = vpop.f32.mrf.mxu0
  %1811 = vmatprep.mubr.f32.mxu0 0.0
  %1812 = vmatmul.mubr.f32.gmra.mxu0 %v740
  %v1813 = vpop.f32.mrf.mxu0
  %v1814 = vadd.f32 %v247, %v1813
  %v1815 = vpop.f32.mrf.mxu0
  %1816 = vmatprep.mubr.f32.mxu0 0.0
  %1817 = vmatmul.mubr.f32.gmra.mxu0 %v743
  %v1818 = vpop.f32.mrf.mxu0
  %v1819 = vadd.f32 %v247, %v1818
  %v1820 = vpop.f32.mrf.mxu0
  %1821 = vmatprep.mubr.f32.mxu0 0.0
  %1822 = vmatmul.mubr.f32.gmra.mxu0 %v746
  %v1823 = vpop.f32.mrf.mxu0
  %v1824 = vadd.f32 %v247, %v1823
  %v1825 = vpop.f32.mrf.mxu0
  %1826 = vmatprep.mubr.f32.mxu0 0.0
  %1827 = vmatmul.mubr.f32.gmra.mxu0 %v749
  %v1828 = vpop.f32.mrf.mxu0
  %v1829 = vadd.f32 %v247, %v1828
  %v1830 = vpop.f32.mrf.mxu0
  %1831 = vmatprep.mubr.f32.mxu0 0.0
  %1832 = vmatmul.mubr.f32.gmra.mxu0 %v752
  %v1833 = vpop.f32.mrf.mxu0
  %v1834 = vadd.f32 %v247, %v1833
  %v1835 = vpop.f32.mrf.mxu0
  %1836 = vmatprep.mubr.f32.mxu0 0.0
  %1837 = vmatmul.mubr.f32.gmra.mxu0 %v755
  %v1838 = vpop.f32.mrf.mxu0
  %v1839 = vadd.f32 %v247, %v1838
  %v1840 = vpop.f32.mrf.mxu0
  %1841 = vmatprep.mubr.f32.mxu0 0.0
  %1842 = vmatmul.mubr.f32.gmra.mxu0 %v758
  %v1843 = vpop.f32.mrf.mxu0
  %v1844 = vadd.f32 %v247, %v1843
  %v1845 = vpop.f32.mrf.mxu0
  %1846 = vmatprep.mubr.f32.mxu0 0.0
  %1847 = vmatmul.mubr.f32.gmra.mxu0 %v761
  %v1848 = vpop.f32.mrf.mxu0
  %v1849 = vadd.f32 %v247, %v1848
  %v1850 = vpop.f32.mrf.mxu0
  %1851 = vmatprep.mubr.f32.mxu0 0.0
  %1852 = vmatmul.mubr.f32.gmra.mxu0 %v764
  %v1853 = vpop.f32.mrf.mxu0
  %v1854 = vadd.f32 %v247, %v1853
  %v1855 = vpop.f32.mrf.mxu0
  %1856 = vmatprep.mubr.f32.mxu0 0.0
  %1857 = vmatmul.mubr.f32.gmra.mxu0 %v767
  %v1858 = vpop.f32.mrf.mxu0
  %v1859 = vadd.f32 %v247, %v1858
  %v1860 = vpop.f32.mrf.mxu0
  %1861 = vmatprep.mubr.f32.mxu0 0.0
  %1862 = vmatmul.mubr.f32.gmra.mxu0 %v770
  %v1863 = vpop.f32.mrf.mxu0
  %v1864 = vadd.f32 %v247, %v1863
  %v1865 = vpop.f32.mrf.mxu0
  %1866 = vmatprep.mubr.f32.mxu0 0.0
  %1867 = vmatmul.mubr.f32.gmra.mxu0 %v773
  %v1868 = vpop.f32.mrf.mxu0
  %v1869 = vadd.f32 %v247, %v1868
  %v1870 = vpop.f32.mrf.mxu0
  %1871 = vmatprep.mubr.f32.mxu0 0.0
  %1872 = vmatmul.mubr.f32.gmra.mxu0 %v776
  %v1873 = vpop.f32.mrf.mxu0
  %v1874 = vadd.f32 %v247, %v1873
  %v1875 = vpop.f32.mrf.mxu0
  %1876 = vmatprep.mubr.f32.mxu0 0.0
  %1877 = vmatmul.mubr.f32.gmra.mxu0 %v779
  %v1878 = vpop.f32.mrf.mxu0
  %v1879 = vadd.f32 %v247, %v1878
  %v1880 = vpop.f32.mrf.mxu0
  %1881 = vmatprep.mubr.f32.mxu0 0.0
  %1882 = vmatmul.mubr.f32.gmra.mxu0 %v782
  %v1883 = vpop.f32.mrf.mxu0
  %v1884 = vadd.f32 %v247, %v1883
  %v1885 = vpop.f32.mrf.mxu0
  %1886 = vmatprep.mubr.f32.mxu0 0.0
  %1887 = vmatmul.mubr.f32.gmra.mxu0 %v785
  %v1888 = vpop.f32.mrf.mxu0
  %v1889 = vadd.f32 %v247, %v1888
  %v1890 = vpop.f32.mrf.mxu0
  %1891 = vmatprep.mubr.f32.mxu0 0.0
  %1892 = vmatmul.mubr.f32.gmra.mxu0 %v788
  %v1893 = vpop.f32.mrf.mxu0
  %v1894 = vadd.f32 %v247, %v1893
  %v1895 = vpop.f32.mrf.mxu0
  %1896 = vmatprep.mubr.f32.mxu0 0.0
  %1897 = vmatmul.mubr.f32.gmra.mxu0 %v791
  %v1898 = vpop.f32.mrf.mxu0
  %v1899 = vadd.f32 %v247, %v1898
  %v1900 = vpop.f32.mrf.mxu0
  %1901 = vmatprep.mubr.f32.mxu0 0.0
  %1902 = vmatmul.mubr.f32.gmra.mxu0 %v794
  %v1903 = vpop.f32.mrf.mxu0
  %v1904 = vadd.f32 %v247, %v1903
  %v1905 = vpop.f32.mrf.mxu0
  %1906 = vmatprep.mubr.f32.mxu0 0.0
  %1907 = vmatmul.mubr.f32.gmra.mxu0 %v797
  %v1908 = vpop.f32.mrf.mxu0
  %v1909 = vadd.f32 %v247, %v1908
  %v1910 = vpop.f32.mrf.mxu0
  %1911 = vmatprep.mubr.f32.mxu0 0.0
  %1912 = vmatmul.mubr.f32.gmra.mxu0 %v800
  %v1913 = vpop.f32.mrf.mxu0
  %v1914 = vadd.f32 %v247, %v1913
  %v1915 = vpop.f32.mrf.mxu0
  %1916 = vmatprep.mubr.f32.mxu0 0.0
  %1917 = vmatmul.mubr.f32.gmra.mxu0 %v803
  %v1918 = vpop.f32.mrf.mxu0
  %v1919 = vadd.f32 %v247, %v1918
  %v1920 = vpop.f32.mrf.mxu0
  %1921 = vmatprep.mubr.f32.mxu0 0.0
  %1922 = vmatmul.mubr.f32.gmra.mxu0 %v806
  %v1923 = vpop.f32.mrf.mxu0
  %v1924 = vadd.f32 %v247, %v1923
  %v1925 = vpop.f32.mrf.mxu0
  %1926 = vmatprep.mubr.f32.mxu0 0.0
  %1927 = vmatmul.mubr.f32.gmra.mxu0 %v809
  %v1928 = vpop.f32.mrf.mxu0
  %v1929 = vadd.f32 %v247, %v1928
  %v1930 = vpop.f32.mrf.mxu0
  %1931 = vmatprep.mubr.f32.mxu0 0.0
  %1932 = vmatmul.mubr.f32.gmra.mxu0 %v812
  %v1933 = vpop.f32.mrf.mxu0
  %v1934 = vadd.f32 %v247, %v1933
  %v1935 = vpop.f32.mrf.mxu0
  %1936 = vmatprep.mubr.f32.mxu0 0.0
  %1937 = vmatmul.mubr.f32.gmra.mxu0 %v815
  %v1938 = vpop.f32.mrf.mxu0
  %v1939 = vadd.f32 %v247, %v1938
  %v1940 = vpop.f32.mrf.mxu0
  %1941 = vmatprep.mubr.f32.mxu0 0.0
  %1942 = vmatmul.mubr.f32.gmra.mxu0 %v818
  %v1943 = vpop.f32.mrf.mxu0
  %v1944 = vadd.f32 %v247, %v1943
  %v1945 = vpop.f32.mrf.mxu0
  %1946 = vmatprep.mubr.f32.mxu0 0.0
  %1947 = vmatmul.mubr.f32.gmra.mxu0 %v821
  %v1948 = vpop.f32.mrf.mxu0
  %v1949 = vadd.f32 %v247, %v1948
  %v1950 = vpop.f32.mrf.mxu0
  %1951 = vmatprep.mubr.f32.mxu0 0.0
  %1952 = vmatmul.mubr.f32.gmra.mxu0 %v824
  %v1953 = vpop.f32.mrf.mxu0
  %v1954 = vadd.f32 %v247, %v1953
  %v1955 = vpop.f32.mrf.mxu0
  %1956 = vmatprep.mubr.f32.mxu0 0.0
  %1957 = vmatmul.mubr.f32.gmra.mxu0 %v827
  %v1958 = vpop.f32.mrf.mxu0
  %v1959 = vadd.f32 %v247, %v1958
  %v1960 = vpop.f32.mrf.mxu0
  %1961 = vmatprep.mubr.f32.mxu0 0.0
  %1962 = vmatmul.mubr.f32.gmra.mxu0 %v830
  %v1963 = vpop.f32.mrf.mxu0
  %v1964 = vadd.f32 %v247, %v1963
  %v1965 = vpop.f32.mrf.mxu0
  %1966 = vmatprep.mubr.f32.mxu0 0.0
  %1967 = vmatmul.mubr.f32.gmra.mxu0 %v833
  %v1968 = vpop.f32.mrf.mxu0
  %v1969 = vadd.f32 %v247, %v1968
  %v1970 = vpop.f32.mrf.mxu0
  %1971 = vmatprep.mubr.f32.mxu0 0.0
  %1972 = vmatmul.mubr.f32.gmra.mxu0 %v836
  %v1973 = vpop.f32.mrf.mxu0
  %v1974 = vadd.f32 %v247, %v1973
  %v1975 = vpop.f32.mrf.mxu0
  %1976 = vmatprep.mubr.f32.mxu0 0.0
  %1977 = vmatmul.mubr.f32.gmra.mxu0 %v839
  %v1978 = vpop.f32.mrf.mxu0
  %v1979 = vadd.f32 %v247, %v1978
  %v1980 = vpop.f32.mrf.mxu0
  %1981 = vmatprep.mubr.f32.mxu0 0.0
  %1982 = vmatmul.mubr.f32.gmra.mxu0 %v842
  %v1983 = vpop.f32.mrf.mxu0
  %v1984 = vadd.f32 %v247, %v1983
  %v1985 = vpop.f32.mrf.mxu0
  %1986 = vmatprep.mubr.f32.mxu0 0.0
  %1987 = vmatmul.mubr.f32.gmra.mxu0 %v845
  %v1988 = vpop.f32.mrf.mxu0
  %v1989 = vadd.f32 %v247, %v1988
  %v1990 = vpop.f32.mrf.mxu0
  %1991 = vmatprep.mubr.f32.mxu0 0.0
  %1992 = vmatmul.mubr.f32.gmra.mxu0 %v848
  %v1993 = vpop.f32.mrf.mxu0
  %v1994 = vadd.f32 %v247, %v1993
  %v1995 = vpop.f32.mrf.mxu0
  %1996 = vmatprep.mubr.f32.mxu0 0.0
  %1997 = vmatmul.mubr.f32.gmra.mxu0 %v851
  %v1998 = vpop.f32.mrf.mxu0
  %v1999 = vadd.f32 %v247, %v1998
  %v2000 = vpop.f32.mrf.mxu0
  %2001 = vmatprep.mubr.f32.mxu0 0.0
  %2002 = vmatmul.mubr.f32.gmra.mxu0 %v854
  %v2003 = vpop.f32.mrf.mxu0
  %v2004 = vadd.f32 %v247, %v2003
  %v2005 = vpop.f32.mrf.mxu0
  %2006 = vmatprep.mubr.f32.mxu0 0.0
  %2007 = vmatmul.mubr.f32.gmra.mxu0 %v857
  %v2008 = vpop.f32.mrf.mxu0
  %v2009 = vadd.f32 %v247, %v2008
  %v2010 = vpop.f32.mrf.mxu0
  %2011 = vmatprep.mubr.f32.mxu0 0.0
  %2012 = vmatmul.mubr.f32.gmra.mxu0 %v860
  %v2013 = vpop.f32.mrf.mxu0
  %v2014 = vadd.f32 %v247, %v2013
  %v2015 = vpop.f32.mrf.mxu0
  %2016 = vmatprep.mubr.f32.mxu0 0.0
  %2017 = vmatmul.mubr.f32.gmra.mxu0 %v863
  %v2018 = vpop.f32.mrf.mxu0
  %v2019 = vadd.f32 %v247, %v2018
  %v2020 = vpop.f32.mrf.mxu0
  %2021 = vmatprep.mubr.f32.mxu0 0.0
  %2022 = vmatmul.mubr.f32.gmra.mxu0 %v866
  %v2023 = vpop.f32.mrf.mxu0
  %v2024 = vadd.f32 %v247, %v2023
  %v2025 = vpop.f32.mrf.mxu0
  %2026 = vmatprep.mubr.f32.mxu0 0.0
  %2027 = vmatmul.mubr.f32.gmra.mxu0 %v869
  %v2028 = vpop.f32.mrf.mxu0
  %v2029 = vadd.f32 %v247, %v2028
  %v2030 = vpop.f32.mrf.mxu0
  %2031 = vmatprep.mubr.f32.mxu0 0.0
  %2032 = vmatmul.mubr.f32.gmra.mxu0 %v872
  %v2033 = vpop.f32.mrf.mxu0
  %v2034 = vadd.f32 %v247, %v2033
  %v2035 = vpop.f32.mrf.mxu0
  %2036 = vmatprep.mubr.f32.mxu0 0.0
  %2037 = vmatmul.mubr.f32.gmra.mxu0 %v875
  %v2038 = vpop.f32.mrf.mxu0
  %v2039 = vadd.f32 %v247, %v2038
  %v2040 = vpop.f32.mrf.mxu0
  %2041 = vmatprep.mubr.f32.mxu0 0.0
  %2042 = vmatmul.mubr.f32.gmra.mxu0 %v878
  %v2043 = vpop.f32.mrf.mxu0
  %v2044 = vadd.f32 %v247, %v2043
  %v2045 = vpop.f32.mrf.mxu0
  %2046 = vmatprep.mubr.f32.mxu0 0.0
  %2047 = vmatmul.mubr.f32.gmra.mxu0 %v881
  %v2048 = vpop.f32.mrf.mxu0
  %v2049 = vadd.f32 %v247, %v2048
  %v2050 = vpop.f32.mrf.mxu0
  %2051 = vmatprep.mubr.f32.mxu0 0.0
  %2052 = vmatmul.mubr.f32.gmra.mxu0 %v884
  %v2053 = vpop.f32.mrf.mxu0
  %v2054 = vadd.f32 %v247, %v2053
  %v2055 = vpop.f32.mrf.mxu0
  %2056 = vmatprep.mubr.f32.mxu0 0.0
  %2057 = vmatmul.mubr.f32.gmra.mxu0 %v887
  %v2058 = vpop.f32.mrf.mxu0
  %v2059 = vadd.f32 %v247, %v2058
  %v2060 = vpop.f32.mrf.mxu0
  %2061 = vmatprep.mubr.f32.mxu0 0.0
  %2062 = vmatmul.mubr.f32.gmra.mxu0 %v890
  %v2063 = vpop.f32.mrf.mxu0
  %v2064 = vadd.f32 %v247, %v2063
  %v2065 = vpop.f32.mrf.mxu0
  %2066 = vmatprep.mubr.f32.mxu0 0.0
  %2067 = vmatmul.mubr.f32.gmra.mxu0 %v893
  %v2068 = vpop.f32.mrf.mxu0
  %v2069 = vadd.f32 %v247, %v2068
  %v2070 = vpop.f32.mrf.mxu0
  %2071 = vmatprep.mubr.f32.mxu0 0.0
  %2072 = vmatmul.mubr.f32.gmra.mxu0 %v896
  %v2073 = vpop.f32.mrf.mxu0
  %v2074 = vadd.f32 %v247, %v2073
  %v2075 = vpop.f32.mrf.mxu0
  %2076 = vmatprep.mubr.f32.mxu0 0.0
  %2077 = vmatmul.mubr.f32.gmra.mxu0 %v899
  %v2078 = vpop.f32.mrf.mxu0
  %v2079 = vadd.f32 %v247, %v2078
  %v2080 = vpop.f32.mrf.mxu0
  %2081 = vmatprep.mubr.f32.mxu0 0.0
  %2082 = vmatmul.mubr.f32.gmra.mxu0 %v902
  %v2083 = vpop.f32.mrf.mxu0
  %v2084 = vadd.f32 %v247, %v2083
  %v2085 = vpop.f32.mrf.mxu0
  %2086 = vmatprep.mubr.f32.mxu0 0.0
  %2087 = vmatmul.mubr.f32.gmra.mxu0 %v905
  %v2088 = vpop.f32.mrf.mxu0
  %v2089 = vadd.f32 %v247, %v2088
  %v2090 = vpop.f32.mrf.mxu0
  %2091 = vmatprep.mubr.f32.mxu0 0.0
  %2092 = vmatmul.mubr.f32.gmra.mxu0 %v908
  %v2093 = vpop.f32.mrf.mxu0
  %v2094 = vadd.f32 %v247, %v2093
  %v2095 = vpop.f32.mrf.mxu0
  %2096 = vmatprep.mubr.f32.mxu0 0.0
  %2097 = vmatmul.mubr.f32.gmra.mxu0 %v911
  %v2098 = vpop.f32.mrf.mxu0
  %v2099 = vadd.f32 %v247, %v2098
  %v2100 = vpop.f32.mrf.mxu0
  %2101 = vmatprep.mubr.f32.mxu0 0.0
  %2102 = vmatmul.mubr.f32.gmra.mxu0 %v914
  %v2103 = vpop.f32.mrf.mxu0
  %v2104 = vadd.f32 %v247, %v2103
  %v2105 = vpop.f32.mrf.mxu0
  %2106 = vmatprep.mubr.f32.mxu0 0.0
  %2107 = vmatmul.mubr.f32.gmra.mxu0 %v917
  %v2108 = vpop.f32.mrf.mxu0
  %v2109 = vadd.f32 %v247, %v2108
  %v2110 = vpop.f32.mrf.mxu0
  %2111 = vmatprep.mubr.f32.mxu0 0.0
  %2112 = vmatmul.mubr.f32.gmra.mxu0 %v920
  %v2113 = vpop.f32.mrf.mxu0
  %v2114 = vadd.f32 %v247, %v2113
  %v2115 = vpop.f32.mrf.mxu0
  %2116 = vmatprep.mubr.f32.mxu0 0.0
  %2117 = vmatmul.mubr.f32.gmra.mxu0 %v923
  %v2118 = vpop.f32.mrf.mxu0
  %v2119 = vadd.f32 %v247, %v2118
  %v2120 = vpop.f32.mrf.mxu0
  %2121 = vmatprep.mubr.f32.mxu0 0.0
  %2122 = vmatmul.mubr.f32.gmra.mxu0 %v926
  %v2123 = vpop.f32.mrf.mxu0
  %v2124 = vadd.f32 %v247, %v2123
  %v2125 = vpop.f32.mrf.mxu0
  %2126 = vdwg.mxu0
  %v2127 = vmax.f32 %v999, 0.0
  %v2128 = vmax.f32 %v1004, 0.0
  %v2129 = vmax.f32 %v1009, 0.0
  %v2130 = vmax.f32 %v1014, 0.0
  %v2131 = vmax.f32 %v1019, 0.0
  %v2132 = vmax.f32 %v1024, 0.0
  %v2133 = vmax.f32 %v1029, 0.0
  %v2134 = vmax.f32 %v1034, 0.0
  %v2135 = vmax.f32 %v1039, 0.0
  %v2136 = vmax.f32 %v1044, 0.0
  %v2137 = vmax.f32 %v1049, 0.0
  %v2138 = vmax.f32 %v1054, 0.0
  %v2139 = vmax.f32 %v1059, 0.0
  %v2140 = vmax.f32 %v1064, 0.0
  %v2141 = vmax.f32 %v1069, 0.0
  %v2142 = vmax.f32 %v1074, 0.0
  %v2143 = vmax.f32 %v1079, 0.0
  %v2144 = vmax.f32 %v1084, 0.0
  %v2145 = vmax.f32 %v1089, 0.0
  %v2146 = vmax.f32 %v1094, 0.0
  %v2147 = vmax.f32 %v1099, 0.0
  %v2148 = vmax.f32 %v1104, 0.0
  %v2149 = vmax.f32 %v1109, 0.0
  %v2150 = vmax.f32 %v1114, 0.0
  %v2151 = vmax.f32 %v1119, 0.0
  %v2152 = vmax.f32 %v1124, 0.0
  %v2153 = vmax.f32 %v1129, 0.0
  %v2154 = vmax.f32 %v1134, 0.0
  %v2155 = vmax.f32 %v1139, 0.0
  %v2156 = vmax.f32 %v1144, 0.0
  %v2157 = vmax.f32 %v1149, 0.0
  %v2158 = vmax.f32 %v1154, 0.0
  %v2159 = vmax.f32 %v1159, 0.0
  %v2160 = vmax.f32 %v1164, 0.0
  %v2161 = vmax.f32 %v1169, 0.0
  %v2162 = vmax.f32 %v1174, 0.0
  %v2163 = vmax.f32 %v1179, 0.0
  %v2164 = vmax.f32 %v1184, 0.0
  %v2165 = vmax.f32 %v1189, 0.0
  %v2166 = vmax.f32 %v1194, 0.0
  %v2167 = vmax.f32 %v1199, 0.0
  %v2168 = vmax.f32 %v1204, 0.0
  %v2169 = vmax.f32 %v1209, 0.0
  %v2170 = vmax.f32 %v1214, 0.0
  %v2171 = vmax.f32 %v1219, 0.0
  %v2172 = vmax.f32 %v1224, 0.0
  %v2173 = vmax.f32 %v1229, 0.0
  %v2174 = vmax.f32 %v1234, 0.0
  %v2175 = vmax.f32 %v1239, 0.0
  %v2176 = vmax.f32 %v1244, 0.0
  %v2177 = vmax.f32 %v1249, 0.0
  %v2178 = vmax.f32 %v1254, 0.0
  %v2179 = vmax.f32 %v1259, 0.0
  %v2180 = vmax.f32 %v1264, 0.0
  %v2181 = vmax.f32 %v1269, 0.0
  %v2182 = vmax.f32 %v1274, 0.0
  %v2183 = vmax.f32 %v1279, 0.0
  %v2184 = vmax.f32 %v1284, 0.0
  %v2185 = vmax.f32 %v1289, 0.0
  %v2186 = vmax.f32 %v1294, 0.0
  %v2187 = vmax.f32 %v1299, 0.0
  %v2188 = vmax.f32 %v1304, 0.0
  %v2189 = vmax.f32 %v1309, 0.0
  %v2190 = vmax.f32 %v1314, 0.0
  %v2191 = vmax.f32 %v1319, 0.0
  %v2192 = vmax.f32 %v1324, 0.0
  %v2193 = vmax.f32 %v1329, 0.0
  %v2194 = vmax.f32 %v1334, 0.0
  %v2195 = vmax.f32 %v1339, 0.0
  %v2196 = vmax.f32 %v1344, 0.0
  %v2197 = vmax.f32 %v1349, 0.0
  %v2198 = vmax.f32 %v1354, 0.0
  %v2199 = vmax.f32 %v1359, 0.0
  %v2200 = vmax.f32 %v1364, 0.0
  %v2201 = vmax.f32 %v1369, 0.0
  %v2202 = vmax.f32 %v1374, 0.0
  %v2203 = vmax.f32 %v1379, 0.0
  %v2204 = vmax.f32 %v1384, 0.0
  %v2205 = vmax.f32 %v1389, 0.0
  %v2206 = vmax.f32 %v1394, 0.0
  %v2207 = vmax.f32 %v1399, 0.0
  %v2208 = vmax.f32 %v1404, 0.0
  %v2209 = vmax.f32 %v1409, 0.0
  %v2210 = vmax.f32 %v1414, 0.0
  %v2211 = vmax.f32 %v1419, 0.0
  %v2212 = vmax.f32 %v1424, 0.0
  %v2213 = vmax.f32 %v1429, 0.0
  %v2214 = vmax.f32 %v1434, 0.0
  %v2215 = vmax.f32 %v1439, 0.0
  %v2216 = vmax.f32 %v1444, 0.0
  %v2217 = vmax.f32 %v1449, 0.0
  %v2218 = vmax.f32 %v1454, 0.0
  %v2219 = vmax.f32 %v1459, 0.0
  %v2220 = vmax.f32 %v1464, 0.0
  %v2221 = vmax.f32 %v1469, 0.0
  %v2222 = vmax.f32 %v1474, 0.0
  %v2223 = vmax.f32 %v1479, 0.0
  %v2224 = vmax.f32 %v1484, 0.0
  %v2225 = vmax.f32 %v1489, 0.0
  %v2226 = vmax.f32 %v1494, 0.0
  %v2227 = vmax.f32 %v1499, 0.0
  %v2228 = vmax.f32 %v1504, 0.0
  %v2229 = vmax.f32 %v1509, 0.0
  %v2230 = vmax.f32 %v1514, 0.0
  %v2231 = vmax.f32 %v1519, 0.0
  %v2232 = vmax.f32 %v1524, 0.0
  %v2233 = vmax.f32 %v1529, 0.0
  %v2234 = vmax.f32 %v1534, 0.0
  %v2235 = vmax.f32 %v1539, 0.0
  %v2236 = vmax.f32 %v1544, 0.0
  %v2237 = vmax.f32 %v1549, 0.0
  %v2238 = vmax.f32 %v1554, 0.0
  %v2239 = vmax.f32 %v1559, 0.0
  %v2240 = vmax.f32 %v1564, 0.0
  %v2241 = vmax.f32 %v1569, 0.0
  %v2242 = vmax.f32 %v1574, 0.0
  %v2243 = vmax.f32 %v1579, 0.0
  %v2244 = vmax.f32 %v1584, 0.0
  %v2245 = vmax.f32 %v1589, 0.0
  %v2246 = vmax.f32 %v1594, 0.0
  %v2247 = vmax.f32 %v1599, 0.0
  %v2248 = vmax.f32 %v1604, 0.0
  %v2249 = vmax.f32 %v1609, 0.0
  %v2250 = vmax.f32 %v1614, 0.0
  %v2251 = vmax.f32 %v1619, 0.0
  %v2252 = vmax.f32 %v1624, 0.0
  %v2253 = vmax.f32 %v1629, 0.0
  %v2254 = vmax.f32 %v1634, 0.0
  %v2255 = vmax.f32 %v1639, 0.0
  %v2256 = vmax.f32 %v1644, 0.0
  %v2257 = vmax.f32 %v1649, 0.0
  %v2258 = vmax.f32 %v1654, 0.0
  %v2259 = vmax.f32 %v1659, 0.0
  %v2260 = vmax.f32 %v1664, 0.0
  %v2261 = vmax.f32 %v1669, 0.0
  %v2262 = vmax.f32 %v1674, 0.0
  %v2263 = vmax.f32 %v1679, 0.0
  %v2264 = vmax.f32 %v1684, 0.0
  %v2265 = vmax.f32 %v1689, 0.0
  %v2266 = vmax.f32 %v1694, 0.0
  %v2267 = vmax.f32 %v1699, 0.0
  %v2268 = vmax.f32 %v1704, 0.0
  %v2269 = vmax.f32 %v1709, 0.0
  %v2270 = vmax.f32 %v1714, 0.0
  %v2271 = vmax.f32 %v1719, 0.0
  %v2272 = vmax.f32 %v1724, 0.0
  %v2273 = vmax.f32 %v1729, 0.0
  %v2274 = vmax.f32 %v1734, 0.0
  %v2275 = vmax.f32 %v1739, 0.0
  %v2276 = vmax.f32 %v1744, 0.0
  %v2277 = vmax.f32 %v1749, 0.0
  %v2278 = vmax.f32 %v1754, 0.0
  %v2279 = vmax.f32 %v1759, 0.0
  %v2280 = vmax.f32 %v1764, 0.0
  %v2281 = vmax.f32 %v1769, 0.0
  %v2282 = vmax.f32 %v1774, 0.0
  %v2283 = vmax.f32 %v1779, 0.0
  %v2284 = vmax.f32 %v1784, 0.0
  %v2285 = vmax.f32 %v1789, 0.0
  %v2286 = vmax.f32 %v1794, 0.0
  %v2287 = vmax.f32 %v1799, 0.0
  %v2288 = vmax.f32 %v1804, 0.0
  %v2289 = vmax.f32 %v1809, 0.0
  %v2290 = vmax.f32 %v1814, 0.0
  %v2291 = vmax.f32 %v1819, 0.0
  %v2292 = vmax.f32 %v1824, 0.0
  %v2293 = vmax.f32 %v1829, 0.0
  %v2294 = vmax.f32 %v1834, 0.0
  %v2295 = vmax.f32 %v1839, 0.0
  %v2296 = vmax.f32 %v1844, 0.0
  %v2297 = vmax.f32 %v1849, 0.0
  %v2298 = vmax.f32 %v1854, 0.0
  %v2299 = vmax.f32 %v1859, 0.0
  %v2300 = vmax.f32 %v1864, 0.0
  %v2301 = vmax.f32 %v1869, 0.0
  %v2302 = vmax.f32 %v1874, 0.0
  %v2303 = vmax.f32 %v1879, 0.0
  %v2304 = vmax.f32 %v1884, 0.0
  %v2305 = vmax.f32 %v1889, 0.0
  %v2306 = vmax.f32 %v1894, 0.0
  %v2307 = vmax.f32 %v1899, 0.0
  %v2308 = vmax.f32 %v1904, 0.0
  %v2309 = vmax.f32 %v1909, 0.0
  %v2310 = vmax.f32 %v1914, 0.0
  %v2311 = vmax.f32 %v1919, 0.0
  %v2312 = vmax.f32 %v1924, 0.0
  %v2313 = vmax.f32 %v1929, 0.0
  %v2314 = vmax.f32 %v1934, 0.0
  %v2315 = vmax.f32 %v1939, 0.0
  %v2316 = vmax.f32 %v1944, 0.0
  %v2317 = vmax.f32 %v1949, 0.0
  %v2318 = vmax.f32 %v1954, 0.0
  %v2319 = vmax.f32 %v1959, 0.0
  %v2320 = vmax.f32 %v1964, 0.0
  %v2321 = vmax.f32 %v1969, 0.0
  %v2322 = vmax.f32 %v1974, 0.0
  %v2323 = vmax.f32 %v1979, 0.0
  %v2324 = vmax.f32 %v1984, 0.0
  %v2325 = vmax.f32 %v1989, 0.0
  %v2326 = vmax.f32 %v1994, 0.0
  %v2327 = vmax.f32 %v1999, 0.0
  %v2328 = vmax.f32 %v2004, 0.0
  %v2329 = vmax.f32 %v2009, 0.0
  %v2330 = vmax.f32 %v2014, 0.0
  %v2331 = vmax.f32 %v2019, 0.0
  %v2332 = vmax.f32 %v2024, 0.0
  %v2333 = vmax.f32 %v2029, 0.0
  %v2334 = vmax.f32 %v2034, 0.0
  %v2335 = vmax.f32 %v2039, 0.0
  %v2336 = vmax.f32 %v2044, 0.0
  %v2337 = vmax.f32 %v2049, 0.0
  %v2338 = vmax.f32 %v2054, 0.0
  %v2339 = vmax.f32 %v2059, 0.0
  %v2340 = vmax.f32 %v2064, 0.0
  %v2341 = vmax.f32 %v2069, 0.0
  %v2342 = vmax.f32 %v2074, 0.0
  %v2343 = vmax.f32 %v2079, 0.0
  %v2344 = vmax.f32 %v2084, 0.0
  %v2345 = vmax.f32 %v2089, 0.0
  %v2346 = vmax.f32 %v2094, 0.0
  %v2347 = vmax.f32 %v2099, 0.0
  %v2348 = vmax.f32 %v2104, 0.0
  %v2349 = vmax.f32 %v2109, 0.0
  %v2350 = vmax.f32 %v2114, 0.0
  %v2351 = vmax.f32 %v2119, 0.0
  %v2352 = vmax.f32 %v2124, 0.0
  %v2353 = vpack.c.bf16 %v2128, %v2127
  %v2354 = vpack.c.bf16 %v2130, %v2129
  %v2355 = vpack.c.bf16 %v2132, %v2131
  %v2356 = vpack.c.bf16 %v2134, %v2133
  %v2357 = vpack.c.bf16 %v2136, %v2135
  %v2358 = vpack.c.bf16 %v2138, %v2137
  %v2359 = vpack.c.bf16 %v2140, %v2139
  %v2360 = vpack.c.bf16 %v2142, %v2141
  %v2361 = vpack.c.bf16 %v2144, %v2143
  %v2362 = vpack.c.bf16 %v2146, %v2145
  %v2363 = vpack.c.bf16 %v2148, %v2147
  %v2364 = vpack.c.bf16 %v2150, %v2149
  %v2365 = vpack.c.bf16 %v2152, %v2151
  %v2366 = vpack.c.bf16 %v2154, %v2153
  %v2367 = vpack.c.bf16 %v2156, %v2155
  %v2368 = vpack.c.bf16 %v2158, %v2157
  %v2369 = vpack.c.bf16 %v2160, %v2159
  %v2370 = vpack.c.bf16 %v2162, %v2161
  %v2371 = vpack.c.bf16 %v2164, %v2163
  %v2372 = vpack.c.bf16 %v2166, %v2165
  %v2373 = vpack.c.bf16 %v2168, %v2167
  %v2374 = vpack.c.bf16 %v2170, %v2169
  %v2375 = vpack.c.bf16 %v2172, %v2171
  %v2376 = vpack.c.bf16 %v2174, %v2173
  %v2377 = vpack.c.bf16 %v2176, %v2175
  %v2378 = vpack.c.bf16 %v2178, %v2177
  %v2379 = vpack.c.bf16 %v2180, %v2179
  %v2380 = vpack.c.bf16 %v2182, %v2181
  %v2381 = vpack.c.bf16 %v2184, %v2183
  %v2382 = vpack.c.bf16 %v2186, %v2185
  %v2383 = vpack.c.bf16 %v2188, %v2187
  %v2384 = vpack.c.bf16 %v2190, %v2189
  %v2385 = vpack.c.bf16 %v2192, %v2191
  %v2386 = vpack.c.bf16 %v2194, %v2193
  %v2387 = vpack.c.bf16 %v2196, %v2195
  %v2388 = vpack.c.bf16 %v2198, %v2197
  %v2389 = vpack.c.bf16 %v2200, %v2199
  %v2390 = vpack.c.bf16 %v2202, %v2201
  %v2391 = vpack.c.bf16 %v2204, %v2203
  %v2392 = vpack.c.bf16 %v2206, %v2205
  %v2393 = vpack.c.bf16 %v2208, %v2207
  %v2394 = vpack.c.bf16 %v2210, %v2209
  %v2395 = vpack.c.bf16 %v2212, %v2211
  %v2396 = vpack.c.bf16 %v2214, %v2213
  %v2397 = vpack.c.bf16 %v2216, %v2215
  %v2398 = vpack.c.bf16 %v2218, %v2217
  %v2399 = vpack.c.bf16 %v2220, %v2219
  %v2400 = vpack.c.bf16 %v2222, %v2221
  %v2401 = vpack.c.bf16 %v2224, %v2223
  %v2402 = vpack.c.bf16 %v2226, %v2225
  %v2403 = vpack.c.bf16 %v2228, %v2227
  %v2404 = vpack.c.bf16 %v2230, %v2229
  %v2405 = vpack.c.bf16 %v2232, %v2231
  %v2406 = vpack.c.bf16 %v2234, %v2233
  %v2407 = vpack.c.bf16 %v2236, %v2235
  %v2408 = vpack.c.bf16 %v2238, %v2237
  %v2409 = vpack.c.bf16 %v2240, %v2239
  %v2410 = vpack.c.bf16 %v2242, %v2241
  %v2411 = vpack.c.bf16 %v2244, %v2243
  %v2412 = vpack.c.bf16 %v2246, %v2245
  %v2413 = vpack.c.bf16 %v2248, %v2247
  %v2414 = vpack.c.bf16 %v2250, %v2249
  %v2415 = vpack.c.bf16 %v2252, %v2251
  %v2416 = vpack.c.bf16 %v2254, %v2253
  %v2417 = vpack.c.bf16 %v2256, %v2255
  %v2418 = vpack.c.bf16 %v2258, %v2257
  %v2419 = vpack.c.bf16 %v2260, %v2259
  %v2420 = vpack.c.bf16 %v2262, %v2261
  %v2421 = vpack.c.bf16 %v2264, %v2263
  %v2422 = vpack.c.bf16 %v2266, %v2265
  %v2423 = vpack.c.bf16 %v2268, %v2267
  %v2424 = vpack.c.bf16 %v2270, %v2269
  %v2425 = vpack.c.bf16 %v2272, %v2271
  %v2426 = vpack.c.bf16 %v2274, %v2273
  %v2427 = vpack.c.bf16 %v2276, %v2275
  %v2428 = vpack.c.bf16 %v2278, %v2277
  %v2429 = vpack.c.bf16 %v2280, %v2279
  %v2430 = vpack.c.bf16 %v2282, %v2281
  %v2431 = vpack.c.bf16 %v2284, %v2283
  %v2432 = vpack.c.bf16 %v2286, %v2285
  %v2433 = vpack.c.bf16 %v2288, %v2287
  %v2434 = vpack.c.bf16 %v2290, %v2289
  %v2435 = vpack.c.bf16 %v2292, %v2291
  %v2436 = vpack.c.bf16 %v2294, %v2293
  %v2437 = vpack.c.bf16 %v2296, %v2295
  %v2438 = vpack.c.bf16 %v2298, %v2297
  %v2439 = vpack.c.bf16 %v2300, %v2299
  %v2440 = vpack.c.bf16 %v2302, %v2301
  %v2441 = vpack.c.bf16 %v2304, %v2303
  %v2442 = vpack.c.bf16 %v2306, %v2305
  %v2443 = vpack.c.bf16 %v2308, %v2307
  %v2444 = vpack.c.bf16 %v2310, %v2309
  %v2445 = vpack.c.bf16 %v2312, %v2311
  %v2446 = vpack.c.bf16 %v2314, %v2313
  %v2447 = vpack.c.bf16 %v2316, %v2315
  %v2448 = vpack.c.bf16 %v2318, %v2317
  %v2449 = vpack.c.bf16 %v2320, %v2319
  %v2450 = vpack.c.bf16 %v2322, %v2321
  %v2451 = vpack.c.bf16 %v2324, %v2323
  %v2452 = vpack.c.bf16 %v2326, %v2325
  %v2453 = vpack.c.bf16 %v2328, %v2327
  %v2454 = vpack.c.bf16 %v2330, %v2329
  %v2455 = vpack.c.bf16 %v2332, %v2331
  %v2456 = vpack.c.bf16 %v2334, %v2333
  %v2457 = vpack.c.bf16 %v2336, %v2335
  %v2458 = vpack.c.bf16 %v2338, %v2337
  %v2459 = vpack.c.bf16 %v2340, %v2339
  %v2460 = vpack.c.bf16 %v2342, %v2341
  %v2461 = vpack.c.bf16 %v2344, %v2343
  %v2462 = vpack.c.bf16 %v2346, %v2345
  %v2463 = vpack.c.bf16 %v2348, %v2347
  %v2464 = vpack.c.bf16 %v2350, %v2349
  %v2465 = vpack.c.bf16 %v2352, %v2351
  %v2579 = vunpack.c.l.b16 %v2353
  %v2580 = vunpack.c.h.b16 %v2353
  %v2581 = vunpack.c.l.b16 %v2354
  %v2582 = vunpack.c.h.b16 %v2354
  %v2583 = vunpack.c.l.b16 %v2355
  %v2584 = vunpack.c.h.b16 %v2355
  %v2585 = vunpack.c.l.b16 %v2356
  %v2586 = vunpack.c.h.b16 %v2356
  %v2587 = vunpack.c.l.b16 %v2357
  %v2588 = vunpack.c.h.b16 %v2357
  %v2589 = vunpack.c.l.b16 %v2358
  %v2590 = vunpack.c.h.b16 %v2358
  %v2591 = vunpack.c.l.b16 %v2359
  %v2592 = vunpack.c.h.b16 %v2359
  %v2593 = vunpack.c.l.b16 %v2360
  %v2594 = vunpack.c.h.b16 %v2360
  %v2595 = vunpack.c.l.b16 %v2361
  %v2596 = vunpack.c.h.b16 %v2361
  %v2597 = vunpack.c.l.b16 %v2362
  %v2598 = vunpack.c.h.b16 %v2362
  %v2599 = vunpack.c.l.b16 %v2363
  %v2600 = vunpack.c.h.b16 %v2363
  %v2601 = vunpack.c.l.b16 %v2364
  %v2602 = vunpack.c.h.b16 %v2364
  %v2603 = vunpack.c.l.b16 %v2365
  %v2604 = vunpack.c.h.b16 %v2365
  %v2605 = vunpack.c.l.b16 %v2366
  %v2606 = vunpack.c.h.b16 %v2366
  %v2607 = vunpack.c.l.b16 %v2367
  %v2608 = vunpack.c.h.b16 %v2367
  %v2609 = vunpack.c.l.b16 %v2368
  %v2610 = vunpack.c.h.b16 %v2368
  %v2611 = vunpack.c.l.b16 %v2369
  %v2612 = vunpack.c.h.b16 %v2369
  %v2613 = vunpack.c.l.b16 %v2370
  %v2614 = vunpack.c.h.b16 %v2370
  %v2615 = vunpack.c.l.b16 %v2371
  %v2616 = vunpack.c.h.b16 %v2371
  %v2617 = vunpack.c.l.b16 %v2372
  %v2618 = vunpack.c.h.b16 %v2372
  %v2619 = vunpack.c.l.b16 %v2373
  %v2620 = vunpack.c.h.b16 %v2373
  %v2621 = vunpack.c.l.b16 %v2374
  %v2622 = vunpack.c.h.b16 %v2374
  %v2623 = vunpack.c.l.b16 %v2375
  %v2624 = vunpack.c.h.b16 %v2375
  %v2625 = vunpack.c.l.b16 %v2376
  %v2626 = vunpack.c.h.b16 %v2376
  %v2627 = vunpack.c.l.b16 %v2377
  %v2628 = vunpack.c.h.b16 %v2377
  %v2629 = vunpack.c.l.b16 %v2378
  %v2630 = vunpack.c.h.b16 %v2378
  %v2631 = vunpack.c.l.b16 %v2379
  %v2632 = vunpack.c.h.b16 %v2379
  %v2633 = vunpack.c.l.b16 %v2380
  %v2634 = vunpack.c.h.b16 %v2380
  %v2635 = vunpack.c.l.b16 %v2381
  %v2636 = vunpack.c.h.b16 %v2381
  %v2637 = vunpack.c.l.b16 %v2382
  %v2638 = vunpack.c.h.b16 %v2382
  %v2639 = vunpack.c.l.b16 %v2383
  %v2640 = vunpack.c.h.b16 %v2383
  %v2641 = vunpack.c.l.b16 %v2384
  %v2642 = vunpack.c.h.b16 %v2384
  %v2643 = vunpack.c.l.b16 %v2385
  %v2644 = vunpack.c.h.b16 %v2385
  %v2645 = vunpack.c.l.b16 %v2386
  %v2646 = vunpack.c.h.b16 %v2386
  %v2647 = vunpack.c.l.b16 %v2387
  %v2648 = vunpack.c.h.b16 %v2387
  %v2649 = vunpack.c.l.b16 %v2388
  %v2650 = vunpack.c.h.b16 %v2388
  %v2651 = vunpack.c.l.b16 %v2389
  %v2652 = vunpack.c.h.b16 %v2389
  %v2653 = vunpack.c.l.b16 %v2390
  %v2654 = vunpack.c.h.b16 %v2390
  %v2655 = vunpack.c.l.b16 %v2391
  %v2656 = vunpack.c.h.b16 %v2391
  %v2657 = vunpack.c.l.b16 %v2392
  %v2658 = vunpack.c.h.b16 %v2392
  %v2659 = vunpack.c.l.b16 %v2393
  %v2660 = vunpack.c.h.b16 %v2393
  %v2661 = vunpack.c.l.b16 %v2394
  %v2662 = vunpack.c.h.b16 %v2394
  %v2663 = vunpack.c.l.b16 %v2395
  %v2664 = vunpack.c.h.b16 %v2395
  %v2665 = vunpack.c.l.b16 %v2396
  %v2666 = vunpack.c.h.b16 %v2396
  %v2667 = vunpack.c.l.b16 %v2397
  %v2668 = vunpack.c.h.b16 %v2397
  %v2669 = vunpack.c.l.b16 %v2398
  %v2670 = vunpack.c.h.b16 %v2398
  %v2671 = vunpack.c.l.b16 %v2399
  %v2672 = vunpack.c.h.b16 %v2399
  %v2673 = vunpack.c.l.b16 %v2400
  %v2674 = vunpack.c.h.b16 %v2400
  %v2675 = vunpack.c.l.b16 %v2401
  %v2676 = vunpack.c.h.b16 %v2401
  %v2677 = vunpack.c.l.b16 %v2402
  %v2678 = vunpack.c.h.b16 %v2402
  %v2679 = vunpack.c.l.b16 %v2403
  %v2680 = vunpack.c.h.b16 %v2403
  %v2681 = vunpack.c.l.b16 %v2404
  %v2682 = vunpack.c.h.b16 %v2404
  %v2683 = vunpack.c.l.b16 %v2405
  %v2684 = vunpack.c.h.b16 %v2405
  %v2685 = vunpack.c.l.b16 %v2406
  %v2686 = vunpack.c.h.b16 %v2406
  %v2687 = vunpack.c.l.b16 %v2407
  %v2688 = vunpack.c.h.b16 %v2407
  %v2689 = vunpack.c.l.b16 %v2408
  %v2690 = vunpack.c.h.b16 %v2408
  %v2691 = vunpack.c.l.b16 %v2409
  %v2692 = vunpack.c.h.b16 %v2409
  %v2693 = vunpack.c.l.b16 %v2410
  %v2694 = vunpack.c.h.b16 %v2410
  %v2695 = vunpack.c.l.b16 %v2411
  %v2696 = vunpack.c.h.b16 %v2411
  %v2697 = vunpack.c.l.b16 %v2412
  %v2698 = vunpack.c.h.b16 %v2412
  %v2699 = vunpack.c.l.b16 %v2413
  %v2700 = vunpack.c.h.b16 %v2413
  %v2701 = vunpack.c.l.b16 %v2414
  %v2702 = vunpack.c.h.b16 %v2414
  %v2703 = vunpack.c.l.b16 %v2415
  %v2704 = vunpack.c.h.b16 %v2415
  %v2705 = vunpack.c.l.b16 %v2416
  %v2706 = vunpack.c.h.b16 %v2416
  %v2707 = vunpack.c.l.b16 %v2417
  %v2708 = vunpack.c.h.b16 %v2417
  %v2709 = vunpack.c.l.b16 %v2418
  %v2710 = vunpack.c.h.b16 %v2418
  %v2711 = vunpack.c.l.b16 %v2419
  %v2712 = vunpack.c.h.b16 %v2419
  %v2713 = vunpack.c.l.b16 %v2420
  %v2714 = vunpack.c.h.b16 %v2420
  %v2715 = vunpack.c.l.b16 %v2421
  %v2716 = vunpack.c.h.b16 %v2421
  %v2717 = vunpack.c.l.b16 %v2422
  %v2718 = vunpack.c.h.b16 %v2422
  %v2719 = vunpack.c.l.b16 %v2423
  %v2720 = vunpack.c.h.b16 %v2423
  %v2721 = vunpack.c.l.b16 %v2424
  %v2722 = vunpack.c.h.b16 %v2424
  %v2723 = vunpack.c.l.b16 %v2425
  %v2724 = vunpack.c.h.b16 %v2425
  %v2725 = vunpack.c.l.b16 %v2426
  %v2726 = vunpack.c.h.b16 %v2426
  %v2727 = vunpack.c.l.b16 %v2427
  %v2728 = vunpack.c.h.b16 %v2427
  %v2729 = vunpack.c.l.b16 %v2428
  %v2730 = vunpack.c.h.b16 %v2428
  %v2731 = vunpack.c.l.b16 %v2429
  %v2732 = vunpack.c.h.b16 %v2429
  %v2733 = vunpack.c.l.b16 %v2430
  %v2734 = vunpack.c.h.b16 %v2430
  %v2735 = vunpack.c.l.b16 %v2431
  %v2736 = vunpack.c.h.b16 %v2431
  %v2737 = vunpack.c.l.b16 %v2432
  %v2738 = vunpack.c.h.b16 %v2432
  %v2739 = vunpack.c.l.b16 %v2433
  %v2740 = vunpack.c.h.b16 %v2433
  %v2741 = vunpack.c.l.b16 %v2434
  %v2742 = vunpack.c.h.b16 %v2434
  %v2743 = vunpack.c.l.b16 %v2435
  %v2744 = vunpack.c.h.b16 %v2435
  %v2745 = vunpack.c.l.b16 %v2436
  %v2746 = vunpack.c.h.b16 %v2436
  %v2747 = vunpack.c.l.b16 %v2437
  %v2748 = vunpack.c.h.b16 %v2437
  %v2749 = vunpack.c.l.b16 %v2438
  %v2750 = vunpack.c.h.b16 %v2438
  %v2751 = vunpack.c.l.b16 %v2439
  %v2752 = vunpack.c.h.b16 %v2439
  %v2753 = vunpack.c.l.b16 %v2440
  %v2754 = vunpack.c.h.b16 %v2440
  %v2755 = vunpack.c.l.b16 %v2441
  %v2756 = vunpack.c.h.b16 %v2441
  %v2757 = vunpack.c.l.b16 %v2442
  %v2758 = vunpack.c.h.b16 %v2442
  %v2759 = vunpack.c.l.b16 %v2443
  %v2760 = vunpack.c.h.b16 %v2443
  %v2761 = vunpack.c.l.b16 %v2444
  %v2762 = vunpack.c.h.b16 %v2444
  %v2763 = vunpack.c.l.b16 %v2445
  %v2764 = vunpack.c.h.b16 %v2445
  %v2765 = vunpack.c.l.b16 %v2446
  %v2766 = vunpack.c.h.b16 %v2446
  %v2767 = vunpack.c.l.b16 %v2447
  %v2768 = vunpack.c.h.b16 %v2447
  %v2769 = vunpack.c.l.b16 %v2448
  %v2770 = vunpack.c.h.b16 %v2448
  %v2771 = vunpack.c.l.b16 %v2449
  %v2772 = vunpack.c.h.b16 %v2449
  %v2773 = vunpack.c.l.b16 %v2450
  %v2774 = vunpack.c.h.b16 %v2450
  %v2775 = vunpack.c.l.b16 %v2451
  %v2776 = vunpack.c.h.b16 %v2451
  %v2777 = vunpack.c.l.b16 %v2452
  %v2778 = vunpack.c.h.b16 %v2452
  %v2779 = vunpack.c.l.b16 %v2453
  %v2780 = vunpack.c.h.b16 %v2453
  %v2781 = vunpack.c.l.b16 %v2454
  %v2782 = vunpack.c.h.b16 %v2454
  %v2783 = vunpack.c.l.b16 %v2455
  %v2784 = vunpack.c.h.b16 %v2455
  %v2785 = vunpack.c.l.b16 %v2456
  %v2786 = vunpack.c.h.b16 %v2456
  %v2787 = vunpack.c.l.b16 %v2457
  %v2788 = vunpack.c.h.b16 %v2457
  %v2789 = vunpack.c.l.b16 %v2458
  %v2790 = vunpack.c.h.b16 %v2458
  %v2791 = vunpack.c.l.b16 %v2459
  %v2792 = vunpack.c.h.b16 %v2459
  %v2793 = vunpack.c.l.b16 %v2460
  %v2794 = vunpack.c.h.b16 %v2460
  %v2795 = vunpack.c.l.b16 %v2461
  %v2796 = vunpack.c.h.b16 %v2461
  %v2797 = vunpack.c.l.b16 %v2462
  %v2798 = vunpack.c.h.b16 %v2462
  %v2799 = vunpack.c.l.b16 %v2463
  %v2800 = vunpack.c.h.b16 %v2463
  %v2801 = vunpack.c.l.b16 %v2464
  %v2802 = vunpack.c.h.b16 %v2464
  %v2803 = vunpack.c.l.b16 %v2465
  %v2804 = vunpack.c.h.b16 %v2465
  %v2805 = vpack.c.b16 %v2579, %v2579
  %v2806 = vpack.c.b16 %v2580, %v2580
  %v2807 = vpack.c.b16 %v2581, %v2581
  %v2808 = vpack.c.b16 %v2582, %v2582
  %v2809 = vpack.c.b16 %v2583, %v2583
  %v2810 = vpack.c.b16 %v2584, %v2584
  %v2811 = vpack.c.b16 %v2585, %v2585
  %v2812 = vpack.c.b16 %v2586, %v2586
  %v2813 = vpack.c.b16 %v2587, %v2587
  %v2814 = vpack.c.b16 %v2588, %v2588
  %v2815 = vpack.c.b16 %v2589, %v2589
  %v2816 = vpack.c.b16 %v2590, %v2590
  %v2817 = vpack.c.b16 %v2591, %v2591
  %v2818 = vpack.c.b16 %v2592, %v2592
  %v2819 = vpack.c.b16 %v2593, %v2593
  %v2820 = vpack.c.b16 %v2594, %v2594
  %v2821 = vpack.c.b16 %v2595, %v2595
  %v2822 = vpack.c.b16 %v2596, %v2596
  %v2823 = vpack.c.b16 %v2597, %v2597
  %v2824 = vpack.c.b16 %v2598, %v2598
  %v2825 = vpack.c.b16 %v2599, %v2599
  %v2826 = vpack.c.b16 %v2600, %v2600
  %v2827 = vpack.c.b16 %v2601, %v2601
  %v2828 = vpack.c.b16 %v2602, %v2602
  %v2829 = vpack.c.b16 %v2603, %v2603
  %v2830 = vpack.c.b16 %v2604, %v2604
  %v2831 = vpack.c.b16 %v2605, %v2605
  %v2832 = vpack.c.b16 %v2606, %v2606
  %v2833 = vpack.c.b16 %v2607, %v2607
  %v2834 = vpack.c.b16 %v2608, %v2608
  %v2835 = vpack.c.b16 %v2609, %v2609
  %v2836 = vpack.c.b16 %v2610, %v2610
  %v2837 = vpack.c.b16 %v2611, %v2611
  %v2838 = vpack.c.b16 %v2612, %v2612
  %v2839 = vpack.c.b16 %v2613, %v2613
  %v2840 = vpack.c.b16 %v2614, %v2614
  %v2841 = vpack.c.b16 %v2615, %v2615
  %v2842 = vpack.c.b16 %v2616, %v2616
  %v2843 = vpack.c.b16 %v2617, %v2617
  %v2844 = vpack.c.b16 %v2618, %v2618
  %v2845 = vpack.c.b16 %v2619, %v2619
  %v2846 = vpack.c.b16 %v2620, %v2620
  %v2847 = vpack.c.b16 %v2621, %v2621
  %v2848 = vpack.c.b16 %v2622, %v2622
  %v2849 = vpack.c.b16 %v2623, %v2623
  %v2850 = vpack.c.b16 %v2624, %v2624
  %v2851 = vpack.c.b16 %v2625, %v2625
  %v2852 = vpack.c.b16 %v2626, %v2626
  %v2853 = vpack.c.b16 %v2627, %v2627
  %v2854 = vpack.c.b16 %v2628, %v2628
  %v2855 = vpack.c.b16 %v2629, %v2629
  %v2856 = vpack.c.b16 %v2630, %v2630
  %v2857 = vpack.c.b16 %v2631, %v2631
  %v2858 = vpack.c.b16 %v2632, %v2632
  %v2859 = vpack.c.b16 %v2633, %v2633
  %v2860 = vpack.c.b16 %v2634, %v2634
  %v2861 = vpack.c.b16 %v2635, %v2635
  %v2862 = vpack.c.b16 %v2636, %v2636
  %v2863 = vpack.c.b16 %v2637, %v2637
  %v2864 = vpack.c.b16 %v2638, %v2638
  %v2865 = vpack.c.b16 %v2639, %v2639
  %v2866 = vpack.c.b16 %v2640, %v2640
  %v2867 = vpack.c.b16 %v2641, %v2641
  %v2868 = vpack.c.b16 %v2642, %v2642
  %v2869 = vpack.c.b16 %v2643, %v2643
  %v2870 = vpack.c.b16 %v2644, %v2644
  %v2871 = vpack.c.b16 %v2645, %v2645
  %v2872 = vpack.c.b16 %v2646, %v2646
  %v2873 = vpack.c.b16 %v2647, %v2647
  %v2874 = vpack.c.b16 %v2648, %v2648
  %v2875 = vpack.c.b16 %v2649, %v2649
  %v2876 = vpack.c.b16 %v2650, %v2650
  %v2877 = vpack.c.b16 %v2651, %v2651
  %v2878 = vpack.c.b16 %v2652, %v2652
  %v2879 = vpack.c.b16 %v2653, %v2653
  %v2880 = vpack.c.b16 %v2654, %v2654
  %v2881 = vpack.c.b16 %v2655, %v2655
  %v2882 = vpack.c.b16 %v2656, %v2656
  %v2883 = vpack.c.b16 %v2657, %v2657
  %v2884 = vpack.c.b16 %v2658, %v2658
  %v2885 = vpack.c.b16 %v2659, %v2659
  %v2886 = vpack.c.b16 %v2660, %v2660
  %v2887 = vpack.c.b16 %v2661, %v2661
  %v2888 = vpack.c.b16 %v2662, %v2662
  %v2889 = vpack.c.b16 %v2663, %v2663
  %v2890 = vpack.c.b16 %v2664, %v2664
  %v2891 = vpack.c.b16 %v2665, %v2665
  %v2892 = vpack.c.b16 %v2666, %v2666
  %v2893 = vpack.c.b16 %v2667, %v2667
  %v2894 = vpack.c.b16 %v2668, %v2668
  %v2895 = vpack.c.b16 %v2669, %v2669
  %v2896 = vpack.c.b16 %v2670, %v2670
  %v2897 = vpack.c.b16 %v2671, %v2671
  %v2898 = vpack.c.b16 %v2672, %v2672
  %v2899 = vpack.c.b16 %v2673, %v2673
  %v2900 = vpack.c.b16 %v2674, %v2674
  %v2901 = vpack.c.b16 %v2675, %v2675
  %v2902 = vpack.c.b16 %v2676, %v2676
  %v2903 = vpack.c.b16 %v2677, %v2677
  %v2904 = vpack.c.b16 %v2678, %v2678
  %v2905 = vpack.c.b16 %v2679, %v2679
  %v2906 = vpack.c.b16 %v2680, %v2680
  %v2907 = vpack.c.b16 %v2681, %v2681
  %v2908 = vpack.c.b16 %v2682, %v2682
  %v2909 = vpack.c.b16 %v2683, %v2683
  %v2910 = vpack.c.b16 %v2684, %v2684
  %v2911 = vpack.c.b16 %v2685, %v2685
  %v2912 = vpack.c.b16 %v2686, %v2686
  %v2913 = vpack.c.b16 %v2687, %v2687
  %v2914 = vpack.c.b16 %v2688, %v2688
  %v2915 = vpack.c.b16 %v2689, %v2689
  %v2916 = vpack.c.b16 %v2690, %v2690
  %v2917 = vpack.c.b16 %v2691, %v2691
  %v2918 = vpack.c.b16 %v2692, %v2692
  %v2919 = vpack.c.b16 %v2693, %v2693
  %v2920 = vpack.c.b16 %v2694, %v2694
  %v2921 = vpack.c.b16 %v2695, %v2695
  %v2922 = vpack.c.b16 %v2696, %v2696
  %v2923 = vpack.c.b16 %v2697, %v2697
  %v2924 = vpack.c.b16 %v2698, %v2698
  %v2925 = vpack.c.b16 %v2699, %v2699
  %v2926 = vpack.c.b16 %v2700, %v2700
  %v2927 = vpack.c.b16 %v2701, %v2701
  %v2928 = vpack.c.b16 %v2702, %v2702
  %v2929 = vpack.c.b16 %v2703, %v2703
  %v2930 = vpack.c.b16 %v2704, %v2704
  %v2931 = vpack.c.b16 %v2705, %v2705
  %v2932 = vpack.c.b16 %v2706, %v2706
  %v2933 = vpack.c.b16 %v2707, %v2707
  %v2934 = vpack.c.b16 %v2708, %v2708
  %v2935 = vpack.c.b16 %v2709, %v2709
  %v2936 = vpack.c.b16 %v2710, %v2710
  %v2937 = vpack.c.b16 %v2711, %v2711
  %v2938 = vpack.c.b16 %v2712, %v2712
  %v2939 = vpack.c.b16 %v2713, %v2713
  %v2940 = vpack.c.b16 %v2714, %v2714
  %v2941 = vpack.c.b16 %v2715, %v2715
  %v2942 = vpack.c.b16 %v2716, %v2716
  %v2943 = vpack.c.b16 %v2717, %v2717
  %v2944 = vpack.c.b16 %v2718, %v2718
  %v2945 = vpack.c.b16 %v2719, %v2719
  %v2946 = vpack.c.b16 %v2720, %v2720
  %v2947 = vpack.c.b16 %v2721, %v2721
  %v2948 = vpack.c.b16 %v2722, %v2722
  %v2949 = vpack.c.b16 %v2723, %v2723
  %v2950 = vpack.c.b16 %v2724, %v2724
  %v2951 = vpack.c.b16 %v2725, %v2725
  %v2952 = vpack.c.b16 %v2726, %v2726
  %v2953 = vpack.c.b16 %v2727, %v2727
  %v2954 = vpack.c.b16 %v2728, %v2728
  %v2955 = vpack.c.b16 %v2729, %v2729
  %v2956 = vpack.c.b16 %v2730, %v2730
  %v2957 = vpack.c.b16 %v2731, %v2731
  %v2958 = vpack.c.b16 %v2732, %v2732
  %v2959 = vpack.c.b16 %v2733, %v2733
  %v2960 = vpack.c.b16 %v2734, %v2734
  %v2961 = vpack.c.b16 %v2735, %v2735
  %v2962 = vpack.c.b16 %v2736, %v2736
  %v2963 = vpack.c.b16 %v2737, %v2737
  %v2964 = vpack.c.b16 %v2738, %v2738
  %v2965 = vpack.c.b16 %v2739, %v2739
  %v2966 = vpack.c.b16 %v2740, %v2740
  %v2967 = vpack.c.b16 %v2741, %v2741
  %v2968 = vpack.c.b16 %v2742, %v2742
  %v2969 = vpack.c.b16 %v2743, %v2743
  %v2970 = vpack.c.b16 %v2744, %v2744
  %v2971 = vpack.c.b16 %v2745, %v2745
  %v2972 = vpack.c.b16 %v2746, %v2746
  %v2973 = vpack.c.b16 %v2747, %v2747
  %v2974 = vpack.c.b16 %v2748, %v2748
  %v2975 = vpack.c.b16 %v2749, %v2749
  %v2976 = vpack.c.b16 %v2750, %v2750
  %v2977 = vpack.c.b16 %v2751, %v2751
  %v2978 = vpack.c.b16 %v2752, %v2752
  %v2979 = vpack.c.b16 %v2753, %v2753
  %v2980 = vpack.c.b16 %v2754, %v2754
  %v2981 = vpack.c.b16 %v2755, %v2755
  %v2982 = vpack.c.b16 %v2756, %v2756
  %v2983 = vpack.c.b16 %v2757, %v2757
  %v2984 = vpack.c.b16 %v2758, %v2758
  %v2985 = vpack.c.b16 %v2759, %v2759
  %v2986 = vpack.c.b16 %v2760, %v2760
  %v2987 = vpack.c.b16 %v2761, %v2761
  %v2988 = vpack.c.b16 %v2762, %v2762
  %v2989 = vpack.c.b16 %v2763, %v2763
  %v2990 = vpack.c.b16 %v2764, %v2764
  %v2991 = vpack.c.b16 %v2765, %v2765
  %v2992 = vpack.c.b16 %v2766, %v2766
  %v2993 = vpack.c.b16 %v2767, %v2767
  %v2994 = vpack.c.b16 %v2768, %v2768
  %v2995 = vpack.c.b16 %v2769, %v2769
  %v2996 = vpack.c.b16 %v2770, %v2770
  %v2997 = vpack.c.b16 %v2771, %v2771
  %v2998 = vpack.c.b16 %v2772, %v2772
  %v2999 = vpack.c.b16 %v2773, %v2773
  %v3000 = vpack.c.b16 %v2774, %v2774
  %v3001 = vpack.c.b16 %v2775, %v2775
  %v3002 = vpack.c.b16 %v2776, %v2776
  %v3003 = vpack.c.b16 %v2777, %v2777
  %v3004 = vpack.c.b16 %v2778, %v2778
  %v3005 = vpack.c.b16 %v2779, %v2779
  %v3006 = vpack.c.b16 %v2780, %v2780
  %v3007 = vpack.c.b16 %v2781, %v2781
  %v3008 = vpack.c.b16 %v2782, %v2782
  %v3009 = vpack.c.b16 %v2783, %v2783
  %v3010 = vpack.c.b16 %v2784, %v2784
  %v3011 = vpack.c.b16 %v2785, %v2785
  %v3012 = vpack.c.b16 %v2786, %v2786
  %v3013 = vpack.c.b16 %v2787, %v2787
  %v3014 = vpack.c.b16 %v2788, %v2788
  %v3015 = vpack.c.b16 %v2789, %v2789
  %v3016 = vpack.c.b16 %v2790, %v2790
  %v3017 = vpack.c.b16 %v2791, %v2791
  %v3018 = vpack.c.b16 %v2792, %v2792
  %v3019 = vpack.c.b16 %v2793, %v2793
  %v3020 = vpack.c.b16 %v2794, %v2794
  %v3021 = vpack.c.b16 %v2795, %v2795
  %v3022 = vpack.c.b16 %v2796, %v2796
  %v3023 = vpack.c.b16 %v2797, %v2797
  %v3024 = vpack.c.b16 %v2798, %v2798
  %v3025 = vpack.c.b16 %v2799, %v2799
  %v3026 = vpack.c.b16 %v2800, %v2800
  %v3027 = vpack.c.b16 %v2801, %v2801
  %v3028 = vpack.c.b16 %v2802, %v2802
  %v3029 = vpack.c.b16 %v2803, %v2803
  %v3030 = vpack.c.b16 %v2804, %v2804
  %vm3257 = vcmask 257024
  %3258 = vst.msk [vmem:[%s3] sm:$0xf] %vm3257, %v2805
  %3259 = vst.msk [vmem:[%s3 + $0x4] sm:$0xf] %vm3257, %v2806
  %3260 = vst.msk [vmem:[%s3 + $0x8] sm:$0xf] %vm3257, %v2807
  %3261 = vst.msk [vmem:[%s3 + $0xc] sm:$0xf] %vm3257, %v2808
  %3262 = vst.msk [vmem:[%s3 + $0x10] sm:$0xf] %vm3257, %v2809
  %3263 = vst.msk [vmem:[%s3 + $0x14] sm:$0xf] %vm3257, %v2810
  %3264 = vst.msk [vmem:[%s3 + $0x18] sm:$0xf] %vm3257, %v2811
  %3265 = vst.msk [vmem:[%s3 + $0x1c] sm:$0xf] %vm3257, %v2812
  %3266 = vst.msk [vmem:[%s3 + $0x20] sm:$0xf] %vm3257, %v2813
  %3267 = vst.msk [vmem:[%s3 + $0x24] sm:$0xf] %vm3257, %v2814
  %3268 = vst.msk [vmem:[%s3 + $0x28] sm:$0xf] %vm3257, %v2815
  %3269 = vst.msk [vmem:[%s3 + $0x2c] sm:$0xf] %vm3257, %v2816
  %3270 = vst.msk [vmem:[%s3 + $0x30] sm:$0xf] %vm3257, %v2817
  %3271 = vst.msk [vmem:[%s3 + $0x34] sm:$0xf] %vm3257, %v2818
  %3272 = vst.msk [vmem:[%s3 + $0x38] sm:$0xf] %vm3257, %v2819
  %3273 = vst.msk [vmem:[%s3 + $0x3c] sm:$0xf] %vm3257, %v2820
  %3274 = vst.msk [vmem:[%s3 + $0x40] sm:$0xf] %vm3257, %v2821
  %3275 = vst.msk [vmem:[%s3 + $0x44] sm:$0xf] %vm3257, %v2822
  %3276 = vst.msk [vmem:[%s3 + $0x48] sm:$0xf] %vm3257, %v2823
  %3277 = vst.msk [vmem:[%s3 + $0x4c] sm:$0xf] %vm3257, %v2824
  %3278 = vst.msk [vmem:[%s3 + $0x50] sm:$0xf] %vm3257, %v2825
  %3279 = vst.msk [vmem:[%s3 + $0x54] sm:$0xf] %vm3257, %v2826
  %3280 = vst.msk [vmem:[%s3 + $0x58] sm:$0xf] %vm3257, %v2827
  %3281 = vst.msk [vmem:[%s3 + $0x5c] sm:$0xf] %vm3257, %v2828
  %3282 = vst.msk [vmem:[%s3 + $0x60] sm:$0xf] %vm3257, %v2829
  %3283 = vst.msk [vmem:[%s3 + $0x64] sm:$0xf] %vm3257, %v2830
  %3284 = vst.msk [vmem:[%s3 + $0x68] sm:$0xf] %vm3257, %v2831
  %3285 = vst.msk [vmem:[%s3 + $0x6c] sm:$0xf] %vm3257, %v2832
  %3286 = vst.msk [vmem:[%s3 + $0x70] sm:$0xf] %vm3257, %v2833
  %3287 = vst.msk [vmem:[%s3 + $0x74] sm:$0xf] %vm3257, %v2834
  %3288 = vst.msk [vmem:[%s3 + $0x78] sm:$0xf] %vm3257, %v2835
  %3289 = vst.msk [vmem:[%s3 + $0x7c] sm:$0xf] %vm3257, %v2836
  %3290 = vst.msk [vmem:[%s3 + $0x80] sm:$0xf] %vm3257, %v2837
  %3291 = vst.msk [vmem:[%s3 + $0x84] sm:$0xf] %vm3257, %v2838
  %3292 = vst.msk [vmem:[%s3 + $0x88] sm:$0xf] %vm3257, %v2839
  %3293 = vst.msk [vmem:[%s3 + $0x8c] sm:$0xf] %vm3257, %v2840
  %3294 = vst.msk [vmem:[%s3 + $0x90] sm:$0xf] %vm3257, %v2841
  %3295 = vst.msk [vmem:[%s3 + $0x94] sm:$0xf] %vm3257, %v2842
  %3296 = vst.msk [vmem:[%s3 + $0x98] sm:$0xf] %vm3257, %v2843
  %3297 = vst.msk [vmem:[%s3 + $0x9c] sm:$0xf] %vm3257, %v2844
  %3298 = vst.msk [vmem:[%s3 + $0xa0] sm:$0xf] %vm3257, %v2845
  %3299 = vst.msk [vmem:[%s3 + $0xa4] sm:$0xf] %vm3257, %v2846
  %3300 = vst.msk [vmem:[%s3 + $0xa8] sm:$0xf] %vm3257, %v2847
  %3301 = vst.msk [vmem:[%s3 + $0xac] sm:$0xf] %vm3257, %v2848
  %3302 = vst.msk [vmem:[%s3 + $0xb0] sm:$0xf] %vm3257, %v2849
  %3303 = vst.msk [vmem:[%s3 + $0xb4] sm:$0xf] %vm3257, %v2850
  %3304 = vst.msk [vmem:[%s3 + $0xb8] sm:$0xf] %vm3257, %v2851
  %3305 = vst.msk [vmem:[%s3 + $0xbc] sm:$0xf] %vm3257, %v2852
  %3306 = vst.msk [vmem:[%s3 + $0xc0] sm:$0xf] %vm3257, %v2853
  %3307 = vst.msk [vmem:[%s3 + $0xc4] sm:$0xf] %vm3257, %v2854
  %3308 = vst.msk [vmem:[%s3 + $0xc8] sm:$0xf] %vm3257, %v2855
  %3309 = vst.msk [vmem:[%s3 + $0xcc] sm:$0xf] %vm3257, %v2856
  %3310 = vst.msk [vmem:[%s3 + $0xd0] sm:$0xf] %vm3257, %v2857
  %3311 = vst.msk [vmem:[%s3 + $0xd4] sm:$0xf] %vm3257, %v2858
  %3312 = vst.msk [vmem:[%s3 + $0xd8] sm:$0xf] %vm3257, %v2859
  %3313 = vst.msk [vmem:[%s3 + $0xdc] sm:$0xf] %vm3257, %v2860
  %3314 = vst.msk [vmem:[%s3 + $0xe0] sm:$0xf] %vm3257, %v2861
  %3315 = vst.msk [vmem:[%s3 + $0xe4] sm:$0xf] %vm3257, %v2862
  %3316 = vst.msk [vmem:[%s3 + $0xe8] sm:$0xf] %vm3257, %v2863
  %3317 = vst.msk [vmem:[%s3 + $0xec] sm:$0xf] %vm3257, %v2864
  %3318 = vst.msk [vmem:[%s3 + $0xf0] sm:$0xf] %vm3257, %v2865
  %3319 = vst.msk [vmem:[%s3 + $0xf4] sm:$0xf] %vm3257, %v2866
  %3320 = vst.msk [vmem:[%s3 + $0xf8] sm:$0xf] %vm3257, %v2867
  %3321 = vst.msk [vmem:[%s3 + $0xfc] sm:$0xf] %vm3257, %v2868
  %3322 = vst.msk [vmem:[%s3 + $0x100] sm:$0xf] %vm3257, %v2869
  %3323 = vst.msk [vmem:[%s3 + $0x104] sm:$0xf] %vm3257, %v2870
  %3324 = vst.msk [vmem:[%s3 + $0x108] sm:$0xf] %vm3257, %v2871
  %3325 = vst.msk [vmem:[%s3 + $0x10c] sm:$0xf] %vm3257, %v2872
  %3326 = vst.msk [vmem:[%s3 + $0x110] sm:$0xf] %vm3257, %v2873
  %3327 = vst.msk [vmem:[%s3 + $0x114] sm:$0xf] %vm3257, %v2874
  %3328 = vst.msk [vmem:[%s3 + $0x118] sm:$0xf] %vm3257, %v2875
  %3329 = vst.msk [vmem:[%s3 + $0x11c] sm:$0xf] %vm3257, %v2876
  %3330 = vst.msk [vmem:[%s3 + $0x120] sm:$0xf] %vm3257, %v2877
  %3331 = vst.msk [vmem:[%s3 + $0x124] sm:$0xf] %vm3257, %v2878
  %3332 = vst.msk [vmem:[%s3 + $0x128] sm:$0xf] %vm3257, %v2879
  %3333 = vst.msk [vmem:[%s3 + $0x12c] sm:$0xf] %vm3257, %v2880
  %3334 = vst.msk [vmem:[%s3 + $0x130] sm:$0xf] %vm3257, %v2881
  %3335 = vst.msk [vmem:[%s3 + $0x134] sm:$0xf] %vm3257, %v2882
  %3336 = vst.msk [vmem:[%s3 + $0x138] sm:$0xf] %vm3257, %v2883
  %3337 = vst.msk [vmem:[%s3 + $0x13c] sm:$0xf] %vm3257, %v2884
  %3338 = vst.msk [vmem:[%s3 + $0x140] sm:$0xf] %vm3257, %v2885
  %3339 = vst.msk [vmem:[%s3 + $0x144] sm:$0xf] %vm3257, %v2886
  %3340 = vst.msk [vmem:[%s3 + $0x148] sm:$0xf] %vm3257, %v2887
  %3341 = vst.msk [vmem:[%s3 + $0x14c] sm:$0xf] %vm3257, %v2888
  %3342 = vst.msk [vmem:[%s3 + $0x150] sm:$0xf] %vm3257, %v2889
  %3343 = vst.msk [vmem:[%s3 + $0x154] sm:$0xf] %vm3257, %v2890
  %3344 = vst.msk [vmem:[%s3 + $0x158] sm:$0xf] %vm3257, %v2891
  %3345 = vst.msk [vmem:[%s3 + $0x15c] sm:$0xf] %vm3257, %v2892
  %3346 = vst.msk [vmem:[%s3 + $0x160] sm:$0xf] %vm3257, %v2893
  %3347 = vst.msk [vmem:[%s3 + $0x164] sm:$0xf] %vm3257, %v2894
  %3348 = vst.msk [vmem:[%s3 + $0x168] sm:$0xf] %vm3257, %v2895
  %3349 = vst.msk [vmem:[%s3 + $0x16c] sm:$0xf] %vm3257, %v2896
  %3350 = vst.msk [vmem:[%s3 + $0x170] sm:$0xf] %vm3257, %v2897
  %3351 = vst.msk [vmem:[%s3 + $0x174] sm:$0xf] %vm3257, %v2898
  %3352 = vst.msk [vmem:[%s3 + $0x178] sm:$0xf] %vm3257, %v2899
  %3353 = vst.msk [vmem:[%s3 + $0x17c] sm:$0xf] %vm3257, %v2900
  %3354 = vst.msk [vmem:[%s3 + $0x180] sm:$0xf] %vm3257, %v2901
  %3355 = vst.msk [vmem:[%s3 + $0x184] sm:$0xf] %vm3257, %v2902
  %3356 = vst.msk [vmem:[%s3 + $0x188] sm:$0xf] %vm3257, %v2903
  %3357 = vst.msk [vmem:[%s3 + $0x18c] sm:$0xf] %vm3257, %v2904
  %3358 = vst.msk [vmem:[%s3 + $0x190] sm:$0xf] %vm3257, %v2905
  %3359 = vst.msk [vmem:[%s3 + $0x194] sm:$0xf] %vm3257, %v2906
  %3360 = vst.msk [vmem:[%s3 + $0x198] sm:$0xf] %vm3257, %v2907
  %3361 = vst.msk [vmem:[%s3 + $0x19c] sm:$0xf] %vm3257, %v2908
  %3362 = vst.msk [vmem:[%s3 + $0x1a0] sm:$0xf] %vm3257, %v2909
  %3363 = vst.msk [vmem:[%s3 + $0x1a4] sm:$0xf] %vm3257, %v2910
  %3364 = vst.msk [vmem:[%s3 + $0x1a8] sm:$0xf] %vm3257, %v2911
  %3365 = vst.msk [vmem:[%s3 + $0x1ac] sm:$0xf] %vm3257, %v2912
  %3366 = vst.msk [vmem:[%s3 + $0x1b0] sm:$0xf] %vm3257, %v2913
  %3367 = vst.msk [vmem:[%s3 + $0x1b4] sm:$0xf] %vm3257, %v2914
  %3368 = vst.msk [vmem:[%s3 + $0x1b8] sm:$0xf] %vm3257, %v2915
  %3369 = vst.msk [vmem:[%s3 + $0x1bc] sm:$0xf] %vm3257, %v2916
  %3370 = vst.msk [vmem:[%s3 + $0x1c0] sm:$0xf] %vm3257, %v2917
  %3371 = vst.msk [vmem:[%s3 + $0x1c4] sm:$0xf] %vm3257, %v2918
  %3372 = vst.msk [vmem:[%s3 + $0x1c8] sm:$0xf] %vm3257, %v2919
  %3373 = vst.msk [vmem:[%s3 + $0x1cc] sm:$0xf] %vm3257, %v2920
  %3374 = vst.msk [vmem:[%s3 + $0x1d0] sm:$0xf] %vm3257, %v2921
  %3375 = vst.msk [vmem:[%s3 + $0x1d4] sm:$0xf] %vm3257, %v2922
  %3376 = vst.msk [vmem:[%s3 + $0x1d8] sm:$0xf] %vm3257, %v2923
  %3377 = vst.msk [vmem:[%s3 + $0x1dc] sm:$0xf] %vm3257, %v2924
  %3378 = vst.msk [vmem:[%s3 + $0x1e0] sm:$0xf] %vm3257, %v2925
  %3379 = vst.msk [vmem:[%s3 + $0x1e4] sm:$0xf] %vm3257, %v2926
  %3380 = vst.msk [vmem:[%s3 + $0x1e8] sm:$0xf] %vm3257, %v2927
  %3381 = vst.msk [vmem:[%s3 + $0x1ec] sm:$0xf] %vm3257, %v2928
  %3382 = vst.msk [vmem:[%s3 + $0x1f0] sm:$0xf] %vm3257, %v2929
  %3383 = vst.msk [vmem:[%s3 + $0x1f4] sm:$0xf] %vm3257, %v2930
  %3384 = vst.msk [vmem:[%s3 + $0x1f8] sm:$0xf] %vm3257, %v2931
  %3385 = vst.msk [vmem:[%s3 + $0x1fc] sm:$0xf] %vm3257, %v2932
  %3386 = vst.msk [vmem:[%s3 + $0x200] sm:$0xf] %vm3257, %v2933
  %3387 = vst.msk [vmem:[%s3 + $0x204] sm:$0xf] %vm3257, %v2934
  %3388 = vst.msk [vmem:[%s3 + $0x208] sm:$0xf] %vm3257, %v2935
  %3389 = vst.msk [vmem:[%s3 + $0x20c] sm:$0xf] %vm3257, %v2936
  %3390 = vst.msk [vmem:[%s3 + $0x210] sm:$0xf] %vm3257, %v2937
  %3391 = vst.msk [vmem:[%s3 + $0x214] sm:$0xf] %vm3257, %v2938
  %3392 = vst.msk [vmem:[%s3 + $0x218] sm:$0xf] %vm3257, %v2939
  %3393 = vst.msk [vmem:[%s3 + $0x21c] sm:$0xf] %vm3257, %v2940
  %3394 = vst.msk [vmem:[%s3 + $0x220] sm:$0xf] %vm3257, %v2941
  %3395 = vst.msk [vmem:[%s3 + $0x224] sm:$0xf] %vm3257, %v2942
  %3396 = vst.msk [vmem:[%s3 + $0x228] sm:$0xf] %vm3257, %v2943
  %3397 = vst.msk [vmem:[%s3 + $0x22c] sm:$0xf] %vm3257, %v2944
  %3398 = vst.msk [vmem:[%s3 + $0x230] sm:$0xf] %vm3257, %v2945
  %3399 = vst.msk [vmem:[%s3 + $0x234] sm:$0xf] %vm3257, %v2946
  %3400 = vst.msk [vmem:[%s3 + $0x238] sm:$0xf] %vm3257, %v2947
  %3401 = vst.msk [vmem:[%s3 + $0x23c] sm:$0xf] %vm3257, %v2948
  %3402 = vst.msk [vmem:[%s3 + $0x240] sm:$0xf] %vm3257, %v2949
  %3403 = vst.msk [vmem:[%s3 + $0x244] sm:$0xf] %vm3257, %v2950
  %3404 = vst.msk [vmem:[%s3 + $0x248] sm:$0xf] %vm3257, %v2951
  %3405 = vst.msk [vmem:[%s3 + $0x24c] sm:$0xf] %vm3257, %v2952
  %3406 = vst.msk [vmem:[%s3 + $0x250] sm:$0xf] %vm3257, %v2953
  %3407 = vst.msk [vmem:[%s3 + $0x254] sm:$0xf] %vm3257, %v2954
  %3408 = vst.msk [vmem:[%s3 + $0x258] sm:$0xf] %vm3257, %v2955
  %3409 = vst.msk [vmem:[%s3 + $0x25c] sm:$0xf] %vm3257, %v2956
  %3410 = vst.msk [vmem:[%s3 + $0x260] sm:$0xf] %vm3257, %v2957
  %3411 = vst.msk [vmem:[%s3 + $0x264] sm:$0xf] %vm3257, %v2958
  %3412 = vst.msk [vmem:[%s3 + $0x268] sm:$0xf] %vm3257, %v2959
  %3413 = vst.msk [vmem:[%s3 + $0x26c] sm:$0xf] %vm3257, %v2960
  %3414 = vst.msk [vmem:[%s3 + $0x270] sm:$0xf] %vm3257, %v2961
  %3415 = vst.msk [vmem:[%s3 + $0x274] sm:$0xf] %vm3257, %v2962
  %3416 = vst.msk [vmem:[%s3 + $0x278] sm:$0xf] %vm3257, %v2963
  %3417 = vst.msk [vmem:[%s3 + $0x27c] sm:$0xf] %vm3257, %v2964
  %3418 = vst.msk [vmem:[%s3 + $0x280] sm:$0xf] %vm3257, %v2965
  %3419 = vst.msk [vmem:[%s3 + $0x284] sm:$0xf] %vm3257, %v2966
  %3420 = vst.msk [vmem:[%s3 + $0x288] sm:$0xf] %vm3257, %v2967
  %3421 = vst.msk [vmem:[%s3 + $0x28c] sm:$0xf] %vm3257, %v2968
  %3422 = vst.msk [vmem:[%s3 + $0x290] sm:$0xf] %vm3257, %v2969
  %3423 = vst.msk [vmem:[%s3 + $0x294] sm:$0xf] %vm3257, %v2970
  %3424 = vst.msk [vmem:[%s3 + $0x298] sm:$0xf] %vm3257, %v2971
  %3425 = vst.msk [vmem:[%s3 + $0x29c] sm:$0xf] %vm3257, %v2972
  %3426 = vst.msk [vmem:[%s3 + $0x2a0] sm:$0xf] %vm3257, %v2973
  %3427 = vst.msk [vmem:[%s3 + $0x2a4] sm:$0xf] %vm3257, %v2974
  %3428 = vst.msk [vmem:[%s3 + $0x2a8] sm:$0xf] %vm3257, %v2975
  %3429 = vst.msk [vmem:[%s3 + $0x2ac] sm:$0xf] %vm3257, %v2976
  %3430 = vst.msk [vmem:[%s3 + $0x2b0] sm:$0xf] %vm3257, %v2977
  %3431 = vst.msk [vmem:[%s3 + $0x2b4] sm:$0xf] %vm3257, %v2978
  %3432 = vst.msk [vmem:[%s3 + $0x2b8] sm:$0xf] %vm3257, %v2979
  %3433 = vst.msk [vmem:[%s3 + $0x2bc] sm:$0xf] %vm3257, %v2980
  %3434 = vst.msk [vmem:[%s3 + $0x2c0] sm:$0xf] %vm3257, %v2981
  %3435 = vst.msk [vmem:[%s3 + $0x2c4] sm:$0xf] %vm3257, %v2982
  %3436 = vst.msk [vmem:[%s3 + $0x2c8] sm:$0xf] %vm3257, %v2983
  %3437 = vst.msk [vmem:[%s3 + $0x2cc] sm:$0xf] %vm3257, %v2984
  %3438 = vst.msk [vmem:[%s3 + $0x2d0] sm:$0xf] %vm3257, %v2985
  %3439 = vst.msk [vmem:[%s3 + $0x2d4] sm:$0xf] %vm3257, %v2986
  %3440 = vst.msk [vmem:[%s3 + $0x2d8] sm:$0xf] %vm3257, %v2987
  %3441 = vst.msk [vmem:[%s3 + $0x2dc] sm:$0xf] %vm3257, %v2988
  %3442 = vst.msk [vmem:[%s3 + $0x2e0] sm:$0xf] %vm3257, %v2989
  %3443 = vst.msk [vmem:[%s3 + $0x2e4] sm:$0xf] %vm3257, %v2990
  %3444 = vst.msk [vmem:[%s3 + $0x2e8] sm:$0xf] %vm3257, %v2991
  %3445 = vst.msk [vmem:[%s3 + $0x2ec] sm:$0xf] %vm3257, %v2992
  %3446 = vst.msk [vmem:[%s3 + $0x2f0] sm:$0xf] %vm3257, %v2993
  %3447 = vst.msk [vmem:[%s3 + $0x2f4] sm:$0xf] %vm3257, %v2994
  %3448 = vst.msk [vmem:[%s3 + $0x2f8] sm:$0xf] %vm3257, %v2995
  %3449 = vst.msk [vmem:[%s3 + $0x2fc] sm:$0xf] %vm3257, %v2996
  %3450 = vst.msk [vmem:[%s3 + $0x300] sm:$0xf] %vm3257, %v2997
  %3451 = vst.msk [vmem:[%s3 + $0x304] sm:$0xf] %vm3257, %v2998
  %3452 = vst.msk [vmem:[%s3 + $0x308] sm:$0xf] %vm3257, %v2999
  %3453 = vst.msk [vmem:[%s3 + $0x30c] sm:$0xf] %vm3257, %v3000
  %3454 = vst.msk [vmem:[%s3 + $0x310] sm:$0xf] %vm3257, %v3001
  %3455 = vst.msk [vmem:[%s3 + $0x314] sm:$0xf] %vm3257, %v3002
  %3456 = vst.msk [vmem:[%s3 + $0x318] sm:$0xf] %vm3257, %v3003
  %3457 = vst.msk [vmem:[%s3 + $0x31c] sm:$0xf] %vm3257, %v3004
  %3458 = vst.msk [vmem:[%s3 + $0x320] sm:$0xf] %vm3257, %v3005
  %3459 = vst.msk [vmem:[%s3 + $0x324] sm:$0xf] %vm3257, %v3006
  %3460 = vst.msk [vmem:[%s3 + $0x328] sm:$0xf] %vm3257, %v3007
  %3461 = vst.msk [vmem:[%s3 + $0x32c] sm:$0xf] %vm3257, %v3008
  %3462 = vst.msk [vmem:[%s3 + $0x330] sm:$0xf] %vm3257, %v3009
  %3463 = vst.msk [vmem:[%s3 + $0x334] sm:$0xf] %vm3257, %v3010
  %3464 = vst.msk [vmem:[%s3 + $0x338] sm:$0xf] %vm3257, %v3011
  %3465 = vst.msk [vmem:[%s3 + $0x33c] sm:$0xf] %vm3257, %v3012
  %3466 = vst.msk [vmem:[%s3 + $0x340] sm:$0xf] %vm3257, %v3013
  %3467 = vst.msk [vmem:[%s3 + $0x344] sm:$0xf] %vm3257, %v3014
  %3468 = vst.msk [vmem:[%s3 + $0x348] sm:$0xf] %vm3257, %v3015
  %3469 = vst.msk [vmem:[%s3 + $0x34c] sm:$0xf] %vm3257, %v3016
  %3470 = vst.msk [vmem:[%s3 + $0x350] sm:$0xf] %vm3257, %v3017
  %3471 = vst.msk [vmem:[%s3 + $0x354] sm:$0xf] %vm3257, %v3018
  %3472 = vst.msk [vmem:[%s3 + $0x358] sm:$0xf] %vm3257, %v3019
  %3473 = vst.msk [vmem:[%s3 + $0x35c] sm:$0xf] %vm3257, %v3020
  %3474 = vst.msk [vmem:[%s3 + $0x360] sm:$0xf] %vm3257, %v3021
  %3475 = vst.msk [vmem:[%s3 + $0x364] sm:$0xf] %vm3257, %v3022
  %3476 = vst.msk [vmem:[%s3 + $0x368] sm:$0xf] %vm3257, %v3023
  %3477 = vst.msk [vmem:[%s3 + $0x36c] sm:$0xf] %vm3257, %v3024
  %3478 = vst.msk [vmem:[%s3 + $0x370] sm:$0xf] %vm3257, %v3025
  %3479 = vst.msk [vmem:[%s3 + $0x374] sm:$0xf] %vm3257, %v3026
  %3480 = vst.msk [vmem:[%s3 + $0x378] sm:$0xf] %vm3257, %v3027
  %3481 = vst.msk [vmem:[%s3 + $0x37c] sm:$0xf] %vm3257, %v3028
  %3482 = vst.msk [vmem:[%s3 + $0x380] sm:$0xf] %vm3257, %v3029
  %3483 = vst.msk [vmem:[%s3 + $0x384] sm:$0xf] %vm3257, %v3030
  // Predicated region
  $region14: #{net_forward.3} parent=0 // pred_check
    _
  $region15: #{net_forward.3} parent=0 // pred_check_branch
    %3485 = sbr.rel (0) target = $region17
  $region16: #{net_forward.3} parent=0 // pred_region
    _
  $region17: #{net_forward.3} parent=0 // pred_fallthru
    _
  // Predicated region
  $region18: #{net_forward.3} parent=0 // pred_check
    _
  $region19: #{net_forward.3} parent=0 // pred_check_branch
    %3487 = sbr.rel (0) target = $region21
  $region20: #{net_forward.3} parent=0 // pred_region
    _
  $region21: #{net_forward.3} parent=0 // pred_fallthru
    _

// kernel: net_forward.5
$region0: #{net_forward.5}
  #allocation0 [shape = 'u32[]', space=smem, size = 0x4, offset = 0x4, fixed_abs, tag = 'smem constant byte address 0x4 - core index']
  #allocation1 [shape = 'u32[144,128]{1,0:T(1,128)}', space=vmem, size = 0x12000, scoped, tag = 'internal scratch']
  #allocation2 [shape = 'f32[2,128]{1,0:T(2,128)}', space=vmem, size = 0x400, scoped, tag = 'scratch operand']
  %s0 = inlined_call_operand.vmem [shape: bf16[2,12544], index: 0, kind: input, shape index: {}]
  %s1 = inlined_call_operand.vmem [shape: bf16[12544,128], index: 1, kind: input, shape index: {}]
  %s2 = inlined_call_operand.vmem [shape: f32[1,128], index: 2, kind: input, shape index: {}]
  %s3 = inlined_call_operand.vmem [shape: f32[128,2], index: 3, kind: input, shape index: {}]
  %s4 = inlined_call_operand.vmem [shape: f32[1,2], index: 4, kind: input, shape index: {}]
  %s5 = inlined_call_operand.hbm [shape: f32[2,2], index: 5, kind: output, shape index: {}]
  %s6 = sld [smem:[#allocation0]]
  $region61: #{net_forward.5} parent=0
    _
  %s8 = ssub.s32 1, %s6
  %s9 = scalar_select 0, %s8, %s6
  $region1: #{net_forward.5} parent=0
    #allocation3 [shape = 'u8[1024]{0}', space=vmem, size = 0x400, scoped, tag = 'output window, operand 0, single buffered']
    #allocation4 [shape = 's32[2]{0}', space=sflag, size = 0x8, scoped, tag = 'scoped memory for net_forward.5']
    %10 = vsyncpa [#allocation4], 0
    loop: start=0, step=1, limit=9
    $region2: #{net_forward.5} parent=1 // loop_pre_header
      _
    $region3: #{net_forward.5} parent=1 // loop_header
      %s12 = sphi 0, %s16
      %p13 = scmp.ge.s32.totalorder %s12, 9
      %s22 = sphi 0, %s24
      %s25 = sphi 0, %s22
      %s26 = sphi 0, %s25
      %s42 = sphi 0, %s26
      %s48 = sphi 0, %s50
      %s51 = sphi 0, %s48
      %s52 = sphi 0, %s51
      %s68 = sphi 0, %s52
      %s72 = sphi 0, %s72
      %s74 = sphi 0, %s72
      %s75 = sphi 0, %s74
      %s89 = sphi 0, %s75
      %s93 = sphi 0, %s93
      %s95 = sphi 0, %s93
      %s96 = sphi 0, %s95
      %s110 = sphi 0, %s96
      %s114 = sphi 0, %s114
      %s116 = sphi 0, %s114
      %s117 = sphi 0, %s116
      %s131 = sphi 0, %s117
      %s135 = sphi 0, %s135
      %s137 = sphi 0, %s135
      %s138 = sphi 0, %s137
      %s152 = sphi 0, %s138
    $region4: #{net_forward.5} parent=1 // loop_header_branch
      %15 = sbr.rel (%p13) target = $region8
    $region5: #{net_forward.5} parent=1 // loop_body
      %s17 = ssub.s32 %s12, 1
      %s18 = ssub.s32 %s12, 2
      %s19 = sadd.s32 %s12, 1
      %s20 = ssub.s32 %s12, %s19
      %p21 = scmp.eq.s32.totalorder %s20, 0
      %s23 = sadd.s32 %s22, 1
      %s24 = scalar_select %p21, %s22, %s23
      %p27 = pneg %p21
      %p28 = scmp.eq.s32.totalorder %s12, 6
      %p29 = por %p27, %p28
      %p30 = scmp.ne.s32.totalorder %s22, %s25
      %p31 = scmp.eq.s32.totalorder %s12, 0
      %p32 = por %p30, %p31
      %p33 = scmp.ne.s32.totalorder %s22, %s25
      %p34 = scmp.eq.s32.totalorder %s17, 6
      %p35 = por %p33, %p34
      %p36 = scmp.ne.s32.totalorder %s25, %s26
      %p37 = scmp.eq.s32.totalorder %s17, 0
      %p38 = por %p36, %p37
      %p39 = scmp.ne.s32.totalorder %s25, %s26
      %p40 = scmp.eq.s32.totalorder %s18, 6
      %p41 = por %p39, %p40
      %p43 = scmp.ne.s32.totalorder %s26, %s42
      %p44 = scmp.eq.s32.totalorder %s18, 0
      %p45 = por %p43, %p44
      %s46 = ssub.s32 %s12, %s19
      %p47 = scmp.eq.s32.totalorder %s46, 0
      %s49 = sadd.s32 %s48, 1
      %s50 = scalar_select %p47, %s48, %s49
      %p53 = pneg %p47
      %p54 = scmp.eq.s32.totalorder %s12, 6
      %p55 = por %p53, %p54
      %p56 = scmp.ne.s32.totalorder %s48, %s51
      %p57 = scmp.eq.s32.totalorder %s12, 0
      %p58 = por %p56, %p57
      %p59 = scmp.ne.s32.totalorder %s48, %s51
      %p60 = scmp.eq.s32.totalorder %s17, 6
      %p61 = por %p59, %p60
      %p62 = scmp.ne.s32.totalorder %s51, %s52
      %p63 = scmp.eq.s32.totalorder %s17, 0
      %p64 = por %p62, %p63
      %p65 = scmp.ne.s32.totalorder %s51, %s52
      %p66 = scmp.eq.s32.totalorder %s18, 6
      %p67 = por %p65, %p66
      %p69 = scmp.ne.s32.totalorder %s52, %s68
      %p70 = scmp.eq.s32.totalorder %s18, 0
      %p71 = por %p69, %p70
      %s73 = sadd.s32 %s72, 1
      %p76 = scmp.eq.s32.totalorder %s12, 6
      %p77 = scmp.ne.s32.totalorder %s72, %s74
      %p78 = scmp.eq.s32.totalorder %s12, 0
      %p79 = por %p77, %p78
      %p80 = scmp.ne.s32.totalorder %s72, %s74
      %p81 = scmp.eq.s32.totalorder %s17, 6
      %p82 = por %p80, %p81
      %p83 = scmp.ne.s32.totalorder %s74, %s75
      %p84 = scmp.eq.s32.totalorder %s17, 0
      %p85 = por %p83, %p84
      %p86 = scmp.ne.s32.totalorder %s74, %s75
      %p87 = scmp.eq.s32.totalorder %s18, 6
      %p88 = por %p86, %p87
      %p90 = scmp.ne.s32.totalorder %s75, %s89
      %p91 = scmp.eq.s32.totalorder %s18, 0
      %p92 = por %p90, %p91
      %s94 = sadd.s32 %s93, 1
      %p97 = scmp.eq.s32.totalorder %s12, 6
      %p98 = scmp.ne.s32.totalorder %s93, %s95
      %p99 = scmp.eq.s32.totalorder %s12, 0
      %p100 = por %p98, %p99
      %p101 = scmp.ne.s32.totalorder %s93, %s95
      %p102 = scmp.eq.s32.totalorder %s17, 6
      %p103 = por %p101, %p102
      %p104 = scmp.ne.s32.totalorder %s95, %s96
      %p105 = scmp.eq.s32.totalorder %s17, 0
      %p106 = por %p104, %p105
      %p107 = scmp.ne.s32.totalorder %s95, %s96
      %p108 = scmp.eq.s32.totalorder %s18, 6
      %p109 = por %p107, %p108
      %p111 = scmp.ne.s32.totalorder %s96, %s110
      %p112 = scmp.eq.s32.totalorder %s18, 0
      %p113 = por %p111, %p112
      %s115 = sadd.s32 %s114, 1
      %p118 = scmp.eq.s32.totalorder %s12, 6
      %p119 = scmp.ne.s32.totalorder %s114, %s116
      %p120 = scmp.eq.s32.totalorder %s12, 0
      %p121 = por %p119, %p120
      %p122 = scmp.ne.s32.totalorder %s114, %s116
      %p123 = scmp.eq.s32.totalorder %s17, 6
      %p124 = por %p122, %p123
      %p125 = scmp.ne.s32.totalorder %s116, %s117
      %p126 = scmp.eq.s32.totalorder %s17, 0
      %p127 = por %p125, %p126
      %p128 = scmp.ne.s32.totalorder %s116, %s117
      %p129 = scmp.eq.s32.totalorder %s18, 6
      %p130 = por %p128, %p129
      %p132 = scmp.ne.s32.totalorder %s117, %s131
      %p133 = scmp.eq.s32.totalorder %s18, 0
      %p134 = por %p132, %p133
      %s136 = sadd.s32 %s135, 1
      %p139 = scmp.eq.s32.totalorder %s12, 6
      %p140 = scmp.ne.s32.totalorder %s135, %s137
      %p141 = scmp.eq.s32.totalorder %s12, 0
      %p142 = por %p140, %p141
      %p143 = scmp.ne.s32.totalorder %s135, %s137
      %p144 = scmp.eq.s32.totalorder %s17, 6
      %p145 = por %p143, %p144
      %p146 = scmp.ne.s32.totalorder %s137, %s138
      %p147 = scmp.eq.s32.totalorder %s17, 0
      %p148 = por %p146, %p147
      %p149 = scmp.ne.s32.totalorder %s137, %s138
      %p150 = scmp.eq.s32.totalorder %s18, 6
      %p151 = por %p149, %p150
      %p153 = scmp.ne.s32.totalorder %s138, %s152
      %p154 = scmp.eq.s32.totalorder %s18, 0
      %p155 = por %p153, %p154
      %p156 = scmp.le.s32.totalorder 1, %s12
      %p157 = scmp.lt.s32.totalorder %s12, 8
      %p158 = pnand %p156, %p157
      %p159 = pneg %p158
      // Predicated region
      $region9: #{net_forward.5} parent=5 // pred_check
        _
      $region10: #{net_forward.5} parent=5 // pred_check_branch
        %161 = sbr.rel (%p158) target = $region12
      $region11: #{net_forward.5} parent=5 // pred_region
        %s162 = ssub.s32 %s12, 1
        // Predicated region
        $region13: #{net_forward.5} parent=11 // pred_check
          %p163 = pneg %p85
        $region14: #{net_forward.5} parent=11 // pred_check_branch
          %165 = sbr.rel (%p163) target = $region16
        $region15: #{net_forward.5} parent=11 // pred_region
          _
        $region16: #{net_forward.5} parent=11 // pred_fallthru
          _
        // Predicated region
        $region17: #{net_forward.5} parent=11 // pred_check
          %p166 = pneg %p106
        $region18: #{net_forward.5} parent=11 // pred_check_branch
          %168 = sbr.rel (%p166) target = $region20
        $region19: #{net_forward.5} parent=11 // pred_region
          _
        $region20: #{net_forward.5} parent=11 // pred_fallthru
          _
        // Predicated region
        $region21: #{net_forward.5} parent=11 // pred_check
          %p169 = pneg %p127
        $region22: #{net_forward.5} parent=11 // pred_check_branch
          %171 = sbr.rel (%p169) target = $region24
        $region23: #{net_forward.5} parent=11 // pred_region
          _
        $region24: #{net_forward.5} parent=11 // pred_fallthru
          _
      $region12: #{net_forward.5} parent=5 // pred_fallthru
        _
      %p172 = scmp.lt.s32.totalorder %s12, 7
      // Predicated region
      $region25: #{net_forward.5} parent=5 // pred_check
        %p173 = pneg %p172
      $region26: #{net_forward.5} parent=5 // pred_check_branch
        %175 = sbr.rel (%p173) target = $region28
      $region27: #{net_forward.5} parent=5 // pred_region
        // Predicated region
        $region29: #{net_forward.5} parent=27 // pred_check
          %p176 = pneg %p32
        $region30: #{net_forward.5} parent=27 // pred_check_branch
          %178 = sbr.rel (%p176) target = $region32
        $region31: #{net_forward.5} parent=27 // pred_region
          %s179 = smul.u32 14, %s12
          %p180 = scmp.lt.s32.totalorder %s179, 97
          %s181 = scalar_select %p180, %s179, 97
          %s182 = scalar_lea.vmem %s0, %s181
          %s183 = smul.u32 14, %s12
        $region32: #{net_forward.5} parent=27 // pred_fallthru
          _
        // Predicated region
        $region33: #{net_forward.5} parent=27 // pred_check
          %p184 = pneg %p58
        $region34: #{net_forward.5} parent=27 // pred_check_branch
          %186 = sbr.rel (%p184) target = $region36
        $region35: #{net_forward.5} parent=27 // pred_region
          %s187 = smul.u32 224, %s12
          %p188 = scmp.lt.s32.totalorder %s187, 1567
          %s189 = scalar_select %p188, %s187, 1567
          %s190 = smul.addr %s189, 4
          %s191 = scalar_lea.vmem %s1, %s190
          %s192 = smul.u32 224, %s12
        $region36: #{net_forward.5} parent=27 // pred_fallthru
          _
      $region28: #{net_forward.5} parent=5 // pred_fallthru
        _
      %p193 = scmp.le.s32.totalorder 1, %s12
      %p194 = scmp.lt.s32.totalorder %s12, 8
      %p195 = pnand %p193, %p194
      %p196 = pneg %p195
      // Predicated region
      $region37: #{net_forward.5} parent=5 // pred_check
        _
      $region38: #{net_forward.5} parent=5 // pred_check_branch
        %198 = sbr.rel (%p195) target = $region40
      $region39: #{net_forward.5} parent=5 // pred_region
        %s199 = ssub.s32 %s12, 1
        %s200 = smul.u32 14, %s17
        %p201 = scmp.lt.s32.totalorder %s200, 97
        %s202 = scalar_select %p201, %s200, 97
        %s203 = scalar_lea.vmem %s0, %s202
        %p204 = pneg %p38
        %p205 = pneg %p35
        %s206 = smul.u32 224, %s17
        %p207 = scmp.lt.s32.totalorder %s206, 1567
        %s208 = scalar_select %p207, %s206, 1567
        %s209 = smul.addr %s208, 4
        %s210 = scalar_lea.vmem %s1, %s209
        %p211 = pneg %p64
        %p212 = pneg %p61
        %p213 = pneg %p85
        %p214 = pneg %p82
        %p215 = pneg %p106
        %p216 = pneg %p103
        %p217 = pneg %p127
        %p218 = pneg %p124
        %p219 = pneg %p148
        %p220 = pneg %p145
        %s221 = smul.u32 14, %s17
        %p222 = scmp.lt.s32.totalorder %s221, 97
        %s223 = scalar_select %p222, %s221, 97
        %s224 = scalar_lea.vmem %s0, %s223
        %s225 = smul.u32 14, %s17
        %s226 = smul.u32 224, %s17
        %p227 = scmp.lt.s32.totalorder %s226, 1567
        %s228 = scalar_select %p227, %s226, 1567
        %s229 = smul.addr %s228, 4
        %s230 = scalar_lea.vmem %s1, %s229
        %s231 = smul.u32 224, %s17
        %p233 = scmp.eq.s32.totalorder %s17, 0
        // Predicated region
        $region41: #{net_forward.5} parent=39 // pred_check
          %p234 = pneg %p233
        $region42: #{net_forward.5} parent=39 // pred_check_branch
          %236 = sbr.rel (%p234) target = $region44
        $region43: #{net_forward.5} parent=39 // pred_region
          %237 = vst [vmem:[#allocation2] sm:$0x3] 0.0
        $region44: #{net_forward.5} parent=39 // pred_fallthru
          _
        %v238 = vld [vmem:[#allocation2] sm:$0x3]
        %v239 = vld [vmem:[%s224] sm:$0xff]
        %v240 = vld [vmem:[%s224 + $0x8] sm:$0x3f]
        %v241 = vld [vmem:[%s230] sm:$0xf]
        %v242 = vld [vmem:[%s230 + $0x4] sm:$0xf]
        %v243 = vld [vmem:[%s230 + $0x8] sm:$0xf]
        %v244 = vld [vmem:[%s230 + $0xc] sm:$0xf]
        %v245 = vld [vmem:[%s230 + $0x10] sm:$0xf]
        %v246 = vld [vmem:[%s230 + $0x14] sm:$0xf]
        %v247 = vld [vmem:[%s230 + $0x18] sm:$0xf]
        %v248 = vld [vmem:[%s230 + $0x1c] sm:$0xf]
        %v249 = vld [vmem:[%s230 + $0x20] sm:$0xf]
        %v250 = vld [vmem:[%s230 + $0x24] sm:$0xf]
        %v251 = vld [vmem:[%s230 + $0x28] sm:$0xf]
        %v252 = vld [vmem:[%s230 + $0x2c] sm:$0xf]
        %v253 = vld [vmem:[%s230 + $0x30] sm:$0xf]
        %v254 = vld [vmem:[%s230 + $0x34] sm:$0xf]
        %v255 = vld [vmem:[%s230 + $0x38] sm:$0xf]
        %v256 = vld [vmem:[%s230 + $0x3c] sm:$0xf]
        %v257 = vld [vmem:[%s230 + $0x40] sm:$0xf]
        %v258 = vld [vmem:[%s230 + $0x44] sm:$0xf]
        %v259 = vld [vmem:[%s230 + $0x48] sm:$0xf]
        %v260 = vld [vmem:[%s230 + $0x4c] sm:$0xf]
        %v261 = vld [vmem:[%s230 + $0x50] sm:$0xf]
        %v262 = vld [vmem:[%s230 + $0x54] sm:$0xf]
        %v263 = vld [vmem:[%s230 + $0x58] sm:$0xf]
        %v264 = vld [vmem:[%s230 + $0x5c] sm:$0xf]
        %v265 = vld [vmem:[%s230 + $0x60] sm:$0xf]
        %v266 = vld [vmem:[%s230 + $0x64] sm:$0xf]
        %v267 = vld [vmem:[%s230 + $0x68] sm:$0xf]
        %v268 = vld [vmem:[%s230 + $0x6c] sm:$0xf]
        %v269 = vld [vmem:[%s230 + $0x70] sm:$0xf]
        %v270 = vld [vmem:[%s230 + $0x74] sm:$0xf]
        %v271 = vld [vmem:[%s230 + $0x78] sm:$0xf]
        %v272 = vld [vmem:[%s230 + $0x7c] sm:$0xf]
        %v273 = vld [vmem:[%s230 + $0x80] sm:$0xf]
        %v274 = vld [vmem:[%s230 + $0x84] sm:$0xf]
        %v275 = vld [vmem:[%s230 + $0x88] sm:$0xf]
        %v276 = vld [vmem:[%s230 + $0x8c] sm:$0xf]
        %v277 = vld [vmem:[%s230 + $0x90] sm:$0xf]
        %v278 = vld [vmem:[%s230 + $0x94] sm:$0xf]
        %v279 = vld [vmem:[%s230 + $0x98] sm:$0xf]
        %v280 = vld [vmem:[%s230 + $0x9c] sm:$0xf]
        %v281 = vld [vmem:[%s230 + $0xa0] sm:$0xf]
        %v282 = vld [vmem:[%s230 + $0xa4] sm:$0xf]
        %v283 = vld [vmem:[%s230 + $0xa8] sm:$0xf]
        %v284 = vld [vmem:[%s230 + $0xac] sm:$0xf]
        %v285 = vld [vmem:[%s230 + $0xb0] sm:$0xf]
        %v286 = vld [vmem:[%s230 + $0xb4] sm:$0xf]
        %v287 = vld [vmem:[%s230 + $0xb8] sm:$0xf]
        %v288 = vld [vmem:[%s230 + $0xbc] sm:$0xf]
        %v289 = vld [vmem:[%s230 + $0xc0] sm:$0xf]
        %v290 = vld [vmem:[%s230 + $0xc4] sm:$0xf]
        %v291 = vld [vmem:[%s230 + $0xc8] sm:$0xf]
        %v292 = vld [vmem:[%s230 + $0xcc] sm:$0xf]
        %v293 = vld [vmem:[%s230 + $0xd0] sm:$0xf]
        %v294 = vld [vmem:[%s230 + $0xd4] sm:$0xf]
        %v295 = vld [vmem:[%s230 + $0xd8] sm:$0xf]
        %v296 = vld [vmem:[%s230 + $0xdc] sm:$0xf]
        %v297 = vld [vmem:[%s230 + $0xe0] sm:$0xf]
        %v298 = vld [vmem:[%s230 + $0xe4] sm:$0xf]
        %v299 = vld [vmem:[%s230 + $0xe8] sm:$0xf]
        %v300 = vld [vmem:[%s230 + $0xec] sm:$0xf]
        %v301 = vld [vmem:[%s230 + $0xf0] sm:$0xf]
        %v302 = vld [vmem:[%s230 + $0xf4] sm:$0xf]
        %v303 = vld [vmem:[%s230 + $0xf8] sm:$0xf]
        %v304 = vld [vmem:[%s230 + $0xfc] sm:$0xf]
        %v305 = vld [vmem:[%s230 + $0x100] sm:$0xf]
        %v306 = vld [vmem:[%s230 + $0x104] sm:$0xf]
        %v307 = vld [vmem:[%s230 + $0x108] sm:$0xf]
        %v308 = vld [vmem:[%s230 + $0x10c] sm:$0xf]
        %v309 = vld [vmem:[%s230 + $0x110] sm:$0xf]
        %v310 = vld [vmem:[%s230 + $0x114] sm:$0xf]
        %v311 = vld [vmem:[%s230 + $0x118] sm:$0xf]
        %v312 = vld [vmem:[%s230 + $0x11c] sm:$0xf]
        %v313 = vld [vmem:[%s230 + $0x120] sm:$0xf]
        %v314 = vld [vmem:[%s230 + $0x124] sm:$0xf]
        %v315 = vld [vmem:[%s230 + $0x128] sm:$0xf]
        %v316 = vld [vmem:[%s230 + $0x12c] sm:$0xf]
        %v317 = vld [vmem:[%s230 + $0x130] sm:$0xf]
        %v318 = vld [vmem:[%s230 + $0x134] sm:$0xf]
        %v319 = vld [vmem:[%s230 + $0x138] sm:$0xf]
        %v320 = vld [vmem:[%s230 + $0x13c] sm:$0xf]
        %v321 = vld [vmem:[%s230 + $0x140] sm:$0xf]
        %v322 = vld [vmem:[%s230 + $0x144] sm:$0xf]
        %v323 = vld [vmem:[%s230 + $0x148] sm:$0xf]
        %v324 = vld [vmem:[%s230 + $0x14c] sm:$0xf]
        %v325 = vld [vmem:[%s230 + $0x150] sm:$0xf]
        %v326 = vld [vmem:[%s230 + $0x154] sm:$0xf]
        %v327 = vld [vmem:[%s230 + $0x158] sm:$0xf]
        %v328 = vld [vmem:[%s230 + $0x15c] sm:$0xf]
        %v329 = vld [vmem:[%s230 + $0x160] sm:$0xf]
        %v330 = vld [vmem:[%s230 + $0x164] sm:$0xf]
        %v331 = vld [vmem:[%s230 + $0x168] sm:$0xf]
        %v332 = vld [vmem:[%s230 + $0x16c] sm:$0xf]
        %v333 = vld [vmem:[%s230 + $0x170] sm:$0xf]
        %v334 = vld [vmem:[%s230 + $0x174] sm:$0xf]
        %v335 = vld [vmem:[%s230 + $0x178] sm:$0xf]
        %v336 = vld [vmem:[%s230 + $0x17c] sm:$0xf]
        %v337 = vld [vmem:[%s230 + $0x180] sm:$0xf]
        %v338 = vld [vmem:[%s230 + $0x184] sm:$0xf]
        %v339 = vld [vmem:[%s230 + $0x188] sm:$0xf]
        %v340 = vld [vmem:[%s230 + $0x18c] sm:$0xf]
        %v341 = vld [vmem:[%s230 + $0x190] sm:$0xf]
        %v342 = vld [vmem:[%s230 + $0x194] sm:$0xf]
        %v343 = vld [vmem:[%s230 + $0x198] sm:$0xf]
        %v344 = vld [vmem:[%s230 + $0x19c] sm:$0xf]
        %v345 = vld [vmem:[%s230 + $0x1a0] sm:$0xf]
        %v346 = vld [vmem:[%s230 + $0x1a4] sm:$0xf]
        %v347 = vld [vmem:[%s230 + $0x1a8] sm:$0xf]
        %v348 = vld [vmem:[%s230 + $0x1ac] sm:$0xf]
        %v349 = vld [vmem:[%s230 + $0x1b0] sm:$0xf]
        %v350 = vld [vmem:[%s230 + $0x1b4] sm:$0xf]
        %v351 = vld [vmem:[%s230 + $0x1b8] sm:$0xf]
        %v352 = vld [vmem:[%s230 + $0x1bc] sm:$0xf]
        %v353 = vld [vmem:[%s230 + $0x1c0] sm:$0xf]
        %v354 = vld [vmem:[%s230 + $0x1c4] sm:$0xf]
        %v355 = vld [vmem:[%s230 + $0x1c8] sm:$0xf]
        %v356 = vld [vmem:[%s230 + $0x1cc] sm:$0xf]
        %v357 = vld [vmem:[%s230 + $0x1d0] sm:$0xf]
        %v358 = vld [vmem:[%s230 + $0x1d4] sm:$0xf]
        %v359 = vld [vmem:[%s230 + $0x1d8] sm:$0xf]
        %v360 = vld [vmem:[%s230 + $0x1dc] sm:$0xf]
        %v361 = vld [vmem:[%s230 + $0x1e0] sm:$0xf]
        %v362 = vld [vmem:[%s230 + $0x1e4] sm:$0xf]
        %v363 = vld [vmem:[%s230 + $0x1e8] sm:$0xf]
        %v364 = vld [vmem:[%s230 + $0x1ec] sm:$0xf]
        %v365 = vld [vmem:[%s230 + $0x1f0] sm:$0xf]
        %v366 = vld [vmem:[%s230 + $0x1f4] sm:$0xf]
        %v367 = vld [vmem:[%s230 + $0x1f8] sm:$0xf]
        %v368 = vld [vmem:[%s230 + $0x1fc] sm:$0xf]
        %v369 = vld [vmem:[%s230 + $0x200] sm:$0xf]
        %v370 = vld [vmem:[%s230 + $0x204] sm:$0xf]
        %v371 = vld [vmem:[%s230 + $0x208] sm:$0xf]
        %v372 = vld [vmem:[%s230 + $0x20c] sm:$0xf]
        %v373 = vld [vmem:[%s230 + $0x210] sm:$0xf]
        %v374 = vld [vmem:[%s230 + $0x214] sm:$0xf]
        %v375 = vld [vmem:[%s230 + $0x218] sm:$0xf]
        %v376 = vld [vmem:[%s230 + $0x21c] sm:$0xf]
        %v377 = vld [vmem:[%s230 + $0x220] sm:$0xf]
        %v378 = vld [vmem:[%s230 + $0x224] sm:$0xf]
        %v379 = vld [vmem:[%s230 + $0x228] sm:$0xf]
        %v380 = vld [vmem:[%s230 + $0x22c] sm:$0xf]
        %v381 = vld [vmem:[%s230 + $0x230] sm:$0xf]
        %v382 = vld [vmem:[%s230 + $0x234] sm:$0xf]
        %v383 = vld [vmem:[%s230 + $0x238] sm:$0xf]
        %v384 = vld [vmem:[%s230 + $0x23c] sm:$0xf]
        %v385 = vld [vmem:[%s230 + $0x240] sm:$0xf]
        %v386 = vld [vmem:[%s230 + $0x244] sm:$0xf]
        %v387 = vld [vmem:[%s230 + $0x248] sm:$0xf]
        %v388 = vld [vmem:[%s230 + $0x24c] sm:$0xf]
        %v389 = vld [vmem:[%s230 + $0x250] sm:$0xf]
        %v390 = vld [vmem:[%s230 + $0x254] sm:$0xf]
        %v391 = vld [vmem:[%s230 + $0x258] sm:$0xf]
        %v392 = vld [vmem:[%s230 + $0x25c] sm:$0xf]
        %v393 = vld [vmem:[%s230 + $0x260] sm:$0xf]
        %v394 = vld [vmem:[%s230 + $0x264] sm:$0xf]
        %v395 = vld [vmem:[%s230 + $0x268] sm:$0xf]
        %v396 = vld [vmem:[%s230 + $0x26c] sm:$0xf]
        %v397 = vld [vmem:[%s230 + $0x270] sm:$0xf]
        %v398 = vld [vmem:[%s230 + $0x274] sm:$0xf]
        %v399 = vld [vmem:[%s230 + $0x278] sm:$0xf]
        %v400 = vld [vmem:[%s230 + $0x27c] sm:$0xf]
        %v401 = vld [vmem:[%s230 + $0x280] sm:$0xf]
        %v402 = vld [vmem:[%s230 + $0x284] sm:$0xf]
        %v403 = vld [vmem:[%s230 + $0x288] sm:$0xf]
        %v404 = vld [vmem:[%s230 + $0x28c] sm:$0xf]
        %v405 = vld [vmem:[%s230 + $0x290] sm:$0xf]
        %v406 = vld [vmem:[%s230 + $0x294] sm:$0xf]
        %v407 = vld [vmem:[%s230 + $0x298] sm:$0xf]
        %v408 = vld [vmem:[%s230 + $0x29c] sm:$0xf]
        %v409 = vld [vmem:[%s230 + $0x2a0] sm:$0xf]
        %v410 = vld [vmem:[%s230 + $0x2a4] sm:$0xf]
        %v411 = vld [vmem:[%s230 + $0x2a8] sm:$0xf]
        %v412 = vld [vmem:[%s230 + $0x2ac] sm:$0xf]
        %v413 = vld [vmem:[%s230 + $0x2b0] sm:$0xf]
        %v414 = vld [vmem:[%s230 + $0x2b4] sm:$0xf]
        %v415 = vld [vmem:[%s230 + $0x2b8] sm:$0xf]
        %v416 = vld [vmem:[%s230 + $0x2bc] sm:$0xf]
        %v417 = vld [vmem:[%s230 + $0x2c0] sm:$0xf]
        %v418 = vld [vmem:[%s230 + $0x2c4] sm:$0xf]
        %v419 = vld [vmem:[%s230 + $0x2c8] sm:$0xf]
        %v420 = vld [vmem:[%s230 + $0x2cc] sm:$0xf]
        %v421 = vld [vmem:[%s230 + $0x2d0] sm:$0xf]
        %v422 = vld [vmem:[%s230 + $0x2d4] sm:$0xf]
        %v423 = vld [vmem:[%s230 + $0x2d8] sm:$0xf]
        %v424 = vld [vmem:[%s230 + $0x2dc] sm:$0xf]
        %v425 = vld [vmem:[%s230 + $0x2e0] sm:$0xf]
        %v426 = vld [vmem:[%s230 + $0x2e4] sm:$0xf]
        %v427 = vld [vmem:[%s230 + $0x2e8] sm:$0xf]
        %v428 = vld [vmem:[%s230 + $0x2ec] sm:$0xf]
        %v429 = vld [vmem:[%s230 + $0x2f0] sm:$0xf]
        %v430 = vld [vmem:[%s230 + $0x2f4] sm:$0xf]
        %v431 = vld [vmem:[%s230 + $0x2f8] sm:$0xf]
        %v432 = vld [vmem:[%s230 + $0x2fc] sm:$0xf]
        %v433 = vld [vmem:[%s230 + $0x300] sm:$0xf]
        %v434 = vld [vmem:[%s230 + $0x304] sm:$0xf]
        %v435 = vld [vmem:[%s230 + $0x308] sm:$0xf]
        %v436 = vld [vmem:[%s230 + $0x30c] sm:$0xf]
        %v437 = vld [vmem:[%s230 + $0x310] sm:$0xf]
        %v438 = vld [vmem:[%s230 + $0x314] sm:$0xf]
        %v439 = vld [vmem:[%s230 + $0x318] sm:$0xf]
        %v440 = vld [vmem:[%s230 + $0x31c] sm:$0xf]
        %v441 = vld [vmem:[%s230 + $0x320] sm:$0xf]
        %v442 = vld [vmem:[%s230 + $0x324] sm:$0xf]
        %v443 = vld [vmem:[%s230 + $0x328] sm:$0xf]
        %v444 = vld [vmem:[%s230 + $0x32c] sm:$0xf]
        %v445 = vld [vmem:[%s230 + $0x330] sm:$0xf]
        %v446 = vld [vmem:[%s230 + $0x334] sm:$0xf]
        %v447 = vld [vmem:[%s230 + $0x338] sm:$0xf]
        %v448 = vld [vmem:[%s230 + $0x33c] sm:$0xf]
        %v449 = vld [vmem:[%s230 + $0x340] sm:$0xf]
        %v450 = vld [vmem:[%s230 + $0x344] sm:$0xf]
        %v451 = vld [vmem:[%s230 + $0x348] sm:$0xf]
        %v452 = vld [vmem:[%s230 + $0x34c] sm:$0xf]
        %v453 = vld [vmem:[%s230 + $0x350] sm:$0xf]
        %v454 = vld [vmem:[%s230 + $0x354] sm:$0xf]
        %v455 = vld [vmem:[%s230 + $0x358] sm:$0xf]
        %v456 = vld [vmem:[%s230 + $0x35c] sm:$0xf]
        %v457 = vld [vmem:[%s230 + $0x360] sm:$0xf]
        %v458 = vld [vmem:[%s230 + $0x364] sm:$0xf]
        %v459 = vld [vmem:[%s230 + $0x368] sm:$0xf]
        %v460 = vld [vmem:[%s230 + $0x36c] sm:$0xf]
        %v461 = vld [vmem:[%s230 + $0x370] sm:$0xf]
        %v462 = vld [vmem:[%s230 + $0x374] sm:$0xf]
        %v463 = vld [vmem:[%s230 + $0x378] sm:$0xf]
        %v464 = vld [vmem:[%s230 + $0x37c] sm:$0xf]
        %v467 = vcombine.high %v239, %v239
        %v469 = vunpack.c.l.s4 1966171168
        %v470 = vunpack.c.0.s8 %v469
        %v471 = vlaneseq
        %v472 = vshrl.u32 %v471, 7
        %v473 = vsub.s32 %v470, %v472
        %v474 = vrot.slane %v239, %v473
        %v476 = vunpack.c.l.s4 1966171168
        %v477 = vunpack.c.0.s8 %v476
        %v478 = vlaneseq
        %v479 = vshrl.u32 %v478, 7
        %v480 = vsub.s32 %v477, %v479
        %v481 = vrot.slane %v467, %v480
        %v482 = vcombine.high %v474, %v474
        %v483 = vcombine.high %v481, %v481
        %v485 = vunpack.c.l.s4 1966171168
        %v486 = vunpack.c.0.s8 %v485
        %v487 = vlaneseq
        %v488 = vshrl.u32 %v487, 7
        %v489 = vsub.s32 %v486, %v488
        %v490 = vrot.slane %v474, %v489
        %v492 = vunpack.c.l.s4 1966171168
        %v493 = vunpack.c.0.s8 %v492
        %v494 = vlaneseq
        %v495 = vshrl.u32 %v494, 7
        %v496 = vsub.s32 %v493, %v495
        %v497 = vrot.slane %v481, %v496
        %v499 = vunpack.c.l.s4 1966171168
        %v500 = vunpack.c.0.s8 %v499
        %v501 = vlaneseq
        %v502 = vshrl.u32 %v501, 7
        %v503 = vsub.s32 %v500, %v502
        %v504 = vrot.slane %v482, %v503
        %v506 = vunpack.c.l.s4 1966171168
        %v507 = vunpack.c.0.s8 %v506
        %v508 = vlaneseq
        %v509 = vshrl.u32 %v508, 7
        %v510 = vsub.s32 %v507, %v509
        %v511 = vrot.slane %v483, %v510
        %v512 = vcombine.high %v490, %v490
        %v513 = vcombine.high %v497, %v497
        %v514 = vcombine.high %v504, %v504
        %v515 = vcombine.high %v511, %v511
        %v516 = vcombine.high %v240, %v240
        %v518 = vunpack.c.l.s4 1966171168
        %v519 = vunpack.c.0.s8 %v518
        %v520 = vlaneseq
        %v521 = vshrl.u32 %v520, 7
        %v522 = vsub.s32 %v519, %v521
        %v523 = vrot.slane %v240, %v522
        %v525 = vunpack.c.l.s4 1966171168
        %v526 = vunpack.c.0.s8 %v525
        %v527 = vlaneseq
        %v528 = vshrl.u32 %v527, 7
        %v529 = vsub.s32 %v526, %v528
        %v530 = vrot.slane %v516, %v529
        %v531 = vcombine.high %v523, %v523
        %v532 = vcombine.high %v530, %v530
        %v534 = vunpack.c.l.s4 1966171168
        %v535 = vunpack.c.0.s8 %v534
        %v536 = vlaneseq
        %v537 = vshrl.u32 %v536, 7
        %v538 = vsub.s32 %v535, %v537
        %v539 = vrot.slane %v523, %v538
        %v541 = vunpack.c.l.s4 1966171168
        %v542 = vunpack.c.0.s8 %v541
        %v543 = vlaneseq
        %v544 = vshrl.u32 %v543, 7
        %v545 = vsub.s32 %v542, %v544
        %v546 = vrot.slane %v530, %v545
        %v548 = vunpack.c.l.s4 1966171168
        %v549 = vunpack.c.0.s8 %v548
        %v550 = vlaneseq
        %v551 = vshrl.u32 %v550, 7
        %v552 = vsub.s32 %v549, %v551
        %v553 = vrot.slane %v531, %v552
        %v555 = vunpack.c.l.s4 1966171168
        %v556 = vunpack.c.0.s8 %v555
        %v557 = vlaneseq
        %v558 = vshrl.u32 %v557, 7
        %v559 = vsub.s32 %v556, %v558
        %v560 = vrot.slane %v532, %v559
        %v561 = vcombine.high %v539, %v539
        %v562 = vcombine.high %v553, %v553
        %v801 = vunpack.c.l.b16 %v241
        %v802 = vunpack.c.l.b16 %v242
        %v803 = vunpack.c.l.b16 %v243
        %v804 = vunpack.c.l.b16 %v244
        %v805 = vunpack.c.l.b16 %v245
        %v806 = vunpack.c.l.b16 %v246
        %v807 = vunpack.c.l.b16 %v247
        %v808 = vunpack.c.l.b16 %v248
        %v809 = vunpack.c.l.b16 %v249
        %v810 = vunpack.c.l.b16 %v250
        %v811 = vunpack.c.l.b16 %v251
        %v812 = vunpack.c.l.b16 %v252
        %v813 = vunpack.c.l.b16 %v253
        %v814 = vunpack.c.l.b16 %v254
        %v815 = vunpack.c.l.b16 %v255
        %v816 = vunpack.c.l.b16 %v256
        %v817 = vunpack.c.l.b16 %v257
        %v818 = vunpack.c.l.b16 %v258
        %v819 = vunpack.c.l.b16 %v259
        %v820 = vunpack.c.l.b16 %v260
        %v821 = vunpack.c.l.b16 %v261
        %v822 = vunpack.c.l.b16 %v262
        %v823 = vunpack.c.l.b16 %v263
        %v824 = vunpack.c.l.b16 %v264
        %v825 = vunpack.c.l.b16 %v265
        %v826 = vunpack.c.l.b16 %v266
        %v827 = vunpack.c.l.b16 %v267
        %v828 = vunpack.c.l.b16 %v268
        %v829 = vunpack.c.l.b16 %v269
        %v830 = vunpack.c.l.b16 %v270
        %v831 = vunpack.c.l.b16 %v271
        %v832 = vunpack.c.l.b16 %v272
        %v833 = vunpack.c.l.b16 %v273
        %v834 = vunpack.c.l.b16 %v274
        %v835 = vunpack.c.l.b16 %v275
        %v836 = vunpack.c.l.b16 %v276
        %v837 = vunpack.c.l.b16 %v277
        %v838 = vunpack.c.l.b16 %v278
        %v839 = vunpack.c.l.b16 %v279
        %v840 = vunpack.c.l.b16 %v280
        %v841 = vunpack.c.l.b16 %v281
        %v842 = vunpack.c.l.b16 %v282
        %v843 = vunpack.c.l.b16 %v283
        %v844 = vunpack.c.l.b16 %v284
        %v845 = vunpack.c.l.b16 %v285
        %v846 = vunpack.c.l.b16 %v286
        %v847 = vunpack.c.l.b16 %v287
        %v848 = vunpack.c.l.b16 %v288
        %v849 = vunpack.c.l.b16 %v289
        %v850 = vunpack.c.l.b16 %v290
        %v851 = vunpack.c.l.b16 %v291
        %v852 = vunpack.c.l.b16 %v292
        %v853 = vunpack.c.l.b16 %v293
        %v854 = vunpack.c.l.b16 %v294
        %v855 = vunpack.c.l.b16 %v295
        %v856 = vunpack.c.l.b16 %v296
        %v857 = vunpack.c.l.b16 %v297
        %v858 = vunpack.c.l.b16 %v298
        %v859 = vunpack.c.l.b16 %v299
        %v860 = vunpack.c.l.b16 %v300
        %v861 = vunpack.c.l.b16 %v301
        %v862 = vunpack.c.l.b16 %v302
        %v863 = vunpack.c.l.b16 %v303
        %v864 = vunpack.c.l.b16 %v304
        %v865 = vunpack.c.l.b16 %v305
        %v866 = vunpack.c.l.b16 %v306
        %v867 = vunpack.c.l.b16 %v307
        %v868 = vunpack.c.l.b16 %v308
        %v869 = vunpack.c.l.b16 %v309
        %v870 = vunpack.c.l.b16 %v310
        %v871 = vunpack.c.l.b16 %v311
        %v872 = vunpack.c.l.b16 %v312
        %v873 = vunpack.c.l.b16 %v313
        %v874 = vunpack.c.l.b16 %v314
        %v875 = vunpack.c.l.b16 %v315
        %v876 = vunpack.c.l.b16 %v316
        %v877 = vunpack.c.l.b16 %v317
        %v878 = vunpack.c.l.b16 %v318
        %v879 = vunpack.c.l.b16 %v319
        %v880 = vunpack.c.l.b16 %v320
        %v881 = vunpack.c.l.b16 %v321
        %v882 = vunpack.c.l.b16 %v322
        %v883 = vunpack.c.l.b16 %v323
        %v884 = vunpack.c.l.b16 %v324
        %v885 = vunpack.c.l.b16 %v325
        %v886 = vunpack.c.l.b16 %v326
        %v887 = vunpack.c.l.b16 %v327
        %v888 = vunpack.c.l.b16 %v328
        %v889 = vunpack.c.l.b16 %v329
        %v890 = vunpack.c.l.b16 %v330
        %v891 = vunpack.c.l.b16 %v331
        %v892 = vunpack.c.l.b16 %v332
        %v893 = vunpack.c.l.b16 %v333
        %v894 = vunpack.c.l.b16 %v334
        %v895 = vunpack.c.l.b16 %v335
        %v896 = vunpack.c.l.b16 %v336
        %v897 = vunpack.c.l.b16 %v337
        %v898 = vunpack.c.l.b16 %v338
        %v899 = vunpack.c.l.b16 %v339
        %v900 = vunpack.c.l.b16 %v340
        %v901 = vunpack.c.l.b16 %v341
        %v902 = vunpack.c.l.b16 %v342
        %v903 = vunpack.c.l.b16 %v343
        %v904 = vunpack.c.l.b16 %v344
        %v905 = vunpack.c.l.b16 %v345
        %v906 = vunpack.c.l.b16 %v346
        %v907 = vunpack.c.l.b16 %v347
        %v908 = vunpack.c.l.b16 %v348
        %v909 = vunpack.c.l.b16 %v349
        %v910 = vunpack.c.l.b16 %v350
        %v911 = vunpack.c.l.b16 %v351
        %v912 = vunpack.c.l.b16 %v352
        %v913 = vunpack.c.l.b16 %v353
        %v914 = vunpack.c.l.b16 %v354
        %v915 = vunpack.c.l.b16 %v355
        %v916 = vunpack.c.l.b16 %v356
        %v917 = vunpack.c.l.b16 %v357
        %v918 = vunpack.c.l.b16 %v358
        %v919 = vunpack.c.l.b16 %v359
        %v920 = vunpack.c.l.b16 %v360
        %v921 = vunpack.c.l.b16 %v361
        %v922 = vunpack.c.l.b16 %v362
        %v923 = vunpack.c.l.b16 %v363
        %v924 = vunpack.c.l.b16 %v364
        %v925 = vunpack.c.l.b16 %v365
        %v926 = vunpack.c.l.b16 %v366
        %v927 = vunpack.c.l.b16 %v367
        %v928 = vunpack.c.l.b16 %v368
        %v929 = vunpack.c.l.b16 %v369
        %v930 = vunpack.c.l.b16 %v370
        %v931 = vunpack.c.l.b16 %v371
        %v932 = vunpack.c.l.b16 %v372
        %v933 = vunpack.c.l.b16 %v373
        %v934 = vunpack.c.l.b16 %v374
        %v935 = vunpack.c.l.b16 %v375
        %v936 = vunpack.c.l.b16 %v376
        %v937 = vunpack.c.l.b16 %v377
        %v938 = vunpack.c.l.b16 %v378
        %v939 = vunpack.c.l.b16 %v379
        %v940 = vunpack.c.l.b16 %v380
        %v941 = vunpack.c.l.b16 %v381
        %v942 = vunpack.c.l.b16 %v382
        %v943 = vunpack.c.l.b16 %v383
        %v944 = vunpack.c.l.b16 %v384
        %v945 = vunpack.c.l.b16 %v385
        %v946 = vunpack.c.l.b16 %v386
        %v947 = vunpack.c.l.b16 %v387
        %v948 = vunpack.c.l.b16 %v388
        %v949 = vunpack.c.l.b16 %v389
        %v950 = vunpack.c.l.b16 %v390
        %v951 = vunpack.c.l.b16 %v391
        %v952 = vunpack.c.l.b16 %v392
        %v953 = vunpack.c.l.b16 %v393
        %v954 = vunpack.c.l.b16 %v394
        %v955 = vunpack.c.l.b16 %v395
        %v956 = vunpack.c.l.b16 %v396
        %v957 = vunpack.c.l.b16 %v397
        %v958 = vunpack.c.l.b16 %v398
        %v959 = vunpack.c.l.b16 %v399
        %v960 = vunpack.c.l.b16 %v400
        %v961 = vunpack.c.l.b16 %v401
        %v962 = vunpack.c.l.b16 %v402
        %v963 = vunpack.c.l.b16 %v403
        %v964 = vunpack.c.l.b16 %v404
        %v965 = vunpack.c.l.b16 %v405
        %v966 = vunpack.c.l.b16 %v406
        %v967 = vunpack.c.l.b16 %v407
        %v968 = vunpack.c.l.b16 %v408
        %v969 = vunpack.c.l.b16 %v409
        %v970 = vunpack.c.l.b16 %v410
        %v971 = vunpack.c.l.b16 %v411
        %v972 = vunpack.c.l.b16 %v412
        %v973 = vunpack.c.l.b16 %v413
        %v974 = vunpack.c.l.b16 %v414
        %v975 = vunpack.c.l.b16 %v415
        %v976 = vunpack.c.l.b16 %v416
        %v977 = vunpack.c.l.b16 %v417
        %v978 = vunpack.c.l.b16 %v418
        %v979 = vunpack.c.l.b16 %v419
        %v980 = vunpack.c.l.b16 %v420
        %v981 = vunpack.c.l.b16 %v421
        %v982 = vunpack.c.l.b16 %v422
        %v983 = vunpack.c.l.b16 %v423
        %v984 = vunpack.c.l.b16 %v424
        %v985 = vunpack.c.l.b16 %v425
        %v986 = vunpack.c.l.b16 %v426
        %v987 = vunpack.c.l.b16 %v427
        %v988 = vunpack.c.l.b16 %v428
        %v989 = vunpack.c.l.b16 %v429
        %v990 = vunpack.c.l.b16 %v430
        %v991 = vunpack.c.l.b16 %v431
        %v992 = vunpack.c.l.b16 %v432
        %v993 = vunpack.c.l.b16 %v433
        %v994 = vunpack.c.l.b16 %v434
        %v995 = vunpack.c.l.b16 %v435
        %v996 = vunpack.c.l.b16 %v436
        %v997 = vunpack.c.l.b16 %v437
        %v998 = vunpack.c.l.b16 %v438
        %v999 = vunpack.c.l.b16 %v439
        %v1000 = vunpack.c.l.b16 %v440
        %v1001 = vunpack.c.l.b16 %v441
        %v1002 = vunpack.c.l.b16 %v442
        %v1003 = vunpack.c.l.b16 %v443
        %v1004 = vunpack.c.l.b16 %v444
        %v1005 = vunpack.c.l.b16 %v445
        %v1006 = vunpack.c.l.b16 %v446
        %v1007 = vunpack.c.l.b16 %v447
        %v1008 = vunpack.c.l.b16 %v448
        %v1009 = vunpack.c.l.b16 %v449
        %v1010 = vunpack.c.l.b16 %v450
        %v1011 = vunpack.c.l.b16 %v451
        %v1012 = vunpack.c.l.b16 %v452
        %v1013 = vunpack.c.l.b16 %v453
        %v1014 = vunpack.c.l.b16 %v454
        %v1015 = vunpack.c.l.b16 %v455
        %v1016 = vunpack.c.l.b16 %v456
        %v1017 = vunpack.c.l.b16 %v457
        %v1018 = vunpack.c.l.b16 %v458
        %v1019 = vunpack.c.l.b16 %v459
        %v1020 = vunpack.c.l.b16 %v460
        %v1021 = vunpack.c.l.b16 %v461
        %v1022 = vunpack.c.l.b16 %v462
        %v1023 = vunpack.c.l.b16 %v463
        %v1024 = vunpack.c.l.b16 %v464
        %v1025 = vpack.c.b16 %v802, %v801
        %v1026 = vpack.c.b16 %v804, %v803
        %v1027 = vpack.c.b16 %v806, %v805
        %v1028 = vpack.c.b16 %v808, %v807
        %v1029 = vpack.c.b16 %v810, %v809
        %v1030 = vpack.c.b16 %v812, %v811
        %v1031 = vpack.c.b16 %v814, %v813
        %v1032 = vpack.c.b16 %v816, %v815
        %v1033 = vpack.c.b16 %v818, %v817
        %v1034 = vpack.c.b16 %v820, %v819
        %v1035 = vpack.c.b16 %v822, %v821
        %v1036 = vpack.c.b16 %v824, %v823
        %v1037 = vpack.c.b16 %v826, %v825
        %v1038 = vpack.c.b16 %v828, %v827
        %v1039 = vpack.c.b16 %v830, %v829
        %v1040 = vpack.c.b16 %v832, %v831
        %v1041 = vpack.c.b16 %v834, %v833
        %v1042 = vpack.c.b16 %v836, %v835
        %v1043 = vpack.c.b16 %v838, %v837
        %v1044 = vpack.c.b16 %v840, %v839
        %v1045 = vpack.c.b16 %v842, %v841
        %v1046 = vpack.c.b16 %v844, %v843
        %v1047 = vpack.c.b16 %v846, %v845
        %v1048 = vpack.c.b16 %v848, %v847
        %v1049 = vpack.c.b16 %v850, %v849
        %v1050 = vpack.c.b16 %v852, %v851
        %v1051 = vpack.c.b16 %v854, %v853
        %v1052 = vpack.c.b16 %v856, %v855
        %v1053 = vpack.c.b16 %v858, %v857
        %v1054 = vpack.c.b16 %v860, %v859
        %v1055 = vpack.c.b16 %v862, %v861
        %v1056 = vpack.c.b16 %v864, %v863
        %v1057 = vpack.c.b16 %v866, %v865
        %v1058 = vpack.c.b16 %v868, %v867
        %v1059 = vpack.c.b16 %v870, %v869
        %v1060 = vpack.c.b16 %v872, %v871
        %v1061 = vpack.c.b16 %v874, %v873
        %v1062 = vpack.c.b16 %v876, %v875
        %v1063 = vpack.c.b16 %v878, %v877
        %v1064 = vpack.c.b16 %v880, %v879
        %v1065 = vpack.c.b16 %v882, %v881
        %v1066 = vpack.c.b16 %v884, %v883
        %v1067 = vpack.c.b16 %v886, %v885
        %v1068 = vpack.c.b16 %v888, %v887
        %v1069 = vpack.c.b16 %v890, %v889
        %v1070 = vpack.c.b16 %v892, %v891
        %v1071 = vpack.c.b16 %v894, %v893
        %v1072 = vpack.c.b16 %v896, %v895
        %v1073 = vpack.c.b16 %v898, %v897
        %v1074 = vpack.c.b16 %v900, %v899
        %v1075 = vpack.c.b16 %v902, %v901
        %v1076 = vpack.c.b16 %v904, %v903
        %v1077 = vpack.c.b16 %v906, %v905
        %v1078 = vpack.c.b16 %v908, %v907
        %v1079 = vpack.c.b16 %v910, %v909
        %v1080 = vpack.c.b16 %v912, %v911
        %v1081 = vpack.c.b16 %v914, %v913
        %v1082 = vpack.c.b16 %v916, %v915
        %v1083 = vpack.c.b16 %v918, %v917
        %v1084 = vpack.c.b16 %v920, %v919
        %v1085 = vpack.c.b16 %v922, %v921
        %v1086 = vpack.c.b16 %v924, %v923
        %v1087 = vpack.c.b16 %v926, %v925
        %v1088 = vpack.c.b16 %v928, %v927
        %v1089 = vpack.c.b16 %v930, %v929
        %v1090 = vpack.c.b16 %v932, %v931
        %v1091 = vpack.c.b16 %v934, %v933
        %v1092 = vpack.c.b16 %v936, %v935
        %v1093 = vpack.c.b16 %v938, %v937
        %v1094 = vpack.c.b16 %v940, %v939
        %v1095 = vpack.c.b16 %v942, %v941
        %v1096 = vpack.c.b16 %v944, %v943
        %v1097 = vpack.c.b16 %v946, %v945
        %v1098 = vpack.c.b16 %v948, %v947
        %v1099 = vpack.c.b16 %v950, %v949
        %v1100 = vpack.c.b16 %v952, %v951
        %v1101 = vpack.c.b16 %v954, %v953
        %v1102 = vpack.c.b16 %v956, %v955
        %v1103 = vpack.c.b16 %v958, %v957
        %v1104 = vpack.c.b16 %v960, %v959
        %v1105 = vpack.c.b16 %v962, %v961
        %v1106 = vpack.c.b16 %v964, %v963
        %v1107 = vpack.c.b16 %v966, %v965
        %v1108 = vpack.c.b16 %v968, %v967
        %v1109 = vpack.c.b16 %v970, %v969
        %v1110 = vpack.c.b16 %v972, %v971
        %v1111 = vpack.c.b16 %v974, %v973
        %v1112 = vpack.c.b16 %v976, %v975
        %v1113 = vpack.c.b16 %v978, %v977
        %v1114 = vpack.c.b16 %v980, %v979
        %v1115 = vpack.c.b16 %v982, %v981
        %v1116 = vpack.c.b16 %v984, %v983
        %v1117 = vpack.c.b16 %v986, %v985
        %v1118 = vpack.c.b16 %v988, %v987
        %v1119 = vpack.c.b16 %v990, %v989
        %v1120 = vpack.c.b16 %v992, %v991
        %v1121 = vpack.c.b16 %v994, %v993
        %v1122 = vpack.c.b16 %v996, %v995
        %v1123 = vpack.c.b16 %v998, %v997
        %v1124 = vpack.c.b16 %v1000, %v999
        %v1125 = vpack.c.b16 %v1002, %v1001
        %v1126 = vpack.c.b16 %v1004, %v1003
        %v1127 = vpack.c.b16 %v1006, %v1005
        %v1128 = vpack.c.b16 %v1008, %v1007
        %v1129 = vpack.c.b16 %v1010, %v1009
        %v1130 = vpack.c.b16 %v1012, %v1011
        %v1131 = vpack.c.b16 %v1014, %v1013
        %v1132 = vpack.c.b16 %v1016, %v1015
        %v1133 = vpack.c.b16 %v1018, %v1017
        %v1134 = vpack.c.b16 %v1020, %v1019
        %v1135 = vpack.c.b16 %v1022, %v1021
        %v1136 = vpack.c.b16 %v1024, %v1023
        %1249 = vmatprep.subr.bf16.mxu0 0
        %1250 = vmatpush1.bf16.msra.mxu0 %v1032
        %1251 = vmatprep.subr.bf16.mxu0 0
        %1252 = vmatpush1.bf16.msra.mxu0 %v1031
        %1253 = vmatprep.subr.bf16.mxu0 0
        %1254 = vmatpush1.bf16.msra.mxu0 %v1030
        %1255 = vmatprep.subr.bf16.mxu0 0
        %1256 = vmatpush1.bf16.msra.mxu0 %v1029
        %1257 = vmatprep.subr.bf16.mxu0 0
        %1258 = vmatpush1.bf16.msra.mxu0 %v1028
        %1259 = vmatprep.subr.bf16.mxu0 0
        %1260 = vmatpush1.bf16.msra.mxu0 %v1027
        %1261 = vmatprep.subr.bf16.mxu0 0
        %1262 = vmatpush1.bf16.msra.mxu0 %v1026
        %1263 = vmatprep.subr.bf16.mxu0 0
        %1264 = vmatpush1.bf16.msra.mxu0 %v1025
        %1265 = vmatprep.subr.bf16.mxu0 0
        %1266 = vmatpush2.bf16.msra.mxu0 %v1040
        %1267 = vmatprep.subr.bf16.mxu0 0
        %1268 = vmatpush2.bf16.msra.mxu0 %v1039
        %1269 = vmatprep.subr.bf16.mxu0 0
        %1270 = vmatpush2.bf16.msra.mxu0 %v1038
        %1271 = vmatprep.subr.bf16.mxu0 0
        %1272 = vmatpush2.bf16.msra.mxu0 %v1037
        %1273 = vmatprep.subr.bf16.mxu0 0
        %1274 = vmatpush2.bf16.msra.mxu0 %v1036
        %1275 = vmatprep.subr.bf16.mxu0 0
        %1276 = vmatpush2.bf16.msra.mxu0 %v1035
        %1277 = vmatprep.subr.bf16.mxu0 0
        %1278 = vmatpush2.bf16.msra.mxu0 %v1034
        %1279 = vmatprep.subr.bf16.mxu0 0
        %1280 = vmatpush2.bf16.msra.mxu0 %v1033
        %1281 = vmatprep.mubr.bf16.mxu0 %v504
        %1282 = vmatmul.mubr.bf16.gmra.mxu0 %v490
        %v1283 = vpop.f32.mrf.mxu0
        %v1284 = vadd.f32 0.0, %v1283
        %v1285 = vpop.f32.mrf.mxu0
        %v1286 = vpop.f32.mrf.mxu0
        %v1287 = vpop.f32.mrf.mxu0
        %1288 = vdwg.mxu0
        %1289 = vmatprep.subr.bf16.mxu0 0
        %1290 = vmatpush1.bf16.msra.mxu0 %v1048
        %1291 = vmatprep.subr.bf16.mxu0 0
        %1292 = vmatpush1.bf16.msra.mxu0 %v1047
        %1293 = vmatprep.subr.bf16.mxu0 0
        %1294 = vmatpush1.bf16.msra.mxu0 %v1046
        %1295 = vmatprep.subr.bf16.mxu0 0
        %1296 = vmatpush1.bf16.msra.mxu0 %v1045
        %1297 = vmatprep.subr.bf16.mxu0 0
        %1298 = vmatpush1.bf16.msra.mxu0 %v1044
        %1299 = vmatprep.subr.bf16.mxu0 0
        %1300 = vmatpush1.bf16.msra.mxu0 %v1043
        %1301 = vmatprep.subr.bf16.mxu0 0
        %1302 = vmatpush1.bf16.msra.mxu0 %v1042
        %1303 = vmatprep.subr.bf16.mxu0 0
        %1304 = vmatpush1.bf16.msra.mxu0 %v1041
        %1305 = vmatprep.subr.bf16.mxu0 0
        %1306 = vmatpush2.bf16.msra.mxu0 %v1056
        %1307 = vmatprep.subr.bf16.mxu0 0
        %1308 = vmatpush2.bf16.msra.mxu0 %v1055
        %1309 = vmatprep.subr.bf16.mxu0 0
        %1310 = vmatpush2.bf16.msra.mxu0 %v1054
        %1311 = vmatprep.subr.bf16.mxu0 0
        %1312 = vmatpush2.bf16.msra.mxu0 %v1053
        %1313 = vmatprep.subr.bf16.mxu0 0
        %1314 = vmatpush2.bf16.msra.mxu0 %v1052
        %1315 = vmatprep.subr.bf16.mxu0 0
        %1316 = vmatpush2.bf16.msra.mxu0 %v1051
        %1317 = vmatprep.subr.bf16.mxu0 0
        %1318 = vmatpush2.bf16.msra.mxu0 %v1050
        %1319 = vmatprep.subr.bf16.mxu0 0
        %1320 = vmatpush2.bf16.msra.mxu0 %v1049
        %1321 = vmatprep.mubr.bf16.mxu0 %v514
        %1322 = vmatmul.mubr.bf16.gmra.mxu0 %v512
        %v1323 = vpop.f32.mrf.mxu0
        %v1324 = vadd.f32 %v1284, %v1323
        %v1325 = vpop.f32.mrf.mxu0
        %v1326 = vpop.f32.mrf.mxu0
        %v1327 = vpop.f32.mrf.mxu0
        %1328 = vdwg.mxu0
        %1329 = vmatprep.subr.bf16.mxu0 0
        %1330 = vmatpush1.bf16.msra.mxu0 %v1064
        %1331 = vmatprep.subr.bf16.mxu0 0
        %1332 = vmatpush1.bf16.msra.mxu0 %v1063
        %1333 = vmatprep.subr.bf16.mxu0 0
        %1334 = vmatpush1.bf16.msra.mxu0 %v1062
        %1335 = vmatprep.subr.bf16.mxu0 0
        %1336 = vmatpush1.bf16.msra.mxu0 %v1061
        %1337 = vmatprep.subr.bf16.mxu0 0
        %1338 = vmatpush1.bf16.msra.mxu0 %v1060
        %1339 = vmatprep.subr.bf16.mxu0 0
        %1340 = vmatpush1.bf16.msra.mxu0 %v1059
        %1341 = vmatprep.subr.bf16.mxu0 0
        %1342 = vmatpush1.bf16.msra.mxu0 %v1058
        %1343 = vmatprep.subr.bf16.mxu0 0
        %1344 = vmatpush1.bf16.msra.mxu0 %v1057
        %1345 = vmatprep.subr.bf16.mxu0 0
        %1346 = vmatpush2.bf16.msra.mxu0 %v1072
        %1347 = vmatprep.subr.bf16.mxu0 0
        %1348 = vmatpush2.bf16.msra.mxu0 %v1071
        %1349 = vmatprep.subr.bf16.mxu0 0
        %1350 = vmatpush2.bf16.msra.mxu0 %v1070
        %1351 = vmatprep.subr.bf16.mxu0 0
        %1352 = vmatpush2.bf16.msra.mxu0 %v1069
        %1353 = vmatprep.subr.bf16.mxu0 0
        %1354 = vmatpush2.bf16.msra.mxu0 %v1068
        %1355 = vmatprep.subr.bf16.mxu0 0
        %1356 = vmatpush2.bf16.msra.mxu0 %v1067
        %1357 = vmatprep.subr.bf16.mxu0 0
        %1358 = vmatpush2.bf16.msra.mxu0 %v1066
        %1359 = vmatprep.subr.bf16.mxu0 0
        %1360 = vmatpush2.bf16.msra.mxu0 %v1065
        %1361 = vmatprep.mubr.bf16.mxu0 %v511
        %1362 = vmatmul.mubr.bf16.gmra.mxu0 %v497
        %v1363 = vpop.f32.mrf.mxu0
        %v1364 = vadd.f32 %v1324, %v1363
        %v1365 = vpop.f32.mrf.mxu0
        %v1366 = vpop.f32.mrf.mxu0
        %v1367 = vpop.f32.mrf.mxu0
        %1368 = vdwg.mxu0
        %1369 = vmatprep.subr.bf16.mxu0 0
        %1370 = vmatpush1.bf16.msra.mxu0 %v1080
        %1371 = vmatprep.subr.bf16.mxu0 0
        %1372 = vmatpush1.bf16.msra.mxu0 %v1079
        %1373 = vmatprep.subr.bf16.mxu0 0
        %1374 = vmatpush1.bf16.msra.mxu0 %v1078
        %1375 = vmatprep.subr.bf16.mxu0 0
        %1376 = vmatpush1.bf16.msra.mxu0 %v1077
        %1377 = vmatprep.subr.bf16.mxu0 0
        %1378 = vmatpush1.bf16.msra.mxu0 %v1076
        %1379 = vmatprep.subr.bf16.mxu0 0
        %1380 = vmatpush1.bf16.msra.mxu0 %v1075
        %1381 = vmatprep.subr.bf16.mxu0 0
        %1382 = vmatpush1.bf16.msra.mxu0 %v1074
        %1383 = vmatprep.subr.bf16.mxu0 0
        %1384 = vmatpush1.bf16.msra.mxu0 %v1073
        %1385 = vmatprep.subr.bf16.mxu0 0
        %1386 = vmatpush2.bf16.msra.mxu0 %v1088
        %1387 = vmatprep.subr.bf16.mxu0 0
        %1388 = vmatpush2.bf16.msra.mxu0 %v1087
        %1389 = vmatprep.subr.bf16.mxu0 0
        %1390 = vmatpush2.bf16.msra.mxu0 %v1086
        %1391 = vmatprep.subr.bf16.mxu0 0
        %1392 = vmatpush2.bf16.msra.mxu0 %v1085
        %1393 = vmatprep.subr.bf16.mxu0 0
        %1394 = vmatpush2.bf16.msra.mxu0 %v1084
        %1395 = vmatprep.subr.bf16.mxu0 0
        %1396 = vmatpush2.bf16.msra.mxu0 %v1083
        %1397 = vmatprep.subr.bf16.mxu0 0
        %1398 = vmatpush2.bf16.msra.mxu0 %v1082
        %1399 = vmatprep.subr.bf16.mxu0 0
        %1400 = vmatpush2.bf16.msra.mxu0 %v1081
        %1401 = vmatprep.mubr.bf16.mxu0 %v515
        %1402 = vmatmul.mubr.bf16.gmra.mxu0 %v513
        %v1403 = vpop.f32.mrf.mxu0
        %v1404 = vadd.f32 %v1364, %v1403
        %v1405 = vpop.f32.mrf.mxu0
        %v1406 = vpop.f32.mrf.mxu0
        %v1407 = vpop.f32.mrf.mxu0
        %1408 = vdwg.mxu0
        %1409 = vmatprep.subr.bf16.mxu0 0
        %1410 = vmatpush1.bf16.msra.mxu0 %v1096
        %1411 = vmatprep.subr.bf16.mxu0 0
        %1412 = vmatpush1.bf16.msra.mxu0 %v1095
        %1413 = vmatprep.subr.bf16.mxu0 0
        %1414 = vmatpush1.bf16.msra.mxu0 %v1094
        %1415 = vmatprep.subr.bf16.mxu0 0
        %1416 = vmatpush1.bf16.msra.mxu0 %v1093
        %1417 = vmatprep.subr.bf16.mxu0 0
        %1418 = vmatpush1.bf16.msra.mxu0 %v1092
        %1419 = vmatprep.subr.bf16.mxu0 0
        %1420 = vmatpush1.bf16.msra.mxu0 %v1091
        %1421 = vmatprep.subr.bf16.mxu0 0
        %1422 = vmatpush1.bf16.msra.mxu0 %v1090
        %1423 = vmatprep.subr.bf16.mxu0 0
        %1424 = vmatpush1.bf16.msra.mxu0 %v1089
        %1425 = vmatprep.subr.bf16.mxu0 0
        %1426 = vmatpush2.bf16.msra.mxu0 %v1104
        %1427 = vmatprep.subr.bf16.mxu0 0
        %1428 = vmatpush2.bf16.msra.mxu0 %v1103
        %1429 = vmatprep.subr.bf16.mxu0 0
        %1430 = vmatpush2.bf16.msra.mxu0 %v1102
        %1431 = vmatprep.subr.bf16.mxu0 0
        %1432 = vmatpush2.bf16.msra.mxu0 %v1101
        %1433 = vmatprep.subr.bf16.mxu0 0
        %1434 = vmatpush2.bf16.msra.mxu0 %v1100
        %1435 = vmatprep.subr.bf16.mxu0 0
        %1436 = vmatpush2.bf16.msra.mxu0 %v1099
        %1437 = vmatprep.subr.bf16.mxu0 0
        %1438 = vmatpush2.bf16.msra.mxu0 %v1098
        %1439 = vmatprep.subr.bf16.mxu0 0
        %1440 = vmatpush2.bf16.msra.mxu0 %v1097
        %1441 = vmatprep.mubr.bf16.mxu0 %v553
        %1442 = vmatmul.mubr.bf16.gmra.mxu0 %v539
        %v1443 = vpop.f32.mrf.mxu0
        %v1444 = vadd.f32 %v1404, %v1443
        %v1445 = vpop.f32.mrf.mxu0
        %v1446 = vpop.f32.mrf.mxu0
        %v1447 = vpop.f32.mrf.mxu0
        %1448 = vdwg.mxu0
        %1449 = vmatprep.subr.bf16.mxu0 0
        %1450 = vmatpush1.bf16.msra.mxu0 %v1112
        %1451 = vmatprep.subr.bf16.mxu0 0
        %1452 = vmatpush1.bf16.msra.mxu0 %v1111
        %1453 = vmatprep.subr.bf16.mxu0 0
        %1454 = vmatpush1.bf16.msra.mxu0 %v1110
        %1455 = vmatprep.subr.bf16.mxu0 0
        %1456 = vmatpush1.bf16.msra.mxu0 %v1109
        %1457 = vmatprep.subr.bf16.mxu0 0
        %1458 = vmatpush1.bf16.msra.mxu0 %v1108
        %1459 = vmatprep.subr.bf16.mxu0 0
        %1460 = vmatpush1.bf16.msra.mxu0 %v1107
        %1461 = vmatprep.subr.bf16.mxu0 0
        %1462 = vmatpush1.bf16.msra.mxu0 %v1106
        %1463 = vmatprep.subr.bf16.mxu0 0
        %1464 = vmatpush1.bf16.msra.mxu0 %v1105
        %1465 = vmatprep.subr.bf16.mxu0 0
        %1466 = vmatpush2.bf16.msra.mxu0 %v1120
        %1467 = vmatprep.subr.bf16.mxu0 0
        %1468 = vmatpush2.bf16.msra.mxu0 %v1119
        %1469 = vmatprep.subr.bf16.mxu0 0
        %1470 = vmatpush2.bf16.msra.mxu0 %v1118
        %1471 = vmatprep.subr.bf16.mxu0 0
        %1472 = vmatpush2.bf16.msra.mxu0 %v1117
        %1473 = vmatprep.subr.bf16.mxu0 0
        %1474 = vmatpush2.bf16.msra.mxu0 %v1116
        %1475 = vmatprep.subr.bf16.mxu0 0
        %1476 = vmatpush2.bf16.msra.mxu0 %v1115
        %1477 = vmatprep.subr.bf16.mxu0 0
        %1478 = vmatpush2.bf16.msra.mxu0 %v1114
        %1479 = vmatprep.subr.bf16.mxu0 0
        %1480 = vmatpush2.bf16.msra.mxu0 %v1113
        %1481 = vmatprep.mubr.bf16.mxu0 %v562
        %1482 = vmatmul.mubr.bf16.gmra.mxu0 %v561
        %v1483 = vpop.f32.mrf.mxu0
        %v1484 = vadd.f32 %v1444, %v1483
        %v1485 = vpop.f32.mrf.mxu0
        %v1486 = vpop.f32.mrf.mxu0
        %v1487 = vpop.f32.mrf.mxu0
        %1488 = vdwg.mxu0
        %1489 = vmatprep.subr.bf16.mxu0 0
        %1490 = vmatpush1.bf16.msra.mxu0 %v1128
        %1491 = vmatprep.subr.bf16.mxu0 0
        %1492 = vmatpush1.bf16.msra.mxu0 %v1127
        %1493 = vmatprep.subr.bf16.mxu0 0
        %1494 = vmatpush1.bf16.msra.mxu0 %v1126
        %1495 = vmatprep.subr.bf16.mxu0 0
        %1496 = vmatpush1.bf16.msra.mxu0 %v1125
        %1497 = vmatprep.subr.bf16.mxu0 0
        %1498 = vmatpush1.bf16.msra.mxu0 %v1124
        %1499 = vmatprep.subr.bf16.mxu0 0
        %1500 = vmatpush1.bf16.msra.mxu0 %v1123
        %1501 = vmatprep.subr.bf16.mxu0 0
        %1502 = vmatpush1.bf16.msra.mxu0 %v1122
        %1503 = vmatprep.subr.bf16.mxu0 0
        %1504 = vmatpush1.bf16.msra.mxu0 %v1121
        %1505 = vmatprep.subr.bf16.mxu0 0
        %1506 = vmatpush2.bf16.msra.mxu0 %v1136
        %1507 = vmatprep.subr.bf16.mxu0 0
        %1508 = vmatpush2.bf16.msra.mxu0 %v1135
        %1509 = vmatprep.subr.bf16.mxu0 0
        %1510 = vmatpush2.bf16.msra.mxu0 %v1134
        %1511 = vmatprep.subr.bf16.mxu0 0
        %1512 = vmatpush2.bf16.msra.mxu0 %v1133
        %1513 = vmatprep.subr.bf16.mxu0 0
        %1514 = vmatpush2.bf16.msra.mxu0 %v1132
        %1515 = vmatprep.subr.bf16.mxu0 0
        %1516 = vmatpush2.bf16.msra.mxu0 %v1131
        %1517 = vmatprep.subr.bf16.mxu0 0
        %1518 = vmatpush2.bf16.msra.mxu0 %v1130
        %1519 = vmatprep.subr.bf16.mxu0 0
        %1520 = vmatpush2.bf16.msra.mxu0 %v1129
        %1521 = vmatprep.mubr.bf16.mxu0 %v560
        %1522 = vmatmul.mubr.bf16.gmra.mxu0 %v546
        %v1523 = vpop.f32.mrf.mxu0
        %v1524 = vadd.f32 %v1484, %v1523
        %v1525 = vpop.f32.mrf.mxu0
        %v1526 = vpop.f32.mrf.mxu0
        %v1527 = vpop.f32.mrf.mxu0
        %1528 = vdwg.mxu0
        %v1529 = vadd.f32 %v238, %v1524
        %1530 = vst [vmem:[#allocation2] sm:$0x3] %v1529
        %p1531 = scmp.eq.s32.totalorder %s17, 6
        // Predicated region
        $region45: #{net_forward.5} parent=39 // pred_check
          %p1532 = pneg %p1531
        $region46: #{net_forward.5} parent=39 // pred_check_branch
          %1534 = sbr.rel (%p1532) target = $region48
        $region47: #{net_forward.5} parent=39 // pred_region
          %v1535 = vld [vmem:[#allocation2] sm:$0x3]
          %v1536 = vld [vmem:[%s2] sm:$0x1]
          %v1538 = vlaneseq
          %v1539 = vshrl.u32 %v1538, 7
          %v1540 = vsub.s32 0, %v1539
          %v1541 = vrot.slane %v1536, %v1540
          %v1543 = vadd.f32 %v1535, %v1541
          %v1544 = vmax.f32 %v1543, 0.0
          %v1545 = vld [vmem:[%s3] sm:$0xff]
          %v1546 = vld [vmem:[%s3 + $0x8] sm:$0xff]
          %v1547 = vld [vmem:[%s3 + $0x10] sm:$0xff]
          %v1548 = vld [vmem:[%s3 + $0x18] sm:$0xff]
          %v1549 = vld [vmem:[%s3 + $0x20] sm:$0xff]
          %v1550 = vld [vmem:[%s3 + $0x28] sm:$0xff]
          %v1551 = vld [vmem:[%s3 + $0x30] sm:$0xff]
          %v1552 = vld [vmem:[%s3 + $0x38] sm:$0xff]
          %v1553 = vld [vmem:[%s3 + $0x40] sm:$0xff]
          %v1554 = vld [vmem:[%s3 + $0x48] sm:$0xff]
          %v1555 = vld [vmem:[%s3 + $0x50] sm:$0xff]
          %v1556 = vld [vmem:[%s3 + $0x58] sm:$0xff]
          %v1557 = vld [vmem:[%s3 + $0x60] sm:$0xff]
          %v1558 = vld [vmem:[%s3 + $0x68] sm:$0xff]
          %v1559 = vld [vmem:[%s3 + $0x70] sm:$0xff]
          %v1560 = vld [vmem:[%s3 + $0x78] sm:$0xff]
          %v1561 = vld [vmem:[%s4] sm:$0x1]
          %v1563 = vlaneseq
          %v1564 = vshrl.u32 %v1563, 7
          %v1565 = vsub.s32 0, %v1564
          %v1566 = vrot.slane %v1561, %v1565
          %1568 = vmatprep.subr.mxu0 0.0
          %1569 = vmatpush1.msra.mxu0 %v1560
          %1570 = vmatprep.subr.mxu0 0.0
          %1571 = vmatpush1.msra.mxu0 %v1559
          %1572 = vmatprep.subr.mxu0 0.0
          %1573 = vmatpush1.msra.mxu0 %v1558
          %1574 = vmatprep.subr.mxu0 0.0
          %1575 = vmatpush1.msra.mxu0 %v1557
          %1576 = vmatprep.subr.mxu0 0.0
          %1577 = vmatpush1.msra.mxu0 %v1556
          %1578 = vmatprep.subr.mxu0 0.0
          %1579 = vmatpush1.msra.mxu0 %v1555
          %1580 = vmatprep.subr.mxu0 0.0
          %1581 = vmatpush1.msra.mxu0 %v1554
          %1582 = vmatprep.subr.mxu0 0.0
          %1583 = vmatpush1.msra.mxu0 %v1553
          %1584 = vmatprep.subr.mxu0 0.0
          %1585 = vmatpush1.msra.mxu0 %v1552
          %1586 = vmatprep.subr.mxu0 0.0
          %1587 = vmatpush1.msra.mxu0 %v1551
          %1588 = vmatprep.subr.mxu0 0.0
          %1589 = vmatpush1.msra.mxu0 %v1550
          %1590 = vmatprep.subr.mxu0 0.0
          %1591 = vmatpush1.msra.mxu0 %v1549
          %1592 = vmatprep.subr.mxu0 0.0
          %1593 = vmatpush1.msra.mxu0 %v1548
          %1594 = vmatprep.subr.mxu0 0.0
          %1595 = vmatpush1.msra.mxu0 %v1547
          %1596 = vmatprep.subr.mxu0 0.0
          %1597 = vmatpush1.msra.mxu0 %v1546
          %1598 = vmatprep.subr.mxu0 0.0
          %1599 = vmatpush1.msra.mxu0 %v1545
          %1600 = vmatprep.subr.mxu0 0.0
          %1601 = vmatpush2.msra.mxu0 0.0
          %1602 = vmatprep.subr.mxu0 0.0
          %1603 = vmatpush2.msra.mxu0 0.0
          %1604 = vmatprep.subr.mxu0 0.0
          %1605 = vmatpush2.msra.mxu0 0.0
          %1606 = vmatprep.subr.mxu0 0.0
          %1607 = vmatpush2.msra.mxu0 0.0
          %1608 = vmatprep.subr.mxu0 0.0
          %1609 = vmatpush2.msra.mxu0 0.0
          %1610 = vmatprep.subr.mxu0 0.0
          %1611 = vmatpush2.msra.mxu0 0.0
          %1612 = vmatprep.subr.mxu0 0.0
          %1613 = vmatpush2.msra.mxu0 0.0
          %1614 = vmatprep.subr.mxu0 0.0
          %1615 = vmatpush2.msra.mxu0 0.0
          %1616 = vmatprep.subr.mxu0 0.0
          %1617 = vmatpush2.msra.mxu0 0.0
          %1618 = vmatprep.subr.mxu0 0.0
          %1619 = vmatpush2.msra.mxu0 0.0
          %1620 = vmatprep.subr.mxu0 0.0
          %1621 = vmatpush2.msra.mxu0 0.0
          %1622 = vmatprep.subr.mxu0 0.0
          %1623 = vmatpush2.msra.mxu0 0.0
          %1624 = vmatprep.subr.mxu0 0.0
          %1625 = vmatpush2.msra.mxu0 0.0
          %1626 = vmatprep.subr.mxu0 0.0
          %1627 = vmatpush2.msra.mxu0 0.0
          %1628 = vmatprep.subr.mxu0 0.0
          %1629 = vmatpush2.msra.mxu0 0.0
          %1630 = vmatprep.subr.mxu0 0.0
          %1631 = vmatpush2.msra.mxu0 0.0
          %1632 = vmatprep.mubr.f32.mxu0 0.0
          %1633 = vmatmul.mubr.f32.gmra.mxu0 %v1544
          %v1634 = vpop.f32.mrf.mxu0
          %v1635 = vadd.f32 %v1566, %v1634
          %v1636 = vpop.f32.mrf.mxu0
          %1637 = vdwg.mxu0
          %vm1638 = vcmask 9216
          %v1639 = vsel %vm1638, %v1635, -inf
          %1640 = vmax.xlane.f32.xlu0 %v1639
          %v1641 = vpop.xlane.xlu0 %1640
          %v1642 = vsub.f32 %v1635, %v1641
          %v1643 = vmul.f32 %v1642, 1.442695
          %v1644 = vpow.pop %v1643
          %v1645 = vsel %vm1638, %v1644, 0.0
          %1646 = vadd.xlane.f32.xlu0 %v1645
          %v1647 = vpop.xlane.xlu0 %1646
          %v1648 = vlog2.pop %v1647
          %v1649 = vmul.f32 %v1648, 0.6931472
          %v1650 = vsub.f32 %v1642, %v1649
          %1651 = vst.msk [vmem:[#allocation3] sm:$0x3] %vm1638, %v1650
        $region48: #{net_forward.5} parent=39 // pred_fallthru
          _
        // Predicated region
        $region49: #{net_forward.5} parent=39 // pred_check
          %p1652 = pneg %p145
        $region50: #{net_forward.5} parent=39 // pred_check_branch
          %1654 = sbr.rel (%p1652) target = $region52
        $region51: #{net_forward.5} parent=39 // pred_region
          %s1656 = ssub.s32 32, 32
          %1657 = vsyncadd [#allocation4], %s1656
          %s1659 = sshll.u32 [#allocation3], 4
          %s1660 = int_to_ptr.vmem [resolvable:$true] %s1659
          %1662 = dma.vmem_to_hbm [thread:$0]  %s1660, 32, %s5, [#allocation4]
        $region52: #{net_forward.5} parent=39 // pred_fallthru
          _
        // Predicated region
        $region53: #{net_forward.5} parent=39 // pred_check
          %p1663 = pneg %p145
        $region54: #{net_forward.5} parent=39 // pred_check_branch
          %1665 = sbr.rel (%p1663) target = $region56
        $region55: #{net_forward.5} parent=39 // pred_region
          %1666 = dma.done [#allocation4], 32
        $region56: #{net_forward.5} parent=39 // pred_fallthru
          _
      $region40: #{net_forward.5} parent=5 // pred_fallthru
        _
      %p1667 = scmp.le.s32.totalorder 2, %s12
      // Predicated region
      $region57: #{net_forward.5} parent=5 // pred_check
        %p1668 = pneg %p1667
      $region58: #{net_forward.5} parent=5 // pred_check_branch
        %1670 = sbr.rel (%p1668) target = $region60
      $region59: #{net_forward.5} parent=5 // pred_region
        %s1671 = ssub.s32 %s12, 2
      $region60: #{net_forward.5} parent=5 // pred_fallthru
        _
    $region6: #{net_forward.5} parent=1 // loop_footer
      %s16 = sadd.s32 1, %s12
    $region7: #{net_forward.5} parent=1 // loop_footer_branch
      %11 = sbr.rel target = $region3
    $region8: #{net_forward.5} parent=1 // loop_exit
      _
    %1672 = vsyncpa [#allocation4], 1
    %s1673 = scalar_lea.sflag [#allocation4], 1
    %1674 = vsyncpa %s1673, 1

// kernel: net_forward.4
$region0: #{net_forward.4}
  #allocation0 [shape = 'u32[]', space=smem, size = 0x4, offset = 0x4, fixed_abs, tag = 'smem constant byte address 0x4 - core index']
  #allocation1 [shape = 'u32[144,128]{1,0:T(1,128)}', space=vmem, size = 0x12000, scoped, tag = 'internal scratch']
  %s0 = inlined_call_operand.vmem [shape: bf16[4,400,288], index: 0, kind: input, shape index: {}]
  %s1 = inlined_call_operand.vmem [shape: bf16[288,64], index: 1, kind: input, shape index: {}]
  %s2 = inlined_call_operand.vmem [shape: f32[1,64], index: 2, kind: input, shape index: {}]
  %s3 = inlined_call_operand.vmem [shape: bf16[400,64], index: 3, kind: output, shape index: {}]
  %s4 = sld [smem:[#allocation0]]
  $region22: #{net_forward.4} parent=0
    _
  %s6 = ssub.s32 1, %s4
  %s7 = scalar_select 0, %s6, %s4
  // Predicated region
  $region2: #{net_forward.4} parent=0 // pred_check
    _
  $region3: #{net_forward.4} parent=0 // pred_check_branch
    %9 = sbr.rel (0) target = $region5
  $region4: #{net_forward.4} parent=0 // pred_region
    _
  $region5: #{net_forward.4} parent=0 // pred_fallthru
    _
  // Predicated region
  $region6: #{net_forward.4} parent=0 // pred_check
    _
  $region7: #{net_forward.4} parent=0 // pred_check_branch
    %11 = sbr.rel (0) target = $region9
  $region8: #{net_forward.4} parent=0 // pred_region
    _
  $region9: #{net_forward.4} parent=0 // pred_fallthru
    _
  // Predicated region
  $region10: #{net_forward.4} parent=0 // pred_check
    _
  $region11: #{net_forward.4} parent=0 // pred_check_branch
    %13 = sbr.rel (0) target = $region13
  $region12: #{net_forward.4} parent=0 // pred_region
    _
  $region13: #{net_forward.4} parent=0 // pred_fallthru
    _
  %v15 = vld [vmem:[%s0] sm:$0xff]
  %v16 = vld [vmem:[%s0 + $0x8] sm:$0xf]
  %v17 = vld [vmem:[%s0 + $0xc] sm:$0xff]
  %v18 = vld [vmem:[%s0 + $0x14] sm:$0xf]
  %v19 = vld [vmem:[%s0 + $0x18] sm:$0xff]
  %v20 = vld [vmem:[%s0 + $0x20] sm:$0xf]
  %v21 = vld [vmem:[%s0 + $0x24] sm:$0xff]
  %v22 = vld [vmem:[%s0 + $0x2c] sm:$0xf]
  %v23 = vld [vmem:[%s0 + $0x30] sm:$0xff]
  %v24 = vld [vmem:[%s0 + $0x38] sm:$0xf]
  %v25 = vld [vmem:[%s0 + $0x3c] sm:$0xff]
  %v26 = vld [vmem:[%s0 + $0x44] sm:$0xf]
  %v27 = vld [vmem:[%s0 + $0x48] sm:$0xff]
  %v28 = vld [vmem:[%s0 + $0x50] sm:$0xf]
  %v29 = vld [vmem:[%s0 + $0x54] sm:$0xff]
  %v30 = vld [vmem:[%s0 + $0x5c] sm:$0xf]
  %v31 = vld [vmem:[%s0 + $0x60] sm:$0xff]
  %v32 = vld [vmem:[%s0 + $0x68] sm:$0xf]
  %v33 = vld [vmem:[%s0 + $0x6c] sm:$0xff]
  %v34 = vld [vmem:[%s0 + $0x74] sm:$0xf]
  %v35 = vld [vmem:[%s0 + $0x78] sm:$0xff]
  %v36 = vld [vmem:[%s0 + $0x80] sm:$0xf]
  %v37 = vld [vmem:[%s0 + $0x84] sm:$0xff]
  %v38 = vld [vmem:[%s0 + $0x8c] sm:$0xf]
  %v39 = vld [vmem:[%s0 + $0x90] sm:$0xff]
  %v40 = vld [vmem:[%s0 + $0x98] sm:$0xf]
  %v41 = vld [vmem:[%s0 + $0x9c] sm:$0xff]
  %v42 = vld [vmem:[%s0 + $0xa4] sm:$0xf]
  %v43 = vld [vmem:[%s0 + $0xa8] sm:$0xff]
  %v44 = vld [vmem:[%s0 + $0xb0] sm:$0xf]
  %v45 = vld [vmem:[%s0 + $0xb4] sm:$0xff]
  %v46 = vld [vmem:[%s0 + $0xbc] sm:$0xf]
  %v47 = vld [vmem:[%s0 + $0xc0] sm:$0xff]
  %v48 = vld [vmem:[%s0 + $0xc8] sm:$0xf]
  %v49 = vld [vmem:[%s0 + $0xcc] sm:$0xff]
  %v50 = vld [vmem:[%s0 + $0xd4] sm:$0xf]
  %v51 = vld [vmem:[%s0 + $0xd8] sm:$0xff]
  %v52 = vld [vmem:[%s0 + $0xe0] sm:$0xf]
  %v53 = vld [vmem:[%s0 + $0xe4] sm:$0xff]
  %v54 = vld [vmem:[%s0 + $0xec] sm:$0xf]
  %v55 = vld [vmem:[%s0 + $0xf0] sm:$0xff]
  %v56 = vld [vmem:[%s0 + $0xf8] sm:$0xf]
  %v57 = vld [vmem:[%s0 + $0xfc] sm:$0xff]
  %v58 = vld [vmem:[%s0 + $0x104] sm:$0xf]
  %v59 = vld [vmem:[%s0 + $0x108] sm:$0xff]
  %v60 = vld [vmem:[%s0 + $0x110] sm:$0xf]
  %v61 = vld [vmem:[%s0 + $0x114] sm:$0xff]
  %v62 = vld [vmem:[%s0 + $0x11c] sm:$0xf]
  %v63 = vld [vmem:[%s0 + $0x120] sm:$0xff]
  %v64 = vld [vmem:[%s0 + $0x128] sm:$0xf]
  %v65 = vld [vmem:[%s0 + $0x12c] sm:$0xff]
  %v66 = vld [vmem:[%s0 + $0x134] sm:$0xf]
  %v67 = vld [vmem:[%s0 + $0x138] sm:$0xff]
  %v68 = vld [vmem:[%s0 + $0x140] sm:$0xf]
  %v69 = vld [vmem:[%s0 + $0x144] sm:$0xff]
  %v70 = vld [vmem:[%s0 + $0x14c] sm:$0xf]
  %v71 = vld [vmem:[%s0 + $0x150] sm:$0xff]
  %v72 = vld [vmem:[%s0 + $0x158] sm:$0xf]
  %v73 = vld [vmem:[%s0 + $0x15c] sm:$0xff]
  %v74 = vld [vmem:[%s0 + $0x164] sm:$0xf]
  %v75 = vld [vmem:[%s0 + $0x168] sm:$0xff]
  %v76 = vld [vmem:[%s0 + $0x170] sm:$0xf]
  %v77 = vld [vmem:[%s0 + $0x174] sm:$0xff]
  %v78 = vld [vmem:[%s0 + $0x17c] sm:$0xf]
  %v79 = vld [vmem:[%s0 + $0x180] sm:$0xff]
  %v80 = vld [vmem:[%s0 + $0x188] sm:$0xf]
  %v81 = vld [vmem:[%s0 + $0x18c] sm:$0xff]
  %v82 = vld [vmem:[%s0 + $0x194] sm:$0xf]
  %v83 = vld [vmem:[%s0 + $0x198] sm:$0xff]
  %v84 = vld [vmem:[%s0 + $0x1a0] sm:$0xf]
  %v85 = vld [vmem:[%s0 + $0x1a4] sm:$0xff]
  %v86 = vld [vmem:[%s0 + $0x1ac] sm:$0xf]
  %v87 = vld [vmem:[%s0 + $0x1b0] sm:$0xff]
  %v88 = vld [vmem:[%s0 + $0x1b8] sm:$0xf]
  %v89 = vld [vmem:[%s0 + $0x1bc] sm:$0xff]
  %v90 = vld [vmem:[%s0 + $0x1c4] sm:$0xf]
  %v91 = vld [vmem:[%s0 + $0x1c8] sm:$0xff]
  %v92 = vld [vmem:[%s0 + $0x1d0] sm:$0xf]
  %v93 = vld [vmem:[%s0 + $0x1d4] sm:$0xff]
  %v94 = vld [vmem:[%s0 + $0x1dc] sm:$0xf]
  %v95 = vld [vmem:[%s0 + $0x1e0] sm:$0xff]
  %v96 = vld [vmem:[%s0 + $0x1e8] sm:$0xf]
  %v97 = vld [vmem:[%s0 + $0x1ec] sm:$0xff]
  %v98 = vld [vmem:[%s0 + $0x1f4] sm:$0xf]
  %v99 = vld [vmem:[%s0 + $0x1f8] sm:$0xff]
  %v100 = vld [vmem:[%s0 + $0x200] sm:$0xf]
  %v101 = vld [vmem:[%s0 + $0x204] sm:$0xff]
  %v102 = vld [vmem:[%s0 + $0x20c] sm:$0xf]
  %v103 = vld [vmem:[%s0 + $0x210] sm:$0xff]
  %v104 = vld [vmem:[%s0 + $0x218] sm:$0xf]
  %v105 = vld [vmem:[%s0 + $0x21c] sm:$0xff]
  %v106 = vld [vmem:[%s0 + $0x224] sm:$0xf]
  %v107 = vld [vmem:[%s0 + $0x228] sm:$0xff]
  %v108 = vld [vmem:[%s0 + $0x230] sm:$0xf]
  %v109 = vld [vmem:[%s0 + $0x234] sm:$0xff]
  %v110 = vld [vmem:[%s0 + $0x23c] sm:$0xf]
  %v111 = vld [vmem:[%s0 + $0x240] sm:$0xff]
  %v112 = vld [vmem:[%s0 + $0x248] sm:$0xf]
  %v113 = vld [vmem:[%s0 + $0x24c] sm:$0xff]
  %v114 = vld [vmem:[%s0 + $0x254] sm:$0xf]
  %v115 = vld [vmem:[%s0 + $0x258] sm:$0xff]
  %v116 = vld [vmem:[%s0 + $0x260] sm:$0xf]
  %v117 = vld [vmem:[%s0 + $0x264] sm:$0xff]
  %v118 = vld [vmem:[%s0 + $0x26c] sm:$0xf]
  %v119 = vld [vmem:[%s0 + $0x270] sm:$0xff]
  %v120 = vld [vmem:[%s0 + $0x278] sm:$0xf]
  %v121 = vld [vmem:[%s0 + $0x27c] sm:$0xff]
  %v122 = vld [vmem:[%s0 + $0x284] sm:$0xf]
  %v123 = vld [vmem:[%s0 + $0x288] sm:$0xff]
  %v124 = vld [vmem:[%s0 + $0x290] sm:$0xf]
  %v125 = vld [vmem:[%s0 + $0x294] sm:$0xff]
  %v126 = vld [vmem:[%s0 + $0x29c] sm:$0xf]
  %v127 = vld [vmem:[%s0 + $0x2a0] sm:$0xff]
  %v128 = vld [vmem:[%s0 + $0x2a8] sm:$0xf]
  %v129 = vld [vmem:[%s0 + $0x2ac] sm:$0xff]
  %v130 = vld [vmem:[%s0 + $0x2b4] sm:$0xf]
  %v131 = vld [vmem:[%s0 + $0x2b8] sm:$0xff]
  %v132 = vld [vmem:[%s0 + $0x2c0] sm:$0xf]
  %v133 = vld [vmem:[%s0 + $0x2c4] sm:$0xff]
  %v134 = vld [vmem:[%s0 + $0x2cc] sm:$0xf]
  %v135 = vld [vmem:[%s0 + $0x2d0] sm:$0xff]
  %v136 = vld [vmem:[%s0 + $0x2d8] sm:$0xf]
  %v137 = vld [vmem:[%s0 + $0x2dc] sm:$0xff]
  %v138 = vld [vmem:[%s0 + $0x2e4] sm:$0xf]
  %v139 = vld [vmem:[%s0 + $0x2e8] sm:$0xff]
  %v140 = vld [vmem:[%s0 + $0x2f0] sm:$0xf]
  %v141 = vld [vmem:[%s0 + $0x2f4] sm:$0xff]
  %v142 = vld [vmem:[%s0 + $0x2fc] sm:$0xf]
  %v143 = vld [vmem:[%s0 + $0x300] sm:$0xff]
  %v144 = vld [vmem:[%s0 + $0x308] sm:$0xf]
  %v145 = vld [vmem:[%s0 + $0x30c] sm:$0xff]
  %v146 = vld [vmem:[%s0 + $0x314] sm:$0xf]
  %v147 = vld [vmem:[%s0 + $0x318] sm:$0xff]
  %v148 = vld [vmem:[%s0 + $0x320] sm:$0xf]
  %v149 = vld [vmem:[%s0 + $0x324] sm:$0xff]
  %v150 = vld [vmem:[%s0 + $0x32c] sm:$0xf]
  %v151 = vld [vmem:[%s0 + $0x330] sm:$0xff]
  %v152 = vld [vmem:[%s0 + $0x338] sm:$0xf]
  %v153 = vld [vmem:[%s0 + $0x33c] sm:$0xff]
  %v154 = vld [vmem:[%s0 + $0x344] sm:$0xf]
  %v155 = vld [vmem:[%s0 + $0x348] sm:$0xff]
  %v156 = vld [vmem:[%s0 + $0x350] sm:$0xf]
  %v157 = vld [vmem:[%s0 + $0x354] sm:$0xff]
  %v158 = vld [vmem:[%s0 + $0x35c] sm:$0xf]
  %v159 = vld [vmem:[%s0 + $0x360] sm:$0xff]
  %v160 = vld [vmem:[%s0 + $0x368] sm:$0xf]
  %v161 = vld [vmem:[%s0 + $0x36c] sm:$0xff]
  %v162 = vld [vmem:[%s0 + $0x374] sm:$0xf]
  %v163 = vld [vmem:[%s0 + $0x378] sm:$0xff]
  %v164 = vld [vmem:[%s0 + $0x380] sm:$0xf]
  %v165 = vld [vmem:[%s0 + $0x384] sm:$0xff]
  %v166 = vld [vmem:[%s0 + $0x38c] sm:$0xf]
  %v167 = vld [vmem:[%s0 + $0x390] sm:$0xff]
  %v168 = vld [vmem:[%s0 + $0x398] sm:$0xf]
  %v169 = vld [vmem:[%s0 + $0x39c] sm:$0xff]
  %v170 = vld [vmem:[%s0 + $0x3a4] sm:$0xf]
  %v171 = vld [vmem:[%s0 + $0x3a8] sm:$0xff]
  %v172 = vld [vmem:[%s0 + $0x3b0] sm:$0xf]
  %v173 = vld [vmem:[%s0 + $0x3b4] sm:$0xff]
  %v174 = vld [vmem:[%s0 + $0x3bc] sm:$0xf]
  %v175 = vld [vmem:[%s0 + $0x3c0] sm:$0xff]
  %v176 = vld [vmem:[%s0 + $0x3c8] sm:$0xf]
  %v177 = vld [vmem:[%s0 + $0x3cc] sm:$0xff]
  %v178 = vld [vmem:[%s0 + $0x3d4] sm:$0xf]
  %v179 = vld [vmem:[%s0 + $0x3d8] sm:$0xff]
  %v180 = vld [vmem:[%s0 + $0x3e0] sm:$0xf]
  %v181 = vld [vmem:[%s0 + $0x3e4] sm:$0xff]
  %v182 = vld [vmem:[%s0 + $0x3ec] sm:$0xf]
  %v183 = vld [vmem:[%s0 + $0x3f0] sm:$0xff]
  %v184 = vld [vmem:[%s0 + $0x3f8] sm:$0xf]
  %v185 = vld [vmem:[%s0 + $0x3fc] sm:$0xff]
  %v186 = vld [vmem:[%s0 + $0x404] sm:$0xf]
  %v187 = vld [vmem:[%s0 + $0x408] sm:$0xff]
  %v188 = vld [vmem:[%s0 + $0x410] sm:$0xf]
  %v189 = vld [vmem:[%s0 + $0x414] sm:$0xff]
  %v190 = vld [vmem:[%s0 + $0x41c] sm:$0xf]
  %v191 = vld [vmem:[%s0 + $0x420] sm:$0xff]
  %v192 = vld [vmem:[%s0 + $0x428] sm:$0xf]
  %v193 = vld [vmem:[%s0 + $0x42c] sm:$0xff]
  %v194 = vld [vmem:[%s0 + $0x434] sm:$0xf]
  %v195 = vld [vmem:[%s0 + $0x438] sm:$0xff]
  %v196 = vld [vmem:[%s0 + $0x440] sm:$0xf]
  %v197 = vld [vmem:[%s0 + $0x444] sm:$0xff]
  %v198 = vld [vmem:[%s0 + $0x44c] sm:$0xf]
  %v199 = vld [vmem:[%s0 + $0x450] sm:$0xff]
  %v200 = vld [vmem:[%s0 + $0x458] sm:$0xf]
  %v201 = vld [vmem:[%s0 + $0x45c] sm:$0xff]
  %v202 = vld [vmem:[%s0 + $0x464] sm:$0xf]
  %v203 = vld [vmem:[%s0 + $0x468] sm:$0xff]
  %v204 = vld [vmem:[%s0 + $0x470] sm:$0xf]
  %v205 = vld [vmem:[%s0 + $0x474] sm:$0xff]
  %v206 = vld [vmem:[%s0 + $0x47c] sm:$0xf]
  %v207 = vld [vmem:[%s0 + $0x480] sm:$0xff]
  %v208 = vld [vmem:[%s0 + $0x488] sm:$0xf]
  %v209 = vld [vmem:[%s0 + $0x48c] sm:$0xff]
  %v210 = vld [vmem:[%s0 + $0x494] sm:$0xf]
  %v211 = vld [vmem:[%s0 + $0x498] sm:$0xff]
  %v212 = vld [vmem:[%s0 + $0x4a0] sm:$0xf]
  %v213 = vld [vmem:[%s0 + $0x4a4] sm:$0xff]
  %v214 = vld [vmem:[%s0 + $0x4ac] sm:$0xf]
  %v215 = vld [vmem:[%s0 + $0x4b0] sm:$0xff]
  %v216 = vld [vmem:[%s0 + $0x4b8] sm:$0xf]
  %v217 = vld [vmem:[%s0 + $0x4bc] sm:$0xff]
  %v218 = vld [vmem:[%s0 + $0x4c4] sm:$0xf]
  %v219 = vld [vmem:[%s0 + $0x4c8] sm:$0xff]
  %v220 = vld [vmem:[%s0 + $0x4d0] sm:$0xf]
  %v221 = vld [vmem:[%s0 + $0x4d4] sm:$0xff]
  %v222 = vld [vmem:[%s0 + $0x4dc] sm:$0xf]
  %v223 = vld [vmem:[%s0 + $0x4e0] sm:$0xff]
  %v224 = vld [vmem:[%s0 + $0x4e8] sm:$0xf]
  %v225 = vld [vmem:[%s0 + $0x4ec] sm:$0xff]
  %v226 = vld [vmem:[%s0 + $0x4f4] sm:$0xf]
  %v227 = vld [vmem:[%s0 + $0x4f8] sm:$0xff]
  %v228 = vld [vmem:[%s0 + $0x500] sm:$0xf]
  %v229 = vld [vmem:[%s0 + $0x504] sm:$0xff]
  %v230 = vld [vmem:[%s0 + $0x50c] sm:$0xf]
  %v231 = vld [vmem:[%s0 + $0x510] sm:$0xff]
  %v232 = vld [vmem:[%s0 + $0x518] sm:$0xf]
  %v233 = vld [vmem:[%s0 + $0x51c] sm:$0xff]
  %v234 = vld [vmem:[%s0 + $0x524] sm:$0xf]
  %v235 = vld [vmem:[%s0 + $0x528] sm:$0xff]
  %v236 = vld [vmem:[%s0 + $0x530] sm:$0xf]
  %v237 = vld [vmem:[%s0 + $0x534] sm:$0xff]
  %v238 = vld [vmem:[%s0 + $0x53c] sm:$0xf]
  %v239 = vld [vmem:[%s0 + $0x540] sm:$0xff]
  %v240 = vld [vmem:[%s0 + $0x548] sm:$0xf]
  %v241 = vld [vmem:[%s0 + $0x54c] sm:$0xff]
  %v242 = vld [vmem:[%s0 + $0x554] sm:$0xf]
  %v243 = vld [vmem:[%s0 + $0x558] sm:$0xff]
  %v244 = vld [vmem:[%s0 + $0x560] sm:$0xf]
  %v245 = vld [vmem:[%s0 + $0x564] sm:$0xff]
  %v246 = vld [vmem:[%s0 + $0x56c] sm:$0xf]
  %v247 = vld [vmem:[%s0 + $0x570] sm:$0xff]
  %v248 = vld [vmem:[%s0 + $0x578] sm:$0xf]
  %v249 = vld [vmem:[%s0 + $0x57c] sm:$0xff]
  %v250 = vld [vmem:[%s0 + $0x584] sm:$0xf]
  %v251 = vld [vmem:[%s0 + $0x588] sm:$0xff]
  %v252 = vld [vmem:[%s0 + $0x590] sm:$0xf]
  %v253 = vld [vmem:[%s0 + $0x594] sm:$0xff]
  %v254 = vld [vmem:[%s0 + $0x59c] sm:$0xf]
  %v255 = vld [vmem:[%s0 + $0x5a0] sm:$0xff]
  %v256 = vld [vmem:[%s0 + $0x5a8] sm:$0xf]
  %v257 = vld [vmem:[%s0 + $0x5ac] sm:$0xff]
  %v258 = vld [vmem:[%s0 + $0x5b4] sm:$0xf]
  %v259 = vld [vmem:[%s0 + $0x5b8] sm:$0xff]
  %v260 = vld [vmem:[%s0 + $0x5c0] sm:$0xf]
  %v261 = vld [vmem:[%s0 + $0x5c4] sm:$0xff]
  %v262 = vld [vmem:[%s0 + $0x5cc] sm:$0xf]
  %v263 = vld [vmem:[%s0 + $0x5d0] sm:$0xff]
  %v264 = vld [vmem:[%s0 + $0x5d8] sm:$0xf]
  %v265 = vld [vmem:[%s0 + $0x5dc] sm:$0xff]
  %v266 = vld [vmem:[%s0 + $0x5e4] sm:$0xf]
  %v267 = vld [vmem:[%s0 + $0x5e8] sm:$0xff]
  %v268 = vld [vmem:[%s0 + $0x5f0] sm:$0xf]
  %v269 = vld [vmem:[%s0 + $0x5f4] sm:$0xff]
  %v270 = vld [vmem:[%s0 + $0x5fc] sm:$0xf]
  %v271 = vld [vmem:[%s0 + $0x600] sm:$0xff]
  %v272 = vld [vmem:[%s0 + $0x608] sm:$0xf]
  %v273 = vld [vmem:[%s0 + $0x60c] sm:$0xff]
  %v274 = vld [vmem:[%s0 + $0x614] sm:$0xf]
  %v275 = vld [vmem:[%s0 + $0x618] sm:$0xff]
  %v276 = vld [vmem:[%s0 + $0x620] sm:$0xf]
  %v277 = vld [vmem:[%s0 + $0x624] sm:$0xff]
  %v278 = vld [vmem:[%s0 + $0x62c] sm:$0xf]
  %v279 = vld [vmem:[%s0 + $0x630] sm:$0xff]
  %v280 = vld [vmem:[%s0 + $0x638] sm:$0xf]
  %v281 = vld [vmem:[%s0 + $0x63c] sm:$0xff]
  %v282 = vld [vmem:[%s0 + $0x644] sm:$0xf]
  %v283 = vld [vmem:[%s0 + $0x648] sm:$0xff]
  %v284 = vld [vmem:[%s0 + $0x650] sm:$0xf]
  %v285 = vld [vmem:[%s0 + $0x654] sm:$0xff]
  %v286 = vld [vmem:[%s0 + $0x65c] sm:$0xf]
  %v287 = vld [vmem:[%s0 + $0x660] sm:$0xff]
  %v288 = vld [vmem:[%s0 + $0x668] sm:$0xf]
  %v289 = vld [vmem:[%s0 + $0x66c] sm:$0xff]
  %v290 = vld [vmem:[%s0 + $0x674] sm:$0xf]
  %v291 = vld [vmem:[%s0 + $0x678] sm:$0xff]
  %v292 = vld [vmem:[%s0 + $0x680] sm:$0xf]
  %v293 = vld [vmem:[%s0 + $0x684] sm:$0xff]
  %v294 = vld [vmem:[%s0 + $0x68c] sm:$0xf]
  %v295 = vld [vmem:[%s0 + $0x690] sm:$0xff]
  %v296 = vld [vmem:[%s0 + $0x698] sm:$0xf]
  %v297 = vld [vmem:[%s0 + $0x69c] sm:$0xff]
  %v298 = vld [vmem:[%s0 + $0x6a4] sm:$0xf]
  %v299 = vld [vmem:[%s0 + $0x6a8] sm:$0xff]
  %v300 = vld [vmem:[%s0 + $0x6b0] sm:$0xf]
  %v301 = vld [vmem:[%s0 + $0x6b4] sm:$0xff]
  %v302 = vld [vmem:[%s0 + $0x6bc] sm:$0xf]
  %v303 = vld [vmem:[%s0 + $0x6c0] sm:$0xff]
  %v304 = vld [vmem:[%s0 + $0x6c8] sm:$0xf]
  %v305 = vld [vmem:[%s0 + $0x6cc] sm:$0xff]
  %v306 = vld [vmem:[%s0 + $0x6d4] sm:$0xf]
  %v307 = vld [vmem:[%s0 + $0x6d8] sm:$0xff]
  %v308 = vld [vmem:[%s0 + $0x6e0] sm:$0xf]
  %v309 = vld [vmem:[%s0 + $0x6e4] sm:$0xff]
  %v310 = vld [vmem:[%s0 + $0x6ec] sm:$0xf]
  %v311 = vld [vmem:[%s0 + $0x6f0] sm:$0xff]
  %v312 = vld [vmem:[%s0 + $0x6f8] sm:$0xf]
  %v313 = vld [vmem:[%s0 + $0x6fc] sm:$0xff]
  %v314 = vld [vmem:[%s0 + $0x704] sm:$0xf]
  %v315 = vld [vmem:[%s0 + $0x708] sm:$0xff]
  %v316 = vld [vmem:[%s0 + $0x710] sm:$0xf]
  %v317 = vld [vmem:[%s0 + $0x714] sm:$0xff]
  %v318 = vld [vmem:[%s0 + $0x71c] sm:$0xf]
  %v319 = vld [vmem:[%s0 + $0x720] sm:$0xff]
  %v320 = vld [vmem:[%s0 + $0x728] sm:$0xf]
  %v321 = vld [vmem:[%s0 + $0x72c] sm:$0xff]
  %v322 = vld [vmem:[%s0 + $0x734] sm:$0xf]
  %v323 = vld [vmem:[%s0 + $0x738] sm:$0xff]
  %v324 = vld [vmem:[%s0 + $0x740] sm:$0xf]
  %v325 = vld [vmem:[%s0 + $0x744] sm:$0xff]
  %v326 = vld [vmem:[%s0 + $0x74c] sm:$0xf]
  %v327 = vld [vmem:[%s0 + $0x750] sm:$0xff]
  %v328 = vld [vmem:[%s0 + $0x758] sm:$0xf]
  %v329 = vld [vmem:[%s0 + $0x75c] sm:$0xff]
  %v330 = vld [vmem:[%s0 + $0x764] sm:$0xf]
  %v331 = vld [vmem:[%s0 + $0x768] sm:$0xff]
  %v332 = vld [vmem:[%s0 + $0x770] sm:$0xf]
  %v333 = vld [vmem:[%s0 + $0x774] sm:$0xff]
  %v334 = vld [vmem:[%s0 + $0x77c] sm:$0xf]
  %v335 = vld [vmem:[%s0 + $0x780] sm:$0xff]
  %v336 = vld [vmem:[%s0 + $0x788] sm:$0xf]
  %v337 = vld [vmem:[%s0 + $0x78c] sm:$0xff]
  %v338 = vld [vmem:[%s0 + $0x794] sm:$0xf]
  %v339 = vld [vmem:[%s0 + $0x798] sm:$0xff]
  %v340 = vld [vmem:[%s0 + $0x7a0] sm:$0xf]
  %v341 = vld [vmem:[%s0 + $0x7a4] sm:$0xff]
  %v342 = vld [vmem:[%s0 + $0x7ac] sm:$0xf]
  %v343 = vld [vmem:[%s0 + $0x7b0] sm:$0xff]
  %v344 = vld [vmem:[%s0 + $0x7b8] sm:$0xf]
  %v345 = vld [vmem:[%s0 + $0x7bc] sm:$0xff]
  %v346 = vld [vmem:[%s0 + $0x7c4] sm:$0xf]
  %v347 = vld [vmem:[%s0 + $0x7c8] sm:$0xff]
  %v348 = vld [vmem:[%s0 + $0x7d0] sm:$0xf]
  %v349 = vld [vmem:[%s0 + $0x7d4] sm:$0xff]
  %v350 = vld [vmem:[%s0 + $0x7dc] sm:$0xf]
  %v351 = vld [vmem:[%s0 + $0x7e0] sm:$0xff]
  %v352 = vld [vmem:[%s0 + $0x7e8] sm:$0xf]
  %v353 = vld [vmem:[%s0 + $0x7ec] sm:$0xff]
  %v354 = vld [vmem:[%s0 + $0x7f4] sm:$0xf]
  %v355 = vld [vmem:[%s0 + $0x7f8] sm:$0xff]
  %v356 = vld [vmem:[%s0 + $0x800] sm:$0xf]
  %v357 = vld [vmem:[%s0 + $0x804] sm:$0xff]
  %v358 = vld [vmem:[%s0 + $0x80c] sm:$0xf]
  %v359 = vld [vmem:[%s0 + $0x810] sm:$0xff]
  %v360 = vld [vmem:[%s0 + $0x818] sm:$0xf]
  %v361 = vld [vmem:[%s0 + $0x81c] sm:$0xff]
  %v362 = vld [vmem:[%s0 + $0x824] sm:$0xf]
  %v363 = vld [vmem:[%s0 + $0x828] sm:$0xff]
  %v364 = vld [vmem:[%s0 + $0x830] sm:$0xf]
  %v365 = vld [vmem:[%s0 + $0x834] sm:$0xff]
  %v366 = vld [vmem:[%s0 + $0x83c] sm:$0xf]
  %v367 = vld [vmem:[%s0 + $0x840] sm:$0xff]
  %v368 = vld [vmem:[%s0 + $0x848] sm:$0xf]
  %v369 = vld [vmem:[%s0 + $0x84c] sm:$0xff]
  %v370 = vld [vmem:[%s0 + $0x854] sm:$0xf]
  %v371 = vld [vmem:[%s0 + $0x858] sm:$0xff]
  %v372 = vld [vmem:[%s0 + $0x860] sm:$0xf]
  %v373 = vld [vmem:[%s0 + $0x864] sm:$0xff]
  %v374 = vld [vmem:[%s0 + $0x86c] sm:$0xf]
  %v375 = vld [vmem:[%s0 + $0x870] sm:$0xff]
  %v376 = vld [vmem:[%s0 + $0x878] sm:$0xf]
  %v377 = vld [vmem:[%s0 + $0x87c] sm:$0xff]
  %v378 = vld [vmem:[%s0 + $0x884] sm:$0xf]
  %v379 = vld [vmem:[%s0 + $0x888] sm:$0xff]
  %v380 = vld [vmem:[%s0 + $0x890] sm:$0xf]
  %v381 = vld [vmem:[%s0 + $0x894] sm:$0xff]
  %v382 = vld [vmem:[%s0 + $0x89c] sm:$0xf]
  %v383 = vld [vmem:[%s0 + $0x8a0] sm:$0xff]
  %v384 = vld [vmem:[%s0 + $0x8a8] sm:$0xf]
  %v385 = vld [vmem:[%s0 + $0x8ac] sm:$0xff]
  %v386 = vld [vmem:[%s0 + $0x8b4] sm:$0xf]
  %v387 = vld [vmem:[%s0 + $0x8b8] sm:$0xff]
  %v388 = vld [vmem:[%s0 + $0x8c0] sm:$0xf]
  %v389 = vld [vmem:[%s0 + $0x8c4] sm:$0xff]
  %v390 = vld [vmem:[%s0 + $0x8cc] sm:$0xf]
  %v391 = vld [vmem:[%s0 + $0x8d0] sm:$0xff]
  %v392 = vld [vmem:[%s0 + $0x8d8] sm:$0xf]
  %v393 = vld [vmem:[%s0 + $0x8dc] sm:$0xff]
  %v394 = vld [vmem:[%s0 + $0x8e4] sm:$0xf]
  %v395 = vld [vmem:[%s0 + $0x8e8] sm:$0xff]
  %v396 = vld [vmem:[%s0 + $0x8f0] sm:$0xf]
  %v397 = vld [vmem:[%s0 + $0x8f4] sm:$0xff]
  %v398 = vld [vmem:[%s0 + $0x8fc] sm:$0xf]
  %v399 = vld [vmem:[%s0 + $0x900] sm:$0xff]
  %v400 = vld [vmem:[%s0 + $0x908] sm:$0xf]
  %v401 = vld [vmem:[%s0 + $0x90c] sm:$0xff]
  %v402 = vld [vmem:[%s0 + $0x914] sm:$0xf]
  %v403 = vld [vmem:[%s0 + $0x918] sm:$0xff]
  %v404 = vld [vmem:[%s0 + $0x920] sm:$0xf]
  %v405 = vld [vmem:[%s0 + $0x924] sm:$0xff]
  %v406 = vld [vmem:[%s0 + $0x92c] sm:$0xf]
  %v407 = vld [vmem:[%s0 + $0x930] sm:$0xff]
  %v408 = vld [vmem:[%s0 + $0x938] sm:$0xf]
  %v409 = vld [vmem:[%s0 + $0x93c] sm:$0xff]
  %v410 = vld [vmem:[%s0 + $0x944] sm:$0xf]
  %v411 = vld [vmem:[%s0 + $0x948] sm:$0xff]
  %v412 = vld [vmem:[%s0 + $0x950] sm:$0xf]
  %v413 = vld [vmem:[%s0 + $0x954] sm:$0xff]
  %v414 = vld [vmem:[%s0 + $0x95c] sm:$0xf]
  %v415 = vld [vmem:[%s1] sm:$0xf]
  %v416 = vld [vmem:[%s1 + $0x4] sm:$0xf]
  %v417 = vld [vmem:[%s1 + $0x8] sm:$0xf]
  %v418 = vld [vmem:[%s1 + $0xc] sm:$0xf]
  %v419 = vld [vmem:[%s1 + $0x10] sm:$0xf]
  %v420 = vld [vmem:[%s1 + $0x14] sm:$0xf]
  %v421 = vld [vmem:[%s1 + $0x18] sm:$0xf]
  %v422 = vld [vmem:[%s1 + $0x1c] sm:$0xf]
  %v423 = vld [vmem:[%s1 + $0x20] sm:$0xf]
  %v424 = vld [vmem:[%s1 + $0x24] sm:$0xf]
  %v425 = vld [vmem:[%s1 + $0x28] sm:$0xf]
  %v426 = vld [vmem:[%s1 + $0x2c] sm:$0xf]
  %v427 = vld [vmem:[%s1 + $0x30] sm:$0xf]
  %v428 = vld [vmem:[%s1 + $0x34] sm:$0xf]
  %v429 = vld [vmem:[%s1 + $0x38] sm:$0xf]
  %v430 = vld [vmem:[%s1 + $0x3c] sm:$0xf]
  %v431 = vld [vmem:[%s1 + $0x40] sm:$0xf]
  %v432 = vld [vmem:[%s1 + $0x44] sm:$0xf]
  %v433 = vld [vmem:[%s1 + $0x48] sm:$0xf]
  %v434 = vld [vmem:[%s1 + $0x4c] sm:$0xf]
  %v435 = vld [vmem:[%s1 + $0x50] sm:$0xf]
  %v436 = vld [vmem:[%s1 + $0x54] sm:$0xf]
  %v437 = vld [vmem:[%s1 + $0x58] sm:$0xf]
  %v438 = vld [vmem:[%s1 + $0x5c] sm:$0xf]
  %v439 = vld [vmem:[%s1 + $0x60] sm:$0xf]
  %v440 = vld [vmem:[%s1 + $0x64] sm:$0xf]
  %v441 = vld [vmem:[%s1 + $0x68] sm:$0xf]
  %v442 = vld [vmem:[%s1 + $0x6c] sm:$0xf]
  %v443 = vld [vmem:[%s1 + $0x70] sm:$0xf]
  %v444 = vld [vmem:[%s1 + $0x74] sm:$0xf]
  %v445 = vld [vmem:[%s1 + $0x78] sm:$0xf]
  %v446 = vld [vmem:[%s1 + $0x7c] sm:$0xf]
  %v447 = vld [vmem:[%s1 + $0x80] sm:$0xf]
  %v448 = vld [vmem:[%s1 + $0x84] sm:$0xf]
  %v449 = vld [vmem:[%s1 + $0x88] sm:$0xf]
  %v450 = vld [vmem:[%s1 + $0x8c] sm:$0xf]
  %v851 = vunpack.c.l.b16 %v15
  %v852 = vunpack.c.h.b16 %v15
  %v853 = vunpack.c.l.b16 %v16
  %v854 = vunpack.c.l.b16 %v17
  %v855 = vunpack.c.h.b16 %v17
  %v856 = vunpack.c.l.b16 %v18
  %v857 = vunpack.c.l.b16 %v19
  %v858 = vunpack.c.h.b16 %v19
  %v859 = vunpack.c.l.b16 %v20
  %v860 = vunpack.c.l.b16 %v21
  %v861 = vunpack.c.h.b16 %v21
  %v862 = vunpack.c.l.b16 %v22
  %v863 = vunpack.c.l.b16 %v23
  %v864 = vunpack.c.h.b16 %v23
  %v865 = vunpack.c.l.b16 %v24
  %v866 = vunpack.c.l.b16 %v25
  %v867 = vunpack.c.h.b16 %v25
  %v868 = vunpack.c.l.b16 %v26
  %v869 = vunpack.c.l.b16 %v27
  %v870 = vunpack.c.h.b16 %v27
  %v871 = vunpack.c.l.b16 %v28
  %v872 = vunpack.c.l.b16 %v29
  %v873 = vunpack.c.h.b16 %v29
  %v874 = vunpack.c.l.b16 %v30
  %v875 = vunpack.c.l.b16 %v31
  %v876 = vunpack.c.h.b16 %v31
  %v877 = vunpack.c.l.b16 %v32
  %v878 = vunpack.c.l.b16 %v33
  %v879 = vunpack.c.h.b16 %v33
  %v880 = vunpack.c.l.b16 %v34
  %v881 = vunpack.c.l.b16 %v35
  %v882 = vunpack.c.h.b16 %v35
  %v883 = vunpack.c.l.b16 %v36
  %v884 = vunpack.c.l.b16 %v37
  %v885 = vunpack.c.h.b16 %v37
  %v886 = vunpack.c.l.b16 %v38
  %v887 = vunpack.c.l.b16 %v39
  %v888 = vunpack.c.h.b16 %v39
  %v889 = vunpack.c.l.b16 %v40
  %v890 = vunpack.c.l.b16 %v41
  %v891 = vunpack.c.h.b16 %v41
  %v892 = vunpack.c.l.b16 %v42
  %v893 = vunpack.c.l.b16 %v43
  %v894 = vunpack.c.h.b16 %v43
  %v895 = vunpack.c.l.b16 %v44
  %v896 = vunpack.c.l.b16 %v45
  %v897 = vunpack.c.h.b16 %v45
  %v898 = vunpack.c.l.b16 %v46
  %v899 = vunpack.c.l.b16 %v47
  %v900 = vunpack.c.h.b16 %v47
  %v901 = vunpack.c.l.b16 %v48
  %v902 = vunpack.c.l.b16 %v49
  %v903 = vunpack.c.h.b16 %v49
  %v904 = vunpack.c.l.b16 %v50
  %v905 = vunpack.c.l.b16 %v51
  %v906 = vunpack.c.h.b16 %v51
  %v907 = vunpack.c.l.b16 %v52
  %v908 = vunpack.c.l.b16 %v53
  %v909 = vunpack.c.h.b16 %v53
  %v910 = vunpack.c.l.b16 %v54
  %v911 = vunpack.c.l.b16 %v55
  %v912 = vunpack.c.h.b16 %v55
  %v913 = vunpack.c.l.b16 %v56
  %v914 = vunpack.c.l.b16 %v57
  %v915 = vunpack.c.h.b16 %v57
  %v916 = vunpack.c.l.b16 %v58
  %v917 = vunpack.c.l.b16 %v59
  %v918 = vunpack.c.h.b16 %v59
  %v919 = vunpack.c.l.b16 %v60
  %v920 = vunpack.c.l.b16 %v61
  %v921 = vunpack.c.h.b16 %v61
  %v922 = vunpack.c.l.b16 %v62
  %v923 = vunpack.c.l.b16 %v63
  %v924 = vunpack.c.h.b16 %v63
  %v925 = vunpack.c.l.b16 %v64
  %v926 = vunpack.c.l.b16 %v65
  %v927 = vunpack.c.h.b16 %v65
  %v928 = vunpack.c.l.b16 %v66
  %v929 = vunpack.c.l.b16 %v67
  %v930 = vunpack.c.h.b16 %v67
  %v931 = vunpack.c.l.b16 %v68
  %v932 = vunpack.c.l.b16 %v69
  %v933 = vunpack.c.h.b16 %v69
  %v934 = vunpack.c.l.b16 %v70
  %v935 = vunpack.c.l.b16 %v71
  %v936 = vunpack.c.h.b16 %v71
  %v937 = vunpack.c.l.b16 %v72
  %v938 = vunpack.c.l.b16 %v73
  %v939 = vunpack.c.h.b16 %v73
  %v940 = vunpack.c.l.b16 %v74
  %v941 = vunpack.c.l.b16 %v75
  %v942 = vunpack.c.h.b16 %v75
  %v943 = vunpack.c.l.b16 %v76
  %v944 = vunpack.c.l.b16 %v77
  %v945 = vunpack.c.h.b16 %v77
  %v946 = vunpack.c.l.b16 %v78
  %v947 = vunpack.c.l.b16 %v79
  %v948 = vunpack.c.h.b16 %v79
  %v949 = vunpack.c.l.b16 %v80
  %v950 = vunpack.c.l.b16 %v81
  %v951 = vunpack.c.h.b16 %v81
  %v952 = vunpack.c.l.b16 %v82
  %v953 = vunpack.c.l.b16 %v83
  %v954 = vunpack.c.h.b16 %v83
  %v955 = vunpack.c.l.b16 %v84
  %v956 = vunpack.c.l.b16 %v85
  %v957 = vunpack.c.h.b16 %v85
  %v958 = vunpack.c.l.b16 %v86
  %v959 = vunpack.c.l.b16 %v87
  %v960 = vunpack.c.h.b16 %v87
  %v961 = vunpack.c.l.b16 %v88
  %v962 = vunpack.c.l.b16 %v89
  %v963 = vunpack.c.h.b16 %v89
  %v964 = vunpack.c.l.b16 %v90
  %v965 = vunpack.c.l.b16 %v91
  %v966 = vunpack.c.h.b16 %v91
  %v967 = vunpack.c.l.b16 %v92
  %v968 = vunpack.c.l.b16 %v93
  %v969 = vunpack.c.h.b16 %v93
  %v970 = vunpack.c.l.b16 %v94
  %v971 = vunpack.c.l.b16 %v95
  %v972 = vunpack.c.h.b16 %v95
  %v973 = vunpack.c.l.b16 %v96
  %v974 = vunpack.c.l.b16 %v97
  %v975 = vunpack.c.h.b16 %v97
  %v976 = vunpack.c.l.b16 %v98
  %v977 = vunpack.c.l.b16 %v99
  %v978 = vunpack.c.h.b16 %v99
  %v979 = vunpack.c.l.b16 %v100
  %v980 = vunpack.c.l.b16 %v101
  %v981 = vunpack.c.h.b16 %v101
  %v982 = vunpack.c.l.b16 %v102
  %v983 = vunpack.c.l.b16 %v103
  %v984 = vunpack.c.h.b16 %v103
  %v985 = vunpack.c.l.b16 %v104
  %v986 = vunpack.c.l.b16 %v105
  %v987 = vunpack.c.h.b16 %v105
  %v988 = vunpack.c.l.b16 %v106
  %v989 = vunpack.c.l.b16 %v107
  %v990 = vunpack.c.h.b16 %v107
  %v991 = vunpack.c.l.b16 %v108
  %v992 = vunpack.c.l.b16 %v109
  %v993 = vunpack.c.h.b16 %v109
  %v994 = vunpack.c.l.b16 %v110
  %v995 = vunpack.c.l.b16 %v111
  %v996 = vunpack.c.h.b16 %v111
  %v997 = vunpack.c.l.b16 %v112
  %v998 = vunpack.c.l.b16 %v113
  %v999 = vunpack.c.h.b16 %v113
  %v1000 = vunpack.c.l.b16 %v114
  %v1001 = vunpack.c.l.b16 %v115
  %v1002 = vunpack.c.h.b16 %v115
  %v1003 = vunpack.c.l.b16 %v116
  %v1004 = vunpack.c.l.b16 %v117
  %v1005 = vunpack.c.h.b16 %v117
  %v1006 = vunpack.c.l.b16 %v118
  %v1007 = vunpack.c.l.b16 %v119
  %v1008 = vunpack.c.h.b16 %v119
  %v1009 = vunpack.c.l.b16 %v120
  %v1010 = vunpack.c.l.b16 %v121
  %v1011 = vunpack.c.h.b16 %v121
  %v1012 = vunpack.c.l.b16 %v122
  %v1013 = vunpack.c.l.b16 %v123
  %v1014 = vunpack.c.h.b16 %v123
  %v1015 = vunpack.c.l.b16 %v124
  %v1016 = vunpack.c.l.b16 %v125
  %v1017 = vunpack.c.h.b16 %v125
  %v1018 = vunpack.c.l.b16 %v126
  %v1019 = vunpack.c.l.b16 %v127
  %v1020 = vunpack.c.h.b16 %v127
  %v1021 = vunpack.c.l.b16 %v128
  %v1022 = vunpack.c.l.b16 %v129
  %v1023 = vunpack.c.h.b16 %v129
  %v1024 = vunpack.c.l.b16 %v130
  %v1025 = vunpack.c.l.b16 %v131
  %v1026 = vunpack.c.h.b16 %v131
  %v1027 = vunpack.c.l.b16 %v132
  %v1028 = vunpack.c.l.b16 %v133
  %v1029 = vunpack.c.h.b16 %v133
  %v1030 = vunpack.c.l.b16 %v134
  %v1031 = vunpack.c.l.b16 %v135
  %v1032 = vunpack.c.h.b16 %v135
  %v1033 = vunpack.c.l.b16 %v136
  %v1034 = vunpack.c.l.b16 %v137
  %v1035 = vunpack.c.h.b16 %v137
  %v1036 = vunpack.c.l.b16 %v138
  %v1037 = vunpack.c.l.b16 %v139
  %v1038 = vunpack.c.h.b16 %v139
  %v1039 = vunpack.c.l.b16 %v140
  %v1040 = vunpack.c.l.b16 %v141
  %v1041 = vunpack.c.h.b16 %v141
  %v1042 = vunpack.c.l.b16 %v142
  %v1043 = vunpack.c.l.b16 %v143
  %v1044 = vunpack.c.h.b16 %v143
  %v1045 = vunpack.c.l.b16 %v144
  %v1046 = vunpack.c.l.b16 %v145
  %v1047 = vunpack.c.h.b16 %v145
  %v1048 = vunpack.c.l.b16 %v146
  %v1049 = vunpack.c.l.b16 %v147
  %v1050 = vunpack.c.h.b16 %v147
  %v1051 = vunpack.c.l.b16 %v148
  %v1052 = vunpack.c.l.b16 %v149
  %v1053 = vunpack.c.h.b16 %v149
  %v1054 = vunpack.c.l.b16 %v150
  %v1055 = vunpack.c.l.b16 %v151
  %v1056 = vunpack.c.h.b16 %v151
  %v1057 = vunpack.c.l.b16 %v152
  %v1058 = vunpack.c.l.b16 %v153
  %v1059 = vunpack.c.h.b16 %v153
  %v1060 = vunpack.c.l.b16 %v154
  %v1061 = vunpack.c.l.b16 %v155
  %v1062 = vunpack.c.h.b16 %v155
  %v1063 = vunpack.c.l.b16 %v156
  %v1064 = vunpack.c.l.b16 %v157
  %v1065 = vunpack.c.h.b16 %v157
  %v1066 = vunpack.c.l.b16 %v158
  %v1067 = vunpack.c.l.b16 %v159
  %v1068 = vunpack.c.h.b16 %v159
  %v1069 = vunpack.c.l.b16 %v160
  %v1070 = vunpack.c.l.b16 %v161
  %v1071 = vunpack.c.h.b16 %v161
  %v1072 = vunpack.c.l.b16 %v162
  %v1073 = vunpack.c.l.b16 %v163
  %v1074 = vunpack.c.h.b16 %v163
  %v1075 = vunpack.c.l.b16 %v164
  %v1076 = vunpack.c.l.b16 %v165
  %v1077 = vunpack.c.h.b16 %v165
  %v1078 = vunpack.c.l.b16 %v166
  %v1079 = vunpack.c.l.b16 %v167
  %v1080 = vunpack.c.h.b16 %v167
  %v1081 = vunpack.c.l.b16 %v168
  %v1082 = vunpack.c.l.b16 %v169
  %v1083 = vunpack.c.h.b16 %v169
  %v1084 = vunpack.c.l.b16 %v170
  %v1085 = vunpack.c.l.b16 %v171
  %v1086 = vunpack.c.h.b16 %v171
  %v1087 = vunpack.c.l.b16 %v172
  %v1088 = vunpack.c.l.b16 %v173
  %v1089 = vunpack.c.h.b16 %v173
  %v1090 = vunpack.c.l.b16 %v174
  %v1091 = vunpack.c.l.b16 %v175
  %v1092 = vunpack.c.h.b16 %v175
  %v1093 = vunpack.c.l.b16 %v176
  %v1094 = vunpack.c.l.b16 %v177
  %v1095 = vunpack.c.h.b16 %v177
  %v1096 = vunpack.c.l.b16 %v178
  %v1097 = vunpack.c.l.b16 %v179
  %v1098 = vunpack.c.h.b16 %v179
  %v1099 = vunpack.c.l.b16 %v180
  %v1100 = vunpack.c.l.b16 %v181
  %v1101 = vunpack.c.h.b16 %v181
  %v1102 = vunpack.c.l.b16 %v182
  %v1103 = vunpack.c.l.b16 %v183
  %v1104 = vunpack.c.h.b16 %v183
  %v1105 = vunpack.c.l.b16 %v184
  %v1106 = vunpack.c.l.b16 %v185
  %v1107 = vunpack.c.h.b16 %v185
  %v1108 = vunpack.c.l.b16 %v186
  %v1109 = vunpack.c.l.b16 %v187
  %v1110 = vunpack.c.h.b16 %v187
  %v1111 = vunpack.c.l.b16 %v188
  %v1112 = vunpack.c.l.b16 %v189
  %v1113 = vunpack.c.h.b16 %v189
  %v1114 = vunpack.c.l.b16 %v190
  %v1115 = vunpack.c.l.b16 %v191
  %v1116 = vunpack.c.h.b16 %v191
  %v1117 = vunpack.c.l.b16 %v192
  %v1118 = vunpack.c.l.b16 %v193
  %v1119 = vunpack.c.h.b16 %v193
  %v1120 = vunpack.c.l.b16 %v194
  %v1121 = vunpack.c.l.b16 %v195
  %v1122 = vunpack.c.h.b16 %v195
  %v1123 = vunpack.c.l.b16 %v196
  %v1124 = vunpack.c.l.b16 %v197
  %v1125 = vunpack.c.h.b16 %v197
  %v1126 = vunpack.c.l.b16 %v198
  %v1127 = vunpack.c.l.b16 %v199
  %v1128 = vunpack.c.h.b16 %v199
  %v1129 = vunpack.c.l.b16 %v200
  %v1130 = vunpack.c.l.b16 %v201
  %v1131 = vunpack.c.h.b16 %v201
  %v1132 = vunpack.c.l.b16 %v202
  %v1133 = vunpack.c.l.b16 %v203
  %v1134 = vunpack.c.h.b16 %v203
  %v1135 = vunpack.c.l.b16 %v204
  %v1136 = vunpack.c.l.b16 %v205
  %v1137 = vunpack.c.h.b16 %v205
  %v1138 = vunpack.c.l.b16 %v206
  %v1139 = vunpack.c.l.b16 %v207
  %v1140 = vunpack.c.h.b16 %v207
  %v1141 = vunpack.c.l.b16 %v208
  %v1142 = vunpack.c.l.b16 %v209
  %v1143 = vunpack.c.h.b16 %v209
  %v1144 = vunpack.c.l.b16 %v210
  %v1145 = vunpack.c.l.b16 %v211
  %v1146 = vunpack.c.h.b16 %v211
  %v1147 = vunpack.c.l.b16 %v212
  %v1148 = vunpack.c.l.b16 %v213
  %v1149 = vunpack.c.h.b16 %v213
  %v1150 = vunpack.c.l.b16 %v214
  %v1151 = vunpack.c.l.b16 %v215
  %v1152 = vunpack.c.h.b16 %v215
  %v1153 = vunpack.c.l.b16 %v216
  %v1154 = vunpack.c.l.b16 %v217
  %v1155 = vunpack.c.h.b16 %v217
  %v1156 = vunpack.c.l.b16 %v218
  %v1157 = vunpack.c.l.b16 %v219
  %v1158 = vunpack.c.h.b16 %v219
  %v1159 = vunpack.c.l.b16 %v220
  %v1160 = vunpack.c.l.b16 %v221
  %v1161 = vunpack.c.h.b16 %v221
  %v1162 = vunpack.c.l.b16 %v222
  %v1163 = vunpack.c.l.b16 %v223
  %v1164 = vunpack.c.h.b16 %v223
  %v1165 = vunpack.c.l.b16 %v224
  %v1166 = vunpack.c.l.b16 %v225
  %v1167 = vunpack.c.h.b16 %v225
  %v1168 = vunpack.c.l.b16 %v226
  %v1169 = vunpack.c.l.b16 %v227
  %v1170 = vunpack.c.h.b16 %v227
  %v1171 = vunpack.c.l.b16 %v228
  %v1172 = vunpack.c.l.b16 %v229
  %v1173 = vunpack.c.h.b16 %v229
  %v1174 = vunpack.c.l.b16 %v230
  %v1175 = vunpack.c.l.b16 %v231
  %v1176 = vunpack.c.h.b16 %v231
  %v1177 = vunpack.c.l.b16 %v232
  %v1178 = vunpack.c.l.b16 %v233
  %v1179 = vunpack.c.h.b16 %v233
  %v1180 = vunpack.c.l.b16 %v234
  %v1181 = vunpack.c.l.b16 %v235
  %v1182 = vunpack.c.h.b16 %v235
  %v1183 = vunpack.c.l.b16 %v236
  %v1184 = vunpack.c.l.b16 %v237
  %v1185 = vunpack.c.h.b16 %v237
  %v1186 = vunpack.c.l.b16 %v238
  %v1187 = vunpack.c.l.b16 %v239
  %v1188 = vunpack.c.h.b16 %v239
  %v1189 = vunpack.c.l.b16 %v240
  %v1190 = vunpack.c.l.b16 %v241
  %v1191 = vunpack.c.h.b16 %v241
  %v1192 = vunpack.c.l.b16 %v242
  %v1193 = vunpack.c.l.b16 %v243
  %v1194 = vunpack.c.h.b16 %v243
  %v1195 = vunpack.c.l.b16 %v244
  %v1196 = vunpack.c.l.b16 %v245
  %v1197 = vunpack.c.h.b16 %v245
  %v1198 = vunpack.c.l.b16 %v246
  %v1199 = vunpack.c.l.b16 %v247
  %v1200 = vunpack.c.h.b16 %v247
  %v1201 = vunpack.c.l.b16 %v248
  %v1202 = vunpack.c.l.b16 %v249
  %v1203 = vunpack.c.h.b16 %v249
  %v1204 = vunpack.c.l.b16 %v250
  %v1205 = vunpack.c.l.b16 %v251
  %v1206 = vunpack.c.h.b16 %v251
  %v1207 = vunpack.c.l.b16 %v252
  %v1208 = vunpack.c.l.b16 %v253
  %v1209 = vunpack.c.h.b16 %v253
  %v1210 = vunpack.c.l.b16 %v254
  %v1211 = vunpack.c.l.b16 %v255
  %v1212 = vunpack.c.h.b16 %v255
  %v1213 = vunpack.c.l.b16 %v256
  %v1214 = vunpack.c.l.b16 %v257
  %v1215 = vunpack.c.h.b16 %v257
  %v1216 = vunpack.c.l.b16 %v258
  %v1217 = vunpack.c.l.b16 %v259
  %v1218 = vunpack.c.h.b16 %v259
  %v1219 = vunpack.c.l.b16 %v260
  %v1220 = vunpack.c.l.b16 %v261
  %v1221 = vunpack.c.h.b16 %v261
  %v1222 = vunpack.c.l.b16 %v262
  %v1223 = vunpack.c.l.b16 %v263
  %v1224 = vunpack.c.h.b16 %v263
  %v1225 = vunpack.c.l.b16 %v264
  %v1226 = vunpack.c.l.b16 %v265
  %v1227 = vunpack.c.h.b16 %v265
  %v1228 = vunpack.c.l.b16 %v266
  %v1229 = vunpack.c.l.b16 %v267
  %v1230 = vunpack.c.h.b16 %v267
  %v1231 = vunpack.c.l.b16 %v268
  %v1232 = vunpack.c.l.b16 %v269
  %v1233 = vunpack.c.h.b16 %v269
  %v1234 = vunpack.c.l.b16 %v270
  %v1235 = vunpack.c.l.b16 %v271
  %v1236 = vunpack.c.h.b16 %v271
  %v1237 = vunpack.c.l.b16 %v272
  %v1238 = vunpack.c.l.b16 %v273
  %v1239 = vunpack.c.h.b16 %v273
  %v1240 = vunpack.c.l.b16 %v274
  %v1241 = vunpack.c.l.b16 %v275
  %v1242 = vunpack.c.h.b16 %v275
  %v1243 = vunpack.c.l.b16 %v276
  %v1244 = vunpack.c.l.b16 %v277
  %v1245 = vunpack.c.h.b16 %v277
  %v1246 = vunpack.c.l.b16 %v278
  %v1247 = vunpack.c.l.b16 %v279
  %v1248 = vunpack.c.h.b16 %v279
  %v1249 = vunpack.c.l.b16 %v280
  %v1250 = vunpack.c.l.b16 %v281
  %v1251 = vunpack.c.h.b16 %v281
  %v1252 = vunpack.c.l.b16 %v282
  %v1253 = vunpack.c.l.b16 %v283
  %v1254 = vunpack.c.h.b16 %v283
  %v1255 = vunpack.c.l.b16 %v284
  %v1256 = vunpack.c.l.b16 %v285
  %v1257 = vunpack.c.h.b16 %v285
  %v1258 = vunpack.c.l.b16 %v286
  %v1259 = vunpack.c.l.b16 %v287
  %v1260 = vunpack.c.h.b16 %v287
  %v1261 = vunpack.c.l.b16 %v288
  %v1262 = vunpack.c.l.b16 %v289
  %v1263 = vunpack.c.h.b16 %v289
  %v1264 = vunpack.c.l.b16 %v290
  %v1265 = vunpack.c.l.b16 %v291
  %v1266 = vunpack.c.h.b16 %v291
  %v1267 = vunpack.c.l.b16 %v292
  %v1268 = vunpack.c.l.b16 %v293
  %v1269 = vunpack.c.h.b16 %v293
  %v1270 = vunpack.c.l.b16 %v294
  %v1271 = vunpack.c.l.b16 %v295
  %v1272 = vunpack.c.h.b16 %v295
  %v1273 = vunpack.c.l.b16 %v296
  %v1274 = vunpack.c.l.b16 %v297
  %v1275 = vunpack.c.h.b16 %v297
  %v1276 = vunpack.c.l.b16 %v298
  %v1277 = vunpack.c.l.b16 %v299
  %v1278 = vunpack.c.h.b16 %v299
  %v1279 = vunpack.c.l.b16 %v300
  %v1280 = vunpack.c.l.b16 %v301
  %v1281 = vunpack.c.h.b16 %v301
  %v1282 = vunpack.c.l.b16 %v302
  %v1283 = vunpack.c.l.b16 %v303
  %v1284 = vunpack.c.h.b16 %v303
  %v1285 = vunpack.c.l.b16 %v304
  %v1286 = vunpack.c.l.b16 %v305
  %v1287 = vunpack.c.h.b16 %v305
  %v1288 = vunpack.c.l.b16 %v306
  %v1289 = vunpack.c.l.b16 %v307
  %v1290 = vunpack.c.h.b16 %v307
  %v1291 = vunpack.c.l.b16 %v308
  %v1292 = vunpack.c.l.b16 %v309
  %v1293 = vunpack.c.h.b16 %v309
  %v1294 = vunpack.c.l.b16 %v310
  %v1295 = vunpack.c.l.b16 %v311
  %v1296 = vunpack.c.h.b16 %v311
  %v1297 = vunpack.c.l.b16 %v312
  %v1298 = vunpack.c.l.b16 %v313
  %v1299 = vunpack.c.h.b16 %v313
  %v1300 = vunpack.c.l.b16 %v314
  %v1301 = vunpack.c.l.b16 %v315
  %v1302 = vunpack.c.h.b16 %v315
  %v1303 = vunpack.c.l.b16 %v316
  %v1304 = vunpack.c.l.b16 %v317
  %v1305 = vunpack.c.h.b16 %v317
  %v1306 = vunpack.c.l.b16 %v318
  %v1307 = vunpack.c.l.b16 %v319
  %v1308 = vunpack.c.h.b16 %v319
  %v1309 = vunpack.c.l.b16 %v320
  %v1310 = vunpack.c.l.b16 %v321
  %v1311 = vunpack.c.h.b16 %v321
  %v1312 = vunpack.c.l.b16 %v322
  %v1313 = vunpack.c.l.b16 %v323
  %v1314 = vunpack.c.h.b16 %v323
  %v1315 = vunpack.c.l.b16 %v324
  %v1316 = vunpack.c.l.b16 %v325
  %v1317 = vunpack.c.h.b16 %v325
  %v1318 = vunpack.c.l.b16 %v326
  %v1319 = vunpack.c.l.b16 %v327
  %v1320 = vunpack.c.h.b16 %v327
  %v1321 = vunpack.c.l.b16 %v328
  %v1322 = vunpack.c.l.b16 %v329
  %v1323 = vunpack.c.h.b16 %v329
  %v1324 = vunpack.c.l.b16 %v330
  %v1325 = vunpack.c.l.b16 %v331
  %v1326 = vunpack.c.h.b16 %v331
  %v1327 = vunpack.c.l.b16 %v332
  %v1328 = vunpack.c.l.b16 %v333
  %v1329 = vunpack.c.h.b16 %v333
  %v1330 = vunpack.c.l.b16 %v334
  %v1331 = vunpack.c.l.b16 %v335
  %v1332 = vunpack.c.h.b16 %v335
  %v1333 = vunpack.c.l.b16 %v336
  %v1334 = vunpack.c.l.b16 %v337
  %v1335 = vunpack.c.h.b16 %v337
  %v1336 = vunpack.c.l.b16 %v338
  %v1337 = vunpack.c.l.b16 %v339
  %v1338 = vunpack.c.h.b16 %v339
  %v1339 = vunpack.c.l.b16 %v340
  %v1340 = vunpack.c.l.b16 %v341
  %v1341 = vunpack.c.h.b16 %v341
  %v1342 = vunpack.c.l.b16 %v342
  %v1343 = vunpack.c.l.b16 %v343
  %v1344 = vunpack.c.h.b16 %v343
  %v1345 = vunpack.c.l.b16 %v344
  %v1346 = vunpack.c.l.b16 %v345
  %v1347 = vunpack.c.h.b16 %v345
  %v1348 = vunpack.c.l.b16 %v346
  %v1349 = vunpack.c.l.b16 %v347
  %v1350 = vunpack.c.h.b16 %v347
  %v1351 = vunpack.c.l.b16 %v348
  %v1352 = vunpack.c.l.b16 %v349
  %v1353 = vunpack.c.h.b16 %v349
  %v1354 = vunpack.c.l.b16 %v350
  %v1355 = vunpack.c.l.b16 %v351
  %v1356 = vunpack.c.h.b16 %v351
  %v1357 = vunpack.c.l.b16 %v352
  %v1358 = vunpack.c.l.b16 %v353
  %v1359 = vunpack.c.h.b16 %v353
  %v1360 = vunpack.c.l.b16 %v354
  %v1361 = vunpack.c.l.b16 %v355
  %v1362 = vunpack.c.h.b16 %v355
  %v1363 = vunpack.c.l.b16 %v356
  %v1364 = vunpack.c.l.b16 %v357
  %v1365 = vunpack.c.h.b16 %v357
  %v1366 = vunpack.c.l.b16 %v358
  %v1367 = vunpack.c.l.b16 %v359
  %v1368 = vunpack.c.h.b16 %v359
  %v1369 = vunpack.c.l.b16 %v360
  %v1370 = vunpack.c.l.b16 %v361
  %v1371 = vunpack.c.h.b16 %v361
  %v1372 = vunpack.c.l.b16 %v362
  %v1373 = vunpack.c.l.b16 %v363
  %v1374 = vunpack.c.h.b16 %v363
  %v1375 = vunpack.c.l.b16 %v364
  %v1376 = vunpack.c.l.b16 %v365
  %v1377 = vunpack.c.h.b16 %v365
  %v1378 = vunpack.c.l.b16 %v366
  %v1379 = vunpack.c.l.b16 %v367
  %v1380 = vunpack.c.h.b16 %v367
  %v1381 = vunpack.c.l.b16 %v368
  %v1382 = vunpack.c.l.b16 %v369
  %v1383 = vunpack.c.h.b16 %v369
  %v1384 = vunpack.c.l.b16 %v370
  %v1385 = vunpack.c.l.b16 %v371
  %v1386 = vunpack.c.h.b16 %v371
  %v1387 = vunpack.c.l.b16 %v372
  %v1388 = vunpack.c.l.b16 %v373
  %v1389 = vunpack.c.h.b16 %v373
  %v1390 = vunpack.c.l.b16 %v374
  %v1391 = vunpack.c.l.b16 %v375
  %v1392 = vunpack.c.h.b16 %v375
  %v1393 = vunpack.c.l.b16 %v376
  %v1394 = vunpack.c.l.b16 %v377
  %v1395 = vunpack.c.h.b16 %v377
  %v1396 = vunpack.c.l.b16 %v378
  %v1397 = vunpack.c.l.b16 %v379
  %v1398 = vunpack.c.h.b16 %v379
  %v1399 = vunpack.c.l.b16 %v380
  %v1400 = vunpack.c.l.b16 %v381
  %v1401 = vunpack.c.h.b16 %v381
  %v1402 = vunpack.c.l.b16 %v382
  %v1403 = vunpack.c.l.b16 %v383
  %v1404 = vunpack.c.h.b16 %v383
  %v1405 = vunpack.c.l.b16 %v384
  %v1406 = vunpack.c.l.b16 %v385
  %v1407 = vunpack.c.h.b16 %v385
  %v1408 = vunpack.c.l.b16 %v386
  %v1409 = vunpack.c.l.b16 %v387
  %v1410 = vunpack.c.h.b16 %v387
  %v1411 = vunpack.c.l.b16 %v388
  %v1412 = vunpack.c.l.b16 %v389
  %v1413 = vunpack.c.h.b16 %v389
  %v1414 = vunpack.c.l.b16 %v390
  %v1415 = vunpack.c.l.b16 %v391
  %v1416 = vunpack.c.h.b16 %v391
  %v1417 = vunpack.c.l.b16 %v392
  %v1418 = vunpack.c.l.b16 %v393
  %v1419 = vunpack.c.h.b16 %v393
  %v1420 = vunpack.c.l.b16 %v394
  %v1421 = vunpack.c.l.b16 %v395
  %v1422 = vunpack.c.h.b16 %v395
  %v1423 = vunpack.c.l.b16 %v396
  %v1424 = vunpack.c.l.b16 %v397
  %v1425 = vunpack.c.h.b16 %v397
  %v1426 = vunpack.c.l.b16 %v398
  %v1427 = vunpack.c.l.b16 %v399
  %v1428 = vunpack.c.h.b16 %v399
  %v1429 = vunpack.c.l.b16 %v400
  %v1430 = vunpack.c.l.b16 %v401
  %v1431 = vunpack.c.h.b16 %v401
  %v1432 = vunpack.c.l.b16 %v402
  %v1433 = vunpack.c.l.b16 %v403
  %v1434 = vunpack.c.h.b16 %v403
  %v1435 = vunpack.c.l.b16 %v404
  %v1436 = vunpack.c.l.b16 %v405
  %v1437 = vunpack.c.h.b16 %v405
  %v1438 = vunpack.c.l.b16 %v406
  %v1439 = vunpack.c.l.b16 %v407
  %v1440 = vunpack.c.h.b16 %v407
  %v1441 = vunpack.c.l.b16 %v408
  %v1442 = vunpack.c.l.b16 %v409
  %v1443 = vunpack.c.h.b16 %v409
  %v1444 = vunpack.c.l.b16 %v410
  %v1445 = vunpack.c.l.b16 %v411
  %v1446 = vunpack.c.h.b16 %v411
  %v1447 = vunpack.c.l.b16 %v412
  %v1448 = vunpack.c.l.b16 %v413
  %v1449 = vunpack.c.h.b16 %v413
  %v1450 = vunpack.c.l.b16 %v414
  %v1451 = vpack.c.b16 %v854, %v851
  %v1452 = vpack.c.b16 %v855, %v852
  %v1453 = vpack.c.b16 %v856, %v853
  %v1454 = vpack.c.b16 %v860, %v857
  %v1455 = vpack.c.b16 %v861, %v858
  %v1456 = vpack.c.b16 %v862, %v859
  %v1457 = vpack.c.b16 %v866, %v863
  %v1458 = vpack.c.b16 %v867, %v864
  %v1459 = vpack.c.b16 %v868, %v865
  %v1460 = vpack.c.b16 %v872, %v869
  %v1461 = vpack.c.b16 %v873, %v870
  %v1462 = vpack.c.b16 %v874, %v871
  %v1463 = vpack.c.b16 %v878, %v875
  %v1464 = vpack.c.b16 %v879, %v876
  %v1465 = vpack.c.b16 %v880, %v877
  %v1466 = vpack.c.b16 %v884, %v881
  %v1467 = vpack.c.b16 %v885, %v882
  %v1468 = vpack.c.b16 %v886, %v883
  %v1469 = vpack.c.b16 %v890, %v887
  %v1470 = vpack.c.b16 %v891, %v888
  %v1471 = vpack.c.b16 %v892, %v889
  %v1472 = vpack.c.b16 %v896, %v893
  %v1473 = vpack.c.b16 %v897, %v894
  %v1474 = vpack.c.b16 %v898, %v895
  %v1475 = vpack.c.b16 %v902, %v899
  %v1476 = vpack.c.b16 %v903, %v900
  %v1477 = vpack.c.b16 %v904, %v901
  %v1478 = vpack.c.b16 %v908, %v905
  %v1479 = vpack.c.b16 %v909, %v906
  %v1480 = vpack.c.b16 %v910, %v907
  %v1481 = vpack.c.b16 %v914, %v911
  %v1482 = vpack.c.b16 %v915, %v912
  %v1483 = vpack.c.b16 %v916, %v913
  %v1484 = vpack.c.b16 %v920, %v917
  %v1485 = vpack.c.b16 %v921, %v918
  %v1486 = vpack.c.b16 %v922, %v919
  %v1487 = vpack.c.b16 %v926, %v923
  %v1488 = vpack.c.b16 %v927, %v924
  %v1489 = vpack.c.b16 %v928, %v925
  %v1490 = vpack.c.b16 %v932, %v929
  %v1491 = vpack.c.b16 %v933, %v930
  %v1492 = vpack.c.b16 %v934, %v931
  %v1493 = vpack.c.b16 %v938, %v935
  %v1494 = vpack.c.b16 %v939, %v936
  %v1495 = vpack.c.b16 %v940, %v937
  %v1496 = vpack.c.b16 %v944, %v941
  %v1497 = vpack.c.b16 %v945, %v942
  %v1498 = vpack.c.b16 %v946, %v943
  %v1499 = vpack.c.b16 %v950, %v947
  %v1500 = vpack.c.b16 %v951, %v948
  %v1501 = vpack.c.b16 %v952, %v949
  %v1502 = vpack.c.b16 %v956, %v953
  %v1503 = vpack.c.b16 %v957, %v954
  %v1504 = vpack.c.b16 %v958, %v955
  %v1505 = vpack.c.b16 %v962, %v959
  %v1506 = vpack.c.b16 %v963, %v960
  %v1507 = vpack.c.b16 %v964, %v961
  %v1508 = vpack.c.b16 %v968, %v965
  %v1509 = vpack.c.b16 %v969, %v966
  %v1510 = vpack.c.b16 %v970, %v967
  %v1511 = vpack.c.b16 %v974, %v971
  %v1512 = vpack.c.b16 %v975, %v972
  %v1513 = vpack.c.b16 %v976, %v973
  %v1514 = vpack.c.b16 %v980, %v977
  %v1515 = vpack.c.b16 %v981, %v978
  %v1516 = vpack.c.b16 %v982, %v979
  %v1517 = vpack.c.b16 %v986, %v983
  %v1518 = vpack.c.b16 %v987, %v984
  %v1519 = vpack.c.b16 %v988, %v985
  %v1520 = vpack.c.b16 %v992, %v989
  %v1521 = vpack.c.b16 %v993, %v990
  %v1522 = vpack.c.b16 %v994, %v991
  %v1523 = vpack.c.b16 %v998, %v995
  %v1524 = vpack.c.b16 %v999, %v996
  %v1525 = vpack.c.b16 %v1000, %v997
  %v1526 = vpack.c.b16 %v1004, %v1001
  %v1527 = vpack.c.b16 %v1005, %v1002
  %v1528 = vpack.c.b16 %v1006, %v1003
  %v1529 = vpack.c.b16 %v1010, %v1007
  %v1530 = vpack.c.b16 %v1011, %v1008
  %v1531 = vpack.c.b16 %v1012, %v1009
  %v1532 = vpack.c.b16 %v1016, %v1013
  %v1533 = vpack.c.b16 %v1017, %v1014
  %v1534 = vpack.c.b16 %v1018, %v1015
  %v1535 = vpack.c.b16 %v1022, %v1019
  %v1536 = vpack.c.b16 %v1023, %v1020
  %v1537 = vpack.c.b16 %v1024, %v1021
  %v1538 = vpack.c.b16 %v1028, %v1025
  %v1539 = vpack.c.b16 %v1029, %v1026
  %v1540 = vpack.c.b16 %v1030, %v1027
  %v1541 = vpack.c.b16 %v1034, %v1031
  %v1542 = vpack.c.b16 %v1035, %v1032
  %v1543 = vpack.c.b16 %v1036, %v1033
  %v1544 = vpack.c.b16 %v1040, %v1037
  %v1545 = vpack.c.b16 %v1041, %v1038
  %v1546 = vpack.c.b16 %v1042, %v1039
  %v1547 = vpack.c.b16 %v1046, %v1043
  %v1548 = vpack.c.b16 %v1047, %v1044
  %v1549 = vpack.c.b16 %v1048, %v1045
  %v1550 = vpack.c.b16 %v1052, %v1049
  %v1551 = vpack.c.b16 %v1053, %v1050
  %v1552 = vpack.c.b16 %v1054, %v1051
  %v1553 = vpack.c.b16 %v1058, %v1055
  %v1554 = vpack.c.b16 %v1059, %v1056
  %v1555 = vpack.c.b16 %v1060, %v1057
  %v1556 = vpack.c.b16 %v1064, %v1061
  %v1557 = vpack.c.b16 %v1065, %v1062
  %v1558 = vpack.c.b16 %v1066, %v1063
  %v1559 = vpack.c.b16 %v1070, %v1067
  %v1560 = vpack.c.b16 %v1071, %v1068
  %v1561 = vpack.c.b16 %v1072, %v1069
  %v1562 = vpack.c.b16 %v1076, %v1073
  %v1563 = vpack.c.b16 %v1077, %v1074
  %v1564 = vpack.c.b16 %v1078, %v1075
  %v1565 = vpack.c.b16 %v1082, %v1079
  %v1566 = vpack.c.b16 %v1083, %v1080
  %v1567 = vpack.c.b16 %v1084, %v1081
  %v1568 = vpack.c.b16 %v1088, %v1085
  %v1569 = vpack.c.b16 %v1089, %v1086
  %v1570 = vpack.c.b16 %v1090, %v1087
  %v1571 = vpack.c.b16 %v1094, %v1091
  %v1572 = vpack.c.b16 %v1095, %v1092
  %v1573 = vpack.c.b16 %v1096, %v1093
  %v1574 = vpack.c.b16 %v1100, %v1097
  %v1575 = vpack.c.b16 %v1101, %v1098
  %v1576 = vpack.c.b16 %v1102, %v1099
  %v1577 = vpack.c.b16 %v1106, %v1103
  %v1578 = vpack.c.b16 %v1107, %v1104
  %v1579 = vpack.c.b16 %v1108, %v1105
  %v1580 = vpack.c.b16 %v1112, %v1109
  %v1581 = vpack.c.b16 %v1113, %v1110
  %v1582 = vpack.c.b16 %v1114, %v1111
  %v1583 = vpack.c.b16 %v1118, %v1115
  %v1584 = vpack.c.b16 %v1119, %v1116
  %v1585 = vpack.c.b16 %v1120, %v1117
  %v1586 = vpack.c.b16 %v1124, %v1121
  %v1587 = vpack.c.b16 %v1125, %v1122
  %v1588 = vpack.c.b16 %v1126, %v1123
  %v1589 = vpack.c.b16 %v1130, %v1127
  %v1590 = vpack.c.b16 %v1131, %v1128
  %v1591 = vpack.c.b16 %v1132, %v1129
  %v1592 = vpack.c.b16 %v1136, %v1133
  %v1593 = vpack.c.b16 %v1137, %v1134
  %v1594 = vpack.c.b16 %v1138, %v1135
  %v1595 = vpack.c.b16 %v1142, %v1139
  %v1596 = vpack.c.b16 %v1143, %v1140
  %v1597 = vpack.c.b16 %v1144, %v1141
  %v1598 = vpack.c.b16 %v1148, %v1145
  %v1599 = vpack.c.b16 %v1149, %v1146
  %v1600 = vpack.c.b16 %v1150, %v1147
  %v1601 = vpack.c.b16 %v1154, %v1151
  %v1602 = vpack.c.b16 %v1155, %v1152
  %v1603 = vpack.c.b16 %v1156, %v1153
  %v1604 = vpack.c.b16 %v1160, %v1157
  %v1605 = vpack.c.b16 %v1161, %v1158
  %v1606 = vpack.c.b16 %v1162, %v1159
  %v1607 = vpack.c.b16 %v1166, %v1163
  %v1608 = vpack.c.b16 %v1167, %v1164
  %v1609 = vpack.c.b16 %v1168, %v1165
  %v1610 = vpack.c.b16 %v1172, %v1169
  %v1611 = vpack.c.b16 %v1173, %v1170
  %v1612 = vpack.c.b16 %v1174, %v1171
  %v1613 = vpack.c.b16 %v1178, %v1175
  %v1614 = vpack.c.b16 %v1179, %v1176
  %v1615 = vpack.c.b16 %v1180, %v1177
  %v1616 = vpack.c.b16 %v1184, %v1181
  %v1617 = vpack.c.b16 %v1185, %v1182
  %v1618 = vpack.c.b16 %v1186, %v1183
  %v1619 = vpack.c.b16 %v1190, %v1187
  %v1620 = vpack.c.b16 %v1191, %v1188
  %v1621 = vpack.c.b16 %v1192, %v1189
  %v1622 = vpack.c.b16 %v1196, %v1193
  %v1623 = vpack.c.b16 %v1197, %v1194
  %v1624 = vpack.c.b16 %v1198, %v1195
  %v1625 = vpack.c.b16 %v1202, %v1199
  %v1626 = vpack.c.b16 %v1203, %v1200
  %v1627 = vpack.c.b16 %v1204, %v1201
  %v1628 = vpack.c.b16 %v1208, %v1205
  %v1629 = vpack.c.b16 %v1209, %v1206
  %v1630 = vpack.c.b16 %v1210, %v1207
  %v1631 = vpack.c.b16 %v1214, %v1211
  %v1632 = vpack.c.b16 %v1215, %v1212
  %v1633 = vpack.c.b16 %v1216, %v1213
  %v1634 = vpack.c.b16 %v1220, %v1217
  %v1635 = vpack.c.b16 %v1221, %v1218
  %v1636 = vpack.c.b16 %v1222, %v1219
  %v1637 = vpack.c.b16 %v1226, %v1223
  %v1638 = vpack.c.b16 %v1227, %v1224
  %v1639 = vpack.c.b16 %v1228, %v1225
  %v1640 = vpack.c.b16 %v1232, %v1229
  %v1641 = vpack.c.b16 %v1233, %v1230
  %v1642 = vpack.c.b16 %v1234, %v1231
  %v1643 = vpack.c.b16 %v1238, %v1235
  %v1644 = vpack.c.b16 %v1239, %v1236
  %v1645 = vpack.c.b16 %v1240, %v1237
  %v1646 = vpack.c.b16 %v1244, %v1241
  %v1647 = vpack.c.b16 %v1245, %v1242
  %v1648 = vpack.c.b16 %v1246, %v1243
  %v1649 = vpack.c.b16 %v1250, %v1247
  %v1650 = vpack.c.b16 %v1251, %v1248
  %v1651 = vpack.c.b16 %v1252, %v1249
  %v1652 = vpack.c.b16 %v1256, %v1253
  %v1653 = vpack.c.b16 %v1257, %v1254
  %v1654 = vpack.c.b16 %v1258, %v1255
  %v1655 = vpack.c.b16 %v1262, %v1259
  %v1656 = vpack.c.b16 %v1263, %v1260
  %v1657 = vpack.c.b16 %v1264, %v1261
  %v1658 = vpack.c.b16 %v1268, %v1265
  %v1659 = vpack.c.b16 %v1269, %v1266
  %v1660 = vpack.c.b16 %v1270, %v1267
  %v1661 = vpack.c.b16 %v1274, %v1271
  %v1662 = vpack.c.b16 %v1275, %v1272
  %v1663 = vpack.c.b16 %v1276, %v1273
  %v1664 = vpack.c.b16 %v1280, %v1277
  %v1665 = vpack.c.b16 %v1281, %v1278
  %v1666 = vpack.c.b16 %v1282, %v1279
  %v1667 = vpack.c.b16 %v1286, %v1283
  %v1668 = vpack.c.b16 %v1287, %v1284
  %v1669 = vpack.c.b16 %v1288, %v1285
  %v1670 = vpack.c.b16 %v1292, %v1289
  %v1671 = vpack.c.b16 %v1293, %v1290
  %v1672 = vpack.c.b16 %v1294, %v1291
  %v1673 = vpack.c.b16 %v1298, %v1295
  %v1674 = vpack.c.b16 %v1299, %v1296
  %v1675 = vpack.c.b16 %v1300, %v1297
  %v1676 = vpack.c.b16 %v1304, %v1301
  %v1677 = vpack.c.b16 %v1305, %v1302
  %v1678 = vpack.c.b16 %v1306, %v1303
  %v1679 = vpack.c.b16 %v1310, %v1307
  %v1680 = vpack.c.b16 %v1311, %v1308
  %v1681 = vpack.c.b16 %v1312, %v1309
  %v1682 = vpack.c.b16 %v1316, %v1313
  %v1683 = vpack.c.b16 %v1317, %v1314
  %v1684 = vpack.c.b16 %v1318, %v1315
  %v1685 = vpack.c.b16 %v1322, %v1319
  %v1686 = vpack.c.b16 %v1323, %v1320
  %v1687 = vpack.c.b16 %v1324, %v1321
  %v1688 = vpack.c.b16 %v1328, %v1325
  %v1689 = vpack.c.b16 %v1329, %v1326
  %v1690 = vpack.c.b16 %v1330, %v1327
  %v1691 = vpack.c.b16 %v1334, %v1331
  %v1692 = vpack.c.b16 %v1335, %v1332
  %v1693 = vpack.c.b16 %v1336, %v1333
  %v1694 = vpack.c.b16 %v1340, %v1337
  %v1695 = vpack.c.b16 %v1341, %v1338
  %v1696 = vpack.c.b16 %v1342, %v1339
  %v1697 = vpack.c.b16 %v1346, %v1343
  %v1698 = vpack.c.b16 %v1347, %v1344
  %v1699 = vpack.c.b16 %v1348, %v1345
  %v1700 = vpack.c.b16 %v1352, %v1349
  %v1701 = vpack.c.b16 %v1353, %v1350
  %v1702 = vpack.c.b16 %v1354, %v1351
  %v1703 = vpack.c.b16 %v1358, %v1355
  %v1704 = vpack.c.b16 %v1359, %v1356
  %v1705 = vpack.c.b16 %v1360, %v1357
  %v1706 = vpack.c.b16 %v1364, %v1361
  %v1707 = vpack.c.b16 %v1365, %v1362
  %v1708 = vpack.c.b16 %v1366, %v1363
  %v1709 = vpack.c.b16 %v1370, %v1367
  %v1710 = vpack.c.b16 %v1371, %v1368
  %v1711 = vpack.c.b16 %v1372, %v1369
  %v1712 = vpack.c.b16 %v1376, %v1373
  %v1713 = vpack.c.b16 %v1377, %v1374
  %v1714 = vpack.c.b16 %v1378, %v1375
  %v1715 = vpack.c.b16 %v1382, %v1379
  %v1716 = vpack.c.b16 %v1383, %v1380
  %v1717 = vpack.c.b16 %v1384, %v1381
  %v1718 = vpack.c.b16 %v1388, %v1385
  %v1719 = vpack.c.b16 %v1389, %v1386
  %v1720 = vpack.c.b16 %v1390, %v1387
  %v1721 = vpack.c.b16 %v1394, %v1391
  %v1722 = vpack.c.b16 %v1395, %v1392
  %v1723 = vpack.c.b16 %v1396, %v1393
  %v1724 = vpack.c.b16 %v1400, %v1397
  %v1725 = vpack.c.b16 %v1401, %v1398
  %v1726 = vpack.c.b16 %v1402, %v1399
  %v1727 = vpack.c.b16 %v1406, %v1403
  %v1728 = vpack.c.b16 %v1407, %v1404
  %v1729 = vpack.c.b16 %v1408, %v1405
  %v1730 = vpack.c.b16 %v1412, %v1409
  %v1731 = vpack.c.b16 %v1413, %v1410
  %v1732 = vpack.c.b16 %v1414, %v1411
  %v1733 = vpack.c.b16 %v1418, %v1415
  %v1734 = vpack.c.b16 %v1419, %v1416
  %v1735 = vpack.c.b16 %v1420, %v1417
  %v1736 = vpack.c.b16 %v1424, %v1421
  %v1737 = vpack.c.b16 %v1425, %v1422
  %v1738 = vpack.c.b16 %v1426, %v1423
  %v1739 = vpack.c.b16 %v1430, %v1427
  %v1740 = vpack.c.b16 %v1431, %v1428
  %v1741 = vpack.c.b16 %v1432, %v1429
  %v1742 = vpack.c.b16 %v1436, %v1433
  %v1743 = vpack.c.b16 %v1437, %v1434
  %v1744 = vpack.c.b16 %v1438, %v1435
  %v1745 = vpack.c.b16 %v1442, %v1439
  %v1746 = vpack.c.b16 %v1443, %v1440
  %v1747 = vpack.c.b16 %v1444, %v1441
  %v1748 = vpack.c.b16 %v1448, %v1445
  %v1749 = vpack.c.b16 %v1449, %v1446
  %v1750 = vpack.c.b16 %v1450, %v1447
  %v1987 = vunpack.c.l.b16 %v415
  %v1988 = vunpack.c.l.b16 %v416
  %v1989 = vunpack.c.l.b16 %v417
  %v1990 = vunpack.c.l.b16 %v418
  %v1991 = vunpack.c.l.b16 %v419
  %v1992 = vunpack.c.l.b16 %v420
  %v1993 = vunpack.c.l.b16 %v421
  %v1994 = vunpack.c.l.b16 %v422
  %v1995 = vunpack.c.l.b16 %v423
  %v1996 = vunpack.c.l.b16 %v424
  %v1997 = vunpack.c.l.b16 %v425
  %v1998 = vunpack.c.l.b16 %v426
  %v1999 = vunpack.c.l.b16 %v427
  %v2000 = vunpack.c.l.b16 %v428
  %v2001 = vunpack.c.l.b16 %v429
  %v2002 = vunpack.c.l.b16 %v430
  %v2003 = vunpack.c.l.b16 %v431
  %v2004 = vunpack.c.l.b16 %v432
  %v2005 = vunpack.c.l.b16 %v433
  %v2006 = vunpack.c.l.b16 %v434
  %v2007 = vunpack.c.l.b16 %v435
  %v2008 = vunpack.c.l.b16 %v436
  %v2009 = vunpack.c.l.b16 %v437
  %v2010 = vunpack.c.l.b16 %v438
  %v2011 = vunpack.c.l.b16 %v439
  %v2012 = vunpack.c.l.b16 %v440
  %v2013 = vunpack.c.l.b16 %v441
  %v2014 = vunpack.c.l.b16 %v442
  %v2015 = vunpack.c.l.b16 %v443
  %v2016 = vunpack.c.l.b16 %v444
  %v2017 = vunpack.c.l.b16 %v445
  %v2018 = vunpack.c.l.b16 %v446
  %v2019 = vunpack.c.l.b16 %v447
  %v2020 = vunpack.c.l.b16 %v448
  %v2021 = vunpack.c.l.b16 %v449
  %v2022 = vunpack.c.l.b16 %v450
  %v2023 = vpack.c.b16 %v1988, %v1987
  %v2024 = vpack.c.b16 %v1990, %v1989
  %v2025 = vpack.c.b16 %v1992, %v1991
  %v2026 = vpack.c.b16 %v1994, %v1993
  %v2027 = vpack.c.b16 %v1996, %v1995
  %v2028 = vpack.c.b16 %v1998, %v1997
  %v2029 = vpack.c.b16 %v2000, %v1999
  %v2030 = vpack.c.b16 %v2002, %v2001
  %v2031 = vpack.c.b16 %v2004, %v2003
  %v2032 = vpack.c.b16 %v2006, %v2005
  %v2033 = vpack.c.b16 %v2008, %v2007
  %v2034 = vpack.c.b16 %v2010, %v2009
  %v2035 = vpack.c.b16 %v2012, %v2011
  %v2036 = vpack.c.b16 %v2014, %v2013
  %v2037 = vpack.c.b16 %v2016, %v2015
  %v2038 = vpack.c.b16 %v2018, %v2017
  %v2039 = vpack.c.b16 %v2020, %v2019
  %v2040 = vpack.c.b16 %v2022, %v2021
  %vm2059 = vcmask 261120
  %v2061 = vsel %vm2059, %v1453, 0
  %v2064 = vsel %vm2059, %v1456, 0
  %v2067 = vsel %vm2059, %v1459, 0
  %v2070 = vsel %vm2059, %v1462, 0
  %v2073 = vsel %vm2059, %v1465, 0
  %v2076 = vsel %vm2059, %v1468, 0
  %v2079 = vsel %vm2059, %v1471, 0
  %v2082 = vsel %vm2059, %v1474, 0
  %v2085 = vsel %vm2059, %v1477, 0
  %v2088 = vsel %vm2059, %v1480, 0
  %v2091 = vsel %vm2059, %v1483, 0
  %v2094 = vsel %vm2059, %v1486, 0
  %v2097 = vsel %vm2059, %v1489, 0
  %v2100 = vsel %vm2059, %v1492, 0
  %v2103 = vsel %vm2059, %v1495, 0
  %v2106 = vsel %vm2059, %v1498, 0
  %v2109 = vsel %vm2059, %v1501, 0
  %v2112 = vsel %vm2059, %v1504, 0
  %v2115 = vsel %vm2059, %v1507, 0
  %v2118 = vsel %vm2059, %v1510, 0
  %v2121 = vsel %vm2059, %v1513, 0
  %v2124 = vsel %vm2059, %v1516, 0
  %v2127 = vsel %vm2059, %v1519, 0
  %v2130 = vsel %vm2059, %v1522, 0
  %v2133 = vsel %vm2059, %v1525, 0
  %v2136 = vsel %vm2059, %v1528, 0
  %v2139 = vsel %vm2059, %v1531, 0
  %v2142 = vsel %vm2059, %v1534, 0
  %v2145 = vsel %vm2059, %v1537, 0
  %v2148 = vsel %vm2059, %v1540, 0
  %v2151 = vsel %vm2059, %v1543, 0
  %v2154 = vsel %vm2059, %v1546, 0
  %v2157 = vsel %vm2059, %v1549, 0
  %v2160 = vsel %vm2059, %v1552, 0
  %v2163 = vsel %vm2059, %v1555, 0
  %v2166 = vsel %vm2059, %v1558, 0
  %v2169 = vsel %vm2059, %v1561, 0
  %v2172 = vsel %vm2059, %v1564, 0
  %v2175 = vsel %vm2059, %v1567, 0
  %v2178 = vsel %vm2059, %v1570, 0
  %v2181 = vsel %vm2059, %v1573, 0
  %v2184 = vsel %vm2059, %v1576, 0
  %v2187 = vsel %vm2059, %v1579, 0
  %v2190 = vsel %vm2059, %v1582, 0
  %v2193 = vsel %vm2059, %v1585, 0
  %v2196 = vsel %vm2059, %v1588, 0
  %v2199 = vsel %vm2059, %v1591, 0
  %v2202 = vsel %vm2059, %v1594, 0
  %v2205 = vsel %vm2059, %v1597, 0
  %v2208 = vsel %vm2059, %v1600, 0
  %v2211 = vsel %vm2059, %v1603, 0
  %v2214 = vsel %vm2059, %v1606, 0
  %v2217 = vsel %vm2059, %v1609, 0
  %v2220 = vsel %vm2059, %v1612, 0
  %v2223 = vsel %vm2059, %v1615, 0
  %v2226 = vsel %vm2059, %v1618, 0
  %v2229 = vsel %vm2059, %v1621, 0
  %v2232 = vsel %vm2059, %v1624, 0
  %v2235 = vsel %vm2059, %v1627, 0
  %v2238 = vsel %vm2059, %v1630, 0
  %v2241 = vsel %vm2059, %v1633, 0
  %v2244 = vsel %vm2059, %v1636, 0
  %v2247 = vsel %vm2059, %v1639, 0
  %v2250 = vsel %vm2059, %v1642, 0
  %v2253 = vsel %vm2059, %v1645, 0
  %v2256 = vsel %vm2059, %v1648, 0
  %v2259 = vsel %vm2059, %v1651, 0
  %v2262 = vsel %vm2059, %v1654, 0
  %v2265 = vsel %vm2059, %v1657, 0
  %v2268 = vsel %vm2059, %v1660, 0
  %v2271 = vsel %vm2059, %v1663, 0
  %v2274 = vsel %vm2059, %v1666, 0
  %v2277 = vsel %vm2059, %v1669, 0
  %v2280 = vsel %vm2059, %v1672, 0
  %v2283 = vsel %vm2059, %v1675, 0
  %v2286 = vsel %vm2059, %v1678, 0
  %v2289 = vsel %vm2059, %v1681, 0
  %v2292 = vsel %vm2059, %v1684, 0
  %v2295 = vsel %vm2059, %v1687, 0
  %v2298 = vsel %vm2059, %v1690, 0
  %v2301 = vsel %vm2059, %v1693, 0
  %v2304 = vsel %vm2059, %v1696, 0
  %v2307 = vsel %vm2059, %v1699, 0
  %v2310 = vsel %vm2059, %v1702, 0
  %v2313 = vsel %vm2059, %v1705, 0
  %v2316 = vsel %vm2059, %v1708, 0
  %v2319 = vsel %vm2059, %v1711, 0
  %v2322 = vsel %vm2059, %v1714, 0
  %v2325 = vsel %vm2059, %v1717, 0
  %v2328 = vsel %vm2059, %v1720, 0
  %v2331 = vsel %vm2059, %v1723, 0
  %v2334 = vsel %vm2059, %v1726, 0
  %v2337 = vsel %vm2059, %v1729, 0
  %v2340 = vsel %vm2059, %v1732, 0
  %v2343 = vsel %vm2059, %v1735, 0
  %v2346 = vsel %vm2059, %v1738, 0
  %v2349 = vsel %vm2059, %v1741, 0
  %v2352 = vsel %vm2059, %v1744, 0
  %v2355 = vsel %vm2059, %v1747, 0
  %v2358 = vsel %vm2059, %v1750, 0
  %2360 = vmatprep.subr.bf16.mxu0 0
  %2361 = vmatpush1.bf16.msra.mxu0 %v2030
  %2362 = vmatprep.subr.bf16.mxu0 0
  %2363 = vmatpush1.bf16.msra.mxu0 %v2029
  %2364 = vmatprep.subr.bf16.mxu0 0
  %2365 = vmatpush1.bf16.msra.mxu0 %v2028
  %2366 = vmatprep.subr.bf16.mxu0 0
  %2367 = vmatpush1.bf16.msra.mxu0 %v2027
  %2368 = vmatprep.subr.bf16.mxu0 0
  %2369 = vmatpush1.bf16.msra.mxu0 %v2026
  %2370 = vmatprep.subr.bf16.mxu0 0
  %2371 = vmatpush1.bf16.msra.mxu0 %v2025
  %2372 = vmatprep.subr.bf16.mxu0 0
  %2373 = vmatpush1.bf16.msra.mxu0 %v2024
  %2374 = vmatprep.subr.bf16.mxu0 0
  %2375 = vmatpush1.bf16.msra.mxu0 %v2023
  %2376 = vmatprep.subr.bf16.mxu0 0
  %2377 = vmatpush2.bf16.msra.mxu0 %v2038
  %2378 = vmatprep.subr.bf16.mxu0 0
  %2379 = vmatpush2.bf16.msra.mxu0 %v2037
  %2380 = vmatprep.subr.bf16.mxu0 0
  %2381 = vmatpush2.bf16.msra.mxu0 %v2036
  %2382 = vmatprep.subr.bf16.mxu0 0
  %2383 = vmatpush2.bf16.msra.mxu0 %v2035
  %2384 = vmatprep.subr.bf16.mxu0 0
  %2385 = vmatpush2.bf16.msra.mxu0 %v2034
  %2386 = vmatprep.subr.bf16.mxu0 0
  %2387 = vmatpush2.bf16.msra.mxu0 %v2033
  %2388 = vmatprep.subr.bf16.mxu0 0
  %2389 = vmatpush2.bf16.msra.mxu0 %v2032
  %2390 = vmatprep.subr.bf16.mxu0 0
  %2391 = vmatpush2.bf16.msra.mxu0 %v2031
  %2392 = vmatprep.mubr.bf16.mxu0 %v1452
  %2393 = vmatmul.mubr.bf16.gmra.mxu0 %v1451
  %v2394 = vpop.f32.mrf.mxu0
  %v2395 = vadd.f32 0.0, %v2394
  %v2396 = vpop.f32.mrf.mxu0
  %v2397 = vpop.f32.mrf.mxu0
  %v2398 = vadd.f32 0.0, %v2397
  %v2399 = vpop.f32.mrf.mxu0
  %2400 = vmatprep.mubr.bf16.mxu0 %v1455
  %2401 = vmatmul.mubr.bf16.gmra.mxu0 %v1454
  %v2402 = vpop.f32.mrf.mxu0
  %v2403 = vadd.f32 0.0, %v2402
  %v2404 = vpop.f32.mrf.mxu0
  %v2405 = vpop.f32.mrf.mxu0
  %v2406 = vadd.f32 0.0, %v2405
  %v2407 = vpop.f32.mrf.mxu0
  %2408 = vmatprep.mubr.bf16.mxu0 %v1458
  %2409 = vmatmul.mubr.bf16.gmra.mxu0 %v1457
  %v2410 = vpop.f32.mrf.mxu0
  %v2411 = vadd.f32 0.0, %v2410
  %v2412 = vpop.f32.mrf.mxu0
  %v2413 = vpop.f32.mrf.mxu0
  %v2414 = vadd.f32 0.0, %v2413
  %v2415 = vpop.f32.mrf.mxu0
  %2416 = vmatprep.mubr.bf16.mxu0 %v1461
  %2417 = vmatmul.mubr.bf16.gmra.mxu0 %v1460
  %v2418 = vpop.f32.mrf.mxu0
  %v2419 = vadd.f32 0.0, %v2418
  %v2420 = vpop.f32.mrf.mxu0
  %v2421 = vpop.f32.mrf.mxu0
  %v2422 = vadd.f32 0.0, %v2421
  %v2423 = vpop.f32.mrf.mxu0
  %2424 = vmatprep.mubr.bf16.mxu0 %v1464
  %2425 = vmatmul.mubr.bf16.gmra.mxu0 %v1463
  %v2426 = vpop.f32.mrf.mxu0
  %v2427 = vadd.f32 0.0, %v2426
  %v2428 = vpop.f32.mrf.mxu0
  %v2429 = vpop.f32.mrf.mxu0
  %v2430 = vadd.f32 0.0, %v2429
  %v2431 = vpop.f32.mrf.mxu0
  %2432 = vmatprep.mubr.bf16.mxu0 %v1467
  %2433 = vmatmul.mubr.bf16.gmra.mxu0 %v1466
  %v2434 = vpop.f32.mrf.mxu0
  %v2435 = vadd.f32 0.0, %v2434
  %v2436 = vpop.f32.mrf.mxu0
  %v2437 = vpop.f32.mrf.mxu0
  %v2438 = vadd.f32 0.0, %v2437
  %v2439 = vpop.f32.mrf.mxu0
  %2440 = vmatprep.mubr.bf16.mxu0 %v1470
  %2441 = vmatmul.mubr.bf16.gmra.mxu0 %v1469
  %v2442 = vpop.f32.mrf.mxu0
  %v2443 = vadd.f32 0.0, %v2442
  %v2444 = vpop.f32.mrf.mxu0
  %v2445 = vpop.f32.mrf.mxu0
  %v2446 = vadd.f32 0.0, %v2445
  %v2447 = vpop.f32.mrf.mxu0
  %2448 = vmatprep.mubr.bf16.mxu0 %v1473
  %2449 = vmatmul.mubr.bf16.gmra.mxu0 %v1472
  %v2450 = vpop.f32.mrf.mxu0
  %v2451 = vadd.f32 0.0, %v2450
  %v2452 = vpop.f32.mrf.mxu0
  %v2453 = vpop.f32.mrf.mxu0
  %v2454 = vadd.f32 0.0, %v2453
  %v2455 = vpop.f32.mrf.mxu0
  %2456 = vmatprep.mubr.bf16.mxu0 %v1476
  %2457 = vmatmul.mubr.bf16.gmra.mxu0 %v1475
  %v2458 = vpop.f32.mrf.mxu0
  %v2459 = vadd.f32 0.0, %v2458
  %v2460 = vpop.f32.mrf.mxu0
  %v2461 = vpop.f32.mrf.mxu0
  %v2462 = vadd.f32 0.0, %v2461
  %v2463 = vpop.f32.mrf.mxu0
  %2464 = vmatprep.mubr.bf16.mxu0 %v1479
  %2465 = vmatmul.mubr.bf16.gmra.mxu0 %v1478
  %v2466 = vpop.f32.mrf.mxu0
  %v2467 = vadd.f32 0.0, %v2466
  %v2468 = vpop.f32.mrf.mxu0
  %v2469 = vpop.f32.mrf.mxu0
  %v2470 = vadd.f32 0.0, %v2469
  %v2471 = vpop.f32.mrf.mxu0
  %2472 = vmatprep.mubr.bf16.mxu0 %v1482
  %2473 = vmatmul.mubr.bf16.gmra.mxu0 %v1481
  %v2474 = vpop.f32.mrf.mxu0
  %v2475 = vadd.f32 0.0, %v2474
  %v2476 = vpop.f32.mrf.mxu0
  %v2477 = vpop.f32.mrf.mxu0
  %v2478 = vadd.f32 0.0, %v2477
  %v2479 = vpop.f32.mrf.mxu0
  %2480 = vmatprep.mubr.bf16.mxu0 %v1485
  %2481 = vmatmul.mubr.bf16.gmra.mxu0 %v1484
  %v2482 = vpop.f32.mrf.mxu0
  %v2483 = vadd.f32 0.0, %v2482
  %v2484 = vpop.f32.mrf.mxu0
  %v2485 = vpop.f32.mrf.mxu0
  %v2486 = vadd.f32 0.0, %v2485
  %v2487 = vpop.f32.mrf.mxu0
  %2488 = vmatprep.mubr.bf16.mxu0 %v1488
  %2489 = vmatmul.mubr.bf16.gmra.mxu0 %v1487
  %v2490 = vpop.f32.mrf.mxu0
  %v2491 = vadd.f32 0.0, %v2490
  %v2492 = vpop.f32.mrf.mxu0
  %v2493 = vpop.f32.mrf.mxu0
  %v2494 = vadd.f32 0.0, %v2493
  %v2495 = vpop.f32.mrf.mxu0
  %2496 = vmatprep.mubr.bf16.mxu0 %v1491
  %2497 = vmatmul.mubr.bf16.gmra.mxu0 %v1490
  %v2498 = vpop.f32.mrf.mxu0
  %v2499 = vadd.f32 0.0, %v2498
  %v2500 = vpop.f32.mrf.mxu0
  %v2501 = vpop.f32.mrf.mxu0
  %v2502 = vadd.f32 0.0, %v2501
  %v2503 = vpop.f32.mrf.mxu0
  %2504 = vmatprep.mubr.bf16.mxu0 %v1494
  %2505 = vmatmul.mubr.bf16.gmra.mxu0 %v1493
  %v2506 = vpop.f32.mrf.mxu0
  %v2507 = vadd.f32 0.0, %v2506
  %v2508 = vpop.f32.mrf.mxu0
  %v2509 = vpop.f32.mrf.mxu0
  %v2510 = vadd.f32 0.0, %v2509
  %v2511 = vpop.f32.mrf.mxu0
  %2512 = vmatprep.mubr.bf16.mxu0 %v1497
  %2513 = vmatmul.mubr.bf16.gmra.mxu0 %v1496
  %v2514 = vpop.f32.mrf.mxu0
  %v2515 = vadd.f32 0.0, %v2514
  %v2516 = vpop.f32.mrf.mxu0
  %v2517 = vpop.f32.mrf.mxu0
  %v2518 = vadd.f32 0.0, %v2517
  %v2519 = vpop.f32.mrf.mxu0
  %2520 = vmatprep.mubr.bf16.mxu0 %v1500
  %2521 = vmatmul.mubr.bf16.gmra.mxu0 %v1499
  %v2522 = vpop.f32.mrf.mxu0
  %v2523 = vadd.f32 0.0, %v2522
  %v2524 = vpop.f32.mrf.mxu0
  %v2525 = vpop.f32.mrf.mxu0
  %v2526 = vadd.f32 0.0, %v2525
  %v2527 = vpop.f32.mrf.mxu0
  %2528 = vmatprep.mubr.bf16.mxu0 %v1503
  %2529 = vmatmul.mubr.bf16.gmra.mxu0 %v1502
  %v2530 = vpop.f32.mrf.mxu0
  %v2531 = vadd.f32 0.0, %v2530
  %v2532 = vpop.f32.mrf.mxu0
  %v2533 = vpop.f32.mrf.mxu0
  %v2534 = vadd.f32 0.0, %v2533
  %v2535 = vpop.f32.mrf.mxu0
  %2536 = vmatprep.mubr.bf16.mxu0 %v1506
  %2537 = vmatmul.mubr.bf16.gmra.mxu0 %v1505
  %v2538 = vpop.f32.mrf.mxu0
  %v2539 = vadd.f32 0.0, %v2538
  %v2540 = vpop.f32.mrf.mxu0
  %v2541 = vpop.f32.mrf.mxu0
  %v2542 = vadd.f32 0.0, %v2541
  %v2543 = vpop.f32.mrf.mxu0
  %2544 = vmatprep.mubr.bf16.mxu0 %v1509
  %2545 = vmatmul.mubr.bf16.gmra.mxu0 %v1508
  %v2546 = vpop.f32.mrf.mxu0
  %v2547 = vadd.f32 0.0, %v2546
  %v2548 = vpop.f32.mrf.mxu0
  %v2549 = vpop.f32.mrf.mxu0
  %v2550 = vadd.f32 0.0, %v2549
  %v2551 = vpop.f32.mrf.mxu0
  %2552 = vmatprep.mubr.bf16.mxu0 %v1512
  %2553 = vmatmul.mubr.bf16.gmra.mxu0 %v1511
  %v2554 = vpop.f32.mrf.mxu0
  %v2555 = vadd.f32 0.0, %v2554
  %v2556 = vpop.f32.mrf.mxu0
  %v2557 = vpop.f32.mrf.mxu0
  %v2558 = vadd.f32 0.0, %v2557
  %v2559 = vpop.f32.mrf.mxu0
  %2560 = vmatprep.mubr.bf16.mxu0 %v1515
  %2561 = vmatmul.mubr.bf16.gmra.mxu0 %v1514
  %v2562 = vpop.f32.mrf.mxu0
  %v2563 = vadd.f32 0.0, %v2562
  %v2564 = vpop.f32.mrf.mxu0
  %v2565 = vpop.f32.mrf.mxu0
  %v2566 = vadd.f32 0.0, %v2565
  %v2567 = vpop.f32.mrf.mxu0
  %2568 = vmatprep.mubr.bf16.mxu0 %v1518
  %2569 = vmatmul.mubr.bf16.gmra.mxu0 %v1517
  %v2570 = vpop.f32.mrf.mxu0
  %v2571 = vadd.f32 0.0, %v2570
  %v2572 = vpop.f32.mrf.mxu0
  %v2573 = vpop.f32.mrf.mxu0
  %v2574 = vadd.f32 0.0, %v2573
  %v2575 = vpop.f32.mrf.mxu0
  %2576 = vmatprep.mubr.bf16.mxu0 %v1521
  %2577 = vmatmul.mubr.bf16.gmra.mxu0 %v1520
  %v2578 = vpop.f32.mrf.mxu0
  %v2579 = vadd.f32 0.0, %v2578
  %v2580 = vpop.f32.mrf.mxu0
  %v2581 = vpop.f32.mrf.mxu0
  %v2582 = vadd.f32 0.0, %v2581
  %v2583 = vpop.f32.mrf.mxu0
  %2584 = vmatprep.mubr.bf16.mxu0 %v1524
  %2585 = vmatmul.mubr.bf16.gmra.mxu0 %v1523
  %v2586 = vpop.f32.mrf.mxu0
  %v2587 = vadd.f32 0.0, %v2586
  %v2588 = vpop.f32.mrf.mxu0
  %v2589 = vpop.f32.mrf.mxu0
  %v2590 = vadd.f32 0.0, %v2589
  %v2591 = vpop.f32.mrf.mxu0
  %2592 = vmatprep.mubr.bf16.mxu0 %v1527
  %2593 = vmatmul.mubr.bf16.gmra.mxu0 %v1526
  %v2594 = vpop.f32.mrf.mxu0
  %v2595 = vadd.f32 0.0, %v2594
  %v2596 = vpop.f32.mrf.mxu0
  %v2597 = vpop.f32.mrf.mxu0
  %v2598 = vadd.f32 0.0, %v2597
  %v2599 = vpop.f32.mrf.mxu0
  %2600 = vmatprep.mubr.bf16.mxu0 %v1530
  %2601 = vmatmul.mubr.bf16.gmra.mxu0 %v1529
  %v2602 = vpop.f32.mrf.mxu0
  %v2603 = vadd.f32 0.0, %v2602
  %v2604 = vpop.f32.mrf.mxu0
  %v2605 = vpop.f32.mrf.mxu0
  %v2606 = vadd.f32 0.0, %v2605
  %v2607 = vpop.f32.mrf.mxu0
  %2608 = vmatprep.mubr.bf16.mxu0 %v1533
  %2609 = vmatmul.mubr.bf16.gmra.mxu0 %v1532
  %v2610 = vpop.f32.mrf.mxu0
  %v2611 = vadd.f32 0.0, %v2610
  %v2612 = vpop.f32.mrf.mxu0
  %v2613 = vpop.f32.mrf.mxu0
  %v2614 = vadd.f32 0.0, %v2613
  %v2615 = vpop.f32.mrf.mxu0
  %2616 = vmatprep.mubr.bf16.mxu0 %v1536
  %2617 = vmatmul.mubr.bf16.gmra.mxu0 %v1535
  %v2618 = vpop.f32.mrf.mxu0
  %v2619 = vadd.f32 0.0, %v2618
  %v2620 = vpop.f32.mrf.mxu0
  %v2621 = vpop.f32.mrf.mxu0
  %v2622 = vadd.f32 0.0, %v2621
  %v2623 = vpop.f32.mrf.mxu0
  %2624 = vmatprep.mubr.bf16.mxu0 %v1539
  %2625 = vmatmul.mubr.bf16.gmra.mxu0 %v1538
  %v2626 = vpop.f32.mrf.mxu0
  %v2627 = vadd.f32 0.0, %v2626
  %v2628 = vpop.f32.mrf.mxu0
  %v2629 = vpop.f32.mrf.mxu0
  %v2630 = vadd.f32 0.0, %v2629
  %v2631 = vpop.f32.mrf.mxu0
  %2632 = vmatprep.mubr.bf16.mxu0 %v1542
  %2633 = vmatmul.mubr.bf16.gmra.mxu0 %v1541
  %v2634 = vpop.f32.mrf.mxu0
  %v2635 = vadd.f32 0.0, %v2634
  %v2636 = vpop.f32.mrf.mxu0
  %v2637 = vpop.f32.mrf.mxu0
  %v2638 = vadd.f32 0.0, %v2637
  %v2639 = vpop.f32.mrf.mxu0
  %2640 = vmatprep.mubr.bf16.mxu0 %v1545
  %2641 = vmatmul.mubr.bf16.gmra.mxu0 %v1544
  %v2642 = vpop.f32.mrf.mxu0
  %v2643 = vadd.f32 0.0, %v2642
  %v2644 = vpop.f32.mrf.mxu0
  %v2645 = vpop.f32.mrf.mxu0
  %v2646 = vadd.f32 0.0, %v2645
  %v2647 = vpop.f32.mrf.mxu0
  %2648 = vmatprep.mubr.bf16.mxu0 %v1548
  %2649 = vmatmul.mubr.bf16.gmra.mxu0 %v1547
  %v2650 = vpop.f32.mrf.mxu0
  %v2651 = vadd.f32 0.0, %v2650
  %v2652 = vpop.f32.mrf.mxu0
  %v2653 = vpop.f32.mrf.mxu0
  %v2654 = vadd.f32 0.0, %v2653
  %v2655 = vpop.f32.mrf.mxu0
  %2656 = vmatprep.mubr.bf16.mxu0 %v1551
  %2657 = vmatmul.mubr.bf16.gmra.mxu0 %v1550
  %v2658 = vpop.f32.mrf.mxu0
  %v2659 = vadd.f32 0.0, %v2658
  %v2660 = vpop.f32.mrf.mxu0
  %v2661 = vpop.f32.mrf.mxu0
  %v2662 = vadd.f32 0.0, %v2661
  %v2663 = vpop.f32.mrf.mxu0
  %2664 = vmatprep.mubr.bf16.mxu0 %v1554
  %2665 = vmatmul.mubr.bf16.gmra.mxu0 %v1553
  %v2666 = vpop.f32.mrf.mxu0
  %v2667 = vadd.f32 0.0, %v2666
  %v2668 = vpop.f32.mrf.mxu0
  %v2669 = vpop.f32.mrf.mxu0
  %v2670 = vadd.f32 0.0, %v2669
  %v2671 = vpop.f32.mrf.mxu0
  %2672 = vmatprep.mubr.bf16.mxu0 %v1557
  %2673 = vmatmul.mubr.bf16.gmra.mxu0 %v1556
  %v2674 = vpop.f32.mrf.mxu0
  %v2675 = vadd.f32 0.0, %v2674
  %v2676 = vpop.f32.mrf.mxu0
  %v2677 = vpop.f32.mrf.mxu0
  %v2678 = vadd.f32 0.0, %v2677
  %v2679 = vpop.f32.mrf.mxu0
  %2680 = vmatprep.mubr.bf16.mxu0 %v1560
  %2681 = vmatmul.mubr.bf16.gmra.mxu0 %v1559
  %v2682 = vpop.f32.mrf.mxu0
  %v2683 = vadd.f32 0.0, %v2682
  %v2684 = vpop.f32.mrf.mxu0
  %v2685 = vpop.f32.mrf.mxu0
  %v2686 = vadd.f32 0.0, %v2685
  %v2687 = vpop.f32.mrf.mxu0
  %2688 = vmatprep.mubr.bf16.mxu0 %v1563
  %2689 = vmatmul.mubr.bf16.gmra.mxu0 %v1562
  %v2690 = vpop.f32.mrf.mxu0
  %v2691 = vadd.f32 0.0, %v2690
  %v2692 = vpop.f32.mrf.mxu0
  %v2693 = vpop.f32.mrf.mxu0
  %v2694 = vadd.f32 0.0, %v2693
  %v2695 = vpop.f32.mrf.mxu0
  %2696 = vmatprep.mubr.bf16.mxu0 %v1566
  %2697 = vmatmul.mubr.bf16.gmra.mxu0 %v1565
  %v2698 = vpop.f32.mrf.mxu0
  %v2699 = vadd.f32 0.0, %v2698
  %v2700 = vpop.f32.mrf.mxu0
  %v2701 = vpop.f32.mrf.mxu0
  %v2702 = vadd.f32 0.0, %v2701
  %v2703 = vpop.f32.mrf.mxu0
  %2704 = vmatprep.mubr.bf16.mxu0 %v1569
  %2705 = vmatmul.mubr.bf16.gmra.mxu0 %v1568
  %v2706 = vpop.f32.mrf.mxu0
  %v2707 = vadd.f32 0.0, %v2706
  %v2708 = vpop.f32.mrf.mxu0
  %v2709 = vpop.f32.mrf.mxu0
  %v2710 = vadd.f32 0.0, %v2709
  %v2711 = vpop.f32.mrf.mxu0
  %2712 = vmatprep.mubr.bf16.mxu0 %v1572
  %2713 = vmatmul.mubr.bf16.gmra.mxu0 %v1571
  %v2714 = vpop.f32.mrf.mxu0
  %v2715 = vadd.f32 0.0, %v2714
  %v2716 = vpop.f32.mrf.mxu0
  %v2717 = vpop.f32.mrf.mxu0
  %v2718 = vadd.f32 0.0, %v2717
  %v2719 = vpop.f32.mrf.mxu0
  %2720 = vmatprep.mubr.bf16.mxu0 %v1575
  %2721 = vmatmul.mubr.bf16.gmra.mxu0 %v1574
  %v2722 = vpop.f32.mrf.mxu0
  %v2723 = vadd.f32 0.0, %v2722
  %v2724 = vpop.f32.mrf.mxu0
  %v2725 = vpop.f32.mrf.mxu0
  %v2726 = vadd.f32 0.0, %v2725
  %v2727 = vpop.f32.mrf.mxu0
  %2728 = vmatprep.mubr.bf16.mxu0 %v1578
  %2729 = vmatmul.mubr.bf16.gmra.mxu0 %v1577
  %v2730 = vpop.f32.mrf.mxu0
  %v2731 = vadd.f32 0.0, %v2730
  %v2732 = vpop.f32.mrf.mxu0
  %v2733 = vpop.f32.mrf.mxu0
  %v2734 = vadd.f32 0.0, %v2733
  %v2735 = vpop.f32.mrf.mxu0
  %2736 = vmatprep.mubr.bf16.mxu0 %v1581
  %2737 = vmatmul.mubr.bf16.gmra.mxu0 %v1580
  %v2738 = vpop.f32.mrf.mxu0
  %v2739 = vadd.f32 0.0, %v2738
  %v2740 = vpop.f32.mrf.mxu0
  %v2741 = vpop.f32.mrf.mxu0
  %v2742 = vadd.f32 0.0, %v2741
  %v2743 = vpop.f32.mrf.mxu0
  %2744 = vmatprep.mubr.bf16.mxu0 %v1584
  %2745 = vmatmul.mubr.bf16.gmra.mxu0 %v1583
  %v2746 = vpop.f32.mrf.mxu0
  %v2747 = vadd.f32 0.0, %v2746
  %v2748 = vpop.f32.mrf.mxu0
  %v2749 = vpop.f32.mrf.mxu0
  %v2750 = vadd.f32 0.0, %v2749
  %v2751 = vpop.f32.mrf.mxu0
  %2752 = vmatprep.mubr.bf16.mxu0 %v1587
  %2753 = vmatmul.mubr.bf16.gmra.mxu0 %v1586
  %v2754 = vpop.f32.mrf.mxu0
  %v2755 = vadd.f32 0.0, %v2754
  %v2756 = vpop.f32.mrf.mxu0
  %v2757 = vpop.f32.mrf.mxu0
  %v2758 = vadd.f32 0.0, %v2757
  %v2759 = vpop.f32.mrf.mxu0
  %2760 = vmatprep.mubr.bf16.mxu0 %v1590
  %2761 = vmatmul.mubr.bf16.gmra.mxu0 %v1589
  %v2762 = vpop.f32.mrf.mxu0
  %v2763 = vadd.f32 0.0, %v2762
  %v2764 = vpop.f32.mrf.mxu0
  %v2765 = vpop.f32.mrf.mxu0
  %v2766 = vadd.f32 0.0, %v2765
  %v2767 = vpop.f32.mrf.mxu0
  %2768 = vmatprep.mubr.bf16.mxu0 %v1593
  %2769 = vmatmul.mubr.bf16.gmra.mxu0 %v1592
  %v2770 = vpop.f32.mrf.mxu0
  %v2771 = vadd.f32 0.0, %v2770
  %v2772 = vpop.f32.mrf.mxu0
  %v2773 = vpop.f32.mrf.mxu0
  %v2774 = vadd.f32 0.0, %v2773
  %v2775 = vpop.f32.mrf.mxu0
  %2776 = vmatprep.mubr.bf16.mxu0 %v1596
  %2777 = vmatmul.mubr.bf16.gmra.mxu0 %v1595
  %v2778 = vpop.f32.mrf.mxu0
  %v2779 = vadd.f32 0.0, %v2778
  %v2780 = vpop.f32.mrf.mxu0
  %v2781 = vpop.f32.mrf.mxu0
  %v2782 = vadd.f32 0.0, %v2781
  %v2783 = vpop.f32.mrf.mxu0
  %2784 = vmatprep.mubr.bf16.mxu0 %v1599
  %2785 = vmatmul.mubr.bf16.gmra.mxu0 %v1598
  %v2786 = vpop.f32.mrf.mxu0
  %v2787 = vadd.f32 0.0, %v2786
  %v2788 = vpop.f32.mrf.mxu0
  %v2789 = vpop.f32.mrf.mxu0
  %v2790 = vadd.f32 0.0, %v2789
  %v2791 = vpop.f32.mrf.mxu0
  %2792 = vmatprep.mubr.bf16.mxu0 %v1602
  %2793 = vmatmul.mubr.bf16.gmra.mxu0 %v1601
  %v2794 = vpop.f32.mrf.mxu0
  %v2795 = vadd.f32 0.0, %v2794
  %v2796 = vpop.f32.mrf.mxu0
  %v2797 = vpop.f32.mrf.mxu0
  %v2798 = vadd.f32 0.0, %v2797
  %v2799 = vpop.f32.mrf.mxu0
  %2800 = vmatprep.mubr.bf16.mxu0 %v1605
  %2801 = vmatmul.mubr.bf16.gmra.mxu0 %v1604
  %v2802 = vpop.f32.mrf.mxu0
  %v2803 = vadd.f32 0.0, %v2802
  %v2804 = vpop.f32.mrf.mxu0
  %v2805 = vpop.f32.mrf.mxu0
  %v2806 = vadd.f32 0.0, %v2805
  %v2807 = vpop.f32.mrf.mxu0
  %2808 = vmatprep.mubr.bf16.mxu0 %v1608
  %2809 = vmatmul.mubr.bf16.gmra.mxu0 %v1607
  %v2810 = vpop.f32.mrf.mxu0
  %v2811 = vadd.f32 0.0, %v2810
  %v2812 = vpop.f32.mrf.mxu0
  %v2813 = vpop.f32.mrf.mxu0
  %v2814 = vadd.f32 0.0, %v2813
  %v2815 = vpop.f32.mrf.mxu0
  %2816 = vmatprep.mubr.bf16.mxu0 %v1611
  %2817 = vmatmul.mubr.bf16.gmra.mxu0 %v1610
  %v2818 = vpop.f32.mrf.mxu0
  %v2819 = vadd.f32 0.0, %v2818
  %v2820 = vpop.f32.mrf.mxu0
  %v2821 = vpop.f32.mrf.mxu0
  %v2822 = vadd.f32 0.0, %v2821
  %v2823 = vpop.f32.mrf.mxu0
  %2824 = vmatprep.mubr.bf16.mxu0 %v1614
  %2825 = vmatmul.mubr.bf16.gmra.mxu0 %v1613
  %v2826 = vpop.f32.mrf.mxu0
  %v2827 = vadd.f32 0.0, %v2826
  %v2828 = vpop.f32.mrf.mxu0
  %v2829 = vpop.f32.mrf.mxu0
  %v2830 = vadd.f32 0.0, %v2829
  %v2831 = vpop.f32.mrf.mxu0
  %2832 = vmatprep.mubr.bf16.mxu0 %v1617
  %2833 = vmatmul.mubr.bf16.gmra.mxu0 %v1616
  %v2834 = vpop.f32.mrf.mxu0
  %v2835 = vadd.f32 0.0, %v2834
  %v2836 = vpop.f32.mrf.mxu0
  %v2837 = vpop.f32.mrf.mxu0
  %v2838 = vadd.f32 0.0, %v2837
  %v2839 = vpop.f32.mrf.mxu0
  %2840 = vmatprep.mubr.bf16.mxu0 %v1620
  %2841 = vmatmul.mubr.bf16.gmra.mxu0 %v1619
  %v2842 = vpop.f32.mrf.mxu0
  %v2843 = vadd.f32 0.0, %v2842
  %v2844 = vpop.f32.mrf.mxu0
  %v2845 = vpop.f32.mrf.mxu0
  %v2846 = vadd.f32 0.0, %v2845
  %v2847 = vpop.f32.mrf.mxu0
  %2848 = vmatprep.mubr.bf16.mxu0 %v1623
  %2849 = vmatmul.mubr.bf16.gmra.mxu0 %v1622
  %v2850 = vpop.f32.mrf.mxu0
  %v2851 = vadd.f32 0.0, %v2850
  %v2852 = vpop.f32.mrf.mxu0
  %v2853 = vpop.f32.mrf.mxu0
  %v2854 = vadd.f32 0.0, %v2853
  %v2855 = vpop.f32.mrf.mxu0
  %2856 = vmatprep.mubr.bf16.mxu0 %v1626
  %2857 = vmatmul.mubr.bf16.gmra.mxu0 %v1625
  %v2858 = vpop.f32.mrf.mxu0
  %v2859 = vadd.f32 0.0, %v2858
  %v2860 = vpop.f32.mrf.mxu0
  %v2861 = vpop.f32.mrf.mxu0
  %v2862 = vadd.f32 0.0, %v2861
  %v2863 = vpop.f32.mrf.mxu0
  %2864 = vmatprep.mubr.bf16.mxu0 %v1629
  %2865 = vmatmul.mubr.bf16.gmra.mxu0 %v1628
  %v2866 = vpop.f32.mrf.mxu0
  %v2867 = vadd.f32 0.0, %v2866
  %v2868 = vpop.f32.mrf.mxu0
  %v2869 = vpop.f32.mrf.mxu0
  %v2870 = vadd.f32 0.0, %v2869
  %v2871 = vpop.f32.mrf.mxu0
  %2872 = vmatprep.mubr.bf16.mxu0 %v1632
  %2873 = vmatmul.mubr.bf16.gmra.mxu0 %v1631
  %v2874 = vpop.f32.mrf.mxu0
  %v2875 = vadd.f32 0.0, %v2874
  %v2876 = vpop.f32.mrf.mxu0
  %v2877 = vpop.f32.mrf.mxu0
  %v2878 = vadd.f32 0.0, %v2877
  %v2879 = vpop.f32.mrf.mxu0
  %2880 = vmatprep.mubr.bf16.mxu0 %v1635
  %2881 = vmatmul.mubr.bf16.gmra.mxu0 %v1634
  %v2882 = vpop.f32.mrf.mxu0
  %v2883 = vadd.f32 0.0, %v2882
  %v2884 = vpop.f32.mrf.mxu0
  %v2885 = vpop.f32.mrf.mxu0
  %v2886 = vadd.f32 0.0, %v2885
  %v2887 = vpop.f32.mrf.mxu0
  %2888 = vmatprep.mubr.bf16.mxu0 %v1638
  %2889 = vmatmul.mubr.bf16.gmra.mxu0 %v1637
  %v2890 = vpop.f32.mrf.mxu0
  %v2891 = vadd.f32 0.0, %v2890
  %v2892 = vpop.f32.mrf.mxu0
  %v2893 = vpop.f32.mrf.mxu0
  %v2894 = vadd.f32 0.0, %v2893
  %v2895 = vpop.f32.mrf.mxu0
  %2896 = vmatprep.mubr.bf16.mxu0 %v1641
  %2897 = vmatmul.mubr.bf16.gmra.mxu0 %v1640
  %v2898 = vpop.f32.mrf.mxu0
  %v2899 = vadd.f32 0.0, %v2898
  %v2900 = vpop.f32.mrf.mxu0
  %v2901 = vpop.f32.mrf.mxu0
  %v2902 = vadd.f32 0.0, %v2901
  %v2903 = vpop.f32.mrf.mxu0
  %2904 = vmatprep.mubr.bf16.mxu0 %v1644
  %2905 = vmatmul.mubr.bf16.gmra.mxu0 %v1643
  %v2906 = vpop.f32.mrf.mxu0
  %v2907 = vadd.f32 0.0, %v2906
  %v2908 = vpop.f32.mrf.mxu0
  %v2909 = vpop.f32.mrf.mxu0
  %v2910 = vadd.f32 0.0, %v2909
  %v2911 = vpop.f32.mrf.mxu0
  %2912 = vmatprep.mubr.bf16.mxu0 %v1647
  %2913 = vmatmul.mubr.bf16.gmra.mxu0 %v1646
  %v2914 = vpop.f32.mrf.mxu0
  %v2915 = vadd.f32 0.0, %v2914
  %v2916 = vpop.f32.mrf.mxu0
  %v2917 = vpop.f32.mrf.mxu0
  %v2918 = vadd.f32 0.0, %v2917
  %v2919 = vpop.f32.mrf.mxu0
  %2920 = vmatprep.mubr.bf16.mxu0 %v1650
  %2921 = vmatmul.mubr.bf16.gmra.mxu0 %v1649
  %v2922 = vpop.f32.mrf.mxu0
  %v2923 = vadd.f32 0.0, %v2922
  %v2924 = vpop.f32.mrf.mxu0
  %v2925 = vpop.f32.mrf.mxu0
  %v2926 = vadd.f32 0.0, %v2925
  %v2927 = vpop.f32.mrf.mxu0
  %2928 = vmatprep.mubr.bf16.mxu0 %v1653
  %2929 = vmatmul.mubr.bf16.gmra.mxu0 %v1652
  %v2930 = vpop.f32.mrf.mxu0
  %v2931 = vadd.f32 0.0, %v2930
  %v2932 = vpop.f32.mrf.mxu0
  %v2933 = vpop.f32.mrf.mxu0
  %v2934 = vadd.f32 0.0, %v2933
  %v2935 = vpop.f32.mrf.mxu0
  %2936 = vmatprep.mubr.bf16.mxu0 %v1656
  %2937 = vmatmul.mubr.bf16.gmra.mxu0 %v1655
  %v2938 = vpop.f32.mrf.mxu0
  %v2939 = vadd.f32 0.0, %v2938
  %v2940 = vpop.f32.mrf.mxu0
  %v2941 = vpop.f32.mrf.mxu0
  %v2942 = vadd.f32 0.0, %v2941
  %v2943 = vpop.f32.mrf.mxu0
  %2944 = vmatprep.mubr.bf16.mxu0 %v1659
  %2945 = vmatmul.mubr.bf16.gmra.mxu0 %v1658
  %v2946 = vpop.f32.mrf.mxu0
  %v2947 = vadd.f32 0.0, %v2946
  %v2948 = vpop.f32.mrf.mxu0
  %v2949 = vpop.f32.mrf.mxu0
  %v2950 = vadd.f32 0.0, %v2949
  %v2951 = vpop.f32.mrf.mxu0
  %2952 = vmatprep.mubr.bf16.mxu0 %v1662
  %2953 = vmatmul.mubr.bf16.gmra.mxu0 %v1661
  %v2954 = vpop.f32.mrf.mxu0
  %v2955 = vadd.f32 0.0, %v2954
  %v2956 = vpop.f32.mrf.mxu0
  %v2957 = vpop.f32.mrf.mxu0
  %v2958 = vadd.f32 0.0, %v2957
  %v2959 = vpop.f32.mrf.mxu0
  %2960 = vmatprep.mubr.bf16.mxu0 %v1665
  %2961 = vmatmul.mubr.bf16.gmra.mxu0 %v1664
  %v2962 = vpop.f32.mrf.mxu0
  %v2963 = vadd.f32 0.0, %v2962
  %v2964 = vpop.f32.mrf.mxu0
  %v2965 = vpop.f32.mrf.mxu0
  %v2966 = vadd.f32 0.0, %v2965
  %v2967 = vpop.f32.mrf.mxu0
  %2968 = vmatprep.mubr.bf16.mxu0 %v1668
  %2969 = vmatmul.mubr.bf16.gmra.mxu0 %v1667
  %v2970 = vpop.f32.mrf.mxu0
  %v2971 = vadd.f32 0.0, %v2970
  %v2972 = vpop.f32.mrf.mxu0
  %v2973 = vpop.f32.mrf.mxu0
  %v2974 = vadd.f32 0.0, %v2973
  %v2975 = vpop.f32.mrf.mxu0
  %2976 = vmatprep.mubr.bf16.mxu0 %v1671
  %2977 = vmatmul.mubr.bf16.gmra.mxu0 %v1670
  %v2978 = vpop.f32.mrf.mxu0
  %v2979 = vadd.f32 0.0, %v2978
  %v2980 = vpop.f32.mrf.mxu0
  %v2981 = vpop.f32.mrf.mxu0
  %v2982 = vadd.f32 0.0, %v2981
  %v2983 = vpop.f32.mrf.mxu0
  %2984 = vmatprep.mubr.bf16.mxu0 %v1674
  %2985 = vmatmul.mubr.bf16.gmra.mxu0 %v1673
  %v2986 = vpop.f32.mrf.mxu0
  %v2987 = vadd.f32 0.0, %v2986
  %v2988 = vpop.f32.mrf.mxu0
  %v2989 = vpop.f32.mrf.mxu0
  %v2990 = vadd.f32 0.0, %v2989
  %v2991 = vpop.f32.mrf.mxu0
  %2992 = vmatprep.mubr.bf16.mxu0 %v1677
  %2993 = vmatmul.mubr.bf16.gmra.mxu0 %v1676
  %v2994 = vpop.f32.mrf.mxu0
  %v2995 = vadd.f32 0.0, %v2994
  %v2996 = vpop.f32.mrf.mxu0
  %v2997 = vpop.f32.mrf.mxu0
  %v2998 = vadd.f32 0.0, %v2997
  %v2999 = vpop.f32.mrf.mxu0
  %3000 = vmatprep.mubr.bf16.mxu0 %v1680
  %3001 = vmatmul.mubr.bf16.gmra.mxu0 %v1679
  %v3002 = vpop.f32.mrf.mxu0
  %v3003 = vadd.f32 0.0, %v3002
  %v3004 = vpop.f32.mrf.mxu0
  %v3005 = vpop.f32.mrf.mxu0
  %v3006 = vadd.f32 0.0, %v3005
  %v3007 = vpop.f32.mrf.mxu0
  %3008 = vmatprep.mubr.bf16.mxu0 %v1683
  %3009 = vmatmul.mubr.bf16.gmra.mxu0 %v1682
  %v3010 = vpop.f32.mrf.mxu0
  %v3011 = vadd.f32 0.0, %v3010
  %v3012 = vpop.f32.mrf.mxu0
  %v3013 = vpop.f32.mrf.mxu0
  %v3014 = vadd.f32 0.0, %v3013
  %v3015 = vpop.f32.mrf.mxu0
  %3016 = vmatprep.mubr.bf16.mxu0 %v1686
  %3017 = vmatmul.mubr.bf16.gmra.mxu0 %v1685
  %v3018 = vpop.f32.mrf.mxu0
  %v3019 = vadd.f32 0.0, %v3018
  %v3020 = vpop.f32.mrf.mxu0
  %v3021 = vpop.f32.mrf.mxu0
  %v3022 = vadd.f32 0.0, %v3021
  %v3023 = vpop.f32.mrf.mxu0
  %3024 = vmatprep.mubr.bf16.mxu0 %v1689
  %3025 = vmatmul.mubr.bf16.gmra.mxu0 %v1688
  %v3026 = vpop.f32.mrf.mxu0
  %v3027 = vadd.f32 0.0, %v3026
  %v3028 = vpop.f32.mrf.mxu0
  %v3029 = vpop.f32.mrf.mxu0
  %v3030 = vadd.f32 0.0, %v3029
  %v3031 = vpop.f32.mrf.mxu0
  %3032 = vmatprep.mubr.bf16.mxu0 %v1692
  %3033 = vmatmul.mubr.bf16.gmra.mxu0 %v1691
  %v3034 = vpop.f32.mrf.mxu0
  %v3035 = vadd.f32 0.0, %v3034
  %v3036 = vpop.f32.mrf.mxu0
  %v3037 = vpop.f32.mrf.mxu0
  %v3038 = vadd.f32 0.0, %v3037
  %v3039 = vpop.f32.mrf.mxu0
  %3040 = vmatprep.mubr.bf16.mxu0 %v1695
  %3041 = vmatmul.mubr.bf16.gmra.mxu0 %v1694
  %v3042 = vpop.f32.mrf.mxu0
  %v3043 = vadd.f32 0.0, %v3042
  %v3044 = vpop.f32.mrf.mxu0
  %v3045 = vpop.f32.mrf.mxu0
  %v3046 = vadd.f32 0.0, %v3045
  %v3047 = vpop.f32.mrf.mxu0
  %3048 = vmatprep.mubr.bf16.mxu0 %v1698
  %3049 = vmatmul.mubr.bf16.gmra.mxu0 %v1697
  %v3050 = vpop.f32.mrf.mxu0
  %v3051 = vadd.f32 0.0, %v3050
  %v3052 = vpop.f32.mrf.mxu0
  %v3053 = vpop.f32.mrf.mxu0
  %v3054 = vadd.f32 0.0, %v3053
  %v3055 = vpop.f32.mrf.mxu0
  %3056 = vmatprep.mubr.bf16.mxu0 %v1701
  %3057 = vmatmul.mubr.bf16.gmra.mxu0 %v1700
  %v3058 = vpop.f32.mrf.mxu0
  %v3059 = vadd.f32 0.0, %v3058
  %v3060 = vpop.f32.mrf.mxu0
  %v3061 = vpop.f32.mrf.mxu0
  %v3062 = vadd.f32 0.0, %v3061
  %v3063 = vpop.f32.mrf.mxu0
  %3064 = vmatprep.mubr.bf16.mxu0 %v1704
  %3065 = vmatmul.mubr.bf16.gmra.mxu0 %v1703
  %v3066 = vpop.f32.mrf.mxu0
  %v3067 = vadd.f32 0.0, %v3066
  %v3068 = vpop.f32.mrf.mxu0
  %v3069 = vpop.f32.mrf.mxu0
  %v3070 = vadd.f32 0.0, %v3069
  %v3071 = vpop.f32.mrf.mxu0
  %3072 = vmatprep.mubr.bf16.mxu0 %v1707
  %3073 = vmatmul.mubr.bf16.gmra.mxu0 %v1706
  %v3074 = vpop.f32.mrf.mxu0
  %v3075 = vadd.f32 0.0, %v3074
  %v3076 = vpop.f32.mrf.mxu0
  %v3077 = vpop.f32.mrf.mxu0
  %v3078 = vadd.f32 0.0, %v3077
  %v3079 = vpop.f32.mrf.mxu0
  %3080 = vmatprep.mubr.bf16.mxu0 %v1710
  %3081 = vmatmul.mubr.bf16.gmra.mxu0 %v1709
  %v3082 = vpop.f32.mrf.mxu0
  %v3083 = vadd.f32 0.0, %v3082
  %v3084 = vpop.f32.mrf.mxu0
  %v3085 = vpop.f32.mrf.mxu0
  %v3086 = vadd.f32 0.0, %v3085
  %v3087 = vpop.f32.mrf.mxu0
  %3088 = vmatprep.mubr.bf16.mxu0 %v1713
  %3089 = vmatmul.mubr.bf16.gmra.mxu0 %v1712
  %v3090 = vpop.f32.mrf.mxu0
  %v3091 = vadd.f32 0.0, %v3090
  %v3092 = vpop.f32.mrf.mxu0
  %v3093 = vpop.f32.mrf.mxu0
  %v3094 = vadd.f32 0.0, %v3093
  %v3095 = vpop.f32.mrf.mxu0
  %3096 = vmatprep.mubr.bf16.mxu0 %v1716
  %3097 = vmatmul.mubr.bf16.gmra.mxu0 %v1715
  %v3098 = vpop.f32.mrf.mxu0
  %v3099 = vadd.f32 0.0, %v3098
  %v3100 = vpop.f32.mrf.mxu0
  %v3101 = vpop.f32.mrf.mxu0
  %v3102 = vadd.f32 0.0, %v3101
  %v3103 = vpop.f32.mrf.mxu0
  %3104 = vmatprep.mubr.bf16.mxu0 %v1719
  %3105 = vmatmul.mubr.bf16.gmra.mxu0 %v1718
  %v3106 = vpop.f32.mrf.mxu0
  %v3107 = vadd.f32 0.0, %v3106
  %v3108 = vpop.f32.mrf.mxu0
  %v3109 = vpop.f32.mrf.mxu0
  %v3110 = vadd.f32 0.0, %v3109
  %v3111 = vpop.f32.mrf.mxu0
  %3112 = vmatprep.mubr.bf16.mxu0 %v1722
  %3113 = vmatmul.mubr.bf16.gmra.mxu0 %v1721
  %v3114 = vpop.f32.mrf.mxu0
  %v3115 = vadd.f32 0.0, %v3114
  %v3116 = vpop.f32.mrf.mxu0
  %v3117 = vpop.f32.mrf.mxu0
  %v3118 = vadd.f32 0.0, %v3117
  %v3119 = vpop.f32.mrf.mxu0
  %3120 = vmatprep.mubr.bf16.mxu0 %v1725
  %3121 = vmatmul.mubr.bf16.gmra.mxu0 %v1724
  %v3122 = vpop.f32.mrf.mxu0
  %v3123 = vadd.f32 0.0, %v3122
  %v3124 = vpop.f32.mrf.mxu0
  %v3125 = vpop.f32.mrf.mxu0
  %v3126 = vadd.f32 0.0, %v3125
  %v3127 = vpop.f32.mrf.mxu0
  %3128 = vmatprep.mubr.bf16.mxu0 %v1728
  %3129 = vmatmul.mubr.bf16.gmra.mxu0 %v1727
  %v3130 = vpop.f32.mrf.mxu0
  %v3131 = vadd.f32 0.0, %v3130
  %v3132 = vpop.f32.mrf.mxu0
  %v3133 = vpop.f32.mrf.mxu0
  %v3134 = vadd.f32 0.0, %v3133
  %v3135 = vpop.f32.mrf.mxu0
  %3136 = vmatprep.mubr.bf16.mxu0 %v1731
  %3137 = vmatmul.mubr.bf16.gmra.mxu0 %v1730
  %v3138 = vpop.f32.mrf.mxu0
  %v3139 = vadd.f32 0.0, %v3138
  %v3140 = vpop.f32.mrf.mxu0
  %v3141 = vpop.f32.mrf.mxu0
  %v3142 = vadd.f32 0.0, %v3141
  %v3143 = vpop.f32.mrf.mxu0
  %3144 = vmatprep.mubr.bf16.mxu0 %v1734
  %3145 = vmatmul.mubr.bf16.gmra.mxu0 %v1733
  %v3146 = vpop.f32.mrf.mxu0
  %v3147 = vadd.f32 0.0, %v3146
  %v3148 = vpop.f32.mrf.mxu0
  %v3149 = vpop.f32.mrf.mxu0
  %v3150 = vadd.f32 0.0, %v3149
  %v3151 = vpop.f32.mrf.mxu0
  %3152 = vmatprep.mubr.bf16.mxu0 %v1737
  %3153 = vmatmul.mubr.bf16.gmra.mxu0 %v1736
  %v3154 = vpop.f32.mrf.mxu0
  %v3155 = vadd.f32 0.0, %v3154
  %v3156 = vpop.f32.mrf.mxu0
  %v3157 = vpop.f32.mrf.mxu0
  %v3158 = vadd.f32 0.0, %v3157
  %v3159 = vpop.f32.mrf.mxu0
  %3160 = vmatprep.mubr.bf16.mxu0 %v1740
  %3161 = vmatmul.mubr.bf16.gmra.mxu0 %v1739
  %v3162 = vpop.f32.mrf.mxu0
  %v3163 = vadd.f32 0.0, %v3162
  %v3164 = vpop.f32.mrf.mxu0
  %v3165 = vpop.f32.mrf.mxu0
  %v3166 = vadd.f32 0.0, %v3165
  %v3167 = vpop.f32.mrf.mxu0
  %3168 = vmatprep.mubr.bf16.mxu0 %v1743
  %3169 = vmatmul.mubr.bf16.gmra.mxu0 %v1742
  %v3170 = vpop.f32.mrf.mxu0
  %v3171 = vadd.f32 0.0, %v3170
  %v3172 = vpop.f32.mrf.mxu0
  %v3173 = vpop.f32.mrf.mxu0
  %v3174 = vadd.f32 0.0, %v3173
  %v3175 = vpop.f32.mrf.mxu0
  %3176 = vmatprep.mubr.bf16.mxu0 %v1746
  %3177 = vmatmul.mubr.bf16.gmra.mxu0 %v1745
  %v3178 = vpop.f32.mrf.mxu0
  %v3179 = vadd.f32 0.0, %v3178
  %v3180 = vpop.f32.mrf.mxu0
  %v3181 = vpop.f32.mrf.mxu0
  %v3182 = vadd.f32 0.0, %v3181
  %v3183 = vpop.f32.mrf.mxu0
  %3184 = vmatprep.mubr.bf16.mxu0 %v1749
  %3185 = vmatmul.mubr.bf16.gmra.mxu0 %v1748
  %v3186 = vpop.f32.mrf.mxu0
  %v3187 = vadd.f32 0.0, %v3186
  %v3188 = vpop.f32.mrf.mxu0
  %v3189 = vpop.f32.mrf.mxu0
  %v3190 = vadd.f32 0.0, %v3189
  %v3191 = vpop.f32.mrf.mxu0
  %3192 = vdwg.mxu0
  %3193 = vmatprep.subr.bf16.mxu0 0
  %3194 = vmatpush1.bf16.msra.mxu0 0
  %3195 = vmatprep.subr.bf16.mxu0 0
  %3196 = vmatpush1.bf16.msra.mxu0 0
  %3197 = vmatprep.subr.bf16.mxu0 0
  %3198 = vmatpush1.bf16.msra.mxu0 0
  %3199 = vmatprep.subr.bf16.mxu0 0
  %3200 = vmatpush1.bf16.msra.mxu0 0
  %3201 = vmatprep.subr.bf16.mxu0 0
  %3202 = vmatpush1.bf16.msra.mxu0 0
  %3203 = vmatprep.subr.bf16.mxu0 0
  %3204 = vmatpush1.bf16.msra.mxu0 0
  %3205 = vmatprep.subr.bf16.mxu0 0
  %3206 = vmatpush1.bf16.msra.mxu0 %v2040
  %3207 = vmatprep.subr.bf16.mxu0 0
  %3208 = vmatpush1.bf16.msra.mxu0 %v2039
  %3209 = vmatprep.subr.bf16.mxu0 0
  %3210 = vmatpush2.bf16.msra.mxu0 0
  %3211 = vmatprep.subr.bf16.mxu0 0
  %3212 = vmatpush2.bf16.msra.mxu0 0
  %3213 = vmatprep.subr.bf16.mxu0 0
  %3214 = vmatpush2.bf16.msra.mxu0 0
  %3215 = vmatprep.subr.bf16.mxu0 0
  %3216 = vmatpush2.bf16.msra.mxu0 0
  %3217 = vmatprep.subr.bf16.mxu0 0
  %3218 = vmatpush2.bf16.msra.mxu0 0
  %3219 = vmatprep.subr.bf16.mxu0 0
  %3220 = vmatpush2.bf16.msra.mxu0 0
  %3221 = vmatprep.subr.bf16.mxu0 0
  %3222 = vmatpush2.bf16.msra.mxu0 0
  %3223 = vmatprep.subr.bf16.mxu0 0
  %3224 = vmatpush2.bf16.msra.mxu0 0
  %3225 = vmatprep.mubr.bf16.mxu0 0
  %3226 = vmatmul.mubr.bf16.gmra.mxu0 %v2061
  %v3227 = vpop.f32.mrf.mxu0
  %v3228 = vadd.f32 %v2395, %v3227
  %v3229 = vpop.f32.mrf.mxu0
  %v3230 = vpop.f32.mrf.mxu0
  %v3231 = vadd.f32 %v2398, %v3230
  %v3232 = vpop.f32.mrf.mxu0
  %3233 = vmatprep.mubr.bf16.mxu0 0
  %3234 = vmatmul.mubr.bf16.gmra.mxu0 %v2064
  %v3235 = vpop.f32.mrf.mxu0
  %v3236 = vadd.f32 %v2403, %v3235
  %v3237 = vpop.f32.mrf.mxu0
  %v3238 = vpop.f32.mrf.mxu0
  %v3239 = vadd.f32 %v2406, %v3238
  %v3240 = vpop.f32.mrf.mxu0
  %3241 = vmatprep.mubr.bf16.mxu0 0
  %3242 = vmatmul.mubr.bf16.gmra.mxu0 %v2067
  %v3243 = vpop.f32.mrf.mxu0
  %v3244 = vadd.f32 %v2411, %v3243
  %v3245 = vpop.f32.mrf.mxu0
  %v3246 = vpop.f32.mrf.mxu0
  %v3247 = vadd.f32 %v2414, %v3246
  %v3248 = vpop.f32.mrf.mxu0
  %3249 = vmatprep.mubr.bf16.mxu0 0
  %3250 = vmatmul.mubr.bf16.gmra.mxu0 %v2070
  %v3251 = vpop.f32.mrf.mxu0
  %v3252 = vadd.f32 %v2419, %v3251
  %v3253 = vpop.f32.mrf.mxu0
  %v3254 = vpop.f32.mrf.mxu0
  %v3255 = vadd.f32 %v2422, %v3254
  %v3256 = vpop.f32.mrf.mxu0
  %3257 = vmatprep.mubr.bf16.mxu0 0
  %3258 = vmatmul.mubr.bf16.gmra.mxu0 %v2073
  %v3259 = vpop.f32.mrf.mxu0
  %v3260 = vadd.f32 %v2427, %v3259
  %v3261 = vpop.f32.mrf.mxu0
  %v3262 = vpop.f32.mrf.mxu0
  %v3263 = vadd.f32 %v2430, %v3262
  %v3264 = vpop.f32.mrf.mxu0
  %3265 = vmatprep.mubr.bf16.mxu0 0
  %3266 = vmatmul.mubr.bf16.gmra.mxu0 %v2076
  %v3267 = vpop.f32.mrf.mxu0
  %v3268 = vadd.f32 %v2435, %v3267
  %v3269 = vpop.f32.mrf.mxu0
  %v3270 = vpop.f32.mrf.mxu0
  %v3271 = vadd.f32 %v2438, %v3270
  %v3272 = vpop.f32.mrf.mxu0
  %3273 = vmatprep.mubr.bf16.mxu0 0
  %3274 = vmatmul.mubr.bf16.gmra.mxu0 %v2079
  %v3275 = vpop.f32.mrf.mxu0
  %v3276 = vadd.f32 %v2443, %v3275
  %v3277 = vpop.f32.mrf.mxu0
  %v3278 = vpop.f32.mrf.mxu0
  %v3279 = vadd.f32 %v2446, %v3278
  %v3280 = vpop.f32.mrf.mxu0
  %3281 = vmatprep.mubr.bf16.mxu0 0
  %3282 = vmatmul.mubr.bf16.gmra.mxu0 %v2082
  %v3283 = vpop.f32.mrf.mxu0
  %v3284 = vadd.f32 %v2451, %v3283
  %v3285 = vpop.f32.mrf.mxu0
  %v3286 = vpop.f32.mrf.mxu0
  %v3287 = vadd.f32 %v2454, %v3286
  %v3288 = vpop.f32.mrf.mxu0
  %3289 = vmatprep.mubr.bf16.mxu0 0
  %3290 = vmatmul.mubr.bf16.gmra.mxu0 %v2085
  %v3291 = vpop.f32.mrf.mxu0
  %v3292 = vadd.f32 %v2459, %v3291
  %v3293 = vpop.f32.mrf.mxu0
  %v3294 = vpop.f32.mrf.mxu0
  %v3295 = vadd.f32 %v2462, %v3294
  %v3296 = vpop.f32.mrf.mxu0
  %3297 = vmatprep.mubr.bf16.mxu0 0
  %3298 = vmatmul.mubr.bf16.gmra.mxu0 %v2088
  %v3299 = vpop.f32.mrf.mxu0
  %v3300 = vadd.f32 %v2467, %v3299
  %v3301 = vpop.f32.mrf.mxu0
  %v3302 = vpop.f32.mrf.mxu0
  %v3303 = vadd.f32 %v2470, %v3302
  %v3304 = vpop.f32.mrf.mxu0
  %3305 = vmatprep.mubr.bf16.mxu0 0
  %3306 = vmatmul.mubr.bf16.gmra.mxu0 %v2091
  %v3307 = vpop.f32.mrf.mxu0
  %v3308 = vadd.f32 %v2475, %v3307
  %v3309 = vpop.f32.mrf.mxu0
  %v3310 = vpop.f32.mrf.mxu0
  %v3311 = vadd.f32 %v2478, %v3310
  %v3312 = vpop.f32.mrf.mxu0
  %3313 = vmatprep.mubr.bf16.mxu0 0
  %3314 = vmatmul.mubr.bf16.gmra.mxu0 %v2094
  %v3315 = vpop.f32.mrf.mxu0
  %v3316 = vadd.f32 %v2483, %v3315
  %v3317 = vpop.f32.mrf.mxu0
  %v3318 = vpop.f32.mrf.mxu0
  %v3319 = vadd.f32 %v2486, %v3318
  %v3320 = vpop.f32.mrf.mxu0
  %3321 = vmatprep.mubr.bf16.mxu0 0
  %3322 = vmatmul.mubr.bf16.gmra.mxu0 %v2097
  %v3323 = vpop.f32.mrf.mxu0
  %v3324 = vadd.f32 %v2491, %v3323
  %v3325 = vpop.f32.mrf.mxu0
  %v3326 = vpop.f32.mrf.mxu0
  %v3327 = vadd.f32 %v2494, %v3326
  %v3328 = vpop.f32.mrf.mxu0
  %3329 = vmatprep.mubr.bf16.mxu0 0
  %3330 = vmatmul.mubr.bf16.gmra.mxu0 %v2100
  %v3331 = vpop.f32.mrf.mxu0
  %v3332 = vadd.f32 %v2499, %v3331
  %v3333 = vpop.f32.mrf.mxu0
  %v3334 = vpop.f32.mrf.mxu0
  %v3335 = vadd.f32 %v2502, %v3334
  %v3336 = vpop.f32.mrf.mxu0
  %3337 = vmatprep.mubr.bf16.mxu0 0
  %3338 = vmatmul.mubr.bf16.gmra.mxu0 %v2103
  %v3339 = vpop.f32.mrf.mxu0
  %v3340 = vadd.f32 %v2507, %v3339
  %v3341 = vpop.f32.mrf.mxu0
  %v3342 = vpop.f32.mrf.mxu0
  %v3343 = vadd.f32 %v2510, %v3342
  %v3344 = vpop.f32.mrf.mxu0
  %3345 = vmatprep.mubr.bf16.mxu0 0
  %3346 = vmatmul.mubr.bf16.gmra.mxu0 %v2106
  %v3347 = vpop.f32.mrf.mxu0
  %v3348 = vadd.f32 %v2515, %v3347
  %v3349 = vpop.f32.mrf.mxu0
  %v3350 = vpop.f32.mrf.mxu0
  %v3351 = vadd.f32 %v2518, %v3350
  %v3352 = vpop.f32.mrf.mxu0
  %3353 = vmatprep.mubr.bf16.mxu0 0
  %3354 = vmatmul.mubr.bf16.gmra.mxu0 %v2109
  %v3355 = vpop.f32.mrf.mxu0
  %v3356 = vadd.f32 %v2523, %v3355
  %v3357 = vpop.f32.mrf.mxu0
  %v3358 = vpop.f32.mrf.mxu0
  %v3359 = vadd.f32 %v2526, %v3358
  %v3360 = vpop.f32.mrf.mxu0
  %3361 = vmatprep.mubr.bf16.mxu0 0
  %3362 = vmatmul.mubr.bf16.gmra.mxu0 %v2112
  %v3363 = vpop.f32.mrf.mxu0
  %v3364 = vadd.f32 %v2531, %v3363
  %v3365 = vpop.f32.mrf.mxu0
  %v3366 = vpop.f32.mrf.mxu0
  %v3367 = vadd.f32 %v2534, %v3366
  %v3368 = vpop.f32.mrf.mxu0
  %3369 = vmatprep.mubr.bf16.mxu0 0
  %3370 = vmatmul.mubr.bf16.gmra.mxu0 %v2115
  %v3371 = vpop.f32.mrf.mxu0
  %v3372 = vadd.f32 %v2539, %v3371
  %v3373 = vpop.f32.mrf.mxu0
  %v3374 = vpop.f32.mrf.mxu0
  %v3375 = vadd.f32 %v2542, %v3374
  %v3376 = vpop.f32.mrf.mxu0
  %3377 = vmatprep.mubr.bf16.mxu0 0
  %3378 = vmatmul.mubr.bf16.gmra.mxu0 %v2118
  %v3379 = vpop.f32.mrf.mxu0
  %v3380 = vadd.f32 %v2547, %v3379
  %v3381 = vpop.f32.mrf.mxu0
  %v3382 = vpop.f32.mrf.mxu0
  %v3383 = vadd.f32 %v2550, %v3382
  %v3384 = vpop.f32.mrf.mxu0
  %3385 = vmatprep.mubr.bf16.mxu0 0
  %3386 = vmatmul.mubr.bf16.gmra.mxu0 %v2121
  %v3387 = vpop.f32.mrf.mxu0
  %v3388 = vadd.f32 %v2555, %v3387
  %v3389 = vpop.f32.mrf.mxu0
  %v3390 = vpop.f32.mrf.mxu0
  %v3391 = vadd.f32 %v2558, %v3390
  %v3392 = vpop.f32.mrf.mxu0
  %3393 = vmatprep.mubr.bf16.mxu0 0
  %3394 = vmatmul.mubr.bf16.gmra.mxu0 %v2124
  %v3395 = vpop.f32.mrf.mxu0
  %v3396 = vadd.f32 %v2563, %v3395
  %v3397 = vpop.f32.mrf.mxu0
  %v3398 = vpop.f32.mrf.mxu0
  %v3399 = vadd.f32 %v2566, %v3398
  %v3400 = vpop.f32.mrf.mxu0
  %3401 = vmatprep.mubr.bf16.mxu0 0
  %3402 = vmatmul.mubr.bf16.gmra.mxu0 %v2127
  %v3403 = vpop.f32.mrf.mxu0
  %v3404 = vadd.f32 %v2571, %v3403
  %v3405 = vpop.f32.mrf.mxu0
  %v3406 = vpop.f32.mrf.mxu0
  %v3407 = vadd.f32 %v2574, %v3406
  %v3408 = vpop.f32.mrf.mxu0
  %3409 = vmatprep.mubr.bf16.mxu0 0
  %3410 = vmatmul.mubr.bf16.gmra.mxu0 %v2130
  %v3411 = vpop.f32.mrf.mxu0
  %v3412 = vadd.f32 %v2579, %v3411
  %v3413 = vpop.f32.mrf.mxu0
  %v3414 = vpop.f32.mrf.mxu0
  %v3415 = vadd.f32 %v2582, %v3414
  %v3416 = vpop.f32.mrf.mxu0
  %3417 = vmatprep.mubr.bf16.mxu0 0
  %3418 = vmatmul.mubr.bf16.gmra.mxu0 %v2133
  %v3419 = vpop.f32.mrf.mxu0
  %v3420 = vadd.f32 %v2587, %v3419
  %v3421 = vpop.f32.mrf.mxu0
  %v3422 = vpop.f32.mrf.mxu0
  %v3423 = vadd.f32 %v2590, %v3422
  %v3424 = vpop.f32.mrf.mxu0
  %3425 = vmatprep.mubr.bf16.mxu0 0
  %3426 = vmatmul.mubr.bf16.gmra.mxu0 %v2136
  %v3427 = vpop.f32.mrf.mxu0
  %v3428 = vadd.f32 %v2595, %v3427
  %v3429 = vpop.f32.mrf.mxu0
  %v3430 = vpop.f32.mrf.mxu0
  %v3431 = vadd.f32 %v2598, %v3430
  %v3432 = vpop.f32.mrf.mxu0
  %3433 = vmatprep.mubr.bf16.mxu0 0
  %3434 = vmatmul.mubr.bf16.gmra.mxu0 %v2139
  %v3435 = vpop.f32.mrf.mxu0
  %v3436 = vadd.f32 %v2603, %v3435
  %v3437 = vpop.f32.mrf.mxu0
  %v3438 = vpop.f32.mrf.mxu0
  %v3439 = vadd.f32 %v2606, %v3438
  %v3440 = vpop.f32.mrf.mxu0
  %3441 = vmatprep.mubr.bf16.mxu0 0
  %3442 = vmatmul.mubr.bf16.gmra.mxu0 %v2142
  %v3443 = vpop.f32.mrf.mxu0
  %v3444 = vadd.f32 %v2611, %v3443
  %v3445 = vpop.f32.mrf.mxu0
  %v3446 = vpop.f32.mrf.mxu0
  %v3447 = vadd.f32 %v2614, %v3446
  %v3448 = vpop.f32.mrf.mxu0
  %3449 = vmatprep.mubr.bf16.mxu0 0
  %3450 = vmatmul.mubr.bf16.gmra.mxu0 %v2145
  %v3451 = vpop.f32.mrf.mxu0
  %v3452 = vadd.f32 %v2619, %v3451
  %v3453 = vpop.f32.mrf.mxu0
  %v3454 = vpop.f32.mrf.mxu0
  %v3455 = vadd.f32 %v2622, %v3454
  %v3456 = vpop.f32.mrf.mxu0
  %3457 = vmatprep.mubr.bf16.mxu0 0
  %3458 = vmatmul.mubr.bf16.gmra.mxu0 %v2148
  %v3459 = vpop.f32.mrf.mxu0
  %v3460 = vadd.f32 %v2627, %v3459
  %v3461 = vpop.f32.mrf.mxu0
  %v3462 = vpop.f32.mrf.mxu0
  %v3463 = vadd.f32 %v2630, %v3462
  %v3464 = vpop.f32.mrf.mxu0
  %3465 = vmatprep.mubr.bf16.mxu0 0
  %3466 = vmatmul.mubr.bf16.gmra.mxu0 %v2151
  %v3467 = vpop.f32.mrf.mxu0
  %v3468 = vadd.f32 %v2635, %v3467
  %v3469 = vpop.f32.mrf.mxu0
  %v3470 = vpop.f32.mrf.mxu0
  %v3471 = vadd.f32 %v2638, %v3470
  %v3472 = vpop.f32.mrf.mxu0
  %3473 = vmatprep.mubr.bf16.mxu0 0
  %3474 = vmatmul.mubr.bf16.gmra.mxu0 %v2154
  %v3475 = vpop.f32.mrf.mxu0
  %v3476 = vadd.f32 %v2643, %v3475
  %v3477 = vpop.f32.mrf.mxu0
  %v3478 = vpop.f32.mrf.mxu0
  %v3479 = vadd.f32 %v2646, %v3478
  %v3480 = vpop.f32.mrf.mxu0
  %3481 = vmatprep.mubr.bf16.mxu0 0
  %3482 = vmatmul.mubr.bf16.gmra.mxu0 %v2157
  %v3483 = vpop.f32.mrf.mxu0
  %v3484 = vadd.f32 %v2651, %v3483
  %v3485 = vpop.f32.mrf.mxu0
  %v3486 = vpop.f32.mrf.mxu0
  %v3487 = vadd.f32 %v2654, %v3486
  %v3488 = vpop.f32.mrf.mxu0
  %3489 = vmatprep.mubr.bf16.mxu0 0
  %3490 = vmatmul.mubr.bf16.gmra.mxu0 %v2160
  %v3491 = vpop.f32.mrf.mxu0
  %v3492 = vadd.f32 %v2659, %v3491
  %v3493 = vpop.f32.mrf.mxu0
  %v3494 = vpop.f32.mrf.mxu0
  %v3495 = vadd.f32 %v2662, %v3494
  %v3496 = vpop.f32.mrf.mxu0
  %3497 = vmatprep.mubr.bf16.mxu0 0
  %3498 = vmatmul.mubr.bf16.gmra.mxu0 %v2163
  %v3499 = vpop.f32.mrf.mxu0
  %v3500 = vadd.f32 %v2667, %v3499
  %v3501 = vpop.f32.mrf.mxu0
  %v3502 = vpop.f32.mrf.mxu0
  %v3503 = vadd.f32 %v2670, %v3502
  %v3504 = vpop.f32.mrf.mxu0
  %3505 = vmatprep.mubr.bf16.mxu0 0
  %3506 = vmatmul.mubr.bf16.gmra.mxu0 %v2166
  %v3507 = vpop.f32.mrf.mxu0
  %v3508 = vadd.f32 %v2675, %v3507
  %v3509 = vpop.f32.mrf.mxu0
  %v3510 = vpop.f32.mrf.mxu0
  %v3511 = vadd.f32 %v2678, %v3510
  %v3512 = vpop.f32.mrf.mxu0
  %3513 = vmatprep.mubr.bf16.mxu0 0
  %3514 = vmatmul.mubr.bf16.gmra.mxu0 %v2169
  %v3515 = vpop.f32.mrf.mxu0
  %v3516 = vadd.f32 %v2683, %v3515
  %v3517 = vpop.f32.mrf.mxu0
  %v3518 = vpop.f32.mrf.mxu0
  %v3519 = vadd.f32 %v2686, %v3518
  %v3520 = vpop.f32.mrf.mxu0
  %3521 = vmatprep.mubr.bf16.mxu0 0
  %3522 = vmatmul.mubr.bf16.gmra.mxu0 %v2172
  %v3523 = vpop.f32.mrf.mxu0
  %v3524 = vadd.f32 %v2691, %v3523
  %v3525 = vpop.f32.mrf.mxu0
  %v3526 = vpop.f32.mrf.mxu0
  %v3527 = vadd.f32 %v2694, %v3526
  %v3528 = vpop.f32.mrf.mxu0
  %3529 = vmatprep.mubr.bf16.mxu0 0
  %3530 = vmatmul.mubr.bf16.gmra.mxu0 %v2175
  %v3531 = vpop.f32.mrf.mxu0
  %v3532 = vadd.f32 %v2699, %v3531
  %v3533 = vpop.f32.mrf.mxu0
  %v3534 = vpop.f32.mrf.mxu0
  %v3535 = vadd.f32 %v2702, %v3534
  %v3536 = vpop.f32.mrf.mxu0
  %3537 = vmatprep.mubr.bf16.mxu0 0
  %3538 = vmatmul.mubr.bf16.gmra.mxu0 %v2178
  %v3539 = vpop.f32.mrf.mxu0
  %v3540 = vadd.f32 %v2707, %v3539
  %v3541 = vpop.f32.mrf.mxu0
  %v3542 = vpop.f32.mrf.mxu0
  %v3543 = vadd.f32 %v2710, %v3542
  %v3544 = vpop.f32.mrf.mxu0
  %3545 = vmatprep.mubr.bf16.mxu0 0
  %3546 = vmatmul.mubr.bf16.gmra.mxu0 %v2181
  %v3547 = vpop.f32.mrf.mxu0
  %v3548 = vadd.f32 %v2715, %v3547
  %v3549 = vpop.f32.mrf.mxu0
  %v3550 = vpop.f32.mrf.mxu0
  %v3551 = vadd.f32 %v2718, %v3550
  %v3552 = vpop.f32.mrf.mxu0
  %3553 = vmatprep.mubr.bf16.mxu0 0
  %3554 = vmatmul.mubr.bf16.gmra.mxu0 %v2184
  %v3555 = vpop.f32.mrf.mxu0
  %v3556 = vadd.f32 %v2723, %v3555
  %v3557 = vpop.f32.mrf.mxu0
  %v3558 = vpop.f32.mrf.mxu0
  %v3559 = vadd.f32 %v2726, %v3558
  %v3560 = vpop.f32.mrf.mxu0
  %3561 = vmatprep.mubr.bf16.mxu0 0
  %3562 = vmatmul.mubr.bf16.gmra.mxu0 %v2187
  %v3563 = vpop.f32.mrf.mxu0
  %v3564 = vadd.f32 %v2731, %v3563
  %v3565 = vpop.f32.mrf.mxu0
  %v3566 = vpop.f32.mrf.mxu0
  %v3567 = vadd.f32 %v2734, %v3566
  %v3568 = vpop.f32.mrf.mxu0
  %3569 = vmatprep.mubr.bf16.mxu0 0
  %3570 = vmatmul.mubr.bf16.gmra.mxu0 %v2190
  %v3571 = vpop.f32.mrf.mxu0
  %v3572 = vadd.f32 %v2739, %v3571
  %v3573 = vpop.f32.mrf.mxu0
  %v3574 = vpop.f32.mrf.mxu0
  %v3575 = vadd.f32 %v2742, %v3574
  %v3576 = vpop.f32.mrf.mxu0
  %3577 = vmatprep.mubr.bf16.mxu0 0
  %3578 = vmatmul.mubr.bf16.gmra.mxu0 %v2193
  %v3579 = vpop.f32.mrf.mxu0
  %v3580 = vadd.f32 %v2747, %v3579
  %v3581 = vpop.f32.mrf.mxu0
  %v3582 = vpop.f32.mrf.mxu0
  %v3583 = vadd.f32 %v2750, %v3582
  %v3584 = vpop.f32.mrf.mxu0
  %3585 = vmatprep.mubr.bf16.mxu0 0
  %3586 = vmatmul.mubr.bf16.gmra.mxu0 %v2196
  %v3587 = vpop.f32.mrf.mxu0
  %v3588 = vadd.f32 %v2755, %v3587
  %v3589 = vpop.f32.mrf.mxu0
  %v3590 = vpop.f32.mrf.mxu0
  %v3591 = vadd.f32 %v2758, %v3590
  %v3592 = vpop.f32.mrf.mxu0
  %3593 = vmatprep.mubr.bf16.mxu0 0
  %3594 = vmatmul.mubr.bf16.gmra.mxu0 %v2199
  %v3595 = vpop.f32.mrf.mxu0
  %v3596 = vadd.f32 %v2763, %v3595
  %v3597 = vpop.f32.mrf.mxu0
  %v3598 = vpop.f32.mrf.mxu0
  %v3599 = vadd.f32 %v2766, %v3598
  %v3600 = vpop.f32.mrf.mxu0
  %3601 = vmatprep.mubr.bf16.mxu0 0
  %3602 = vmatmul.mubr.bf16.gmra.mxu0 %v2202
  %v3603 = vpop.f32.mrf.mxu0
  %v3604 = vadd.f32 %v2771, %v3603
  %v3605 = vpop.f32.mrf.mxu0
  %v3606 = vpop.f32.mrf.mxu0
  %v3607 = vadd.f32 %v2774, %v3606
  %v3608 = vpop.f32.mrf.mxu0
  %3609 = vmatprep.mubr.bf16.mxu0 0
  %3610 = vmatmul.mubr.bf16.gmra.mxu0 %v2205
  %v3611 = vpop.f32.mrf.mxu0
  %v3612 = vadd.f32 %v2779, %v3611
  %v3613 = vpop.f32.mrf.mxu0
  %v3614 = vpop.f32.mrf.mxu0
  %v3615 = vadd.f32 %v2782, %v3614
  %v3616 = vpop.f32.mrf.mxu0
  %3617 = vmatprep.mubr.bf16.mxu0 0
  %3618 = vmatmul.mubr.bf16.gmra.mxu0 %v2208
  %v3619 = vpop.f32.mrf.mxu0
  %v3620 = vadd.f32 %v2787, %v3619
  %v3621 = vpop.f32.mrf.mxu0
  %v3622 = vpop.f32.mrf.mxu0
  %v3623 = vadd.f32 %v2790, %v3622
  %v3624 = vpop.f32.mrf.mxu0
  %3625 = vmatprep.mubr.bf16.mxu0 0
  %3626 = vmatmul.mubr.bf16.gmra.mxu0 %v2211
  %v3627 = vpop.f32.mrf.mxu0
  %v3628 = vadd.f32 %v2795, %v3627
  %v3629 = vpop.f32.mrf.mxu0
  %v3630 = vpop.f32.mrf.mxu0
  %v3631 = vadd.f32 %v2798, %v3630
  %v3632 = vpop.f32.mrf.mxu0
  %3633 = vmatprep.mubr.bf16.mxu0 0
  %3634 = vmatmul.mubr.bf16.gmra.mxu0 %v2214
  %v3635 = vpop.f32.mrf.mxu0
  %v3636 = vadd.f32 %v2803, %v3635
  %v3637 = vpop.f32.mrf.mxu0
  %v3638 = vpop.f32.mrf.mxu0
  %v3639 = vadd.f32 %v2806, %v3638
  %v3640 = vpop.f32.mrf.mxu0
  %3641 = vmatprep.mubr.bf16.mxu0 0
  %3642 = vmatmul.mubr.bf16.gmra.mxu0 %v2217
  %v3643 = vpop.f32.mrf.mxu0
  %v3644 = vadd.f32 %v2811, %v3643
  %v3645 = vpop.f32.mrf.mxu0
  %v3646 = vpop.f32.mrf.mxu0
  %v3647 = vadd.f32 %v2814, %v3646
  %v3648 = vpop.f32.mrf.mxu0
  %3649 = vmatprep.mubr.bf16.mxu0 0
  %3650 = vmatmul.mubr.bf16.gmra.mxu0 %v2220
  %v3651 = vpop.f32.mrf.mxu0
  %v3652 = vadd.f32 %v2819, %v3651
  %v3653 = vpop.f32.mrf.mxu0
  %v3654 = vpop.f32.mrf.mxu0
  %v3655 = vadd.f32 %v2822, %v3654
  %v3656 = vpop.f32.mrf.mxu0
  %3657 = vmatprep.mubr.bf16.mxu0 0
  %3658 = vmatmul.mubr.bf16.gmra.mxu0 %v2223
  %v3659 = vpop.f32.mrf.mxu0
  %v3660 = vadd.f32 %v2827, %v3659
  %v3661 = vpop.f32.mrf.mxu0
  %v3662 = vpop.f32.mrf.mxu0
  %v3663 = vadd.f32 %v2830, %v3662
  %v3664 = vpop.f32.mrf.mxu0
  %3665 = vmatprep.mubr.bf16.mxu0 0
  %3666 = vmatmul.mubr.bf16.gmra.mxu0 %v2226
  %v3667 = vpop.f32.mrf.mxu0
  %v3668 = vadd.f32 %v2835, %v3667
  %v3669 = vpop.f32.mrf.mxu0
  %v3670 = vpop.f32.mrf.mxu0
  %v3671 = vadd.f32 %v2838, %v3670
  %v3672 = vpop.f32.mrf.mxu0
  %3673 = vmatprep.mubr.bf16.mxu0 0
  %3674 = vmatmul.mubr.bf16.gmra.mxu0 %v2229
  %v3675 = vpop.f32.mrf.mxu0
  %v3676 = vadd.f32 %v2843, %v3675
  %v3677 = vpop.f32.mrf.mxu0
  %v3678 = vpop.f32.mrf.mxu0
  %v3679 = vadd.f32 %v2846, %v3678
  %v3680 = vpop.f32.mrf.mxu0
  %3681 = vmatprep.mubr.bf16.mxu0 0
  %3682 = vmatmul.mubr.bf16.gmra.mxu0 %v2232
  %v3683 = vpop.f32.mrf.mxu0
  %v3684 = vadd.f32 %v2851, %v3683
  %v3685 = vpop.f32.mrf.mxu0
  %v3686 = vpop.f32.mrf.mxu0
  %v3687 = vadd.f32 %v2854, %v3686
  %v3688 = vpop.f32.mrf.mxu0
  %3689 = vmatprep.mubr.bf16.mxu0 0
  %3690 = vmatmul.mubr.bf16.gmra.mxu0 %v2235
  %v3691 = vpop.f32.mrf.mxu0
  %v3692 = vadd.f32 %v2859, %v3691
  %v3693 = vpop.f32.mrf.mxu0
  %v3694 = vpop.f32.mrf.mxu0
  %v3695 = vadd.f32 %v2862, %v3694
  %v3696 = vpop.f32.mrf.mxu0
  %3697 = vmatprep.mubr.bf16.mxu0 0
  %3698 = vmatmul.mubr.bf16.gmra.mxu0 %v2238
  %v3699 = vpop.f32.mrf.mxu0
  %v3700 = vadd.f32 %v2867, %v3699
  %v3701 = vpop.f32.mrf.mxu0
  %v3702 = vpop.f32.mrf.mxu0
  %v3703 = vadd.f32 %v2870, %v3702
  %v3704 = vpop.f32.mrf.mxu0
  %3705 = vmatprep.mubr.bf16.mxu0 0
  %3706 = vmatmul.mubr.bf16.gmra.mxu0 %v2241
  %v3707 = vpop.f32.mrf.mxu0
  %v3708 = vadd.f32 %v2875, %v3707
  %v3709 = vpop.f32.mrf.mxu0
  %v3710 = vpop.f32.mrf.mxu0
  %v3711 = vadd.f32 %v2878, %v3710
  %v3712 = vpop.f32.mrf.mxu0
  %3713 = vmatprep.mubr.bf16.mxu0 0
  %3714 = vmatmul.mubr.bf16.gmra.mxu0 %v2244
  %v3715 = vpop.f32.mrf.mxu0
  %v3716 = vadd.f32 %v2883, %v3715
  %v3717 = vpop.f32.mrf.mxu0
  %v3718 = vpop.f32.mrf.mxu0
  %v3719 = vadd.f32 %v2886, %v3718
  %v3720 = vpop.f32.mrf.mxu0
  %3721 = vmatprep.mubr.bf16.mxu0 0
  %3722 = vmatmul.mubr.bf16.gmra.mxu0 %v2247
  %v3723 = vpop.f32.mrf.mxu0
  %v3724 = vadd.f32 %v2891, %v3723
  %v3725 = vpop.f32.mrf.mxu0
  %v3726 = vpop.f32.mrf.mxu0
  %v3727 = vadd.f32 %v2894, %v3726
  %v3728 = vpop.f32.mrf.mxu0
  %3729 = vmatprep.mubr.bf16.mxu0 0
  %3730 = vmatmul.mubr.bf16.gmra.mxu0 %v2250
  %v3731 = vpop.f32.mrf.mxu0
  %v3732 = vadd.f32 %v2899, %v3731
  %v3733 = vpop.f32.mrf.mxu0
  %v3734 = vpop.f32.mrf.mxu0
  %v3735 = vadd.f32 %v2902, %v3734
  %v3736 = vpop.f32.mrf.mxu0
  %3737 = vmatprep.mubr.bf16.mxu0 0
  %3738 = vmatmul.mubr.bf16.gmra.mxu0 %v2253
  %v3739 = vpop.f32.mrf.mxu0
  %v3740 = vadd.f32 %v2907, %v3739
  %v3741 = vpop.f32.mrf.mxu0
  %v3742 = vpop.f32.mrf.mxu0
  %v3743 = vadd.f32 %v2910, %v3742
  %v3744 = vpop.f32.mrf.mxu0
  %3745 = vmatprep.mubr.bf16.mxu0 0
  %3746 = vmatmul.mubr.bf16.gmra.mxu0 %v2256
  %v3747 = vpop.f32.mrf.mxu0
  %v3748 = vadd.f32 %v2915, %v3747
  %v3749 = vpop.f32.mrf.mxu0
  %v3750 = vpop.f32.mrf.mxu0
  %v3751 = vadd.f32 %v2918, %v3750
  %v3752 = vpop.f32.mrf.mxu0
  %3753 = vmatprep.mubr.bf16.mxu0 0
  %3754 = vmatmul.mubr.bf16.gmra.mxu0 %v2259
  %v3755 = vpop.f32.mrf.mxu0
  %v3756 = vadd.f32 %v2923, %v3755
  %v3757 = vpop.f32.mrf.mxu0
  %v3758 = vpop.f32.mrf.mxu0
  %v3759 = vadd.f32 %v2926, %v3758
  %v3760 = vpop.f32.mrf.mxu0
  %3761 = vmatprep.mubr.bf16.mxu0 0
  %3762 = vmatmul.mubr.bf16.gmra.mxu0 %v2262
  %v3763 = vpop.f32.mrf.mxu0
  %v3764 = vadd.f32 %v2931, %v3763
  %v3765 = vpop.f32.mrf.mxu0
  %v3766 = vpop.f32.mrf.mxu0
  %v3767 = vadd.f32 %v2934, %v3766
  %v3768 = vpop.f32.mrf.mxu0
  %3769 = vmatprep.mubr.bf16.mxu0 0
  %3770 = vmatmul.mubr.bf16.gmra.mxu0 %v2265
  %v3771 = vpop.f32.mrf.mxu0
  %v3772 = vadd.f32 %v2939, %v3771
  %v3773 = vpop.f32.mrf.mxu0
  %v3774 = vpop.f32.mrf.mxu0
  %v3775 = vadd.f32 %v2942, %v3774
  %v3776 = vpop.f32.mrf.mxu0
  %3777 = vmatprep.mubr.bf16.mxu0 0
  %3778 = vmatmul.mubr.bf16.gmra.mxu0 %v2268
  %v3779 = vpop.f32.mrf.mxu0
  %v3780 = vadd.f32 %v2947, %v3779
  %v3781 = vpop.f32.mrf.mxu0
  %v3782 = vpop.f32.mrf.mxu0
  %v3783 = vadd.f32 %v2950, %v3782
  %v3784 = vpop.f32.mrf.mxu0
  %3785 = vmatprep.mubr.bf16.mxu0 0
  %3786 = vmatmul.mubr.bf16.gmra.mxu0 %v2271
  %v3787 = vpop.f32.mrf.mxu0
  %v3788 = vadd.f32 %v2955, %v3787
  %v3789 = vpop.f32.mrf.mxu0
  %v3790 = vpop.f32.mrf.mxu0
  %v3791 = vadd.f32 %v2958, %v3790
  %v3792 = vpop.f32.mrf.mxu0
  %3793 = vmatprep.mubr.bf16.mxu0 0
  %3794 = vmatmul.mubr.bf16.gmra.mxu0 %v2274
  %v3795 = vpop.f32.mrf.mxu0
  %v3796 = vadd.f32 %v2963, %v3795
  %v3797 = vpop.f32.mrf.mxu0
  %v3798 = vpop.f32.mrf.mxu0
  %v3799 = vadd.f32 %v2966, %v3798
  %v3800 = vpop.f32.mrf.mxu0
  %3801 = vmatprep.mubr.bf16.mxu0 0
  %3802 = vmatmul.mubr.bf16.gmra.mxu0 %v2277
  %v3803 = vpop.f32.mrf.mxu0
  %v3804 = vadd.f32 %v2971, %v3803
  %v3805 = vpop.f32.mrf.mxu0
  %v3806 = vpop.f32.mrf.mxu0
  %v3807 = vadd.f32 %v2974, %v3806
  %v3808 = vpop.f32.mrf.mxu0
  %3809 = vmatprep.mubr.bf16.mxu0 0
  %3810 = vmatmul.mubr.bf16.gmra.mxu0 %v2280
  %v3811 = vpop.f32.mrf.mxu0
  %v3812 = vadd.f32 %v2979, %v3811
  %v3813 = vpop.f32.mrf.mxu0
  %v3814 = vpop.f32.mrf.mxu0
  %v3815 = vadd.f32 %v2982, %v3814
  %v3816 = vpop.f32.mrf.mxu0
  %3817 = vmatprep.mubr.bf16.mxu0 0
  %3818 = vmatmul.mubr.bf16.gmra.mxu0 %v2283
  %v3819 = vpop.f32.mrf.mxu0
  %v3820 = vadd.f32 %v2987, %v3819
  %v3821 = vpop.f32.mrf.mxu0
  %v3822 = vpop.f32.mrf.mxu0
  %v3823 = vadd.f32 %v2990, %v3822
  %v3824 = vpop.f32.mrf.mxu0
  %3825 = vmatprep.mubr.bf16.mxu0 0
  %3826 = vmatmul.mubr.bf16.gmra.mxu0 %v2286
  %v3827 = vpop.f32.mrf.mxu0
  %v3828 = vadd.f32 %v2995, %v3827
  %v3829 = vpop.f32.mrf.mxu0
  %v3830 = vpop.f32.mrf.mxu0
  %v3831 = vadd.f32 %v2998, %v3830
  %v3832 = vpop.f32.mrf.mxu0
  %3833 = vmatprep.mubr.bf16.mxu0 0
  %3834 = vmatmul.mubr.bf16.gmra.mxu0 %v2289
  %v3835 = vpop.f32.mrf.mxu0
  %v3836 = vadd.f32 %v3003, %v3835
  %v3837 = vpop.f32.mrf.mxu0
  %v3838 = vpop.f32.mrf.mxu0
  %v3839 = vadd.f32 %v3006, %v3838
  %v3840 = vpop.f32.mrf.mxu0
  %3841 = vmatprep.mubr.bf16.mxu0 0
  %3842 = vmatmul.mubr.bf16.gmra.mxu0 %v2292
  %v3843 = vpop.f32.mrf.mxu0
  %v3844 = vadd.f32 %v3011, %v3843
  %v3845 = vpop.f32.mrf.mxu0
  %v3846 = vpop.f32.mrf.mxu0
  %v3847 = vadd.f32 %v3014, %v3846
  %v3848 = vpop.f32.mrf.mxu0
  %3849 = vmatprep.mubr.bf16.mxu0 0
  %3850 = vmatmul.mubr.bf16.gmra.mxu0 %v2295
  %v3851 = vpop.f32.mrf.mxu0
  %v3852 = vadd.f32 %v3019, %v3851
  %v3853 = vpop.f32.mrf.mxu0
  %v3854 = vpop.f32.mrf.mxu0
  %v3855 = vadd.f32 %v3022, %v3854
  %v3856 = vpop.f32.mrf.mxu0
  %3857 = vmatprep.mubr.bf16.mxu0 0
  %3858 = vmatmul.mubr.bf16.gmra.mxu0 %v2298
  %v3859 = vpop.f32.mrf.mxu0
  %v3860 = vadd.f32 %v3027, %v3859
  %v3861 = vpop.f32.mrf.mxu0
  %v3862 = vpop.f32.mrf.mxu0
  %v3863 = vadd.f32 %v3030, %v3862
  %v3864 = vpop.f32.mrf.mxu0
  %3865 = vmatprep.mubr.bf16.mxu0 0
  %3866 = vmatmul.mubr.bf16.gmra.mxu0 %v2301
  %v3867 = vpop.f32.mrf.mxu0
  %v3868 = vadd.f32 %v3035, %v3867
  %v3869 = vpop.f32.mrf.mxu0
  %v3870 = vpop.f32.mrf.mxu0
  %v3871 = vadd.f32 %v3038, %v3870
  %v3872 = vpop.f32.mrf.mxu0
  %3873 = vmatprep.mubr.bf16.mxu0 0
  %3874 = vmatmul.mubr.bf16.gmra.mxu0 %v2304
  %v3875 = vpop.f32.mrf.mxu0
  %v3876 = vadd.f32 %v3043, %v3875
  %v3877 = vpop.f32.mrf.mxu0
  %v3878 = vpop.f32.mrf.mxu0
  %v3879 = vadd.f32 %v3046, %v3878
  %v3880 = vpop.f32.mrf.mxu0
  %3881 = vmatprep.mubr.bf16.mxu0 0
  %3882 = vmatmul.mubr.bf16.gmra.mxu0 %v2307
  %v3883 = vpop.f32.mrf.mxu0
  %v3884 = vadd.f32 %v3051, %v3883
  %v3885 = vpop.f32.mrf.mxu0
  %v3886 = vpop.f32.mrf.mxu0
  %v3887 = vadd.f32 %v3054, %v3886
  %v3888 = vpop.f32.mrf.mxu0
  %3889 = vmatprep.mubr.bf16.mxu0 0
  %3890 = vmatmul.mubr.bf16.gmra.mxu0 %v2310
  %v3891 = vpop.f32.mrf.mxu0
  %v3892 = vadd.f32 %v3059, %v3891
  %v3893 = vpop.f32.mrf.mxu0
  %v3894 = vpop.f32.mrf.mxu0
  %v3895 = vadd.f32 %v3062, %v3894
  %v3896 = vpop.f32.mrf.mxu0
  %3897 = vmatprep.mubr.bf16.mxu0 0
  %3898 = vmatmul.mubr.bf16.gmra.mxu0 %v2313
  %v3899 = vpop.f32.mrf.mxu0
  %v3900 = vadd.f32 %v3067, %v3899
  %v3901 = vpop.f32.mrf.mxu0
  %v3902 = vpop.f32.mrf.mxu0
  %v3903 = vadd.f32 %v3070, %v3902
  %v3904 = vpop.f32.mrf.mxu0
  %3905 = vmatprep.mubr.bf16.mxu0 0
  %3906 = vmatmul.mubr.bf16.gmra.mxu0 %v2316
  %v3907 = vpop.f32.mrf.mxu0
  %v3908 = vadd.f32 %v3075, %v3907
  %v3909 = vpop.f32.mrf.mxu0
  %v3910 = vpop.f32.mrf.mxu0
  %v3911 = vadd.f32 %v3078, %v3910
  %v3912 = vpop.f32.mrf.mxu0
  %3913 = vmatprep.mubr.bf16.mxu0 0
  %3914 = vmatmul.mubr.bf16.gmra.mxu0 %v2319
  %v3915 = vpop.f32.mrf.mxu0
  %v3916 = vadd.f32 %v3083, %v3915
  %v3917 = vpop.f32.mrf.mxu0
  %v3918 = vpop.f32.mrf.mxu0
  %v3919 = vadd.f32 %v3086, %v3918
  %v3920 = vpop.f32.mrf.mxu0
  %3921 = vmatprep.mubr.bf16.mxu0 0
  %3922 = vmatmul.mubr.bf16.gmra.mxu0 %v2322
  %v3923 = vpop.f32.mrf.mxu0
  %v3924 = vadd.f32 %v3091, %v3923
  %v3925 = vpop.f32.mrf.mxu0
  %v3926 = vpop.f32.mrf.mxu0
  %v3927 = vadd.f32 %v3094, %v3926
  %v3928 = vpop.f32.mrf.mxu0
  %3929 = vmatprep.mubr.bf16.mxu0 0
  %3930 = vmatmul.mubr.bf16.gmra.mxu0 %v2325
  %v3931 = vpop.f32.mrf.mxu0
  %v3932 = vadd.f32 %v3099, %v3931
  %v3933 = vpop.f32.mrf.mxu0
  %v3934 = vpop.f32.mrf.mxu0
  %v3935 = vadd.f32 %v3102, %v3934
  %v3936 = vpop.f32.mrf.mxu0
  %3937 = vmatprep.mubr.bf16.mxu0 0
  %3938 = vmatmul.mubr.bf16.gmra.mxu0 %v2328
  %v3939 = vpop.f32.mrf.mxu0
  %v3940 = vadd.f32 %v3107, %v3939
  %v3941 = vpop.f32.mrf.mxu0
  %v3942 = vpop.f32.mrf.mxu0
  %v3943 = vadd.f32 %v3110, %v3942
  %v3944 = vpop.f32.mrf.mxu0
  %3945 = vmatprep.mubr.bf16.mxu0 0
  %3946 = vmatmul.mubr.bf16.gmra.mxu0 %v2331
  %v3947 = vpop.f32.mrf.mxu0
  %v3948 = vadd.f32 %v3115, %v3947
  %v3949 = vpop.f32.mrf.mxu0
  %v3950 = vpop.f32.mrf.mxu0
  %v3951 = vadd.f32 %v3118, %v3950
  %v3952 = vpop.f32.mrf.mxu0
  %3953 = vmatprep.mubr.bf16.mxu0 0
  %3954 = vmatmul.mubr.bf16.gmra.mxu0 %v2334
  %v3955 = vpop.f32.mrf.mxu0
  %v3956 = vadd.f32 %v3123, %v3955
  %v3957 = vpop.f32.mrf.mxu0
  %v3958 = vpop.f32.mrf.mxu0
  %v3959 = vadd.f32 %v3126, %v3958
  %v3960 = vpop.f32.mrf.mxu0
  %3961 = vmatprep.mubr.bf16.mxu0 0
  %3962 = vmatmul.mubr.bf16.gmra.mxu0 %v2337
  %v3963 = vpop.f32.mrf.mxu0
  %v3964 = vadd.f32 %v3131, %v3963
  %v3965 = vpop.f32.mrf.mxu0
  %v3966 = vpop.f32.mrf.mxu0
  %v3967 = vadd.f32 %v3134, %v3966
  %v3968 = vpop.f32.mrf.mxu0
  %3969 = vmatprep.mubr.bf16.mxu0 0
  %3970 = vmatmul.mubr.bf16.gmra.mxu0 %v2340
  %v3971 = vpop.f32.mrf.mxu0
  %v3972 = vadd.f32 %v3139, %v3971
  %v3973 = vpop.f32.mrf.mxu0
  %v3974 = vpop.f32.mrf.mxu0
  %v3975 = vadd.f32 %v3142, %v3974
  %v3976 = vpop.f32.mrf.mxu0
  %3977 = vmatprep.mubr.bf16.mxu0 0
  %3978 = vmatmul.mubr.bf16.gmra.mxu0 %v2343
  %v3979 = vpop.f32.mrf.mxu0
  %v3980 = vadd.f32 %v3147, %v3979
  %v3981 = vpop.f32.mrf.mxu0
  %v3982 = vpop.f32.mrf.mxu0
  %v3983 = vadd.f32 %v3150, %v3982
  %v3984 = vpop.f32.mrf.mxu0
  %3985 = vmatprep.mubr.bf16.mxu0 0
  %3986 = vmatmul.mubr.bf16.gmra.mxu0 %v2346
  %v3987 = vpop.f32.mrf.mxu0
  %v3988 = vadd.f32 %v3155, %v3987
  %v3989 = vpop.f32.mrf.mxu0
  %v3990 = vpop.f32.mrf.mxu0
  %v3991 = vadd.f32 %v3158, %v3990
  %v3992 = vpop.f32.mrf.mxu0
  %3993 = vmatprep.mubr.bf16.mxu0 0
  %3994 = vmatmul.mubr.bf16.gmra.mxu0 %v2349
  %v3995 = vpop.f32.mrf.mxu0
  %v3996 = vadd.f32 %v3163, %v3995
  %v3997 = vpop.f32.mrf.mxu0
  %v3998 = vpop.f32.mrf.mxu0
  %v3999 = vadd.f32 %v3166, %v3998
  %v4000 = vpop.f32.mrf.mxu0
  %4001 = vmatprep.mubr.bf16.mxu0 0
  %4002 = vmatmul.mubr.bf16.gmra.mxu0 %v2352
  %v4003 = vpop.f32.mrf.mxu0
  %v4004 = vadd.f32 %v3171, %v4003
  %v4005 = vpop.f32.mrf.mxu0
  %v4006 = vpop.f32.mrf.mxu0
  %v4007 = vadd.f32 %v3174, %v4006
  %v4008 = vpop.f32.mrf.mxu0
  %4009 = vmatprep.mubr.bf16.mxu0 0
  %4010 = vmatmul.mubr.bf16.gmra.mxu0 %v2355
  %v4011 = vpop.f32.mrf.mxu0
  %v4012 = vadd.f32 %v3179, %v4011
  %v4013 = vpop.f32.mrf.mxu0
  %v4014 = vpop.f32.mrf.mxu0
  %v4015 = vadd.f32 %v3182, %v4014
  %v4016 = vpop.f32.mrf.mxu0
  %4017 = vmatprep.mubr.bf16.mxu0 0
  %4018 = vmatmul.mubr.bf16.gmra.mxu0 %v2358
  %v4019 = vpop.f32.mrf.mxu0
  %v4020 = vadd.f32 %v3187, %v4019
  %v4021 = vpop.f32.mrf.mxu0
  %v4022 = vpop.f32.mrf.mxu0
  %v4023 = vadd.f32 %v3190, %v4022
  %v4024 = vpop.f32.mrf.mxu0
  %4025 = vdwg.mxu0
  %vm4026 = vcmask 523264
  %v4027 = vsel %vm4026, %v3228, -inf
  %v4028 = vsel %vm4026, %v3428, -inf
  %v4029 = vmax.f32 %v4027, %v4028
  %v4030 = vsel %vm4026, %v3628, -inf
  %v4031 = vmax.f32 %v4029, %v4030
  %v4032 = vsel %vm4026, %v3828, -inf
  %v4033 = vmax.f32 %v4031, %v4032
  %v4034 = vsel %vm4026, %v3231, -inf
  %v4035 = vsel %vm4026, %v3431, -inf
  %v4036 = vmax.f32 %v4034, %v4035
  %v4037 = vsel %vm4026, %v3631, -inf
  %v4038 = vmax.f32 %v4036, %v4037
  %v4039 = vsel %vm4026, %v3831, -inf
  %v4040 = vmax.f32 %v4038, %v4039
  %v4041 = vsel %vm4026, %v3236, -inf
  %v4042 = vsel %vm4026, %v3436, -inf
  %v4043 = vmax.f32 %v4041, %v4042
  %v4044 = vsel %vm4026, %v3636, -inf
  %v4045 = vmax.f32 %v4043, %v4044
  %v4046 = vsel %vm4026, %v3836, -inf
  %v4047 = vmax.f32 %v4045, %v4046
  %v4048 = vsel %vm4026, %v3239, -inf
  %v4049 = vsel %vm4026, %v3439, -inf
  %v4050 = vmax.f32 %v4048, %v4049
  %v4051 = vsel %vm4026, %v3639, -inf
  %v4052 = vmax.f32 %v4050, %v4051
  %v4053 = vsel %vm4026, %v3839, -inf
  %v4054 = vmax.f32 %v4052, %v4053
  %v4055 = vsel %vm4026, %v3244, -inf
  %v4056 = vsel %vm4026, %v3444, -inf
  %v4057 = vmax.f32 %v4055, %v4056
  %v4058 = vsel %vm4026, %v3644, -inf
  %v4059 = vmax.f32 %v4057, %v4058
  %v4060 = vsel %vm4026, %v3844, -inf
  %v4061 = vmax.f32 %v4059, %v4060
  %v4062 = vsel %vm4026, %v3247, -inf
  %v4063 = vsel %vm4026, %v3447, -inf
  %v4064 = vmax.f32 %v4062, %v4063
  %v4065 = vsel %vm4026, %v3647, -inf
  %v4066 = vmax.f32 %v4064, %v4065
  %v4067 = vsel %vm4026, %v3847, -inf
  %v4068 = vmax.f32 %v4066, %v4067
  %v4069 = vsel %vm4026, %v3252, -inf
  %v4070 = vsel %vm4026, %v3452, -inf
  %v4071 = vmax.f32 %v4069, %v4070
  %v4072 = vsel %vm4026, %v3652, -inf
  %v4073 = vmax.f32 %v4071, %v4072
  %v4074 = vsel %vm4026, %v3852, -inf
  %v4075 = vmax.f32 %v4073, %v4074
  %v4076 = vsel %vm4026, %v3255, -inf
  %v4077 = vsel %vm4026, %v3455, -inf
  %v4078 = vmax.f32 %v4076, %v4077
  %v4079 = vsel %vm4026, %v3655, -inf
  %v4080 = vmax.f32 %v4078, %v4079
  %v4081 = vsel %vm4026, %v3855, -inf
  %v4082 = vmax.f32 %v4080, %v4081
  %v4083 = vsel %vm4026, %v3260, -inf
  %v4084 = vsel %vm4026, %v3460, -inf
  %v4085 = vmax.f32 %v4083, %v4084
  %v4086 = vsel %vm4026, %v3660, -inf
  %v4087 = vmax.f32 %v4085, %v4086
  %v4088 = vsel %vm4026, %v3860, -inf
  %v4089 = vmax.f32 %v4087, %v4088
  %v4090 = vsel %vm4026, %v3263, -inf
  %v4091 = vsel %vm4026, %v3463, -inf
  %v4092 = vmax.f32 %v4090, %v4091
  %v4093 = vsel %vm4026, %v3663, -inf
  %v4094 = vmax.f32 %v4092, %v4093
  %v4095 = vsel %vm4026, %v3863, -inf
  %v4096 = vmax.f32 %v4094, %v4095
  %v4097 = vsel %vm4026, %v3268, -inf
  %v4098 = vsel %vm4026, %v3468, -inf
  %v4099 = vmax.f32 %v4097, %v4098
  %v4100 = vsel %vm4026, %v3668, -inf
  %v4101 = vmax.f32 %v4099, %v4100
  %v4102 = vsel %vm4026, %v3868, -inf
  %v4103 = vmax.f32 %v4101, %v4102
  %v4104 = vsel %vm4026, %v3271, -inf
  %v4105 = vsel %vm4026, %v3471, -inf
  %v4106 = vmax.f32 %v4104, %v4105
  %v4107 = vsel %vm4026, %v3671, -inf
  %v4108 = vmax.f32 %v4106, %v4107
  %v4109 = vsel %vm4026, %v3871, -inf
  %v4110 = vmax.f32 %v4108, %v4109
  %v4111 = vsel %vm4026, %v3276, -inf
  %v4112 = vsel %vm4026, %v3476, -inf
  %v4113 = vmax.f32 %v4111, %v4112
  %v4114 = vsel %vm4026, %v3676, -inf
  %v4115 = vmax.f32 %v4113, %v4114
  %v4116 = vsel %vm4026, %v3876, -inf
  %v4117 = vmax.f32 %v4115, %v4116
  %v4118 = vsel %vm4026, %v3279, -inf
  %v4119 = vsel %vm4026, %v3479, -inf
  %v4120 = vmax.f32 %v4118, %v4119
  %v4121 = vsel %vm4026, %v3679, -inf
  %v4122 = vmax.f32 %v4120, %v4121
  %v4123 = vsel %vm4026, %v3879, -inf
  %v4124 = vmax.f32 %v4122, %v4123
  %v4125 = vsel %vm4026, %v3284, -inf
  %v4126 = vsel %vm4026, %v3484, -inf
  %v4127 = vmax.f32 %v4125, %v4126
  %v4128 = vsel %vm4026, %v3684, -inf
  %v4129 = vmax.f32 %v4127, %v4128
  %v4130 = vsel %vm4026, %v3884, -inf
  %v4131 = vmax.f32 %v4129, %v4130
  %v4132 = vsel %vm4026, %v3287, -inf
  %v4133 = vsel %vm4026, %v3487, -inf
  %v4134 = vmax.f32 %v4132, %v4133
  %v4135 = vsel %vm4026, %v3687, -inf
  %v4136 = vmax.f32 %v4134, %v4135
  %v4137 = vsel %vm4026, %v3887, -inf
  %v4138 = vmax.f32 %v4136, %v4137
  %v4139 = vsel %vm4026, %v3292, -inf
  %v4140 = vsel %vm4026, %v3492, -inf
  %v4141 = vmax.f32 %v4139, %v4140
  %v4142 = vsel %vm4026, %v3692, -inf
  %v4143 = vmax.f32 %v4141, %v4142
  %v4144 = vsel %vm4026, %v3892, -inf
  %v4145 = vmax.f32 %v4143, %v4144
  %v4146 = vsel %vm4026, %v3295, -inf
  %v4147 = vsel %vm4026, %v3495, -inf
  %v4148 = vmax.f32 %v4146, %v4147
  %v4149 = vsel %vm4026, %v3695, -inf
  %v4150 = vmax.f32 %v4148, %v4149
  %v4151 = vsel %vm4026, %v3895, -inf
  %v4152 = vmax.f32 %v4150, %v4151
  %v4153 = vsel %vm4026, %v3300, -inf
  %v4154 = vsel %vm4026, %v3500, -inf
  %v4155 = vmax.f32 %v4153, %v4154
  %v4156 = vsel %vm4026, %v3700, -inf
  %v4157 = vmax.f32 %v4155, %v4156
  %v4158 = vsel %vm4026, %v3900, -inf
  %v4159 = vmax.f32 %v4157, %v4158
  %v4160 = vsel %vm4026, %v3303, -inf
  %v4161 = vsel %vm4026, %v3503, -inf
  %v4162 = vmax.f32 %v4160, %v4161
  %v4163 = vsel %vm4026, %v3703, -inf
  %v4164 = vmax.f32 %v4162, %v4163
  %v4165 = vsel %vm4026, %v3903, -inf
  %v4166 = vmax.f32 %v4164, %v4165
  %v4167 = vsel %vm4026, %v3308, -inf
  %v4168 = vsel %vm4026, %v3508, -inf
  %v4169 = vmax.f32 %v4167, %v4168
  %v4170 = vsel %vm4026, %v3708, -inf
  %v4171 = vmax.f32 %v4169, %v4170
  %v4172 = vsel %vm4026, %v3908, -inf
  %v4173 = vmax.f32 %v4171, %v4172
  %v4174 = vsel %vm4026, %v3311, -inf
  %v4175 = vsel %vm4026, %v3511, -inf
  %v4176 = vmax.f32 %v4174, %v4175
  %v4177 = vsel %vm4026, %v3711, -inf
  %v4178 = vmax.f32 %v4176, %v4177
  %v4179 = vsel %vm4026, %v3911, -inf
  %v4180 = vmax.f32 %v4178, %v4179
  %v4181 = vsel %vm4026, %v3316, -inf
  %v4182 = vsel %vm4026, %v3516, -inf
  %v4183 = vmax.f32 %v4181, %v4182
  %v4184 = vsel %vm4026, %v3716, -inf
  %v4185 = vmax.f32 %v4183, %v4184
  %v4186 = vsel %vm4026, %v3916, -inf
  %v4187 = vmax.f32 %v4185, %v4186
  %v4188 = vsel %vm4026, %v3319, -inf
  %v4189 = vsel %vm4026, %v3519, -inf
  %v4190 = vmax.f32 %v4188, %v4189
  %v4191 = vsel %vm4026, %v3719, -inf
  %v4192 = vmax.f32 %v4190, %v4191
  %v4193 = vsel %vm4026, %v3919, -inf
  %v4194 = vmax.f32 %v4192, %v4193
  %v4195 = vsel %vm4026, %v3324, -inf
  %v4196 = vsel %vm4026, %v3524, -inf
  %v4197 = vmax.f32 %v4195, %v4196
  %v4198 = vsel %vm4026, %v3724, -inf
  %v4199 = vmax.f32 %v4197, %v4198
  %v4200 = vsel %vm4026, %v3924, -inf
  %v4201 = vmax.f32 %v4199, %v4200
  %v4202 = vsel %vm4026, %v3327, -inf
  %v4203 = vsel %vm4026, %v3527, -inf
  %v4204 = vmax.f32 %v4202, %v4203
  %v4205 = vsel %vm4026, %v3727, -inf
  %v4206 = vmax.f32 %v4204, %v4205
  %v4207 = vsel %vm4026, %v3927, -inf
  %v4208 = vmax.f32 %v4206, %v4207
  %v4209 = vsel %vm4026, %v3332, -inf
  %v4210 = vsel %vm4026, %v3532, -inf
  %v4211 = vmax.f32 %v4209, %v4210
  %v4212 = vsel %vm4026, %v3732, -inf
  %v4213 = vmax.f32 %v4211, %v4212
  %v4214 = vsel %vm4026, %v3932, -inf
  %v4215 = vmax.f32 %v4213, %v4214
  %v4216 = vsel %vm4026, %v3335, -inf
  %v4217 = vsel %vm4026, %v3535, -inf
  %v4218 = vmax.f32 %v4216, %v4217
  %v4219 = vsel %vm4026, %v3735, -inf
  %v4220 = vmax.f32 %v4218, %v4219
  %v4221 = vsel %vm4026, %v3935, -inf
  %v4222 = vmax.f32 %v4220, %v4221
  %v4223 = vsel %vm4026, %v3340, -inf
  %v4224 = vsel %vm4026, %v3540, -inf
  %v4225 = vmax.f32 %v4223, %v4224
  %v4226 = vsel %vm4026, %v3740, -inf
  %v4227 = vmax.f32 %v4225, %v4226
  %v4228 = vsel %vm4026, %v3940, -inf
  %v4229 = vmax.f32 %v4227, %v4228
  %v4230 = vsel %vm4026, %v3343, -inf
  %v4231 = vsel %vm4026, %v3543, -inf
  %v4232 = vmax.f32 %v4230, %v4231
  %v4233 = vsel %vm4026, %v3743, -inf
  %v4234 = vmax.f32 %v4232, %v4233
  %v4235 = vsel %vm4026, %v3943, -inf
  %v4236 = vmax.f32 %v4234, %v4235
  %v4237 = vsel %vm4026, %v3348, -inf
  %v4238 = vsel %vm4026, %v3548, -inf
  %v4239 = vmax.f32 %v4237, %v4238
  %v4240 = vsel %vm4026, %v3748, -inf
  %v4241 = vmax.f32 %v4239, %v4240
  %v4242 = vsel %vm4026, %v3948, -inf
  %v4243 = vmax.f32 %v4241, %v4242
  %v4244 = vsel %vm4026, %v3351, -inf
  %v4245 = vsel %vm4026, %v3551, -inf
  %v4246 = vmax.f32 %v4244, %v4245
  %v4247 = vsel %vm4026, %v3751, -inf
  %v4248 = vmax.f32 %v4246, %v4247
  %v4249 = vsel %vm4026, %v3951, -inf
  %v4250 = vmax.f32 %v4248, %v4249
  %v4251 = vsel %vm4026, %v3356, -inf
  %v4252 = vsel %vm4026, %v3556, -inf
  %v4253 = vmax.f32 %v4251, %v4252
  %v4254 = vsel %vm4026, %v3756, -inf
  %v4255 = vmax.f32 %v4253, %v4254
  %v4256 = vsel %vm4026, %v3956, -inf
  %v4257 = vmax.f32 %v4255, %v4256
  %v4258 = vsel %vm4026, %v3359, -inf
  %v4259 = vsel %vm4026, %v3559, -inf
  %v4260 = vmax.f32 %v4258, %v4259
  %v4261 = vsel %vm4026, %v3759, -inf
  %v4262 = vmax.f32 %v4260, %v4261
  %v4263 = vsel %vm4026, %v3959, -inf
  %v4264 = vmax.f32 %v4262, %v4263
  %v4265 = vsel %vm4026, %v3364, -inf
  %v4266 = vsel %vm4026, %v3564, -inf
  %v4267 = vmax.f32 %v4265, %v4266
  %v4268 = vsel %vm4026, %v3764, -inf
  %v4269 = vmax.f32 %v4267, %v4268
  %v4270 = vsel %vm4026, %v3964, -inf
  %v4271 = vmax.f32 %v4269, %v4270
  %v4272 = vsel %vm4026, %v3367, -inf
  %v4273 = vsel %vm4026, %v3567, -inf
  %v4274 = vmax.f32 %v4272, %v4273
  %v4275 = vsel %vm4026, %v3767, -inf
  %v4276 = vmax.f32 %v4274, %v4275
  %v4277 = vsel %vm4026, %v3967, -inf
  %v4278 = vmax.f32 %v4276, %v4277
  %v4279 = vsel %vm4026, %v3372, -inf
  %v4280 = vsel %vm4026, %v3572, -inf
  %v4281 = vmax.f32 %v4279, %v4280
  %v4282 = vsel %vm4026, %v3772, -inf
  %v4283 = vmax.f32 %v4281, %v4282
  %v4284 = vsel %vm4026, %v3972, -inf
  %v4285 = vmax.f32 %v4283, %v4284
  %v4286 = vsel %vm4026, %v3375, -inf
  %v4287 = vsel %vm4026, %v3575, -inf
  %v4288 = vmax.f32 %v4286, %v4287
  %v4289 = vsel %vm4026, %v3775, -inf
  %v4290 = vmax.f32 %v4288, %v4289
  %v4291 = vsel %vm4026, %v3975, -inf
  %v4292 = vmax.f32 %v4290, %v4291
  %v4293 = vsel %vm4026, %v3380, -inf
  %v4294 = vsel %vm4026, %v3580, -inf
  %v4295 = vmax.f32 %v4293, %v4294
  %v4296 = vsel %vm4026, %v3780, -inf
  %v4297 = vmax.f32 %v4295, %v4296
  %v4298 = vsel %vm4026, %v3980, -inf
  %v4299 = vmax.f32 %v4297, %v4298
  %v4300 = vsel %vm4026, %v3383, -inf
  %v4301 = vsel %vm4026, %v3583, -inf
  %v4302 = vmax.f32 %v4300, %v4301
  %v4303 = vsel %vm4026, %v3783, -inf
  %v4304 = vmax.f32 %v4302, %v4303
  %v4305 = vsel %vm4026, %v3983, -inf
  %v4306 = vmax.f32 %v4304, %v4305
  %v4307 = vsel %vm4026, %v3388, -inf
  %v4308 = vsel %vm4026, %v3588, -inf
  %v4309 = vmax.f32 %v4307, %v4308
  %v4310 = vsel %vm4026, %v3788, -inf
  %v4311 = vmax.f32 %v4309, %v4310
  %v4312 = vsel %vm4026, %v3988, -inf
  %v4313 = vmax.f32 %v4311, %v4312
  %v4314 = vsel %vm4026, %v3391, -inf
  %v4315 = vsel %vm4026, %v3591, -inf
  %v4316 = vmax.f32 %v4314, %v4315
  %v4317 = vsel %vm4026, %v3791, -inf
  %v4318 = vmax.f32 %v4316, %v4317
  %v4319 = vsel %vm4026, %v3991, -inf
  %v4320 = vmax.f32 %v4318, %v4319
  %v4321 = vsel %vm4026, %v3396, -inf
  %v4322 = vsel %vm4026, %v3596, -inf
  %v4323 = vmax.f32 %v4321, %v4322
  %v4324 = vsel %vm4026, %v3796, -inf
  %v4325 = vmax.f32 %v4323, %v4324
  %v4326 = vsel %vm4026, %v3996, -inf
  %v4327 = vmax.f32 %v4325, %v4326
  %v4328 = vsel %vm4026, %v3399, -inf
  %v4329 = vsel %vm4026, %v3599, -inf
  %v4330 = vmax.f32 %v4328, %v4329
  %v4331 = vsel %vm4026, %v3799, -inf
  %v4332 = vmax.f32 %v4330, %v4331
  %v4333 = vsel %vm4026, %v3999, -inf
  %v4334 = vmax.f32 %v4332, %v4333
  %v4335 = vsel %vm4026, %v3404, -inf
  %v4336 = vsel %vm4026, %v3604, -inf
  %v4337 = vmax.f32 %v4335, %v4336
  %v4338 = vsel %vm4026, %v3804, -inf
  %v4339 = vmax.f32 %v4337, %v4338
  %v4340 = vsel %vm4026, %v4004, -inf
  %v4341 = vmax.f32 %v4339, %v4340
  %v4342 = vsel %vm4026, %v3407, -inf
  %v4343 = vsel %vm4026, %v3607, -inf
  %v4344 = vmax.f32 %v4342, %v4343
  %v4345 = vsel %vm4026, %v3807, -inf
  %v4346 = vmax.f32 %v4344, %v4345
  %v4347 = vsel %vm4026, %v4007, -inf
  %v4348 = vmax.f32 %v4346, %v4347
  %v4349 = vsel %vm4026, %v3412, -inf
  %v4350 = vsel %vm4026, %v3612, -inf
  %v4351 = vmax.f32 %v4349, %v4350
  %v4352 = vsel %vm4026, %v3812, -inf
  %v4353 = vmax.f32 %v4351, %v4352
  %v4354 = vsel %vm4026, %v4012, -inf
  %v4355 = vmax.f32 %v4353, %v4354
  %v4356 = vsel %vm4026, %v3415, -inf
  %v4357 = vsel %vm4026, %v3615, -inf
  %v4358 = vmax.f32 %v4356, %v4357
  %v4359 = vsel %vm4026, %v3815, -inf
  %v4360 = vmax.f32 %v4358, %v4359
  %v4361 = vsel %vm4026, %v4015, -inf
  %v4362 = vmax.f32 %v4360, %v4361
  %v4363 = vsel %vm4026, %v3420, -inf
  %v4364 = vsel %vm4026, %v3620, -inf
  %v4365 = vmax.f32 %v4363, %v4364
  %v4366 = vsel %vm4026, %v3820, -inf
  %v4367 = vmax.f32 %v4365, %v4366
  %v4368 = vsel %vm4026, %v4020, -inf
  %v4369 = vmax.f32 %v4367, %v4368
  %v4370 = vsel %vm4026, %v3423, -inf
  %v4371 = vsel %vm4026, %v3623, -inf
  %v4372 = vmax.f32 %v4370, %v4371
  %v4373 = vsel %vm4026, %v3823, -inf
  %v4374 = vmax.f32 %v4372, %v4373
  %v4375 = vsel %vm4026, %v4023, -inf
  %v4376 = vmax.f32 %v4374, %v4375
  %v4377 = vld [vmem:[%s2] sm:$0x1]
  %v4379 = vlaneseq
  %v4380 = vshrl.u32 %v4379, 7
  %v4381 = vsub.s32 0, %v4380
  %v4382 = vrot.slane %v4377, %v4381
  %v4384 = vadd.f32 %v4033, %v4382
  %v4385 = vadd.f32 %v4040, %v4382
  %v4386 = vadd.f32 %v4047, %v4382
  %v4387 = vadd.f32 %v4054, %v4382
  %v4388 = vadd.f32 %v4061, %v4382
  %v4389 = vadd.f32 %v4068, %v4382
  %v4390 = vadd.f32 %v4075, %v4382
  %v4391 = vadd.f32 %v4082, %v4382
  %v4392 = vadd.f32 %v4089, %v4382
  %v4393 = vadd.f32 %v4096, %v4382
  %v4394 = vadd.f32 %v4103, %v4382
  %v4395 = vadd.f32 %v4110, %v4382
  %v4396 = vadd.f32 %v4117, %v4382
  %v4397 = vadd.f32 %v4124, %v4382
  %v4398 = vadd.f32 %v4131, %v4382
  %v4399 = vadd.f32 %v4138, %v4382
  %v4400 = vadd.f32 %v4145, %v4382
  %v4401 = vadd.f32 %v4152, %v4382
  %v4402 = vadd.f32 %v4159, %v4382
  %v4403 = vadd.f32 %v4166, %v4382
  %v4404 = vadd.f32 %v4173, %v4382
  %v4405 = vadd.f32 %v4180, %v4382
  %v4406 = vadd.f32 %v4187, %v4382
  %v4407 = vadd.f32 %v4194, %v4382
  %v4408 = vadd.f32 %v4201, %v4382
  %v4409 = vadd.f32 %v4208, %v4382
  %v4410 = vadd.f32 %v4215, %v4382
  %v4411 = vadd.f32 %v4222, %v4382
  %v4412 = vadd.f32 %v4229, %v4382
  %v4413 = vadd.f32 %v4236, %v4382
  %v4414 = vadd.f32 %v4243, %v4382
  %v4415 = vadd.f32 %v4250, %v4382
  %v4416 = vadd.f32 %v4257, %v4382
  %v4417 = vadd.f32 %v4264, %v4382
  %v4418 = vadd.f32 %v4271, %v4382
  %v4419 = vadd.f32 %v4278, %v4382
  %v4420 = vadd.f32 %v4285, %v4382
  %v4421 = vadd.f32 %v4292, %v4382
  %v4422 = vadd.f32 %v4299, %v4382
  %v4423 = vadd.f32 %v4306, %v4382
  %v4424 = vadd.f32 %v4313, %v4382
  %v4425 = vadd.f32 %v4320, %v4382
  %v4426 = vadd.f32 %v4327, %v4382
  %v4427 = vadd.f32 %v4334, %v4382
  %v4428 = vadd.f32 %v4341, %v4382
  %v4429 = vadd.f32 %v4348, %v4382
  %v4430 = vadd.f32 %v4355, %v4382
  %v4431 = vadd.f32 %v4362, %v4382
  %v4432 = vadd.f32 %v4369, %v4382
  %v4433 = vadd.f32 %v4376, %v4382
  %v4434 = vmax.f32 %v4384, 0.0
  %v4435 = vmax.f32 %v4385, 0.0
  %v4436 = vmax.f32 %v4386, 0.0
  %v4437 = vmax.f32 %v4387, 0.0
  %v4438 = vmax.f32 %v4388, 0.0
  %v4439 = vmax.f32 %v4389, 0.0
  %v4440 = vmax.f32 %v4390, 0.0
  %v4441 = vmax.f32 %v4391, 0.0
  %v4442 = vmax.f32 %v4392, 0.0
  %v4443 = vmax.f32 %v4393, 0.0
  %v4444 = vmax.f32 %v4394, 0.0
  %v4445 = vmax.f32 %v4395, 0.0
  %v4446 = vmax.f32 %v4396, 0.0
  %v4447 = vmax.f32 %v4397, 0.0
  %v4448 = vmax.f32 %v4398, 0.0
  %v4449 = vmax.f32 %v4399, 0.0
  %v4450 = vmax.f32 %v4400, 0.0
  %v4451 = vmax.f32 %v4401, 0.0
  %v4452 = vmax.f32 %v4402, 0.0
  %v4453 = vmax.f32 %v4403, 0.0
  %v4454 = vmax.f32 %v4404, 0.0
  %v4455 = vmax.f32 %v4405, 0.0
  %v4456 = vmax.f32 %v4406, 0.0
  %v4457 = vmax.f32 %v4407, 0.0
  %v4458 = vmax.f32 %v4408, 0.0
  %v4459 = vmax.f32 %v4409, 0.0
  %v4460 = vmax.f32 %v4410, 0.0
  %v4461 = vmax.f32 %v4411, 0.0
  %v4462 = vmax.f32 %v4412, 0.0
  %v4463 = vmax.f32 %v4413, 0.0
  %v4464 = vmax.f32 %v4414, 0.0
  %v4465 = vmax.f32 %v4415, 0.0
  %v4466 = vmax.f32 %v4416, 0.0
  %v4467 = vmax.f32 %v4417, 0.0
  %v4468 = vmax.f32 %v4418, 0.0
  %v4469 = vmax.f32 %v4419, 0.0
  %v4470 = vmax.f32 %v4420, 0.0
  %v4471 = vmax.f32 %v4421, 0.0
  %v4472 = vmax.f32 %v4422, 0.0
  %v4473 = vmax.f32 %v4423, 0.0
  %v4474 = vmax.f32 %v4424, 0.0
  %v4475 = vmax.f32 %v4425, 0.0
  %v4476 = vmax.f32 %v4426, 0.0
  %v4477 = vmax.f32 %v4427, 0.0
  %v4478 = vmax.f32 %v4428, 0.0
  %v4479 = vmax.f32 %v4429, 0.0
  %v4480 = vmax.f32 %v4430, 0.0
  %v4481 = vmax.f32 %v4431, 0.0
  %v4482 = vmax.f32 %v4432, 0.0
  %v4483 = vmax.f32 %v4433, 0.0
  %v4484 = vpack.c.bf16 %v4435, %v4434
  %v4485 = vpack.c.bf16 %v4437, %v4436
  %v4486 = vpack.c.bf16 %v4439, %v4438
  %v4487 = vpack.c.bf16 %v4441, %v4440
  %v4488 = vpack.c.bf16 %v4443, %v4442
  %v4489 = vpack.c.bf16 %v4445, %v4444
  %v4490 = vpack.c.bf16 %v4447, %v4446
  %v4491 = vpack.c.bf16 %v4449, %v4448
  %v4492 = vpack.c.bf16 %v4451, %v4450
  %v4493 = vpack.c.bf16 %v4453, %v4452
  %v4494 = vpack.c.bf16 %v4455, %v4454
  %v4495 = vpack.c.bf16 %v4457, %v4456
  %v4496 = vpack.c.bf16 %v4459, %v4458
  %v4497 = vpack.c.bf16 %v4461, %v4460
  %v4498 = vpack.c.bf16 %v4463, %v4462
  %v4499 = vpack.c.bf16 %v4465, %v4464
  %v4500 = vpack.c.bf16 %v4467, %v4466
  %v4501 = vpack.c.bf16 %v4469, %v4468
  %v4502 = vpack.c.bf16 %v4471, %v4470
  %v4503 = vpack.c.bf16 %v4473, %v4472
  %v4504 = vpack.c.bf16 %v4475, %v4474
  %v4505 = vpack.c.bf16 %v4477, %v4476
  %v4506 = vpack.c.bf16 %v4479, %v4478
  %v4507 = vpack.c.bf16 %v4481, %v4480
  %v4508 = vpack.c.bf16 %v4483, %v4482
  %v4534 = vunpack.c.l.b16 %v4484
  %v4535 = vunpack.c.h.b16 %v4484
  %v4536 = vunpack.c.l.b16 %v4485
  %v4537 = vunpack.c.h.b16 %v4485
  %v4538 = vunpack.c.l.b16 %v4486
  %v4539 = vunpack.c.h.b16 %v4486
  %v4540 = vunpack.c.l.b16 %v4487
  %v4541 = vunpack.c.h.b16 %v4487
  %v4542 = vunpack.c.l.b16 %v4488
  %v4543 = vunpack.c.h.b16 %v4488
  %v4544 = vunpack.c.l.b16 %v4489
  %v4545 = vunpack.c.h.b16 %v4489
  %v4546 = vunpack.c.l.b16 %v4490
  %v4547 = vunpack.c.h.b16 %v4490
  %v4548 = vunpack.c.l.b16 %v4491
  %v4549 = vunpack.c.h.b16 %v4491
  %v4550 = vunpack.c.l.b16 %v4492
  %v4551 = vunpack.c.h.b16 %v4492
  %v4552 = vunpack.c.l.b16 %v4493
  %v4553 = vunpack.c.h.b16 %v4493
  %v4554 = vunpack.c.l.b16 %v4494
  %v4555 = vunpack.c.h.b16 %v4494
  %v4556 = vunpack.c.l.b16 %v4495
  %v4557 = vunpack.c.h.b16 %v4495
  %v4558 = vunpack.c.l.b16 %v4496
  %v4559 = vunpack.c.h.b16 %v4496
  %v4560 = vunpack.c.l.b16 %v4497
  %v4561 = vunpack.c.h.b16 %v4497
  %v4562 = vunpack.c.l.b16 %v4498
  %v4563 = vunpack.c.h.b16 %v4498
  %v4564 = vunpack.c.l.b16 %v4499
  %v4565 = vunpack.c.h.b16 %v4499
  %v4566 = vunpack.c.l.b16 %v4500
  %v4567 = vunpack.c.h.b16 %v4500
  %v4568 = vunpack.c.l.b16 %v4501
  %v4569 = vunpack.c.h.b16 %v4501
  %v4570 = vunpack.c.l.b16 %v4502
  %v4571 = vunpack.c.h.b16 %v4502
  %v4572 = vunpack.c.l.b16 %v4503
  %v4573 = vunpack.c.h.b16 %v4503
  %v4574 = vunpack.c.l.b16 %v4504
  %v4575 = vunpack.c.h.b16 %v4504
  %v4576 = vunpack.c.l.b16 %v4505
  %v4577 = vunpack.c.h.b16 %v4505
  %v4578 = vunpack.c.l.b16 %v4506
  %v4579 = vunpack.c.h.b16 %v4506
  %v4580 = vunpack.c.l.b16 %v4507
  %v4581 = vunpack.c.h.b16 %v4507
  %v4582 = vunpack.c.l.b16 %v4508
  %v4583 = vunpack.c.h.b16 %v4508
  %v4584 = vpack.c.b16 %v4534, %v4534
  %v4585 = vpack.c.b16 %v4535, %v4535
  %v4586 = vpack.c.b16 %v4536, %v4536
  %v4587 = vpack.c.b16 %v4537, %v4537
  %v4588 = vpack.c.b16 %v4538, %v4538
  %v4589 = vpack.c.b16 %v4539, %v4539
  %v4590 = vpack.c.b16 %v4540, %v4540
  %v4591 = vpack.c.b16 %v4541, %v4541
  %v4592 = vpack.c.b16 %v4542, %v4542
  %v4593 = vpack.c.b16 %v4543, %v4543
  %v4594 = vpack.c.b16 %v4544, %v4544
  %v4595 = vpack.c.b16 %v4545, %v4545
  %v4596 = vpack.c.b16 %v4546, %v4546
  %v4597 = vpack.c.b16 %v4547, %v4547
  %v4598 = vpack.c.b16 %v4548, %v4548
  %v4599 = vpack.c.b16 %v4549, %v4549
  %v4600 = vpack.c.b16 %v4550, %v4550
  %v4601 = vpack.c.b16 %v4551, %v4551
  %v4602 = vpack.c.b16 %v4552, %v4552
  %v4603 = vpack.c.b16 %v4553, %v4553
  %v4604 = vpack.c.b16 %v4554, %v4554
  %v4605 = vpack.c.b16 %v4555, %v4555
  %v4606 = vpack.c.b16 %v4556, %v4556
  %v4607 = vpack.c.b16 %v4557, %v4557
  %v4608 = vpack.c.b16 %v4558, %v4558
  %v4609 = vpack.c.b16 %v4559, %v4559
  %v4610 = vpack.c.b16 %v4560, %v4560
  %v4611 = vpack.c.b16 %v4561, %v4561
  %v4612 = vpack.c.b16 %v4562, %v4562
  %v4613 = vpack.c.b16 %v4563, %v4563
  %v4614 = vpack.c.b16 %v4564, %v4564
  %v4615 = vpack.c.b16 %v4565, %v4565
  %v4616 = vpack.c.b16 %v4566, %v4566
  %v4617 = vpack.c.b16 %v4567, %v4567
  %v4618 = vpack.c.b16 %v4568, %v4568
  %v4619 = vpack.c.b16 %v4569, %v4569
  %v4620 = vpack.c.b16 %v4570, %v4570
  %v4621 = vpack.c.b16 %v4571, %v4571
  %v4622 = vpack.c.b16 %v4572, %v4572
  %v4623 = vpack.c.b16 %v4573, %v4573
  %v4624 = vpack.c.b16 %v4574, %v4574
  %v4625 = vpack.c.b16 %v4575, %v4575
  %v4626 = vpack.c.b16 %v4576, %v4576
  %v4627 = vpack.c.b16 %v4577, %v4577
  %v4628 = vpack.c.b16 %v4578, %v4578
  %v4629 = vpack.c.b16 %v4579, %v4579
  %v4630 = vpack.c.b16 %v4580, %v4580
  %v4631 = vpack.c.b16 %v4581, %v4581
  %v4632 = vpack.c.b16 %v4582, %v4582
  %v4633 = vpack.c.b16 %v4583, %v4583
  %vm4684 = vcmask 519168
  %4685 = vst.msk [vmem:[%s3] sm:$0xf] %vm4684, %v4584
  %4686 = vst.msk [vmem:[%s3 + $0x4] sm:$0xf] %vm4684, %v4585
  %4687 = vst.msk [vmem:[%s3 + $0x8] sm:$0xf] %vm4684, %v4586
  %4688 = vst.msk [vmem:[%s3 + $0xc] sm:$0xf] %vm4684, %v4587
  %4689 = vst.msk [vmem:[%s3 + $0x10] sm:$0xf] %vm4684, %v4588
  %4690 = vst.msk [vmem:[%s3 + $0x14] sm:$0xf] %vm4684, %v4589
  %4691 = vst.msk [vmem:[%s3 + $0x18] sm:$0xf] %vm4684, %v4590
  %4692 = vst.msk [vmem:[%s3 + $0x1c] sm:$0xf] %vm4684, %v4591
  %4693 = vst.msk [vmem:[%s3 + $0x20] sm:$0xf] %vm4684, %v4592
  %4694 = vst.msk [vmem:[%s3 + $0x24] sm:$0xf] %vm4684, %v4593
  %4695 = vst.msk [vmem:[%s3 + $0x28] sm:$0xf] %vm4684, %v4594
  %4696 = vst.msk [vmem:[%s3 + $0x2c] sm:$0xf] %vm4684, %v4595
  %4697 = vst.msk [vmem:[%s3 + $0x30] sm:$0xf] %vm4684, %v4596
  %4698 = vst.msk [vmem:[%s3 + $0x34] sm:$0xf] %vm4684, %v4597
  %4699 = vst.msk [vmem:[%s3 + $0x38] sm:$0xf] %vm4684, %v4598
  %4700 = vst.msk [vmem:[%s3 + $0x3c] sm:$0xf] %vm4684, %v4599
  %4701 = vst.msk [vmem:[%s3 + $0x40] sm:$0xf] %vm4684, %v4600
  %4702 = vst.msk [vmem:[%s3 + $0x44] sm:$0xf] %vm4684, %v4601
  %4703 = vst.msk [vmem:[%s3 + $0x48] sm:$0xf] %vm4684, %v4602
  %4704 = vst.msk [vmem:[%s3 + $0x4c] sm:$0xf] %vm4684, %v4603
  %4705 = vst.msk [vmem:[%s3 + $0x50] sm:$0xf] %vm4684, %v4604
  %4706 = vst.msk [vmem:[%s3 + $0x54] sm:$0xf] %vm4684, %v4605
  %4707 = vst.msk [vmem:[%s3 + $0x58] sm:$0xf] %vm4684, %v4606
  %4708 = vst.msk [vmem:[%s3 + $0x5c] sm:$0xf] %vm4684, %v4607
  %4709 = vst.msk [vmem:[%s3 + $0x60] sm:$0xf] %vm4684, %v4608
  %4710 = vst.msk [vmem:[%s3 + $0x64] sm:$0xf] %vm4684, %v4609
  %4711 = vst.msk [vmem:[%s3 + $0x68] sm:$0xf] %vm4684, %v4610
  %4712 = vst.msk [vmem:[%s3 + $0x6c] sm:$0xf] %vm4684, %v4611
  %4713 = vst.msk [vmem:[%s3 + $0x70] sm:$0xf] %vm4684, %v4612
  %4714 = vst.msk [vmem:[%s3 + $0x74] sm:$0xf] %vm4684, %v4613
  %4715 = vst.msk [vmem:[%s3 + $0x78] sm:$0xf] %vm4684, %v4614
  %4716 = vst.msk [vmem:[%s3 + $0x7c] sm:$0xf] %vm4684, %v4615
  %4717 = vst.msk [vmem:[%s3 + $0x80] sm:$0xf] %vm4684, %v4616
  %4718 = vst.msk [vmem:[%s3 + $0x84] sm:$0xf] %vm4684, %v4617
  %4719 = vst.msk [vmem:[%s3 + $0x88] sm:$0xf] %vm4684, %v4618
  %4720 = vst.msk [vmem:[%s3 + $0x8c] sm:$0xf] %vm4684, %v4619
  %4721 = vst.msk [vmem:[%s3 + $0x90] sm:$0xf] %vm4684, %v4620
  %4722 = vst.msk [vmem:[%s3 + $0x94] sm:$0xf] %vm4684, %v4621
  %4723 = vst.msk [vmem:[%s3 + $0x98] sm:$0xf] %vm4684, %v4622
  %4724 = vst.msk [vmem:[%s3 + $0x9c] sm:$0xf] %vm4684, %v4623
  %4725 = vst.msk [vmem:[%s3 + $0xa0] sm:$0xf] %vm4684, %v4624
  %4726 = vst.msk [vmem:[%s3 + $0xa4] sm:$0xf] %vm4684, %v4625
  %4727 = vst.msk [vmem:[%s3 + $0xa8] sm:$0xf] %vm4684, %v4626
  %4728 = vst.msk [vmem:[%s3 + $0xac] sm:$0xf] %vm4684, %v4627
  %4729 = vst.msk [vmem:[%s3 + $0xb0] sm:$0xf] %vm4684, %v4628
  %4730 = vst.msk [vmem:[%s3 + $0xb4] sm:$0xf] %vm4684, %v4629
  %4731 = vst.msk [vmem:[%s3 + $0xb8] sm:$0xf] %vm4684, %v4630
  %4732 = vst.msk [vmem:[%s3 + $0xbc] sm:$0xf] %vm4684, %v4631
  %4733 = vst.msk [vmem:[%s3 + $0xc0] sm:$0xf] %vm4684, %v4632
  %4734 = vst.msk [vmem:[%s3 + $0xc4] sm:$0xf] %vm4684, %v4633
  // Predicated region
  $region14: #{net_forward.4} parent=0 // pred_check
    _
  $region15: #{net_forward.4} parent=0 // pred_check_branch
    %4736 = sbr.rel (0) target = $region17
  $region16: #{net_forward.4} parent=0 // pred_region
    _
  $region17: #{net_forward.4} parent=0 // pred_fallthru
    _
  // Predicated region
  $region18: #{net_forward.4} parent=0 // pred_check
    _
  $region19: #{net_forward.4} parent=0 // pred_check_branch
    %4738 = sbr.rel (0) target = $region21
  $region20: #{net_forward.4} parent=0 // pred_region
    _
  $region21: #{net_forward.4} parent=0 // pred_fallthru
    _

</llo_original>
